<compile_context>
chip_gen: v7x
topology: tpu7x:2x2x1
jax: 0.10.0
libtpu: 0.0.40
codegen_flags: <defaults>
</compile_context>

<pallas_src>
import math

import numpy as np
import jax
import jax.numpy as jnp
from jax.experimental import pallas as pl
from jax.experimental.pallas import tpu as pltpu


# ---------------------------------------------------------------------------
# Pallas kernel: one region tile (R regions x P points) per inner grid step,
# channel tiles on the outer grid axis.
# ---------------------------------------------------------------------------
def _make_region_kernel(H, W, P, R, HW):
    inv_p = 1.0 / float(P)

    def kernel(tile_ids_ref, coords_ref, feat_ref, out_ref):
        # tile_ids_ref : SMEM (num_tiles,) int32 (scalar prefetch; index_map only)
        # coords_ref   : VMEM (R, 2P)  rows = [x_0..x_{P-1}, y_0..y_{P-1}] in [0,1]
        # feat_ref     : VMEM (HW, TC) feature slab of this tile's image
        # out_ref      : VMEM (R, TC)  pooled region features (lane-dense)
        del tile_ids_ref

        c = coords_ref[...].astype(jnp.float32)              # (R, 2P)
        # grid_sample(align_corners=True) with grid = 2*coord - 1
        #   => pixel coordinate = coord * (size - 1)
        x = c[:, 0:P] * (W - 1.0)                            # (R, P) width index
        y = c[:, P:2 * P] * (H - 1.0)                        # (R, P) height index

        x0 = jnp.clip(jnp.floor(x), 0.0, W - 1.0)
        y0 = jnp.clip(jnp.floor(y), 0.0, H - 1.0)
        x1 = jnp.minimum(x0 + 1.0, W - 1.0)
        y1 = jnp.minimum(y0 + 1.0, H - 1.0)

        wx1 = x - x0
        wx0 = 1.0 - wx1
        wy1 = y - y0
        wy0 = 1.0 - wy1

        x0i = x0.astype(jnp.int32)
        x1i = x1.astype(jnp.int32)
        y0i = y0.astype(jnp.int32)
        y1i = y1.astype(jnp.int32)
        # flat HW indices of the 4 bilinear corners, (R, P)
        i00 = y0i * W + x0i
        i01 = y0i * W + x1i
        i10 = y1i * W + x0i
        i11 = y1i * W + x1i
        # fold the AdaptiveAvgPool1d(1) mean (1/P) into the corner weights
        w00 = wy0 * wx0 * inv_p
        w01 = wy0 * wx1 * inv_p
        w10 = wy1 * wx0 * inv_p
        w11 = wy1 * wx1 * inv_p

        lane = jax.lax.broadcasted_iota(jnp.int32, (R, HW), 1)

        # Accumulate the folded (R, HW) weight matrix point by point: the live
        # intermediate stays at R*HW (never R*P*HW).
        w = None
        for p in range(P):                                   # P is small & static
            sl = slice(p, p + 1)
            contrib = (jnp.where(lane == i00[:, sl], w00[:, sl], 0.0)
                       + jnp.where(lane == i01[:, sl], w01[:, sl], 0.0)
                       + jnp.where(lane == i10[:, sl], w10[:, sl], 0.0)
                       + jnp.where(lane == i11[:, sl], w11[:, sl], 0.0))
            w = contrib if w is None else w + contrib        # (R, HW) f32

        feat = feat_ref[...]                                 # (HW, TC)
        if feat.dtype == jnp.bfloat16:
            # bf16 x bf16 runs a full-rate MXU pass; accumulation stays f32.
            w = w.astype(jnp.bfloat16)
        pooled = jnp.dot(w, feat, preferred_element_type=jnp.float32)
        out_ref[...] = pooled.astype(out_ref.dtype)

    return kernel


# ---------------------------------------------------------------------------
# Generation-aware VMEM sizing.
# ---------------------------------------------------------------------------
def _vmem_capacity_bytes():
    try:
        info = pltpu.get_tpu_info()
        cap = getattr(info, "vmem_capacity_bytes", None)
        if cap:
            return int(cap)
    except Exception:
        pass
    return 64 * 1024 * 1024   # conservative fallback (v7x per-TC physical)


def _pick_c_tile(HW, C, itemsize, budget_bytes):
    """Largest channel tile whose (HW, TC) feature block fits the per-buffer
    budget.  Prefers TC == C (num_c == 1) whenever it fits."""
    if HW * C * itemsize <= budget_bytes:
        return C
    cands = [t for t in range(128, C, 128)
             if C % t == 0 and HW * t * itemsize <= budget_bytes]
    if cands:
        return max(cands)
    # TODO(synk): pad C / support non-divisor tiles; the fallback may exceed
    # the per-buffer budget for large HW*C with awkward C.
    return C


def region_sample_and_pool(coords_packed, feat_stack, tile_img_ids, *, H, W,
                           num_sample_point, regions_per_tile,
                           return_dtype=jnp.float32):
    """coords_packed: (Npad, 2P) f32 rows [x_0..x_{P-1}, y_0..y_{P-1}] in [0,1],
    regions grouped by image and padded per image to a multiple of R.
    feat_stack: (B, HW, C) (dtype preserved).  tile_img_ids: (num_tiles,) i32.
    Returns pooled region features (Npad, C) in return_dtype."""
    P = num_sample_point
    R = regions_per_tile
    B, HW, C = feat_stack.shape
    assert H * W == HW
    assert R % 8 == 0
    Npad, twoP = coords_packed.shape
    assert twoP == 2 * P and Npad % R == 0
    num_tiles = Npad // R
    assert tile_img_ids.shape == (num_tiles,)

    itemsize = jnp.dtype(feat_stack.dtype).itemsize
    out_itemsize = jnp.dtype(return_dtype).itemsize

    # Scoped VMEM limit ~= 3/4 of physical (v5e/v6e -> ~96 MiB, v7x -> 48 MiB);
    # feature-tile budget = remainder after weight-build temporaries, output
    # and coords blocks, split over the two pipeline buffers.
    vmem_cap = _vmem_capacity_bytes()
    vmem_limit = min(int(vmem_cap * 3 // 4), 100 * 1024 * 1024)
    reserve = (3 * R * HW * 4            # (R, HW) f32 weight accumulation temps
               + 2 * R * 2 * P * 4       # coords blocks (double buffered)
               + 2 * R * C * out_itemsize  # output blocks (double buffered)
               + (1 << 20))              # slack
    feat_budget = max(1 << 20, (vmem_limit - reserve) // 2)
    TC = _pick_c_tile(HW, C, itemsize, feat_budget)
    num_c = max(1, C // TC)

    kernel = _make_region_kernel(H, W, P, R, HW)

    grid_spec = pltpu.PrefetchScalarGridSpec(
        num_scalar_prefetch=1,
        # Channel axis OUTER: for a fixed channel tile, consecutive region
        # tiles of the same image keep the feature block resident (block
        # index unchanged => no re-DMA), so each image's feature map is
        # streamed from HBM exactly once overall.
        grid=(num_c, num_tiles),
        in_specs=[
            pl.BlockSpec((R, 2 * P), lambda c, t, tids: (t, 0)),
            pl.BlockSpec((None, HW, TC), lambda c, t, tids: (tids[t], 0, c)),
        ],
        out_specs=pl.BlockSpec((R, TC), lambda c, t, tids: (t, c)),
    )

    cost = pl.CostEstimate(
        flops=int(2 * num_c * num_tiles * R * HW * TC        # pooled matmul
                  + 12 * num_c * num_tiles * R * HW * P),    # weight build
        transcendentals=0,
        bytes_accessed=int(B * HW * C * itemsize
                           + Npad * 2 * P * 4
                           + Npad * C * out_itemsize),
    )

    pooled = pl.pallas_call(
        kernel,
        out_shape=jax.ShapeDtypeStruct((Npad, C), return_dtype),
        grid_spec=grid_spec,
        compiler_params=pltpu.CompilerParams(
            dimension_semantics=("arbitrary", "parallel"),
            vmem_limit_bytes=vmem_limit,
        ),
        cost_estimate=cost,
    )(tile_img_ids.astype(jnp.int32),
      coords_packed.astype(jnp.float32),
      feat_stack)
    return pooled


# ---------------------------------------------------------------------------
# Host-side glue: mask -> normalized point coords (matches extract_region_feature
# preprocessing; random sub-/over-sampling replaced by deterministic selection).
# ---------------------------------------------------------------------------
def mask_to_points(mask, num_sample_point, new_reso):
    pos = np.argwhere(mask).astype(np.float64)                       # (K, 2) (row, col)
    if pos.shape[0] == 0:
        # TODO(synk): torch version substitutes gt masks / prints 'error' here.
        return np.zeros((num_sample_point, 2), dtype=np.float32)
    ori_wh = np.array([mask.shape[0], mask.shape[1]], dtype=np.float64)
    pts = pos / ori_wh                                               # normalized (y, x)
    # filter_repeat_point: unique at feature-map resolution
    q = (pts * new_reso).astype(np.int32)
    uq = np.unique(q, axis=0)
    pts = uq.astype(np.float64) / float(new_reso)
    k = pts.shape[0]
    # TODO(synk): torch version uses randint/randperm here; deterministic pick instead.
    if k < num_sample_point:
        idx = np.arange(num_sample_point - k) % k
        pts = np.concatenate([pts, pts[idx]], axis=0)
    elif k > num_sample_point:
        idx = np.linspace(0, k - 1, num_sample_point).astype(np.int64)
        pts = pts[idx]
    return pts.astype(np.float32)                                    # (P, 2) (y, x)


class RegionPooling:
    """JAX/Pallas port of hyperseg `region_pooling` (pooled-output path)."""

    def __init__(self, num_sample_point, regions_per_tile=128):
        assert regions_per_tile % 8 == 0
        self.num_sample_point = num_sample_point
        self.regions_per_tile = regions_per_tile

    def forward(self, feature_map, region_masks, return_dtype=jnp.float32):
        assert len(feature_map) == len(region_masks)
        batch_size = len(feature_map)
        HW, C = feature_map[0].shape
        H = W = int(round(math.sqrt(HW)))
        assert H * W == HW
        P = self.num_sample_point
        R = self.regions_per_tile

        rows_chunks = []            # per image: (n_i + pad, 2P) packed [x.., y..]
        tile_img_ids = []
        n_masks = []
        for img_id, masks_i in enumerate(region_masks):
            n_i = len(masks_i)
            n_masks.append(n_i)
            if n_i == 0:
                continue
            rows = []
            for m in masks_i:
                yx = mask_to_points(m, P, new_reso=H)                # (P, 2) (y, x)
                rows.append(np.concatenate([yx[:, 1], yx[:, 0]]))    # (2P,) x then y
            pad = (-n_i) % R                                         # pad image to multiple of R
            rows.extend([rows[0]] * pad)                             # padded rows dropped later
            rows_chunks.append(np.stack(rows, axis=0))
            tile_img_ids.extend([img_id] * ((n_i + pad) // R))

        if sum(n_masks) == 0:
            return [None] * batch_size

        coords = jnp.asarray(np.concatenate(rows_chunks, axis=0).astype(np.float32))
        tids = jnp.asarray(np.asarray(tile_img_ids, dtype=np.int32))
        # keep the feature dtype as given (bf16 stays bf16; matmul accumulates f32)
        feat_stack = jnp.stack(list(feature_map), axis=0)            # (B, HW, C)

        pooled = region_sample_and_pool(
            coords, feat_stack, tids, H=H, W=W, num_sample_point=P,
            regions_per_tile=R, return_dtype=return_dtype)           # (Npad, C)

        region_feature_list = []
        row = 0
        for img_id in range(batch_size):
            n_i = n_masks[img_id]
            if n_i == 0:
                region_feature_list.append(jnp.zeros((0, 1, C), dtype=return_dtype))
                continue
            n_pad_i = ((n_i + R - 1) // R) * R
            region_feature_list.append(pooled[row:row + n_i].reshape(n_i, 1, C))
            row += n_pad_i
        return region_feature_list


# ---------------------------------------------------------------------------
# Pure-JAX reference of the hot path (for a correctness check).
# ---------------------------------------------------------------------------
def _ref_sample_pool(feat_hw_c, coords_xy, H, W):
    f = feat_hw_c.astype(jnp.float32).reshape(H, W, -1)
    x = coords_xy[:, 0] * (W - 1.0)
    y = coords_xy[:, 1] * (H - 1.0)
    x0 = jnp.clip(jnp.floor(x), 0, W - 1)
    y0 = jnp.clip(jnp.floor(y), 0, H - 1)
    x1 = jnp.minimum(x0 + 1, W - 1)
    y1 = jnp.minimum(y0 + 1, H - 1)
    wx1 = x - x0
    wx0 = 1.0 - wx1
    wy1 = y - y0
    wy0 = 1.0 - wy1
    g = lambda yi, xi: f[yi.astype(jnp.int32), xi.astype(jnp.int32)]
    sampled = (g(y0, x0) * (wy0 * wx0)[:, None] + g(y0, x1) * (wy0 * wx1)[:, None]
               + g(y1, x0) * (wy1 * wx0)[:, None] + g(y1, x1) * (wy1 * wx1)[:, None])
    return jnp.mean(sampled, axis=0, keepdims=True)


if __name__ == "__main__":
    B, H, W, C = 2, 16, 16, 32
    Himg, Wimg = 32, 32
    num_sample_point = 8

    key = jax.random.PRNGKey(0)
    feat_key, _ = jax.random.split(key)
    feat_stack = jax.random.normal(feat_key, (B, H * W, C), dtype=jnp.float32)
    feature_map = [feat_stack[b] for b in range(B)]

    def rect(r0, c0, r1, c1):
        m = np.zeros((Himg, Wimg), dtype=bool)
        m[r0:r1, c0:c1] = True
        return m

    region_masks = [
        [rect(2, 2, 12, 14), rect(16, 20, 30, 31)],                     # image 0: 2 masks
        [rect(0, 0, 9, 9), rect(10, 6, 22, 26), rect(25, 25, 32, 32)],  # image 1: 3 masks
    ]

    module = RegionPooling(num_sample_point)
    out_list = module.forward(feature_map, region_masks, return_dtype=jnp.float32)
    out_list = [jax.block_until_ready(o) for o in out_list]

    # --- verify kernel against pure-JAX reference of the same math ---
    ok = True
    for img_id, masks_i in enumerate(region_masks):
        per_img = []
        for m in masks_i:
            yx = mask_to_points(m, num_sample_point, new_reso=H)
            xy = jnp.asarray(yx[:, ::-1].copy())
            per_img.append(_ref_sample_pool(feature_map[img_id], xy, H, W))
        ref = jnp.stack(per_img)                                     # (n_masks, 1, C)
        got = out_list[img_id]
        ok = ok and bool(jnp.allclose(got, ref, rtol=1e-4, atol=1e-4))

    shapes_ok = (out_list[0].shape == (2, 1, C)) and (out_list[1].shape == (3, 1, C))
    if ok and shapes_ok:
        print("KERNEL_OK")
</pallas_src>

<mosaic_0001>
module attributes {stable_mosaic.version = 11 : i64} {
  func.func @kernel(%arg0: i32, %arg1: i32, %arg2: memref<2xi32, #tpu.memory_space<smem>>, %arg3: memref<128x16xf32, #tpu.memory_space<vmem>>, %arg4: memref<1x256x32xf32, #tpu.memory_space<vmem>>, %arg5: memref<128x32xf32, #tpu.memory_space<vmem>>) attributes {dimension_semantics = [#tpu.dimension_semantics<arbitrary>, #tpu.dimension_semantics<parallel>], iteration_bounds = array<i64: 1, 2>, scalar_prefetch = 1 : i64, scratch_operands = 0 : i64, tpu.core_type = #tpu.core_type<tc>, window_params = [{transform_indices = @transform_0, window_bounds = array<i64: 128, 16>}, {transform_indices = @transform_1, window_bounds = array<i64: 1, 256, 32>}, {transform_indices = @transform_2, window_bounds = array<i64: 128, 32>}]} {
    %c0 = arith.constant 0 : index
    %c0_0 = arith.constant 0 : index
    %0 = vector.load %arg3[%c0, %c0_0] : memref<128x16xf32, #tpu.memory_space<vmem>>, vector<128x16xf32>
    %1 = vector.extract_strided_slice %0 {offsets = [0, 0], sizes = [128, 8], strides = [1, 1]} : vector<128x16xf32> to vector<128x8xf32>
    %cst = arith.constant 1.500000e+01 : f32
    %2 = vector.broadcast %cst : f32 to vector<128x8xf32>
    %3 = arith.mulf %1, %2 : vector<128x8xf32>
    %4 = vector.extract_strided_slice %0 {offsets = [0, 8], sizes = [128, 8], strides = [1, 1]} : vector<128x16xf32> to vector<128x8xf32>
    %cst_1 = arith.constant 1.500000e+01 : f32
    %5 = vector.broadcast %cst_1 : f32 to vector<128x8xf32>
    %6 = arith.mulf %4, %5 : vector<128x8xf32>
    %7 = math.floor %3 : vector<128x8xf32>
    %cst_2 = arith.constant 0.000000e+00 : f32
    %cst_3 = arith.constant 1.500000e+01 : f32
    %8 = vector.broadcast %cst_2 : f32 to vector<128x8xf32>
    %9 = arith.maximumf %8, %7 : vector<128x8xf32>
    %10 = vector.broadcast %cst_3 : f32 to vector<128x8xf32>
    %11 = arith.minimumf %10, %9 : vector<128x8xf32>
    %12 = math.floor %6 : vector<128x8xf32>
    %cst_4 = arith.constant 0.000000e+00 : f32
    %cst_5 = arith.constant 1.500000e+01 : f32
    %13 = vector.broadcast %cst_4 : f32 to vector<128x8xf32>
    %14 = arith.maximumf %13, %12 : vector<128x8xf32>
    %15 = vector.broadcast %cst_5 : f32 to vector<128x8xf32>
    %16 = arith.minimumf %15, %14 : vector<128x8xf32>
    %cst_6 = arith.constant 1.000000e+00 : f32
    %17 = vector.broadcast %cst_6 : f32 to vector<128x8xf32>
    %18 = arith.addf %11, %17 : vector<128x8xf32>
    %cst_7 = arith.constant 1.500000e+01 : f32
    %19 = vector.broadcast %cst_7 : f32 to vector<128x8xf32>
    %20 = arith.minimumf %18, %19 : vector<128x8xf32>
    %cst_8 = arith.constant 1.000000e+00 : f32
    %21 = vector.broadcast %cst_8 : f32 to vector<128x8xf32>
    %22 = arith.addf %16, %21 : vector<128x8xf32>
    %cst_9 = arith.constant 1.500000e+01 : f32
    %23 = vector.broadcast %cst_9 : f32 to vector<128x8xf32>
    %24 = arith.minimumf %22, %23 : vector<128x8xf32>
    %25 = arith.subf %3, %11 : vector<128x8xf32>
    %cst_10 = arith.constant 1.000000e+00 : f32
    %26 = vector.broadcast %cst_10 : f32 to vector<128x8xf32>
    %27 = arith.subf %26, %25 : vector<128x8xf32>
    %28 = arith.subf %6, %16 : vector<128x8xf32>
    %cst_11 = arith.constant 1.000000e+00 : f32
    %29 = vector.broadcast %cst_11 : f32 to vector<128x8xf32>
    %30 = arith.subf %29, %28 : vector<128x8xf32>
    %31 = arith.fptosi %11 : vector<128x8xf32> to vector<128x8xi32>
    %32 = arith.fptosi %20 : vector<128x8xf32> to vector<128x8xi32>
    %33 = arith.fptosi %16 : vector<128x8xf32> to vector<128x8xi32>
    %34 = arith.fptosi %24 : vector<128x8xf32> to vector<128x8xi32>
    %c16_i32 = arith.constant 16 : i32
    %35 = vector.broadcast %c16_i32 : i32 to vector<128x8xi32>
    %36 = arith.muli %33, %35 : vector<128x8xi32>
    %37 = arith.addi %36, %31 : vector<128x8xi32>
    %c16_i32_12 = arith.constant 16 : i32
    %38 = vector.broadcast %c16_i32_12 : i32 to vector<128x8xi32>
    %39 = arith.muli %33, %38 : vector<128x8xi32>
    %40 = arith.addi %39, %32 : vector<128x8xi32>
    %c16_i32_13 = arith.constant 16 : i32
    %41 = vector.broadcast %c16_i32_13 : i32 to vector<128x8xi32>
    %42 = arith.muli %34, %41 : vector<128x8xi32>
    %43 = arith.addi %42, %31 : vector<128x8xi32>
    %c16_i32_14 = arith.constant 16 : i32
    %44 = vector.broadcast %c16_i32_14 : i32 to vector<128x8xi32>
    %45 = arith.muli %34, %44 : vector<128x8xi32>
    %46 = arith.addi %45, %32 : vector<128x8xi32>
    %47 = arith.mulf %30, %27 : vector<128x8xf32>
    %cst_15 = arith.constant 1.250000e-01 : f32
    %48 = vector.broadcast %cst_15 : f32 to vector<128x8xf32>
    %49 = arith.mulf %47, %48 : vector<128x8xf32>
    %50 = arith.mulf %30, %25 : vector<128x8xf32>
    %cst_16 = arith.constant 1.250000e-01 : f32
    %51 = vector.broadcast %cst_16 : f32 to vector<128x8xf32>
    %52 = arith.mulf %50, %51 : vector<128x8xf32>
    %53 = arith.mulf %28, %27 : vector<128x8xf32>
    %cst_17 = arith.constant 1.250000e-01 : f32
    %54 = vector.broadcast %cst_17 : f32 to vector<128x8xf32>
    %55 = arith.mulf %53, %54 : vector<128x8xf32>
    %56 = arith.mulf %28, %25 : vector<128x8xf32>
    %cst_18 = arith.constant 1.250000e-01 : f32
    %57 = vector.broadcast %cst_18 : f32 to vector<128x8xf32>
    %58 = arith.mulf %56, %57 : vector<128x8xf32>
    %59 = tpu.iota {dimensions = array<i32: 1>} : vector<128x256xi32>
    %60 = vector.extract_strided_slice %37 {offsets = [0, 0], sizes = [128, 1], strides = [1, 1]} : vector<128x8xi32> to vector<128x1xi32>
    %61 = vector.broadcast %60 : vector<128x1xi32> to vector<128x256xi32>
    %62 = arith.cmpi eq, %59, %61 : vector<128x256xi32>
    %63 = vector.extract_strided_slice %49 {offsets = [0, 0], sizes = [128, 1], strides = [1, 1]} : vector<128x8xf32> to vector<128x1xf32>
    %cst_19 = arith.constant 0.000000e+00 : f32
    %64 = vector.shape_cast %63 : vector<128x1xf32> to vector<128x1xf32>
    %65 = vector.broadcast %64 : vector<128x1xf32> to vector<128x256xf32>
    %66 = vector.broadcast %cst_19 : f32 to vector<128x256xf32>
    %67 = arith.select %62, %65, %66 : vector<128x256xi1>, vector<128x256xf32>
    %68 = vector.extract_strided_slice %40 {offsets = [0, 0], sizes = [128, 1], strides = [1, 1]} : vector<128x8xi32> to vector<128x1xi32>
    %69 = vector.broadcast %68 : vector<128x1xi32> to vector<128x256xi32>
    %70 = arith.cmpi eq, %59, %69 : vector<128x256xi32>
    %71 = vector.extract_strided_slice %52 {offsets = [0, 0], sizes = [128, 1], strides = [1, 1]} : vector<128x8xf32> to vector<128x1xf32>
    %cst_20 = arith.constant 0.000000e+00 : f32
    %72 = vector.shape_cast %71 : vector<128x1xf32> to vector<128x1xf32>
    %73 = vector.broadcast %72 : vector<128x1xf32> to vector<128x256xf32>
    %74 = vector.broadcast %cst_20 : f32 to vector<128x256xf32>
    %75 = arith.select %70, %73, %74 : vector<128x256xi1>, vector<128x256xf32>
    %76 = arith.addf %67, %75 : vector<128x256xf32>
    %77 = vector.extract_strided_slice %43 {offsets = [0, 0], sizes = [128, 1], strides = [1, 1]} : vector<128x8xi32> to vector<128x1xi32>
    %78 = vector.broadcast %77 : vector<128x1xi32> to vector<128x256xi32>
    %79 = arith.cmpi eq, %59, %78 : vector<128x256xi32>
    %80 = vector.extract_strided_slice %55 {offsets = [0, 0], sizes = [128, 1], strides = [1, 1]} : vector<128x8xf32> to vector<128x1xf32>
    %cst_21 = arith.constant 0.000000e+00 : f32
    %81 = vector.shape_cast %80 : vector<128x1xf32> to vector<128x1xf32>
    %82 = vector.broadcast %81 : vector<128x1xf32> to vector<128x256xf32>
    %83 = vector.broadcast %cst_21 : f32 to vector<128x256xf32>
    %84 = arith.select %79, %82, %83 : vector<128x256xi1>, vector<128x256xf32>
    %85 = arith.addf %76, %84 : vector<128x256xf32>
    %86 = vector.extract_strided_slice %46 {offsets = [0, 0], sizes = [128, 1], strides = [1, 1]} : vector<128x8xi32> to vector<128x1xi32>
    %87 = vector.broadcast %86 : vector<128x1xi32> to vector<128x256xi32>
    %88 = arith.cmpi eq, %59, %87 : vector<128x256xi32>
    %89 = vector.extract_strided_slice %58 {offsets = [0, 0], sizes = [128, 1], strides = [1, 1]} : vector<128x8xf32> to vector<128x1xf32>
    %cst_22 = arith.constant 0.000000e+00 : f32
    %90 = vector.shape_cast %89 : vector<128x1xf32> to vector<128x1xf32>
    %91 = vector.broadcast %90 : vector<128x1xf32> to vector<128x256xf32>
    %92 = vector.broadcast %cst_22 : f32 to vector<128x256xf32>
    %93 = arith.select %88, %91, %92 : vector<128x256xi1>, vector<128x256xf32>
    %94 = arith.addf %85, %93 : vector<128x256xf32>
    %95 = vector.extract_strided_slice %37 {offsets = [0, 1], sizes = [128, 1], strides = [1, 1]} : vector<128x8xi32> to vector<128x1xi32>
    %96 = vector.broadcast %95 : vector<128x1xi32> to vector<128x256xi32>
    %97 = arith.cmpi eq, %59, %96 : vector<128x256xi32>
    %98 = vector.extract_strided_slice %49 {offsets = [0, 1], sizes = [128, 1], strides = [1, 1]} : vector<128x8xf32> to vector<128x1xf32>
    %cst_23 = arith.constant 0.000000e+00 : f32
    %99 = vector.shape_cast %98 : vector<128x1xf32> to vector<128x1xf32>
    %100 = vector.broadcast %99 : vector<128x1xf32> to vector<128x256xf32>
    %101 = vector.broadcast %cst_23 : f32 to vector<128x256xf32>
    %102 = arith.select %97, %100, %101 : vector<128x256xi1>, vector<128x256xf32>
    %103 = vector.extract_strided_slice %40 {offsets = [0, 1], sizes = [128, 1], strides = [1, 1]} : vector<128x8xi32> to vector<128x1xi32>
    %104 = vector.broadcast %103 : vector<128x1xi32> to vector<128x256xi32>
    %105 = arith.cmpi eq, %59, %104 : vector<128x256xi32>
    %106 = vector.extract_strided_slice %52 {offsets = [0, 1], sizes = [128, 1], strides = [1, 1]} : vector<128x8xf32> to vector<128x1xf32>
    %cst_24 = arith.constant 0.000000e+00 : f32
    %107 = vector.shape_cast %106 : vector<128x1xf32> to vector<128x1xf32>
    %108 = vector.broadcast %107 : vector<128x1xf32> to vector<128x256xf32>
    %109 = vector.broadcast %cst_24 : f32 to vector<128x256xf32>
    %110 = arith.select %105, %108, %109 : vector<128x256xi1>, vector<128x256xf32>
    %111 = arith.addf %102, %110 : vector<128x256xf32>
    %112 = vector.extract_strided_slice %43 {offsets = [0, 1], sizes = [128, 1], strides = [1, 1]} : vector<128x8xi32> to vector<128x1xi32>
    %113 = vector.broadcast %112 : vector<128x1xi32> to vector<128x256xi32>
    %114 = arith.cmpi eq, %59, %113 : vector<128x256xi32>
    %115 = vector.extract_strided_slice %55 {offsets = [0, 1], sizes = [128, 1], strides = [1, 1]} : vector<128x8xf32> to vector<128x1xf32>
    %cst_25 = arith.constant 0.000000e+00 : f32
    %116 = vector.shape_cast %115 : vector<128x1xf32> to vector<128x1xf32>
    %117 = vector.broadcast %116 : vector<128x1xf32> to vector<128x256xf32>
    %118 = vector.broadcast %cst_25 : f32 to vector<128x256xf32>
    %119 = arith.select %114, %117, %118 : vector<128x256xi1>, vector<128x256xf32>
    %120 = arith.addf %111, %119 : vector<128x256xf32>
    %121 = vector.extract_strided_slice %46 {offsets = [0, 1], sizes = [128, 1], strides = [1, 1]} : vector<128x8xi32> to vector<128x1xi32>
    %122 = vector.broadcast %121 : vector<128x1xi32> to vector<128x256xi32>
    %123 = arith.cmpi eq, %59, %122 : vector<128x256xi32>
    %124 = vector.extract_strided_slice %58 {offsets = [0, 1], sizes = [128, 1], strides = [1, 1]} : vector<128x8xf32> to vector<128x1xf32>
    %cst_26 = arith.constant 0.000000e+00 : f32
    %125 = vector.shape_cast %124 : vector<128x1xf32> to vector<128x1xf32>
    %126 = vector.broadcast %125 : vector<128x1xf32> to vector<128x256xf32>
    %127 = vector.broadcast %cst_26 : f32 to vector<128x256xf32>
    %128 = arith.select %123, %126, %127 : vector<128x256xi1>, vector<128x256xf32>
    %129 = arith.addf %120, %128 : vector<128x256xf32>
    %130 = arith.addf %94, %129 : vector<128x256xf32>
    %131 = vector.extract_strided_slice %37 {offsets = [0, 2], sizes = [128, 1], strides = [1, 1]} : vector<128x8xi32> to vector<128x1xi32>
    %132 = vector.broadcast %131 : vector<128x1xi32> to vector<128x256xi32>
    %133 = arith.cmpi eq, %59, %132 : vector<128x256xi32>
    %134 = vector.extract_strided_slice %49 {offsets = [0, 2], sizes = [128, 1], strides = [1, 1]} : vector<128x8xf32> to vector<128x1xf32>
    %cst_27 = arith.constant 0.000000e+00 : f32
    %135 = vector.shape_cast %134 : vector<128x1xf32> to vector<128x1xf32>
    %136 = vector.broadcast %135 : vector<128x1xf32> to vector<128x256xf32>
    %137 = vector.broadcast %cst_27 : f32 to vector<128x256xf32>
    %138 = arith.select %133, %136, %137 : vector<128x256xi1>, vector<128x256xf32>
    %139 = vector.extract_strided_slice %40 {offsets = [0, 2], sizes = [128, 1], strides = [1, 1]} : vector<128x8xi32> to vector<128x1xi32>
    %140 = vector.broadcast %139 : vector<128x1xi32> to vector<128x256xi32>
    %141 = arith.cmpi eq, %59, %140 : vector<128x256xi32>
    %142 = vector.extract_strided_slice %52 {offsets = [0, 2], sizes = [128, 1], strides = [1, 1]} : vector<128x8xf32> to vector<128x1xf32>
    %cst_28 = arith.constant 0.000000e+00 : f32
    %143 = vector.shape_cast %142 : vector<128x1xf32> to vector<128x1xf32>
    %144 = vector.broadcast %143 : vector<128x1xf32> to vector<128x256xf32>
    %145 = vector.broadcast %cst_28 : f32 to vector<128x256xf32>
    %146 = arith.select %141, %144, %145 : vector<128x256xi1>, vector<128x256xf32>
    %147 = arith.addf %138, %146 : vector<128x256xf32>
    %148 = vector.extract_strided_slice %43 {offsets = [0, 2], sizes = [128, 1], strides = [1, 1]} : vector<128x8xi32> to vector<128x1xi32>
    %149 = vector.broadcast %148 : vector<128x1xi32> to vector<128x256xi32>
    %150 = arith.cmpi eq, %59, %149 : vector<128x256xi32>
    %151 = vector.extract_strided_slice %55 {offsets = [0, 2], sizes = [128, 1], strides = [1, 1]} : vector<128x8xf32> to vector<128x1xf32>
    %cst_29 = arith.constant 0.000000e+00 : f32
    %152 = vector.shape_cast %151 : vector<128x1xf32> to vector<128x1xf32>
    %153 = vector.broadcast %152 : vector<128x1xf32> to vector<128x256xf32>
    %154 = vector.broadcast %cst_29 : f32 to vector<128x256xf32>
    %155 = arith.select %150, %153, %154 : vector<128x256xi1>, vector<128x256xf32>
    %156 = arith.addf %147, %155 : vector<128x256xf32>
    %157 = vector.extract_strided_slice %46 {offsets = [0, 2], sizes = [128, 1], strides = [1, 1]} : vector<128x8xi32> to vector<128x1xi32>
    %158 = vector.broadcast %157 : vector<128x1xi32> to vector<128x256xi32>
    %159 = arith.cmpi eq, %59, %158 : vector<128x256xi32>
    %160 = vector.extract_strided_slice %58 {offsets = [0, 2], sizes = [128, 1], strides = [1, 1]} : vector<128x8xf32> to vector<128x1xf32>
    %cst_30 = arith.constant 0.000000e+00 : f32
    %161 = vector.shape_cast %160 : vector<128x1xf32> to vector<128x1xf32>
    %162 = vector.broadcast %161 : vector<128x1xf32> to vector<128x256xf32>
    %163 = vector.broadcast %cst_30 : f32 to vector<128x256xf32>
    %164 = arith.select %159, %162, %163 : vector<128x256xi1>, vector<128x256xf32>
    %165 = arith.addf %156, %164 : vector<128x256xf32>
    %166 = arith.addf %130, %165 : vector<128x256xf32>
    %167 = vector.extract_strided_slice %37 {offsets = [0, 3], sizes = [128, 1], strides = [1, 1]} : vector<128x8xi32> to vector<128x1xi32>
    %168 = vector.broadcast %167 : vector<128x1xi32> to vector<128x256xi32>
    %169 = arith.cmpi eq, %59, %168 : vector<128x256xi32>
    %170 = vector.extract_strided_slice %49 {offsets = [0, 3], sizes = [128, 1], strides = [1, 1]} : vector<128x8xf32> to vector<128x1xf32>
    %cst_31 = arith.constant 0.000000e+00 : f32
    %171 = vector.shape_cast %170 : vector<128x1xf32> to vector<128x1xf32>
    %172 = vector.broadcast %171 : vector<128x1xf32> to vector<128x256xf32>
    %173 = vector.broadcast %cst_31 : f32 to vector<128x256xf32>
    %174 = arith.select %169, %172, %173 : vector<128x256xi1>, vector<128x256xf32>
    %175 = vector.extract_strided_slice %40 {offsets = [0, 3], sizes = [128, 1], strides = [1, 1]} : vector<128x8xi32> to vector<128x1xi32>
    %176 = vector.broadcast %175 : vector<128x1xi32> to vector<128x256xi32>
    %177 = arith.cmpi eq, %59, %176 : vector<128x256xi32>
    %178 = vector.extract_strided_slice %52 {offsets = [0, 3], sizes = [128, 1], strides = [1, 1]} : vector<128x8xf32> to vector<128x1xf32>
    %cst_32 = arith.constant 0.000000e+00 : f32
    %179 = vector.shape_cast %178 : vector<128x1xf32> to vector<128x1xf32>
    %180 = vector.broadcast %179 : vector<128x1xf32> to vector<128x256xf32>
    %181 = vector.broadcast %cst_32 : f32 to vector<128x256xf32>
    %182 = arith.select %177, %180, %181 : vector<128x256xi1>, vector<128x256xf32>
    %183 = arith.addf %174, %182 : vector<128x256xf32>
    %184 = vector.extract_strided_slice %43 {offsets = [0, 3], sizes = [128, 1], strides = [1, 1]} : vector<128x8xi32> to vector<128x1xi32>
    %185 = vector.broadcast %184 : vector<128x1xi32> to vector<128x256xi32>
    %186 = arith.cmpi eq, %59, %185 : vector<128x256xi32>
    %187 = vector.extract_strided_slice %55 {offsets = [0, 3], sizes = [128, 1], strides = [1, 1]} : vector<128x8xf32> to vector<128x1xf32>
    %cst_33 = arith.constant 0.000000e+00 : f32
    %188 = vector.shape_cast %187 : vector<128x1xf32> to vector<128x1xf32>
    %189 = vector.broadcast %188 : vector<128x1xf32> to vector<128x256xf32>
    %190 = vector.broadcast %cst_33 : f32 to vector<128x256xf32>
    %191 = arith.select %186, %189, %190 : vector<128x256xi1>, vector<128x256xf32>
    %192 = arith.addf %183, %191 : vector<128x256xf32>
    %193 = vector.extract_strided_slice %46 {offsets = [0, 3], sizes = [128, 1], strides = [1, 1]} : vector<128x8xi32> to vector<128x1xi32>
    %194 = vector.broadcast %193 : vector<128x1xi32> to vector<128x256xi32>
    %195 = arith.cmpi eq, %59, %194 : vector<128x256xi32>
    %196 = vector.extract_strided_slice %58 {offsets = [0, 3], sizes = [128, 1], strides = [1, 1]} : vector<128x8xf32> to vector<128x1xf32>
    %cst_34 = arith.constant 0.000000e+00 : f32
    %197 = vector.shape_cast %196 : vector<128x1xf32> to vector<128x1xf32>
    %198 = vector.broadcast %197 : vector<128x1xf32> to vector<128x256xf32>
    %199 = vector.broadcast %cst_34 : f32 to vector<128x256xf32>
    %200 = arith.select %195, %198, %199 : vector<128x256xi1>, vector<128x256xf32>
    %201 = arith.addf %192, %200 : vector<128x256xf32>
    %202 = arith.addf %166, %201 : vector<128x256xf32>
    %203 = vector.extract_strided_slice %37 {offsets = [0, 4], sizes = [128, 1], strides = [1, 1]} : vector<128x8xi32> to vector<128x1xi32>
    %204 = vector.broadcast %203 : vector<128x1xi32> to vector<128x256xi32>
    %205 = arith.cmpi eq, %59, %204 : vector<128x256xi32>
    %206 = vector.extract_strided_slice %49 {offsets = [0, 4], sizes = [128, 1], strides = [1, 1]} : vector<128x8xf32> to vector<128x1xf32>
    %cst_35 = arith.constant 0.000000e+00 : f32
    %207 = vector.shape_cast %206 : vector<128x1xf32> to vector<128x1xf32>
    %208 = vector.broadcast %207 : vector<128x1xf32> to vector<128x256xf32>
    %209 = vector.broadcast %cst_35 : f32 to vector<128x256xf32>
    %210 = arith.select %205, %208, %209 : vector<128x256xi1>, vector<128x256xf32>
    %211 = vector.extract_strided_slice %40 {offsets = [0, 4], sizes = [128, 1], strides = [1, 1]} : vector<128x8xi32> to vector<128x1xi32>
    %212 = vector.broadcast %211 : vector<128x1xi32> to vector<128x256xi32>
    %213 = arith.cmpi eq, %59, %212 : vector<128x256xi32>
    %214 = vector.extract_strided_slice %52 {offsets = [0, 4], sizes = [128, 1], strides = [1, 1]} : vector<128x8xf32> to vector<128x1xf32>
    %cst_36 = arith.constant 0.000000e+00 : f32
    %215 = vector.shape_cast %214 : vector<128x1xf32> to vector<128x1xf32>
    %216 = vector.broadcast %215 : vector<128x1xf32> to vector<128x256xf32>
    %217 = vector.broadcast %cst_36 : f32 to vector<128x256xf32>
    %218 = arith.select %213, %216, %217 : vector<128x256xi1>, vector<128x256xf32>
    %219 = arith.addf %210, %218 : vector<128x256xf32>
    %220 = vector.extract_strided_slice %43 {offsets = [0, 4], sizes = [128, 1], strides = [1, 1]} : vector<128x8xi32> to vector<128x1xi32>
    %221 = vector.broadcast %220 : vector<128x1xi32> to vector<128x256xi32>
    %222 = arith.cmpi eq, %59, %221 : vector<128x256xi32>
    %223 = vector.extract_strided_slice %55 {offsets = [0, 4], sizes = [128, 1], strides = [1, 1]} : vector<128x8xf32> to vector<128x1xf32>
    %cst_37 = arith.constant 0.000000e+00 : f32
    %224 = vector.shape_cast %223 : vector<128x1xf32> to vector<128x1xf32>
    %225 = vector.broadcast %224 : vector<128x1xf32> to vector<128x256xf32>
    %226 = vector.broadcast %cst_37 : f32 to vector<128x256xf32>
    %227 = arith.select %222, %225, %226 : vector<128x256xi1>, vector<128x256xf32>
    %228 = arith.addf %219, %227 : vector<128x256xf32>
    %229 = vector.extract_strided_slice %46 {offsets = [0, 4], sizes = [128, 1], strides = [1, 1]} : vector<128x8xi32> to vector<128x1xi32>
    %230 = vector.broadcast %229 : vector<128x1xi32> to vector<128x256xi32>
    %231 = arith.cmpi eq, %59, %230 : vector<128x256xi32>
    %232 = vector.extract_strided_slice %58 {offsets = [0, 4], sizes = [128, 1], strides = [1, 1]} : vector<128x8xf32> to vector<128x1xf32>
    %cst_38 = arith.constant 0.000000e+00 : f32
    %233 = vector.shape_cast %232 : vector<128x1xf32> to vector<128x1xf32>
    %234 = vector.broadcast %233 : vector<128x1xf32> to vector<128x256xf32>
    %235 = vector.broadcast %cst_38 : f32 to vector<128x256xf32>
    %236 = arith.select %231, %234, %235 : vector<128x256xi1>, vector<128x256xf32>
    %237 = arith.addf %228, %236 : vector<128x256xf32>
    %238 = arith.addf %202, %237 : vector<128x256xf32>
    %239 = vector.extract_strided_slice %37 {offsets = [0, 5], sizes = [128, 1], strides = [1, 1]} : vector<128x8xi32> to vector<128x1xi32>
    %240 = vector.broadcast %239 : vector<128x1xi32> to vector<128x256xi32>
    %241 = arith.cmpi eq, %59, %240 : vector<128x256xi32>
    %242 = vector.extract_strided_slice %49 {offsets = [0, 5], sizes = [128, 1], strides = [1, 1]} : vector<128x8xf32> to vector<128x1xf32>
    %cst_39 = arith.constant 0.000000e+00 : f32
    %243 = vector.shape_cast %242 : vector<128x1xf32> to vector<128x1xf32>
    %244 = vector.broadcast %243 : vector<128x1xf32> to vector<128x256xf32>
    %245 = vector.broadcast %cst_39 : f32 to vector<128x256xf32>
    %246 = arith.select %241, %244, %245 : vector<128x256xi1>, vector<128x256xf32>
    %247 = vector.extract_strided_slice %40 {offsets = [0, 5], sizes = [128, 1], strides = [1, 1]} : vector<128x8xi32> to vector<128x1xi32>
    %248 = vector.broadcast %247 : vector<128x1xi32> to vector<128x256xi32>
    %249 = arith.cmpi eq, %59, %248 : vector<128x256xi32>
    %250 = vector.extract_strided_slice %52 {offsets = [0, 5], sizes = [128, 1], strides = [1, 1]} : vector<128x8xf32> to vector<128x1xf32>
    %cst_40 = arith.constant 0.000000e+00 : f32
    %251 = vector.shape_cast %250 : vector<128x1xf32> to vector<128x1xf32>
    %252 = vector.broadcast %251 : vector<128x1xf32> to vector<128x256xf32>
    %253 = vector.broadcast %cst_40 : f32 to vector<128x256xf32>
    %254 = arith.select %249, %252, %253 : vector<128x256xi1>, vector<128x256xf32>
    %255 = arith.addf %246, %254 : vector<128x256xf32>
    %256 = vector.extract_strided_slice %43 {offsets = [0, 5], sizes = [128, 1], strides = [1, 1]} : vector<128x8xi32> to vector<128x1xi32>
    %257 = vector.broadcast %256 : vector<128x1xi32> to vector<128x256xi32>
    %258 = arith.cmpi eq, %59, %257 : vector<128x256xi32>
    %259 = vector.extract_strided_slice %55 {offsets = [0, 5], sizes = [128, 1], strides = [1, 1]} : vector<128x8xf32> to vector<128x1xf32>
    %cst_41 = arith.constant 0.000000e+00 : f32
    %260 = vector.shape_cast %259 : vector<128x1xf32> to vector<128x1xf32>
    %261 = vector.broadcast %260 : vector<128x1xf32> to vector<128x256xf32>
    %262 = vector.broadcast %cst_41 : f32 to vector<128x256xf32>
    %263 = arith.select %258, %261, %262 : vector<128x256xi1>, vector<128x256xf32>
    %264 = arith.addf %255, %263 : vector<128x256xf32>
    %265 = vector.extract_strided_slice %46 {offsets = [0, 5], sizes = [128, 1], strides = [1, 1]} : vector<128x8xi32> to vector<128x1xi32>
    %266 = vector.broadcast %265 : vector<128x1xi32> to vector<128x256xi32>
    %267 = arith.cmpi eq, %59, %266 : vector<128x256xi32>
    %268 = vector.extract_strided_slice %58 {offsets = [0, 5], sizes = [128, 1], strides = [1, 1]} : vector<128x8xf32> to vector<128x1xf32>
    %cst_42 = arith.constant 0.000000e+00 : f32
    %269 = vector.shape_cast %268 : vector<128x1xf32> to vector<128x1xf32>
    %270 = vector.broadcast %269 : vector<128x1xf32> to vector<128x256xf32>
    %271 = vector.broadcast %cst_42 : f32 to vector<128x256xf32>
    %272 = arith.select %267, %270, %271 : vector<128x256xi1>, vector<128x256xf32>
    %273 = arith.addf %264, %272 : vector<128x256xf32>
    %274 = arith.addf %238, %273 : vector<128x256xf32>
    %275 = vector.extract_strided_slice %37 {offsets = [0, 6], sizes = [128, 1], strides = [1, 1]} : vector<128x8xi32> to vector<128x1xi32>
    %276 = vector.broadcast %275 : vector<128x1xi32> to vector<128x256xi32>
    %277 = arith.cmpi eq, %59, %276 : vector<128x256xi32>
    %278 = vector.extract_strided_slice %49 {offsets = [0, 6], sizes = [128, 1], strides = [1, 1]} : vector<128x8xf32> to vector<128x1xf32>
    %cst_43 = arith.constant 0.000000e+00 : f32
    %279 = vector.shape_cast %278 : vector<128x1xf32> to vector<128x1xf32>
    %280 = vector.broadcast %279 : vector<128x1xf32> to vector<128x256xf32>
    %281 = vector.broadcast %cst_43 : f32 to vector<128x256xf32>
    %282 = arith.select %277, %280, %281 : vector<128x256xi1>, vector<128x256xf32>
    %283 = vector.extract_strided_slice %40 {offsets = [0, 6], sizes = [128, 1], strides = [1, 1]} : vector<128x8xi32> to vector<128x1xi32>
    %284 = vector.broadcast %283 : vector<128x1xi32> to vector<128x256xi32>
    %285 = arith.cmpi eq, %59, %284 : vector<128x256xi32>
    %286 = vector.extract_strided_slice %52 {offsets = [0, 6], sizes = [128, 1], strides = [1, 1]} : vector<128x8xf32> to vector<128x1xf32>
    %cst_44 = arith.constant 0.000000e+00 : f32
    %287 = vector.shape_cast %286 : vector<128x1xf32> to vector<128x1xf32>
    %288 = vector.broadcast %287 : vector<128x1xf32> to vector<128x256xf32>
    %289 = vector.broadcast %cst_44 : f32 to vector<128x256xf32>
    %290 = arith.select %285, %288, %289 : vector<128x256xi1>, vector<128x256xf32>
    %291 = arith.addf %282, %290 : vector<128x256xf32>
    %292 = vector.extract_strided_slice %43 {offsets = [0, 6], sizes = [128, 1], strides = [1, 1]} : vector<128x8xi32> to vector<128x1xi32>
    %293 = vector.broadcast %292 : vector<128x1xi32> to vector<128x256xi32>
    %294 = arith.cmpi eq, %59, %293 : vector<128x256xi32>
    %295 = vector.extract_strided_slice %55 {offsets = [0, 6], sizes = [128, 1], strides = [1, 1]} : vector<128x8xf32> to vector<128x1xf32>
    %cst_45 = arith.constant 0.000000e+00 : f32
    %296 = vector.shape_cast %295 : vector<128x1xf32> to vector<128x1xf32>
    %297 = vector.broadcast %296 : vector<128x1xf32> to vector<128x256xf32>
    %298 = vector.broadcast %cst_45 : f32 to vector<128x256xf32>
    %299 = arith.select %294, %297, %298 : vector<128x256xi1>, vector<128x256xf32>
    %300 = arith.addf %291, %299 : vector<128x256xf32>
    %301 = vector.extract_strided_slice %46 {offsets = [0, 6], sizes = [128, 1], strides = [1, 1]} : vector<128x8xi32> to vector<128x1xi32>
    %302 = vector.broadcast %301 : vector<128x1xi32> to vector<128x256xi32>
    %303 = arith.cmpi eq, %59, %302 : vector<128x256xi32>
    %304 = vector.extract_strided_slice %58 {offsets = [0, 6], sizes = [128, 1], strides = [1, 1]} : vector<128x8xf32> to vector<128x1xf32>
    %cst_46 = arith.constant 0.000000e+00 : f32
    %305 = vector.shape_cast %304 : vector<128x1xf32> to vector<128x1xf32>
    %306 = vector.broadcast %305 : vector<128x1xf32> to vector<128x256xf32>
    %307 = vector.broadcast %cst_46 : f32 to vector<128x256xf32>
    %308 = arith.select %303, %306, %307 : vector<128x256xi1>, vector<128x256xf32>
    %309 = arith.addf %300, %308 : vector<128x256xf32>
    %310 = arith.addf %274, %309 : vector<128x256xf32>
    %311 = vector.extract_strided_slice %37 {offsets = [0, 7], sizes = [128, 1], strides = [1, 1]} : vector<128x8xi32> to vector<128x1xi32>
    %312 = vector.broadcast %311 : vector<128x1xi32> to vector<128x256xi32>
    %313 = arith.cmpi eq, %59, %312 : vector<128x256xi32>
    %314 = vector.extract_strided_slice %49 {offsets = [0, 7], sizes = [128, 1], strides = [1, 1]} : vector<128x8xf32> to vector<128x1xf32>
    %cst_47 = arith.constant 0.000000e+00 : f32
    %315 = vector.shape_cast %314 : vector<128x1xf32> to vector<128x1xf32>
    %316 = vector.broadcast %315 : vector<128x1xf32> to vector<128x256xf32>
    %317 = vector.broadcast %cst_47 : f32 to vector<128x256xf32>
    %318 = arith.select %313, %316, %317 : vector<128x256xi1>, vector<128x256xf32>
    %319 = vector.extract_strided_slice %40 {offsets = [0, 7], sizes = [128, 1], strides = [1, 1]} : vector<128x8xi32> to vector<128x1xi32>
    %320 = vector.broadcast %319 : vector<128x1xi32> to vector<128x256xi32>
    %321 = arith.cmpi eq, %59, %320 : vector<128x256xi32>
    %322 = vector.extract_strided_slice %52 {offsets = [0, 7], sizes = [128, 1], strides = [1, 1]} : vector<128x8xf32> to vector<128x1xf32>
    %cst_48 = arith.constant 0.000000e+00 : f32
    %323 = vector.shape_cast %322 : vector<128x1xf32> to vector<128x1xf32>
    %324 = vector.broadcast %323 : vector<128x1xf32> to vector<128x256xf32>
    %325 = vector.broadcast %cst_48 : f32 to vector<128x256xf32>
    %326 = arith.select %321, %324, %325 : vector<128x256xi1>, vector<128x256xf32>
    %327 = arith.addf %318, %326 : vector<128x256xf32>
    %328 = vector.extract_strided_slice %43 {offsets = [0, 7], sizes = [128, 1], strides = [1, 1]} : vector<128x8xi32> to vector<128x1xi32>
    %329 = vector.broadcast %328 : vector<128x1xi32> to vector<128x256xi32>
    %330 = arith.cmpi eq, %59, %329 : vector<128x256xi32>
    %331 = vector.extract_strided_slice %55 {offsets = [0, 7], sizes = [128, 1], strides = [1, 1]} : vector<128x8xf32> to vector<128x1xf32>
    %cst_49 = arith.constant 0.000000e+00 : f32
    %332 = vector.shape_cast %331 : vector<128x1xf32> to vector<128x1xf32>
    %333 = vector.broadcast %332 : vector<128x1xf32> to vector<128x256xf32>
    %334 = vector.broadcast %cst_49 : f32 to vector<128x256xf32>
    %335 = arith.select %330, %333, %334 : vector<128x256xi1>, vector<128x256xf32>
    %336 = arith.addf %327, %335 : vector<128x256xf32>
    %337 = vector.extract_strided_slice %46 {offsets = [0, 7], sizes = [128, 1], strides = [1, 1]} : vector<128x8xi32> to vector<128x1xi32>
    %338 = vector.broadcast %337 : vector<128x1xi32> to vector<128x256xi32>
    %339 = arith.cmpi eq, %59, %338 : vector<128x256xi32>
    %340 = vector.extract_strided_slice %58 {offsets = [0, 7], sizes = [128, 1], strides = [1, 1]} : vector<128x8xf32> to vector<128x1xf32>
    %cst_50 = arith.constant 0.000000e+00 : f32
    %341 = vector.shape_cast %340 : vector<128x1xf32> to vector<128x1xf32>
    %342 = vector.broadcast %341 : vector<128x1xf32> to vector<128x256xf32>
    %343 = vector.broadcast %cst_50 : f32 to vector<128x256xf32>
    %344 = arith.select %339, %342, %343 : vector<128x256xi1>, vector<128x256xf32>
    %345 = arith.addf %336, %344 : vector<128x256xf32>
    %346 = arith.addf %310, %345 : vector<128x256xf32>
    %c0_51 = arith.constant 0 : index
    %c0_52 = arith.constant 0 : index
    %c0_53 = arith.constant 0 : index
    %347 = vector.load %arg4[%c0_51, %c0_52, %c0_53] : memref<1x256x32xf32, #tpu.memory_space<vmem>>, vector<1x256x32xf32>
    %348 = vector.shape_cast %347 : vector<1x256x32xf32> to vector<256x32xf32>
    %cst_54 = arith.constant dense<0.000000e+00> : vector<128x32xf32>
    %349 = tpu.matmul %346, %348, %cst_54 {dimension_numbers = #tpu.dot_dimension_numbers<[1], [0], [0], [1], [0, 0, 1, 1], [], []>} : vector<128x256xf32>, vector<256x32xf32>, vector<128x32xf32> -> vector<128x32xf32>
    %c0_55 = arith.constant 0 : index
    %c0_56 = arith.constant 0 : index
    %350 = vector.load %arg5[%c0_55, %c0_56] : memref<128x32xf32, #tpu.memory_space<vmem>>, vector<128x32xf32>
    tpu.vector_store %arg5[%c0_55, %c0_56], %349 {strides = array<i32>} : memref<128x32xf32, #tpu.memory_space<vmem>>, vector<128x32xf32>,
    return
  }
  func.func @transform_0(%arg0: i32, %arg1: i32, %arg2: memref<2xi32, #tpu.memory_space<smem>>) -> (i32, i32) {
    %c0_i32 = arith.constant 0 : i32
    %c0_i32_0 = arith.constant 0 : i32
    return %arg1, %c0_i32 : i32, i32
  }
  func.func @transform_1(%arg0: i32, %arg1: i32, %arg2: memref<2xi32, #tpu.memory_space<smem>>) -> (i32, i32, i32) {
    %0 = arith.index_cast %arg1 : i32 to index
    %1 = memref.load %arg2[%0] : memref<2xi32, #tpu.memory_space<smem>>
    %c0_i32 = arith.constant 0 : i32
    %c0_i32_0 = arith.constant 0 : i32
    return %1, %c0_i32, %arg0 : i32, i32, i32
  }
  func.func @transform_2(%arg0: i32, %arg1: i32, %arg2: memref<2xi32, #tpu.memory_space<smem>>) -> (i32, i32) {
    %c0_i32 = arith.constant 0 : i32
    return %arg1, %arg0 : i32, i32
  }
}

</mosaic_0001>

<llo_original>
// kernel: tpu_custom_call.1
$region0: #{tpu_custom_call.1}
  #allocation0 [shape = 'u32[]', space=smem, size = 0x4, offset = 0x4, fixed_abs, tag = 'smem constant byte address 0x4 - core index']
  #allocation1 [shape = 'u32[144,128]{1,0:T(1,128)}', space=vmem, size = 0x12000, scoped, tag = 'internal scratch']
  #allocation2 [shape = 's32[1]{0}', space=sflag, size = 0x4, scoped, tag = 'scoped memory for tpu_custom_call.1']
  #allocation3 [shape = 'u8[512]{0}', space=smem, size = 0x200, scoped, tag = 'prefetched SMEM operand 0']
  %s0 = inlined_call_operand.vmem [shape: s32[2], index: 0, kind: input, shape index: {}]
  %s1 = inlined_call_operand.vmem [shape: f32[256,16], index: 1, kind: input, shape index: {}]
  %s2 = inlined_call_operand.vmem [shape: f32[2,256,32], index: 2, kind: input, shape index: {}]
  %s3 = inlined_call_operand.vmem [shape: f32[256,32], index: 3, kind: output, shape index: {}]
  %s4 = sld [smem:[#allocation0]]
  $region41: #{tpu_custom_call.1} parent=0
    _
  %s6 = ssub.s32 1, %s4
  %s7 = scalar_select 0, %s6, %s4
  %s8 = sshll.u32 %s0, 4
  %s9 = int_to_ptr.vmem [resolvable:$true] %s8
  %11 = dma.vmem_to_smem %s9, 16, [#allocation3], [#allocation2]
  %12 = dma.done [#allocation2], 16
  %13 = sfence
  loop: start=0, step=1, limit=4
  $region2: #{tpu_custom_call.1} parent=0 // loop_pre_header
    _
  $region3: #{tpu_custom_call.1} parent=0 // loop_header
    %s15 = sphi 0, %s19
    %p16 = scmp.ge.s32.totalorder %s15, 4
    %s22 = sphi 0, %s34
    %s23 = sphi 0, %s30
    %s24 = sphi 0, %s22
    %s25 = sphi 0, %s23
    %s26 = sphi 0, %s24
    %s27 = sphi 0, %s25
    %s37 = sphi 0, %s39
    %s40 = sphi 0, %s37
    %s41 = sphi 0, %s40
    %s57 = sphi 0, %s41
    %s67 = sphi 0, %s69
    %s70 = sphi 0, %s67
    %s71 = sphi 0, %s70
    %s87 = sphi 0, %s71
    %s95 = sphi 0, %s97
    %s98 = sphi 0, %s95
    %s99 = sphi 0, %s98
    %s115 = sphi 0, %s99
  $region4: #{tpu_custom_call.1} parent=0 // loop_header_branch
    %18 = sbr.rel (%p16) target = $region8
  $region5: #{tpu_custom_call.1} parent=0 // loop_body
    %s20 = ssub.s32 %s15, 1
    %s21 = ssub.s32 %s15, 2
    %s28 = sadd.s32 1, %s23
    %p29 = scmp.ge.s32.totalorder %s28, 2
    %s30 = scalar_select %p29, 0, %s28
    %s31 = sadd.s32 1, %s22
    %s32 = scalar_select %p29, %s31, %s22
    %p33 = scmp.ge.s32.totalorder %s32, 1
    %s34 = scalar_select %p33, 0, %s32
    %s35 = ssub.s32 %s23, %s30
    %p36 = scmp.eq.s32.totalorder %s35, 0
    %s38 = sadd.s32 %s37, 1
    %s39 = scalar_select %p36, %s37, %s38
    %p42 = pneg %p36
    %p43 = scmp.eq.s32.totalorder %s15, 1
    %p44 = por %p42, %p43
    %p45 = scmp.ne.s32.totalorder %s37, %s40
    %p46 = scmp.eq.s32.totalorder %s15, 0
    %p47 = por %p45, %p46
    %p48 = scmp.ne.s32.totalorder %s37, %s40
    %p49 = scmp.eq.s32.totalorder %s20, 1
    %p50 = por %p48, %p49
    %p51 = scmp.ne.s32.totalorder %s40, %s41
    %p52 = scmp.eq.s32.totalorder %s20, 0
    %p53 = por %p51, %p52
    %p54 = scmp.ne.s32.totalorder %s40, %s41
    %p55 = scmp.eq.s32.totalorder %s21, 1
    %p56 = por %p54, %p55
    %p58 = scmp.ne.s32.totalorder %s41, %s57
    %p59 = scmp.eq.s32.totalorder %s21, 0
    %p60 = por %p58, %p59
    %s61 = sld [smem:[#allocation3 + %s23]]
    %s62 = sld [smem:[#allocation3 + %s30]]
    %s63 = ssub.s32 %s61, %s62
    %s64 = ssub.s32 %s22, %s34
    %s65 = sor.u32 %s63, %s64
    %p66 = scmp.eq.s32.totalorder %s65, 0
    %s68 = sadd.s32 %s67, 1
    %s69 = scalar_select %p66, %s67, %s68
    %p72 = pneg %p66
    %p73 = scmp.eq.s32.totalorder %s15, 1
    %p74 = por %p72, %p73
    %p75 = scmp.ne.s32.totalorder %s67, %s70
    %p76 = scmp.eq.s32.totalorder %s15, 0
    %p77 = por %p75, %p76
    %p78 = scmp.ne.s32.totalorder %s67, %s70
    %p79 = scmp.eq.s32.totalorder %s20, 1
    %p80 = por %p78, %p79
    %p81 = scmp.ne.s32.totalorder %s70, %s71
    %p82 = scmp.eq.s32.totalorder %s20, 0
    %p83 = por %p81, %p82
    %p84 = scmp.ne.s32.totalorder %s70, %s71
    %p85 = scmp.eq.s32.totalorder %s21, 1
    %p86 = por %p84, %p85
    %p88 = scmp.ne.s32.totalorder %s71, %s87
    %p89 = scmp.eq.s32.totalorder %s21, 0
    %p90 = por %p88, %p89
    %s91 = ssub.s32 %s23, %s30
    %s92 = ssub.s32 %s22, %s34
    %s93 = sor.u32 %s91, %s92
    %p94 = scmp.eq.s32.totalorder %s93, 0
    %s96 = sadd.s32 %s95, 1
    %s97 = scalar_select %p94, %s95, %s96
    %p100 = pneg %p94
    %p101 = scmp.eq.s32.totalorder %s15, 1
    %p102 = por %p100, %p101
    %p103 = scmp.ne.s32.totalorder %s95, %s98
    %p104 = scmp.eq.s32.totalorder %s15, 0
    %p105 = por %p103, %p104
    %p106 = scmp.ne.s32.totalorder %s95, %s98
    %p107 = scmp.eq.s32.totalorder %s20, 1
    %p108 = por %p106, %p107
    %p109 = scmp.ne.s32.totalorder %s98, %s99
    %p110 = scmp.eq.s32.totalorder %s20, 0
    %p111 = por %p109, %p110
    %p112 = scmp.ne.s32.totalorder %s98, %s99
    %p113 = scmp.eq.s32.totalorder %s21, 1
    %p114 = por %p112, %p113
    %p116 = scmp.ne.s32.totalorder %s99, %s115
    %p117 = scmp.eq.s32.totalorder %s21, 0
    %p118 = por %p116, %p117
    %p119 = scmp.le.s32.totalorder 1, %s15
    %p120 = scmp.lt.s32.totalorder %s15, 3
    %p121 = pnand %p119, %p120
    %p122 = pneg %p121
    // Predicated region
    $region9: #{tpu_custom_call.1} parent=5 // pred_check
      _
    $region10: #{tpu_custom_call.1} parent=5 // pred_check_branch
      %124 = sbr.rel (%p121) target = $region12
    $region11: #{tpu_custom_call.1} parent=5 // pred_region
      %s125 = ssub.s32 %s15, 1
    $region12: #{tpu_custom_call.1} parent=5 // pred_fallthru
      _
    %p126 = scmp.lt.s32.totalorder %s15, 2
    // Predicated region
    $region13: #{tpu_custom_call.1} parent=5 // pred_check
      %p127 = pneg %p126
    $region14: #{tpu_custom_call.1} parent=5 // pred_check_branch
      %129 = sbr.rel (%p127) target = $region16
    $region15: #{tpu_custom_call.1} parent=5 // pred_region
      // Predicated region
      $region17: #{tpu_custom_call.1} parent=15 // pred_check
        %p130 = pneg %p47
      $region18: #{tpu_custom_call.1} parent=15 // pred_check_branch
        %132 = sbr.rel (%p130) target = $region20
      $region19: #{tpu_custom_call.1} parent=15 // pred_region
        %s133 = smul.u32 16, %s23
        %p134 = scmp.lt.s32.totalorder %s133, 31
        %s135 = scalar_select %p134, %s133, 31
        %s136 = smul.addr %s135, 8
        %s137 = scalar_lea.vmem %s1, %s136
        %s138 = smul.u32 16, %s23
      $region20: #{tpu_custom_call.1} parent=15 // pred_fallthru
        _
      // Predicated region
      $region21: #{tpu_custom_call.1} parent=15 // pred_check
        %p139 = pneg %p77
      $region22: #{tpu_custom_call.1} parent=15 // pred_check_branch
        %141 = sbr.rel (%p139) target = $region24
      $region23: #{tpu_custom_call.1} parent=15 // pred_region
        %s142 = sld [smem:[#allocation3 + %s23]]
        %p143 = scmp.lt.s32.totalorder %s142, 1
        %s144 = scalar_select %p143, %s142, 1
        %p145 = scmp.lt.s32.totalorder %s22, 0
        %s146 = scalar_select %p145, %s22, 0
        %s147 = smul.addr %s144, 32
        %s148 = sadd.s32 %s146, %s147
        %s149 = smul.addr %s148, 8
        %s150 = scalar_lea.vmem %s2, %s149
        %s151 = sld [smem:[#allocation3 + %s23]]
      $region24: #{tpu_custom_call.1} parent=15 // pred_fallthru
        _
    $region16: #{tpu_custom_call.1} parent=5 // pred_fallthru
      _
    %p152 = scmp.le.s32.totalorder 1, %s15
    %p153 = scmp.lt.s32.totalorder %s15, 3
    %p154 = pnand %p152, %p153
    %p155 = pneg %p154
    // Predicated region
    $region25: #{tpu_custom_call.1} parent=5 // pred_check
      _
    $region26: #{tpu_custom_call.1} parent=5 // pred_check_branch
      %157 = sbr.rel (%p154) target = $region28
    $region27: #{tpu_custom_call.1} parent=5 // pred_region
      %s158 = ssub.s32 %s15, 1
      %s159 = smul.u32 16, %s25
      %p160 = scmp.lt.s32.totalorder %s159, 31
      %s161 = scalar_select %p160, %s159, 31
      %s162 = smul.addr %s161, 8
      %s163 = scalar_lea.vmem %s1, %s162
      %p164 = pneg %p53
      %p165 = pneg %p50
      %s166 = sld [smem:[#allocation3 + %s25]]
      %p167 = scmp.lt.s32.totalorder %s166, 1
      %s168 = scalar_select %p167, %s166, 1
      %p169 = scmp.lt.s32.totalorder %s24, 0
      %s170 = scalar_select %p169, %s24, 0
      %s171 = smul.addr %s168, 32
      %s172 = sadd.s32 %s170, %s171
      %s173 = smul.addr %s172, 8
      %s174 = scalar_lea.vmem %s2, %s173
      %p175 = pneg %p83
      %p176 = pneg %p80
      %p177 = pneg %p111
      %p178 = pneg %p108
      %s179 = smul.u32 16, %s25
      %p180 = scmp.lt.s32.totalorder %s179, 31
      %s181 = scalar_select %p180, %s179, 31
      %p182 = scmp.lt.s32.totalorder %s24, 0
      %s183 = scalar_select %p182, %s24, 0
      %s184 = sadd.s32 %s183, %s181
      %s185 = smul.addr %s184, 8
      %s186 = scalar_lea.vmem %s3, %s185
      %s187 = smul.u32 16, %s25
      %p188 = scmp.lt.s32.totalorder %s187, 31
      %s189 = scalar_select %p188, %s187, 31
      %s190 = smul.addr %s189, 8
      %s191 = scalar_lea.vmem %s1, %s190
      %s192 = smul.u32 16, %s25
      %s193 = sld [smem:[#allocation3 + %s25]]
      %p194 = scmp.lt.s32.totalorder %s193, 1
      %s195 = scalar_select %p194, %s193, 1
      %p196 = scmp.lt.s32.totalorder %s24, 0
      %s197 = scalar_select %p196, %s24, 0
      %s198 = smul.addr %s195, 32
      %s199 = sadd.s32 %s197, %s198
      %s200 = smul.addr %s199, 8
      %s201 = scalar_lea.vmem %s2, %s200
      %s202 = sld [smem:[#allocation3 + %s25]]
      %s203 = smul.u32 16, %s25
      %p204 = scmp.lt.s32.totalorder %s203, 31
      %s205 = scalar_select %p204, %s203, 31
      %p206 = scmp.lt.s32.totalorder %s24, 0
      %s207 = scalar_select %p206, %s24, 0
      %s208 = sadd.s32 %s207, %s205
      %s209 = smul.addr %s208, 8
      %s210 = scalar_lea.vmem %s3, %s209
      %s211 = smul.u32 16, %s25
      %v212 = vld [vmem:[%s191] sm:$0xff]
      %v213 = vld [vmem:[%s191 + $0x8] sm:$0xff]
      %v214 = vld [vmem:[%s191 + $0x10] sm:$0xff]
      %v215 = vld [vmem:[%s191 + $0x18] sm:$0xff]
      %v216 = vld [vmem:[%s191 + $0x20] sm:$0xff]
      %v217 = vld [vmem:[%s191 + $0x28] sm:$0xff]
      %v218 = vld [vmem:[%s191 + $0x30] sm:$0xff]
      %v219 = vld [vmem:[%s191 + $0x38] sm:$0xff]
      %v220 = vld [vmem:[%s191 + $0x40] sm:$0xff]
      %v221 = vld [vmem:[%s191 + $0x48] sm:$0xff]
      %v222 = vld [vmem:[%s191 + $0x50] sm:$0xff]
      %v223 = vld [vmem:[%s191 + $0x58] sm:$0xff]
      %v224 = vld [vmem:[%s191 + $0x60] sm:$0xff]
      %v225 = vld [vmem:[%s191 + $0x68] sm:$0xff]
      %v226 = vld [vmem:[%s191 + $0x70] sm:$0xff]
      %v227 = vld [vmem:[%s191 + $0x78] sm:$0xff]
      %v228 = vmul.f32 %v212, 15.0
      %v229 = vmul.f32 %v213, 15.0
      %v230 = vmul.f32 %v214, 15.0
      %v231 = vmul.f32 %v215, 15.0
      %v232 = vmul.f32 %v216, 15.0
      %v233 = vmul.f32 %v217, 15.0
      %v234 = vmul.f32 %v218, 15.0
      %v235 = vmul.f32 %v219, 15.0
      %v236 = vmul.f32 %v220, 15.0
      %v237 = vmul.f32 %v221, 15.0
      %v238 = vmul.f32 %v222, 15.0
      %v239 = vmul.f32 %v223, 15.0
      %v240 = vmul.f32 %v224, 15.0
      %v241 = vmul.f32 %v225, 15.0
      %v242 = vmul.f32 %v226, 15.0
      %v243 = vmul.f32 %v227, 15.0
      %v244 = vfloor.f32 %v228
      %v245 = vfloor.f32 %v229
      %v246 = vfloor.f32 %v230
      %v247 = vfloor.f32 %v231
      %v248 = vfloor.f32 %v232
      %v249 = vfloor.f32 %v233
      %v250 = vfloor.f32 %v234
      %v251 = vfloor.f32 %v235
      %v252 = vfloor.f32 %v236
      %v253 = vfloor.f32 %v237
      %v254 = vfloor.f32 %v238
      %v255 = vfloor.f32 %v239
      %v256 = vfloor.f32 %v240
      %v257 = vfloor.f32 %v241
      %v258 = vfloor.f32 %v242
      %v259 = vfloor.f32 %v243
      %v260 = vmax.f32 %v244, 0.0
      %v261 = vmax.f32 %v245, 0.0
      %v262 = vmax.f32 %v246, 0.0
      %v263 = vmax.f32 %v247, 0.0
      %v264 = vmax.f32 %v248, 0.0
      %v265 = vmax.f32 %v249, 0.0
      %v266 = vmax.f32 %v250, 0.0
      %v267 = vmax.f32 %v251, 0.0
      %v268 = vmax.f32 %v252, 0.0
      %v269 = vmax.f32 %v253, 0.0
      %v270 = vmax.f32 %v254, 0.0
      %v271 = vmax.f32 %v255, 0.0
      %v272 = vmax.f32 %v256, 0.0
      %v273 = vmax.f32 %v257, 0.0
      %v274 = vmax.f32 %v258, 0.0
      %v275 = vmax.f32 %v259, 0.0
      %v276 = vmin.f32 %v260, 15.0
      %v277 = vmin.f32 %v261, 15.0
      %v278 = vmin.f32 %v262, 15.0
      %v279 = vmin.f32 %v263, 15.0
      %v280 = vmin.f32 %v264, 15.0
      %v281 = vmin.f32 %v265, 15.0
      %v282 = vmin.f32 %v266, 15.0
      %v283 = vmin.f32 %v267, 15.0
      %v284 = vmin.f32 %v268, 15.0
      %v285 = vmin.f32 %v269, 15.0
      %v286 = vmin.f32 %v270, 15.0
      %v287 = vmin.f32 %v271, 15.0
      %v288 = vmin.f32 %v272, 15.0
      %v289 = vmin.f32 %v273, 15.0
      %v290 = vmin.f32 %v274, 15.0
      %v291 = vmin.f32 %v275, 15.0
      %v292 = vadd.f32 %v276, 1.0
      %v293 = vadd.f32 %v277, 1.0
      %v294 = vadd.f32 %v278, 1.0
      %v295 = vadd.f32 %v279, 1.0
      %v296 = vadd.f32 %v280, 1.0
      %v297 = vadd.f32 %v281, 1.0
      %v298 = vadd.f32 %v282, 1.0
      %v299 = vadd.f32 %v283, 1.0
      %v300 = vadd.f32 %v284, 1.0
      %v301 = vadd.f32 %v285, 1.0
      %v302 = vadd.f32 %v286, 1.0
      %v303 = vadd.f32 %v287, 1.0
      %v304 = vadd.f32 %v288, 1.0
      %v305 = vadd.f32 %v289, 1.0
      %v306 = vadd.f32 %v290, 1.0
      %v307 = vadd.f32 %v291, 1.0
      %v308 = vmin.f32 %v292, 15.0
      %v309 = vmin.f32 %v293, 15.0
      %v310 = vmin.f32 %v294, 15.0
      %v311 = vmin.f32 %v295, 15.0
      %v312 = vmin.f32 %v296, 15.0
      %v313 = vmin.f32 %v297, 15.0
      %v314 = vmin.f32 %v298, 15.0
      %v315 = vmin.f32 %v299, 15.0
      %v316 = vmin.f32 %v300, 15.0
      %v317 = vmin.f32 %v301, 15.0
      %v318 = vmin.f32 %v302, 15.0
      %v319 = vmin.f32 %v303, 15.0
      %v320 = vmin.f32 %v304, 15.0
      %v321 = vmin.f32 %v305, 15.0
      %v322 = vmin.f32 %v306, 15.0
      %v323 = vmin.f32 %v307, 15.0
      %v324 = vsub.f32 %v228, %v276
      %v325 = vsub.f32 %v229, %v277
      %v326 = vsub.f32 %v230, %v278
      %v327 = vsub.f32 %v231, %v279
      %v328 = vsub.f32 %v232, %v280
      %v329 = vsub.f32 %v233, %v281
      %v330 = vsub.f32 %v234, %v282
      %v331 = vsub.f32 %v235, %v283
      %v332 = vsub.f32 %v236, %v284
      %v333 = vsub.f32 %v237, %v285
      %v334 = vsub.f32 %v238, %v286
      %v335 = vsub.f32 %v239, %v287
      %v336 = vsub.f32 %v240, %v288
      %v337 = vsub.f32 %v241, %v289
      %v338 = vsub.f32 %v242, %v290
      %v339 = vsub.f32 %v243, %v291
      %v340 = vsub.f32 1.0, %v324
      %v341 = vsub.f32 1.0, %v325
      %v342 = vsub.f32 1.0, %v326
      %v343 = vsub.f32 1.0, %v327
      %v344 = vsub.f32 1.0, %v328
      %v345 = vsub.f32 1.0, %v329
      %v346 = vsub.f32 1.0, %v330
      %v347 = vsub.f32 1.0, %v331
      %v348 = vsub.f32 1.0, %v332
      %v349 = vsub.f32 1.0, %v333
      %v350 = vsub.f32 1.0, %v334
      %v351 = vsub.f32 1.0, %v335
      %v352 = vsub.f32 1.0, %v336
      %v353 = vsub.f32 1.0, %v337
      %v354 = vsub.f32 1.0, %v338
      %v355 = vsub.f32 1.0, %v339
      %v356 = vcvt.f32.s32.to.zero.pseudo %v276
      %v357 = vcvt.f32.s32.to.zero.pseudo %v277
      %v358 = vcvt.f32.s32.to.zero.pseudo %v278
      %v359 = vcvt.f32.s32.to.zero.pseudo %v279
      %v360 = vcvt.f32.s32.to.zero.pseudo %v280
      %v361 = vcvt.f32.s32.to.zero.pseudo %v281
      %v362 = vcvt.f32.s32.to.zero.pseudo %v282
      %v363 = vcvt.f32.s32.to.zero.pseudo %v283
      %v364 = vcvt.f32.s32.to.zero.pseudo %v284
      %v365 = vcvt.f32.s32.to.zero.pseudo %v285
      %v366 = vcvt.f32.s32.to.zero.pseudo %v286
      %v367 = vcvt.f32.s32.to.zero.pseudo %v287
      %v368 = vcvt.f32.s32.to.zero.pseudo %v288
      %v369 = vcvt.f32.s32.to.zero.pseudo %v289
      %v370 = vcvt.f32.s32.to.zero.pseudo %v290
      %v371 = vcvt.f32.s32.to.zero.pseudo %v291
      %v372 = vcvt.f32.s32.to.zero.pseudo %v308
      %v373 = vcvt.f32.s32.to.zero.pseudo %v309
      %v374 = vcvt.f32.s32.to.zero.pseudo %v310
      %v375 = vcvt.f32.s32.to.zero.pseudo %v311
      %v376 = vcvt.f32.s32.to.zero.pseudo %v312
      %v377 = vcvt.f32.s32.to.zero.pseudo %v313
      %v378 = vcvt.f32.s32.to.zero.pseudo %v314
      %v379 = vcvt.f32.s32.to.zero.pseudo %v315
      %v380 = vcvt.f32.s32.to.zero.pseudo %v316
      %v381 = vcvt.f32.s32.to.zero.pseudo %v317
      %v382 = vcvt.f32.s32.to.zero.pseudo %v318
      %v383 = vcvt.f32.s32.to.zero.pseudo %v319
      %v384 = vcvt.f32.s32.to.zero.pseudo %v320
      %v385 = vcvt.f32.s32.to.zero.pseudo %v321
      %v386 = vcvt.f32.s32.to.zero.pseudo %v322
      %v387 = vcvt.f32.s32.to.zero.pseudo %v323
      %v388 = vmul.u32 %v356, 16
      %v389 = vmul.u32 %v357, 16
      %v390 = vmul.u32 %v358, 16
      %v391 = vmul.u32 %v359, 16
      %v392 = vmul.u32 %v360, 16
      %v393 = vmul.u32 %v361, 16
      %v394 = vmul.u32 %v362, 16
      %v395 = vmul.u32 %v363, 16
      %v396 = vmul.u32 %v364, 16
      %v397 = vmul.u32 %v365, 16
      %v398 = vmul.u32 %v366, 16
      %v399 = vmul.u32 %v367, 16
      %v400 = vmul.u32 %v368, 16
      %v401 = vmul.u32 %v369, 16
      %v402 = vmul.u32 %v370, 16
      %v403 = vmul.u32 %v371, 16
      %404 = vrot.lane.b32.xlu0 %v356, 8
      %v405 = vpop.permute.xlu0 %404
      %406 = vrot.lane.b32.xlu0 %v357, 8
      %v407 = vpop.permute.xlu0 %406
      %408 = vrot.lane.b32.xlu0 %v358, 8
      %v409 = vpop.permute.xlu0 %408
      %410 = vrot.lane.b32.xlu0 %v359, 8
      %v411 = vpop.permute.xlu0 %410
      %412 = vrot.lane.b32.xlu0 %v360, 8
      %v413 = vpop.permute.xlu0 %412
      %414 = vrot.lane.b32.xlu0 %v361, 8
      %v415 = vpop.permute.xlu0 %414
      %416 = vrot.lane.b32.xlu0 %v362, 8
      %v417 = vpop.permute.xlu0 %416
      %418 = vrot.lane.b32.xlu0 %v363, 8
      %v419 = vpop.permute.xlu0 %418
      %420 = vrot.lane.b32.xlu0 %v364, 8
      %v421 = vpop.permute.xlu0 %420
      %422 = vrot.lane.b32.xlu0 %v365, 8
      %v423 = vpop.permute.xlu0 %422
      %424 = vrot.lane.b32.xlu0 %v366, 8
      %v425 = vpop.permute.xlu0 %424
      %426 = vrot.lane.b32.xlu0 %v367, 8
      %v427 = vpop.permute.xlu0 %426
      %428 = vrot.lane.b32.xlu0 %v368, 8
      %v429 = vpop.permute.xlu0 %428
      %430 = vrot.lane.b32.xlu0 %v369, 8
      %v431 = vpop.permute.xlu0 %430
      %432 = vrot.lane.b32.xlu0 %v370, 8
      %v433 = vpop.permute.xlu0 %432
      %434 = vrot.lane.b32.xlu0 %v371, 8
      %v435 = vpop.permute.xlu0 %434
      %v436 = vadd.s32 %v388, %v405
      %v437 = vadd.s32 %v389, %v407
      %v438 = vadd.s32 %v390, %v409
      %v439 = vadd.s32 %v391, %v411
      %v440 = vadd.s32 %v392, %v413
      %v441 = vadd.s32 %v393, %v415
      %v442 = vadd.s32 %v394, %v417
      %v443 = vadd.s32 %v395, %v419
      %v444 = vadd.s32 %v396, %v421
      %v445 = vadd.s32 %v397, %v423
      %v446 = vadd.s32 %v398, %v425
      %v447 = vadd.s32 %v399, %v427
      %v448 = vadd.s32 %v400, %v429
      %v449 = vadd.s32 %v401, %v431
      %v450 = vadd.s32 %v402, %v433
      %v451 = vadd.s32 %v403, %v435
      %452 = vrot.lane.b32.xlu0 %v372, 8
      %v453 = vpop.permute.xlu0 %452
      %454 = vrot.lane.b32.xlu0 %v373, 8
      %v455 = vpop.permute.xlu0 %454
      %456 = vrot.lane.b32.xlu0 %v374, 8
      %v457 = vpop.permute.xlu0 %456
      %458 = vrot.lane.b32.xlu0 %v375, 8
      %v459 = vpop.permute.xlu0 %458
      %460 = vrot.lane.b32.xlu0 %v376, 8
      %v461 = vpop.permute.xlu0 %460
      %462 = vrot.lane.b32.xlu0 %v377, 8
      %v463 = vpop.permute.xlu0 %462
      %464 = vrot.lane.b32.xlu0 %v378, 8
      %v465 = vpop.permute.xlu0 %464
      %466 = vrot.lane.b32.xlu0 %v379, 8
      %v467 = vpop.permute.xlu0 %466
      %468 = vrot.lane.b32.xlu0 %v380, 8
      %v469 = vpop.permute.xlu0 %468
      %470 = vrot.lane.b32.xlu0 %v381, 8
      %v471 = vpop.permute.xlu0 %470
      %472 = vrot.lane.b32.xlu0 %v382, 8
      %v473 = vpop.permute.xlu0 %472
      %474 = vrot.lane.b32.xlu0 %v383, 8
      %v475 = vpop.permute.xlu0 %474
      %476 = vrot.lane.b32.xlu0 %v384, 8
      %v477 = vpop.permute.xlu0 %476
      %478 = vrot.lane.b32.xlu0 %v385, 8
      %v479 = vpop.permute.xlu0 %478
      %480 = vrot.lane.b32.xlu0 %v386, 8
      %v481 = vpop.permute.xlu0 %480
      %482 = vrot.lane.b32.xlu0 %v387, 8
      %v483 = vpop.permute.xlu0 %482
      %v484 = vadd.s32 %v388, %v453
      %v485 = vadd.s32 %v389, %v455
      %v486 = vadd.s32 %v390, %v457
      %v487 = vadd.s32 %v391, %v459
      %v488 = vadd.s32 %v392, %v461
      %v489 = vadd.s32 %v393, %v463
      %v490 = vadd.s32 %v394, %v465
      %v491 = vadd.s32 %v395, %v467
      %v492 = vadd.s32 %v396, %v469
      %v493 = vadd.s32 %v397, %v471
      %v494 = vadd.s32 %v398, %v473
      %v495 = vadd.s32 %v399, %v475
      %v496 = vadd.s32 %v400, %v477
      %v497 = vadd.s32 %v401, %v479
      %v498 = vadd.s32 %v402, %v481
      %v499 = vadd.s32 %v403, %v483
      %v500 = vmul.u32 %v372, 16
      %v501 = vmul.u32 %v373, 16
      %v502 = vmul.u32 %v374, 16
      %v503 = vmul.u32 %v375, 16
      %v504 = vmul.u32 %v376, 16
      %v505 = vmul.u32 %v377, 16
      %v506 = vmul.u32 %v378, 16
      %v507 = vmul.u32 %v379, 16
      %v508 = vmul.u32 %v380, 16
      %v509 = vmul.u32 %v381, 16
      %v510 = vmul.u32 %v382, 16
      %v511 = vmul.u32 %v383, 16
      %v512 = vmul.u32 %v384, 16
      %v513 = vmul.u32 %v385, 16
      %v514 = vmul.u32 %v386, 16
      %v515 = vmul.u32 %v387, 16
      %v516 = vadd.s32 %v500, %v405
      %v517 = vadd.s32 %v501, %v407
      %v518 = vadd.s32 %v502, %v409
      %v519 = vadd.s32 %v503, %v411
      %v520 = vadd.s32 %v504, %v413
      %v521 = vadd.s32 %v505, %v415
      %v522 = vadd.s32 %v506, %v417
      %v523 = vadd.s32 %v507, %v419
      %v524 = vadd.s32 %v508, %v421
      %v525 = vadd.s32 %v509, %v423
      %v526 = vadd.s32 %v510, %v425
      %v527 = vadd.s32 %v511, %v427
      %v528 = vadd.s32 %v512, %v429
      %v529 = vadd.s32 %v513, %v431
      %v530 = vadd.s32 %v514, %v433
      %v531 = vadd.s32 %v515, %v435
      %v532 = vadd.s32 %v500, %v453
      %v533 = vadd.s32 %v501, %v455
      %v534 = vadd.s32 %v502, %v457
      %v535 = vadd.s32 %v503, %v459
      %v536 = vadd.s32 %v504, %v461
      %v537 = vadd.s32 %v505, %v463
      %v538 = vadd.s32 %v506, %v465
      %v539 = vadd.s32 %v507, %v467
      %v540 = vadd.s32 %v508, %v469
      %v541 = vadd.s32 %v509, %v471
      %v542 = vadd.s32 %v510, %v473
      %v543 = vadd.s32 %v511, %v475
      %v544 = vadd.s32 %v512, %v477
      %v545 = vadd.s32 %v513, %v479
      %v546 = vadd.s32 %v514, %v481
      %v547 = vadd.s32 %v515, %v483
      %564 = vrot.lane.b32.xlu0 %v340, 8
      %v565 = vpop.permute.xlu0 %564
      %566 = vrot.lane.b32.xlu0 %v341, 8
      %v567 = vpop.permute.xlu0 %566
      %568 = vrot.lane.b32.xlu0 %v342, 8
      %v569 = vpop.permute.xlu0 %568
      %570 = vrot.lane.b32.xlu0 %v343, 8
      %v571 = vpop.permute.xlu0 %570
      %572 = vrot.lane.b32.xlu0 %v344, 8
      %v573 = vpop.permute.xlu0 %572
      %574 = vrot.lane.b32.xlu0 %v345, 8
      %v575 = vpop.permute.xlu0 %574
      %576 = vrot.lane.b32.xlu0 %v346, 8
      %v577 = vpop.permute.xlu0 %576
      %578 = vrot.lane.b32.xlu0 %v347, 8
      %v579 = vpop.permute.xlu0 %578
      %580 = vrot.lane.b32.xlu0 %v348, 8
      %v581 = vpop.permute.xlu0 %580
      %582 = vrot.lane.b32.xlu0 %v349, 8
      %v583 = vpop.permute.xlu0 %582
      %584 = vrot.lane.b32.xlu0 %v350, 8
      %v585 = vpop.permute.xlu0 %584
      %586 = vrot.lane.b32.xlu0 %v351, 8
      %v587 = vpop.permute.xlu0 %586
      %588 = vrot.lane.b32.xlu0 %v352, 8
      %v589 = vpop.permute.xlu0 %588
      %590 = vrot.lane.b32.xlu0 %v353, 8
      %v591 = vpop.permute.xlu0 %590
      %592 = vrot.lane.b32.xlu0 %v354, 8
      %v593 = vpop.permute.xlu0 %592
      %594 = vrot.lane.b32.xlu0 %v355, 8
      %v595 = vpop.permute.xlu0 %594
      %v612 = vmul.f32 %v340, %v565
      %v613 = vmul.f32 %v341, %v567
      %v614 = vmul.f32 %v342, %v569
      %v615 = vmul.f32 %v343, %v571
      %v616 = vmul.f32 %v344, %v573
      %v617 = vmul.f32 %v345, %v575
      %v618 = vmul.f32 %v346, %v577
      %v619 = vmul.f32 %v347, %v579
      %v620 = vmul.f32 %v348, %v581
      %v621 = vmul.f32 %v349, %v583
      %v622 = vmul.f32 %v350, %v585
      %v623 = vmul.f32 %v351, %v587
      %v624 = vmul.f32 %v352, %v589
      %v625 = vmul.f32 %v353, %v591
      %v626 = vmul.f32 %v354, %v593
      %v627 = vmul.f32 %v355, %v595
      %v628 = vmul.f32 %v612, 0.125
      %v629 = vmul.f32 %v613, 0.125
      %v630 = vmul.f32 %v614, 0.125
      %v631 = vmul.f32 %v615, 0.125
      %v632 = vmul.f32 %v616, 0.125
      %v633 = vmul.f32 %v617, 0.125
      %v634 = vmul.f32 %v618, 0.125
      %v635 = vmul.f32 %v619, 0.125
      %v636 = vmul.f32 %v620, 0.125
      %v637 = vmul.f32 %v621, 0.125
      %v638 = vmul.f32 %v622, 0.125
      %v639 = vmul.f32 %v623, 0.125
      %v640 = vmul.f32 %v624, 0.125
      %v641 = vmul.f32 %v625, 0.125
      %v642 = vmul.f32 %v626, 0.125
      %v643 = vmul.f32 %v627, 0.125
      %660 = vrot.lane.b32.xlu0 %v324, 8
      %v661 = vpop.permute.xlu0 %660
      %662 = vrot.lane.b32.xlu0 %v325, 8
      %v663 = vpop.permute.xlu0 %662
      %664 = vrot.lane.b32.xlu0 %v326, 8
      %v665 = vpop.permute.xlu0 %664
      %666 = vrot.lane.b32.xlu0 %v327, 8
      %v667 = vpop.permute.xlu0 %666
      %668 = vrot.lane.b32.xlu0 %v328, 8
      %v669 = vpop.permute.xlu0 %668
      %670 = vrot.lane.b32.xlu0 %v329, 8
      %v671 = vpop.permute.xlu0 %670
      %672 = vrot.lane.b32.xlu0 %v330, 8
      %v673 = vpop.permute.xlu0 %672
      %674 = vrot.lane.b32.xlu0 %v331, 8
      %v675 = vpop.permute.xlu0 %674
      %676 = vrot.lane.b32.xlu0 %v332, 8
      %v677 = vpop.permute.xlu0 %676
      %678 = vrot.lane.b32.xlu0 %v333, 8
      %v679 = vpop.permute.xlu0 %678
      %680 = vrot.lane.b32.xlu0 %v334, 8
      %v681 = vpop.permute.xlu0 %680
      %682 = vrot.lane.b32.xlu0 %v335, 8
      %v683 = vpop.permute.xlu0 %682
      %684 = vrot.lane.b32.xlu0 %v336, 8
      %v685 = vpop.permute.xlu0 %684
      %686 = vrot.lane.b32.xlu0 %v337, 8
      %v687 = vpop.permute.xlu0 %686
      %688 = vrot.lane.b32.xlu0 %v338, 8
      %v689 = vpop.permute.xlu0 %688
      %690 = vrot.lane.b32.xlu0 %v339, 8
      %v691 = vpop.permute.xlu0 %690
      %v708 = vmul.f32 %v340, %v661
      %v709 = vmul.f32 %v341, %v663
      %v710 = vmul.f32 %v342, %v665
      %v711 = vmul.f32 %v343, %v667
      %v712 = vmul.f32 %v344, %v669
      %v713 = vmul.f32 %v345, %v671
      %v714 = vmul.f32 %v346, %v673
      %v715 = vmul.f32 %v347, %v675
      %v716 = vmul.f32 %v348, %v677
      %v717 = vmul.f32 %v349, %v679
      %v718 = vmul.f32 %v350, %v681
      %v719 = vmul.f32 %v351, %v683
      %v720 = vmul.f32 %v352, %v685
      %v721 = vmul.f32 %v353, %v687
      %v722 = vmul.f32 %v354, %v689
      %v723 = vmul.f32 %v355, %v691
      %v724 = vmul.f32 %v708, 0.125
      %v725 = vmul.f32 %v709, 0.125
      %v726 = vmul.f32 %v710, 0.125
      %v727 = vmul.f32 %v711, 0.125
      %v728 = vmul.f32 %v712, 0.125
      %v729 = vmul.f32 %v713, 0.125
      %v730 = vmul.f32 %v714, 0.125
      %v731 = vmul.f32 %v715, 0.125
      %v732 = vmul.f32 %v716, 0.125
      %v733 = vmul.f32 %v717, 0.125
      %v734 = vmul.f32 %v718, 0.125
      %v735 = vmul.f32 %v719, 0.125
      %v736 = vmul.f32 %v720, 0.125
      %v737 = vmul.f32 %v721, 0.125
      %v738 = vmul.f32 %v722, 0.125
      %v739 = vmul.f32 %v723, 0.125
      %v740 = vmul.f32 %v324, %v565
      %v741 = vmul.f32 %v325, %v567
      %v742 = vmul.f32 %v326, %v569
      %v743 = vmul.f32 %v327, %v571
      %v744 = vmul.f32 %v328, %v573
      %v745 = vmul.f32 %v329, %v575
      %v746 = vmul.f32 %v330, %v577
      %v747 = vmul.f32 %v331, %v579
      %v748 = vmul.f32 %v332, %v581
      %v749 = vmul.f32 %v333, %v583
      %v750 = vmul.f32 %v334, %v585
      %v751 = vmul.f32 %v335, %v587
      %v752 = vmul.f32 %v336, %v589
      %v753 = vmul.f32 %v337, %v591
      %v754 = vmul.f32 %v338, %v593
      %v755 = vmul.f32 %v339, %v595
      %v756 = vmul.f32 %v740, 0.125
      %v757 = vmul.f32 %v741, 0.125
      %v758 = vmul.f32 %v742, 0.125
      %v759 = vmul.f32 %v743, 0.125
      %v760 = vmul.f32 %v744, 0.125
      %v761 = vmul.f32 %v745, 0.125
      %v762 = vmul.f32 %v746, 0.125
      %v763 = vmul.f32 %v747, 0.125
      %v764 = vmul.f32 %v748, 0.125
      %v765 = vmul.f32 %v749, 0.125
      %v766 = vmul.f32 %v750, 0.125
      %v767 = vmul.f32 %v751, 0.125
      %v768 = vmul.f32 %v752, 0.125
      %v769 = vmul.f32 %v753, 0.125
      %v770 = vmul.f32 %v754, 0.125
      %v771 = vmul.f32 %v755, 0.125
      %v772 = vmul.f32 %v324, %v661
      %v773 = vmul.f32 %v325, %v663
      %v774 = vmul.f32 %v326, %v665
      %v775 = vmul.f32 %v327, %v667
      %v776 = vmul.f32 %v328, %v669
      %v777 = vmul.f32 %v329, %v671
      %v778 = vmul.f32 %v330, %v673
      %v779 = vmul.f32 %v331, %v675
      %v780 = vmul.f32 %v332, %v677
      %v781 = vmul.f32 %v333, %v679
      %v782 = vmul.f32 %v334, %v681
      %v783 = vmul.f32 %v335, %v683
      %v784 = vmul.f32 %v336, %v685
      %v785 = vmul.f32 %v337, %v687
      %v786 = vmul.f32 %v338, %v689
      %v787 = vmul.f32 %v339, %v691
      %v788 = vmul.f32 %v772, 0.125
      %v789 = vmul.f32 %v773, 0.125
      %v790 = vmul.f32 %v774, 0.125
      %v791 = vmul.f32 %v775, 0.125
      %v792 = vmul.f32 %v776, 0.125
      %v793 = vmul.f32 %v777, 0.125
      %v794 = vmul.f32 %v778, 0.125
      %v795 = vmul.f32 %v779, 0.125
      %v796 = vmul.f32 %v780, 0.125
      %v797 = vmul.f32 %v781, 0.125
      %v798 = vmul.f32 %v782, 0.125
      %v799 = vmul.f32 %v783, 0.125
      %v800 = vmul.f32 %v784, 0.125
      %v801 = vmul.f32 %v785, 0.125
      %v802 = vmul.f32 %v786, 0.125
      %v803 = vmul.f32 %v787, 0.125
      %v804 = vlaneseq
      %v805 = vand.u32 %v804, 127
      %v806 = vadd.s32 %v805, 128
      %807 = vset.pattern.permute.xlu0 8
      %808 = vperm.xlu0 %807, %v436
      %v809 = vpop.permute.xlu0 %808
      %810 = vset.pattern.permute.xlu0 8
      %811 = vperm.xlu0 %810, %v437
      %v812 = vpop.permute.xlu0 %811
      %813 = vset.pattern.permute.xlu0 8
      %814 = vperm.xlu0 %813, %v438
      %v815 = vpop.permute.xlu0 %814
      %816 = vset.pattern.permute.xlu0 8
      %817 = vperm.xlu0 %816, %v439
      %v818 = vpop.permute.xlu0 %817
      %819 = vset.pattern.permute.xlu0 8
      %820 = vperm.xlu0 %819, %v440
      %v821 = vpop.permute.xlu0 %820
      %822 = vset.pattern.permute.xlu0 8
      %823 = vperm.xlu0 %822, %v441
      %v824 = vpop.permute.xlu0 %823
      %825 = vset.pattern.permute.xlu0 8
      %826 = vperm.xlu0 %825, %v442
      %v827 = vpop.permute.xlu0 %826
      %828 = vset.pattern.permute.xlu0 8
      %829 = vperm.xlu0 %828, %v443
      %v830 = vpop.permute.xlu0 %829
      %831 = vset.pattern.permute.xlu0 8
      %832 = vperm.xlu0 %831, %v444
      %v833 = vpop.permute.xlu0 %832
      %834 = vset.pattern.permute.xlu0 8
      %835 = vperm.xlu0 %834, %v445
      %v836 = vpop.permute.xlu0 %835
      %837 = vset.pattern.permute.xlu0 8
      %838 = vperm.xlu0 %837, %v446
      %v839 = vpop.permute.xlu0 %838
      %840 = vset.pattern.permute.xlu0 8
      %841 = vperm.xlu0 %840, %v447
      %v842 = vpop.permute.xlu0 %841
      %843 = vset.pattern.permute.xlu0 8
      %844 = vperm.xlu0 %843, %v448
      %v845 = vpop.permute.xlu0 %844
      %846 = vset.pattern.permute.xlu0 8
      %847 = vperm.xlu0 %846, %v449
      %v848 = vpop.permute.xlu0 %847
      %849 = vset.pattern.permute.xlu0 8
      %850 = vperm.xlu0 %849, %v450
      %v851 = vpop.permute.xlu0 %850
      %852 = vset.pattern.permute.xlu0 8
      %853 = vperm.xlu0 %852, %v451
      %v854 = vpop.permute.xlu0 %853
      %vm855 = vcmp.eq.s32.totalorder %v805, %v809
      %vm856 = vcmp.eq.s32.totalorder %v806, %v809
      %vm857 = vcmp.eq.s32.totalorder %v805, %v812
      %vm858 = vcmp.eq.s32.totalorder %v806, %v812
      %vm859 = vcmp.eq.s32.totalorder %v805, %v815
      %vm860 = vcmp.eq.s32.totalorder %v806, %v815
      %vm861 = vcmp.eq.s32.totalorder %v805, %v818
      %vm862 = vcmp.eq.s32.totalorder %v806, %v818
      %vm863 = vcmp.eq.s32.totalorder %v805, %v821
      %vm864 = vcmp.eq.s32.totalorder %v806, %v821
      %vm865 = vcmp.eq.s32.totalorder %v805, %v824
      %vm866 = vcmp.eq.s32.totalorder %v806, %v824
      %vm867 = vcmp.eq.s32.totalorder %v805, %v827
      %vm868 = vcmp.eq.s32.totalorder %v806, %v827
      %vm869 = vcmp.eq.s32.totalorder %v805, %v830
      %vm870 = vcmp.eq.s32.totalorder %v806, %v830
      %vm871 = vcmp.eq.s32.totalorder %v805, %v833
      %vm872 = vcmp.eq.s32.totalorder %v806, %v833
      %vm873 = vcmp.eq.s32.totalorder %v805, %v836
      %vm874 = vcmp.eq.s32.totalorder %v806, %v836
      %vm875 = vcmp.eq.s32.totalorder %v805, %v839
      %vm876 = vcmp.eq.s32.totalorder %v806, %v839
      %vm877 = vcmp.eq.s32.totalorder %v805, %v842
      %vm878 = vcmp.eq.s32.totalorder %v806, %v842
      %vm879 = vcmp.eq.s32.totalorder %v805, %v845
      %vm880 = vcmp.eq.s32.totalorder %v806, %v845
      %vm881 = vcmp.eq.s32.totalorder %v805, %v848
      %vm882 = vcmp.eq.s32.totalorder %v806, %v848
      %vm883 = vcmp.eq.s32.totalorder %v805, %v851
      %vm884 = vcmp.eq.s32.totalorder %v806, %v851
      %vm885 = vcmp.eq.s32.totalorder %v805, %v854
      %vm886 = vcmp.eq.s32.totalorder %v806, %v854
      %888 = vset.pattern.permute.xlu0 8
      %889 = vperm.xlu0 %888, %v628
      %v890 = vpop.permute.xlu0 %889
      %893 = vset.pattern.permute.xlu0 8
      %894 = vperm.xlu0 %893, %v629
      %v895 = vpop.permute.xlu0 %894
      %898 = vset.pattern.permute.xlu0 8
      %899 = vperm.xlu0 %898, %v630
      %v900 = vpop.permute.xlu0 %899
      %903 = vset.pattern.permute.xlu0 8
      %904 = vperm.xlu0 %903, %v631
      %v905 = vpop.permute.xlu0 %904
      %908 = vset.pattern.permute.xlu0 8
      %909 = vperm.xlu0 %908, %v632
      %v910 = vpop.permute.xlu0 %909
      %913 = vset.pattern.permute.xlu0 8
      %914 = vperm.xlu0 %913, %v633
      %v915 = vpop.permute.xlu0 %914
      %918 = vset.pattern.permute.xlu0 8
      %919 = vperm.xlu0 %918, %v634
      %v920 = vpop.permute.xlu0 %919
      %923 = vset.pattern.permute.xlu0 8
      %924 = vperm.xlu0 %923, %v635
      %v925 = vpop.permute.xlu0 %924
      %928 = vset.pattern.permute.xlu0 8
      %929 = vperm.xlu0 %928, %v636
      %v930 = vpop.permute.xlu0 %929
      %933 = vset.pattern.permute.xlu0 8
      %934 = vperm.xlu0 %933, %v637
      %v935 = vpop.permute.xlu0 %934
      %938 = vset.pattern.permute.xlu0 8
      %939 = vperm.xlu0 %938, %v638
      %v940 = vpop.permute.xlu0 %939
      %943 = vset.pattern.permute.xlu0 8
      %944 = vperm.xlu0 %943, %v639
      %v945 = vpop.permute.xlu0 %944
      %948 = vset.pattern.permute.xlu0 8
      %949 = vperm.xlu0 %948, %v640
      %v950 = vpop.permute.xlu0 %949
      %953 = vset.pattern.permute.xlu0 8
      %954 = vperm.xlu0 %953, %v641
      %v955 = vpop.permute.xlu0 %954
      %958 = vset.pattern.permute.xlu0 8
      %959 = vperm.xlu0 %958, %v642
      %v960 = vpop.permute.xlu0 %959
      %963 = vset.pattern.permute.xlu0 8
      %964 = vperm.xlu0 %963, %v643
      %v965 = vpop.permute.xlu0 %964
      %v967 = vsel %vm855, %v890, 0.0
      %v968 = vsel %vm856, %v890, 0.0
      %v969 = vsel %vm857, %v895, 0.0
      %v970 = vsel %vm858, %v895, 0.0
      %v971 = vsel %vm859, %v900, 0.0
      %v972 = vsel %vm860, %v900, 0.0
      %v973 = vsel %vm861, %v905, 0.0
      %v974 = vsel %vm862, %v905, 0.0
      %v975 = vsel %vm863, %v910, 0.0
      %v976 = vsel %vm864, %v910, 0.0
      %v977 = vsel %vm865, %v915, 0.0
      %v978 = vsel %vm866, %v915, 0.0
      %v979 = vsel %vm867, %v920, 0.0
      %v980 = vsel %vm868, %v920, 0.0
      %v981 = vsel %vm869, %v925, 0.0
      %v982 = vsel %vm870, %v925, 0.0
      %v983 = vsel %vm871, %v930, 0.0
      %v984 = vsel %vm872, %v930, 0.0
      %v985 = vsel %vm873, %v935, 0.0
      %v986 = vsel %vm874, %v935, 0.0
      %v987 = vsel %vm875, %v940, 0.0
      %v988 = vsel %vm876, %v940, 0.0
      %v989 = vsel %vm877, %v945, 0.0
      %v990 = vsel %vm878, %v945, 0.0
      %v991 = vsel %vm879, %v950, 0.0
      %v992 = vsel %vm880, %v950, 0.0
      %v993 = vsel %vm881, %v955, 0.0
      %v994 = vsel %vm882, %v955, 0.0
      %v995 = vsel %vm883, %v960, 0.0
      %v996 = vsel %vm884, %v960, 0.0
      %v997 = vsel %vm885, %v965, 0.0
      %v998 = vsel %vm886, %v965, 0.0
      %999 = vset.pattern.permute.xlu0 8
      %1000 = vperm.xlu0 %999, %v484
      %v1001 = vpop.permute.xlu0 %1000
      %1002 = vset.pattern.permute.xlu0 8
      %1003 = vperm.xlu0 %1002, %v485
      %v1004 = vpop.permute.xlu0 %1003
      %1005 = vset.pattern.permute.xlu0 8
      %1006 = vperm.xlu0 %1005, %v486
      %v1007 = vpop.permute.xlu0 %1006
      %1008 = vset.pattern.permute.xlu0 8
      %1009 = vperm.xlu0 %1008, %v487
      %v1010 = vpop.permute.xlu0 %1009
      %1011 = vset.pattern.permute.xlu0 8
      %1012 = vperm.xlu0 %1011, %v488
      %v1013 = vpop.permute.xlu0 %1012
      %1014 = vset.pattern.permute.xlu0 8
      %1015 = vperm.xlu0 %1014, %v489
      %v1016 = vpop.permute.xlu0 %1015
      %1017 = vset.pattern.permute.xlu0 8
      %1018 = vperm.xlu0 %1017, %v490
      %v1019 = vpop.permute.xlu0 %1018
      %1020 = vset.pattern.permute.xlu0 8
      %1021 = vperm.xlu0 %1020, %v491
      %v1022 = vpop.permute.xlu0 %1021
      %1023 = vset.pattern.permute.xlu0 8
      %1024 = vperm.xlu0 %1023, %v492
      %v1025 = vpop.permute.xlu0 %1024
      %1026 = vset.pattern.permute.xlu0 8
      %1027 = vperm.xlu0 %1026, %v493
      %v1028 = vpop.permute.xlu0 %1027
      %1029 = vset.pattern.permute.xlu0 8
      %1030 = vperm.xlu0 %1029, %v494
      %v1031 = vpop.permute.xlu0 %1030
      %1032 = vset.pattern.permute.xlu0 8
      %1033 = vperm.xlu0 %1032, %v495
      %v1034 = vpop.permute.xlu0 %1033
      %1035 = vset.pattern.permute.xlu0 8
      %1036 = vperm.xlu0 %1035, %v496
      %v1037 = vpop.permute.xlu0 %1036
      %1038 = vset.pattern.permute.xlu0 8
      %1039 = vperm.xlu0 %1038, %v497
      %v1040 = vpop.permute.xlu0 %1039
      %1041 = vset.pattern.permute.xlu0 8
      %1042 = vperm.xlu0 %1041, %v498
      %v1043 = vpop.permute.xlu0 %1042
      %1044 = vset.pattern.permute.xlu0 8
      %1045 = vperm.xlu0 %1044, %v499
      %v1046 = vpop.permute.xlu0 %1045
      %vm1047 = vcmp.eq.s32.totalorder %v805, %v1001
      %vm1048 = vcmp.eq.s32.totalorder %v806, %v1001
      %vm1049 = vcmp.eq.s32.totalorder %v805, %v1004
      %vm1050 = vcmp.eq.s32.totalorder %v806, %v1004
      %vm1051 = vcmp.eq.s32.totalorder %v805, %v1007
      %vm1052 = vcmp.eq.s32.totalorder %v806, %v1007
      %vm1053 = vcmp.eq.s32.totalorder %v805, %v1010
      %vm1054 = vcmp.eq.s32.totalorder %v806, %v1010
      %vm1055 = vcmp.eq.s32.totalorder %v805, %v1013
      %vm1056 = vcmp.eq.s32.totalorder %v806, %v1013
      %vm1057 = vcmp.eq.s32.totalorder %v805, %v1016
      %vm1058 = vcmp.eq.s32.totalorder %v806, %v1016
      %vm1059 = vcmp.eq.s32.totalorder %v805, %v1019
      %vm1060 = vcmp.eq.s32.totalorder %v806, %v1019
      %vm1061 = vcmp.eq.s32.totalorder %v805, %v1022
      %vm1062 = vcmp.eq.s32.totalorder %v806, %v1022
      %vm1063 = vcmp.eq.s32.totalorder %v805, %v1025
      %vm1064 = vcmp.eq.s32.totalorder %v806, %v1025
      %vm1065 = vcmp.eq.s32.totalorder %v805, %v1028
      %vm1066 = vcmp.eq.s32.totalorder %v806, %v1028
      %vm1067 = vcmp.eq.s32.totalorder %v805, %v1031
      %vm1068 = vcmp.eq.s32.totalorder %v806, %v1031
      %vm1069 = vcmp.eq.s32.totalorder %v805, %v1034
      %vm1070 = vcmp.eq.s32.totalorder %v806, %v1034
      %vm1071 = vcmp.eq.s32.totalorder %v805, %v1037
      %vm1072 = vcmp.eq.s32.totalorder %v806, %v1037
      %vm1073 = vcmp.eq.s32.totalorder %v805, %v1040
      %vm1074 = vcmp.eq.s32.totalorder %v806, %v1040
      %vm1075 = vcmp.eq.s32.totalorder %v805, %v1043
      %vm1076 = vcmp.eq.s32.totalorder %v806, %v1043
      %vm1077 = vcmp.eq.s32.totalorder %v805, %v1046
      %vm1078 = vcmp.eq.s32.totalorder %v806, %v1046
      %1080 = vset.pattern.permute.xlu0 8
      %1081 = vperm.xlu0 %1080, %v724
      %v1082 = vpop.permute.xlu0 %1081
      %1085 = vset.pattern.permute.xlu0 8
      %1086 = vperm.xlu0 %1085, %v725
      %v1087 = vpop.permute.xlu0 %1086
      %1090 = vset.pattern.permute.xlu0 8
      %1091 = vperm.xlu0 %1090, %v726
      %v1092 = vpop.permute.xlu0 %1091
      %1095 = vset.pattern.permute.xlu0 8
      %1096 = vperm.xlu0 %1095, %v727
      %v1097 = vpop.permute.xlu0 %1096
      %1100 = vset.pattern.permute.xlu0 8
      %1101 = vperm.xlu0 %1100, %v728
      %v1102 = vpop.permute.xlu0 %1101
      %1105 = vset.pattern.permute.xlu0 8
      %1106 = vperm.xlu0 %1105, %v729
      %v1107 = vpop.permute.xlu0 %1106
      %1110 = vset.pattern.permute.xlu0 8
      %1111 = vperm.xlu0 %1110, %v730
      %v1112 = vpop.permute.xlu0 %1111
      %1115 = vset.pattern.permute.xlu0 8
      %1116 = vperm.xlu0 %1115, %v731
      %v1117 = vpop.permute.xlu0 %1116
      %1120 = vset.pattern.permute.xlu0 8
      %1121 = vperm.xlu0 %1120, %v732
      %v1122 = vpop.permute.xlu0 %1121
      %1125 = vset.pattern.permute.xlu0 8
      %1126 = vperm.xlu0 %1125, %v733
      %v1127 = vpop.permute.xlu0 %1126
      %1130 = vset.pattern.permute.xlu0 8
      %1131 = vperm.xlu0 %1130, %v734
      %v1132 = vpop.permute.xlu0 %1131
      %1135 = vset.pattern.permute.xlu0 8
      %1136 = vperm.xlu0 %1135, %v735
      %v1137 = vpop.permute.xlu0 %1136
      %1140 = vset.pattern.permute.xlu0 8
      %1141 = vperm.xlu0 %1140, %v736
      %v1142 = vpop.permute.xlu0 %1141
      %1145 = vset.pattern.permute.xlu0 8
      %1146 = vperm.xlu0 %1145, %v737
      %v1147 = vpop.permute.xlu0 %1146
      %1150 = vset.pattern.permute.xlu0 8
      %1151 = vperm.xlu0 %1150, %v738
      %v1152 = vpop.permute.xlu0 %1151
      %1155 = vset.pattern.permute.xlu0 8
      %1156 = vperm.xlu0 %1155, %v739
      %v1157 = vpop.permute.xlu0 %1156
      %v1159 = vsel %vm1047, %v1082, 0.0
      %v1160 = vsel %vm1048, %v1082, 0.0
      %v1161 = vsel %vm1049, %v1087, 0.0
      %v1162 = vsel %vm1050, %v1087, 0.0
      %v1163 = vsel %vm1051, %v1092, 0.0
      %v1164 = vsel %vm1052, %v1092, 0.0
      %v1165 = vsel %vm1053, %v1097, 0.0
      %v1166 = vsel %vm1054, %v1097, 0.0
      %v1167 = vsel %vm1055, %v1102, 0.0
      %v1168 = vsel %vm1056, %v1102, 0.0
      %v1169 = vsel %vm1057, %v1107, 0.0
      %v1170 = vsel %vm1058, %v1107, 0.0
      %v1171 = vsel %vm1059, %v1112, 0.0
      %v1172 = vsel %vm1060, %v1112, 0.0
      %v1173 = vsel %vm1061, %v1117, 0.0
      %v1174 = vsel %vm1062, %v1117, 0.0
      %v1175 = vsel %vm1063, %v1122, 0.0
      %v1176 = vsel %vm1064, %v1122, 0.0
      %v1177 = vsel %vm1065, %v1127, 0.0
      %v1178 = vsel %vm1066, %v1127, 0.0
      %v1179 = vsel %vm1067, %v1132, 0.0
      %v1180 = vsel %vm1068, %v1132, 0.0
      %v1181 = vsel %vm1069, %v1137, 0.0
      %v1182 = vsel %vm1070, %v1137, 0.0
      %v1183 = vsel %vm1071, %v1142, 0.0
      %v1184 = vsel %vm1072, %v1142, 0.0
      %v1185 = vsel %vm1073, %v1147, 0.0
      %v1186 = vsel %vm1074, %v1147, 0.0
      %v1187 = vsel %vm1075, %v1152, 0.0
      %v1188 = vsel %vm1076, %v1152, 0.0
      %v1189 = vsel %vm1077, %v1157, 0.0
      %v1190 = vsel %vm1078, %v1157, 0.0
      %v1191 = vadd.f32 %v967, %v1159
      %v1192 = vadd.f32 %v968, %v1160
      %v1193 = vadd.f32 %v969, %v1161
      %v1194 = vadd.f32 %v970, %v1162
      %v1195 = vadd.f32 %v971, %v1163
      %v1196 = vadd.f32 %v972, %v1164
      %v1197 = vadd.f32 %v973, %v1165
      %v1198 = vadd.f32 %v974, %v1166
      %v1199 = vadd.f32 %v975, %v1167
      %v1200 = vadd.f32 %v976, %v1168
      %v1201 = vadd.f32 %v977, %v1169
      %v1202 = vadd.f32 %v978, %v1170
      %v1203 = vadd.f32 %v979, %v1171
      %v1204 = vadd.f32 %v980, %v1172
      %v1205 = vadd.f32 %v981, %v1173
      %v1206 = vadd.f32 %v982, %v1174
      %v1207 = vadd.f32 %v983, %v1175
      %v1208 = vadd.f32 %v984, %v1176
      %v1209 = vadd.f32 %v985, %v1177
      %v1210 = vadd.f32 %v986, %v1178
      %v1211 = vadd.f32 %v987, %v1179
      %v1212 = vadd.f32 %v988, %v1180
      %v1213 = vadd.f32 %v989, %v1181
      %v1214 = vadd.f32 %v990, %v1182
      %v1215 = vadd.f32 %v991, %v1183
      %v1216 = vadd.f32 %v992, %v1184
      %v1217 = vadd.f32 %v993, %v1185
      %v1218 = vadd.f32 %v994, %v1186
      %v1219 = vadd.f32 %v995, %v1187
      %v1220 = vadd.f32 %v996, %v1188
      %v1221 = vadd.f32 %v997, %v1189
      %v1222 = vadd.f32 %v998, %v1190
      %1223 = vset.pattern.permute.xlu0 8
      %1224 = vperm.xlu0 %1223, %v516
      %v1225 = vpop.permute.xlu0 %1224
      %1226 = vset.pattern.permute.xlu0 8
      %1227 = vperm.xlu0 %1226, %v517
      %v1228 = vpop.permute.xlu0 %1227
      %1229 = vset.pattern.permute.xlu0 8
      %1230 = vperm.xlu0 %1229, %v518
      %v1231 = vpop.permute.xlu0 %1230
      %1232 = vset.pattern.permute.xlu0 8
      %1233 = vperm.xlu0 %1232, %v519
      %v1234 = vpop.permute.xlu0 %1233
      %1235 = vset.pattern.permute.xlu0 8
      %1236 = vperm.xlu0 %1235, %v520
      %v1237 = vpop.permute.xlu0 %1236
      %1238 = vset.pattern.permute.xlu0 8
      %1239 = vperm.xlu0 %1238, %v521
      %v1240 = vpop.permute.xlu0 %1239
      %1241 = vset.pattern.permute.xlu0 8
      %1242 = vperm.xlu0 %1241, %v522
      %v1243 = vpop.permute.xlu0 %1242
      %1244 = vset.pattern.permute.xlu0 8
      %1245 = vperm.xlu0 %1244, %v523
      %v1246 = vpop.permute.xlu0 %1245
      %1247 = vset.pattern.permute.xlu0 8
      %1248 = vperm.xlu0 %1247, %v524
      %v1249 = vpop.permute.xlu0 %1248
      %1250 = vset.pattern.permute.xlu0 8
      %1251 = vperm.xlu0 %1250, %v525
      %v1252 = vpop.permute.xlu0 %1251
      %1253 = vset.pattern.permute.xlu0 8
      %1254 = vperm.xlu0 %1253, %v526
      %v1255 = vpop.permute.xlu0 %1254
      %1256 = vset.pattern.permute.xlu0 8
      %1257 = vperm.xlu0 %1256, %v527
      %v1258 = vpop.permute.xlu0 %1257
      %1259 = vset.pattern.permute.xlu0 8
      %1260 = vperm.xlu0 %1259, %v528
      %v1261 = vpop.permute.xlu0 %1260
      %1262 = vset.pattern.permute.xlu0 8
      %1263 = vperm.xlu0 %1262, %v529
      %v1264 = vpop.permute.xlu0 %1263
      %1265 = vset.pattern.permute.xlu0 8
      %1266 = vperm.xlu0 %1265, %v530
      %v1267 = vpop.permute.xlu0 %1266
      %1268 = vset.pattern.permute.xlu0 8
      %1269 = vperm.xlu0 %1268, %v531
      %v1270 = vpop.permute.xlu0 %1269
      %vm1271 = vcmp.eq.s32.totalorder %v805, %v1225
      %vm1272 = vcmp.eq.s32.totalorder %v806, %v1225
      %vm1273 = vcmp.eq.s32.totalorder %v805, %v1228
      %vm1274 = vcmp.eq.s32.totalorder %v806, %v1228
      %vm1275 = vcmp.eq.s32.totalorder %v805, %v1231
      %vm1276 = vcmp.eq.s32.totalorder %v806, %v1231
      %vm1277 = vcmp.eq.s32.totalorder %v805, %v1234
      %vm1278 = vcmp.eq.s32.totalorder %v806, %v1234
      %vm1279 = vcmp.eq.s32.totalorder %v805, %v1237
      %vm1280 = vcmp.eq.s32.totalorder %v806, %v1237
      %vm1281 = vcmp.eq.s32.totalorder %v805, %v1240
      %vm1282 = vcmp.eq.s32.totalorder %v806, %v1240
      %vm1283 = vcmp.eq.s32.totalorder %v805, %v1243
      %vm1284 = vcmp.eq.s32.totalorder %v806, %v1243
      %vm1285 = vcmp.eq.s32.totalorder %v805, %v1246
      %vm1286 = vcmp.eq.s32.totalorder %v806, %v1246
      %vm1287 = vcmp.eq.s32.totalorder %v805, %v1249
      %vm1288 = vcmp.eq.s32.totalorder %v806, %v1249
      %vm1289 = vcmp.eq.s32.totalorder %v805, %v1252
      %vm1290 = vcmp.eq.s32.totalorder %v806, %v1252
      %vm1291 = vcmp.eq.s32.totalorder %v805, %v1255
      %vm1292 = vcmp.eq.s32.totalorder %v806, %v1255
      %vm1293 = vcmp.eq.s32.totalorder %v805, %v1258
      %vm1294 = vcmp.eq.s32.totalorder %v806, %v1258
      %vm1295 = vcmp.eq.s32.totalorder %v805, %v1261
      %vm1296 = vcmp.eq.s32.totalorder %v806, %v1261
      %vm1297 = vcmp.eq.s32.totalorder %v805, %v1264
      %vm1298 = vcmp.eq.s32.totalorder %v806, %v1264
      %vm1299 = vcmp.eq.s32.totalorder %v805, %v1267
      %vm1300 = vcmp.eq.s32.totalorder %v806, %v1267
      %vm1301 = vcmp.eq.s32.totalorder %v805, %v1270
      %vm1302 = vcmp.eq.s32.totalorder %v806, %v1270
      %1304 = vset.pattern.permute.xlu0 8
      %1305 = vperm.xlu0 %1304, %v756
      %v1306 = vpop.permute.xlu0 %1305
      %1309 = vset.pattern.permute.xlu0 8
      %1310 = vperm.xlu0 %1309, %v757
      %v1311 = vpop.permute.xlu0 %1310
      %1314 = vset.pattern.permute.xlu0 8
      %1315 = vperm.xlu0 %1314, %v758
      %v1316 = vpop.permute.xlu0 %1315
      %1319 = vset.pattern.permute.xlu0 8
      %1320 = vperm.xlu0 %1319, %v759
      %v1321 = vpop.permute.xlu0 %1320
      %1324 = vset.pattern.permute.xlu0 8
      %1325 = vperm.xlu0 %1324, %v760
      %v1326 = vpop.permute.xlu0 %1325
      %1329 = vset.pattern.permute.xlu0 8
      %1330 = vperm.xlu0 %1329, %v761
      %v1331 = vpop.permute.xlu0 %1330
      %1334 = vset.pattern.permute.xlu0 8
      %1335 = vperm.xlu0 %1334, %v762
      %v1336 = vpop.permute.xlu0 %1335
      %1339 = vset.pattern.permute.xlu0 8
      %1340 = vperm.xlu0 %1339, %v763
      %v1341 = vpop.permute.xlu0 %1340
      %1344 = vset.pattern.permute.xlu0 8
      %1345 = vperm.xlu0 %1344, %v764
      %v1346 = vpop.permute.xlu0 %1345
      %1349 = vset.pattern.permute.xlu0 8
      %1350 = vperm.xlu0 %1349, %v765
      %v1351 = vpop.permute.xlu0 %1350
      %1354 = vset.pattern.permute.xlu0 8
      %1355 = vperm.xlu0 %1354, %v766
      %v1356 = vpop.permute.xlu0 %1355
      %1359 = vset.pattern.permute.xlu0 8
      %1360 = vperm.xlu0 %1359, %v767
      %v1361 = vpop.permute.xlu0 %1360
      %1364 = vset.pattern.permute.xlu0 8
      %1365 = vperm.xlu0 %1364, %v768
      %v1366 = vpop.permute.xlu0 %1365
      %1369 = vset.pattern.permute.xlu0 8
      %1370 = vperm.xlu0 %1369, %v769
      %v1371 = vpop.permute.xlu0 %1370
      %1374 = vset.pattern.permute.xlu0 8
      %1375 = vperm.xlu0 %1374, %v770
      %v1376 = vpop.permute.xlu0 %1375
      %1379 = vset.pattern.permute.xlu0 8
      %1380 = vperm.xlu0 %1379, %v771
      %v1381 = vpop.permute.xlu0 %1380
      %v1383 = vsel %vm1271, %v1306, 0.0
      %v1384 = vsel %vm1272, %v1306, 0.0
      %v1385 = vsel %vm1273, %v1311, 0.0
      %v1386 = vsel %vm1274, %v1311, 0.0
      %v1387 = vsel %vm1275, %v1316, 0.0
      %v1388 = vsel %vm1276, %v1316, 0.0
      %v1389 = vsel %vm1277, %v1321, 0.0
      %v1390 = vsel %vm1278, %v1321, 0.0
      %v1391 = vsel %vm1279, %v1326, 0.0
      %v1392 = vsel %vm1280, %v1326, 0.0
      %v1393 = vsel %vm1281, %v1331, 0.0
      %v1394 = vsel %vm1282, %v1331, 0.0
      %v1395 = vsel %vm1283, %v1336, 0.0
      %v1396 = vsel %vm1284, %v1336, 0.0
      %v1397 = vsel %vm1285, %v1341, 0.0
      %v1398 = vsel %vm1286, %v1341, 0.0
      %v1399 = vsel %vm1287, %v1346, 0.0
      %v1400 = vsel %vm1288, %v1346, 0.0
      %v1401 = vsel %vm1289, %v1351, 0.0
      %v1402 = vsel %vm1290, %v1351, 0.0
      %v1403 = vsel %vm1291, %v1356, 0.0
      %v1404 = vsel %vm1292, %v1356, 0.0
      %v1405 = vsel %vm1293, %v1361, 0.0
      %v1406 = vsel %vm1294, %v1361, 0.0
      %v1407 = vsel %vm1295, %v1366, 0.0
      %v1408 = vsel %vm1296, %v1366, 0.0
      %v1409 = vsel %vm1297, %v1371, 0.0
      %v1410 = vsel %vm1298, %v1371, 0.0
      %v1411 = vsel %vm1299, %v1376, 0.0
      %v1412 = vsel %vm1300, %v1376, 0.0
      %v1413 = vsel %vm1301, %v1381, 0.0
      %v1414 = vsel %vm1302, %v1381, 0.0
      %v1415 = vadd.f32 %v1191, %v1383
      %v1416 = vadd.f32 %v1192, %v1384
      %v1417 = vadd.f32 %v1193, %v1385
      %v1418 = vadd.f32 %v1194, %v1386
      %v1419 = vadd.f32 %v1195, %v1387
      %v1420 = vadd.f32 %v1196, %v1388
      %v1421 = vadd.f32 %v1197, %v1389
      %v1422 = vadd.f32 %v1198, %v1390
      %v1423 = vadd.f32 %v1199, %v1391
      %v1424 = vadd.f32 %v1200, %v1392
      %v1425 = vadd.f32 %v1201, %v1393
      %v1426 = vadd.f32 %v1202, %v1394
      %v1427 = vadd.f32 %v1203, %v1395
      %v1428 = vadd.f32 %v1204, %v1396
      %v1429 = vadd.f32 %v1205, %v1397
      %v1430 = vadd.f32 %v1206, %v1398
      %v1431 = vadd.f32 %v1207, %v1399
      %v1432 = vadd.f32 %v1208, %v1400
      %v1433 = vadd.f32 %v1209, %v1401
      %v1434 = vadd.f32 %v1210, %v1402
      %v1435 = vadd.f32 %v1211, %v1403
      %v1436 = vadd.f32 %v1212, %v1404
      %v1437 = vadd.f32 %v1213, %v1405
      %v1438 = vadd.f32 %v1214, %v1406
      %v1439 = vadd.f32 %v1215, %v1407
      %v1440 = vadd.f32 %v1216, %v1408
      %v1441 = vadd.f32 %v1217, %v1409
      %v1442 = vadd.f32 %v1218, %v1410
      %v1443 = vadd.f32 %v1219, %v1411
      %v1444 = vadd.f32 %v1220, %v1412
      %v1445 = vadd.f32 %v1221, %v1413
      %v1446 = vadd.f32 %v1222, %v1414
      %1447 = vset.pattern.permute.xlu0 8
      %1448 = vperm.xlu0 %1447, %v532
      %v1449 = vpop.permute.xlu0 %1448
      %1450 = vset.pattern.permute.xlu0 8
      %1451 = vperm.xlu0 %1450, %v533
      %v1452 = vpop.permute.xlu0 %1451
      %1453 = vset.pattern.permute.xlu0 8
      %1454 = vperm.xlu0 %1453, %v534
      %v1455 = vpop.permute.xlu0 %1454
      %1456 = vset.pattern.permute.xlu0 8
      %1457 = vperm.xlu0 %1456, %v535
      %v1458 = vpop.permute.xlu0 %1457
      %1459 = vset.pattern.permute.xlu0 8
      %1460 = vperm.xlu0 %1459, %v536
      %v1461 = vpop.permute.xlu0 %1460
      %1462 = vset.pattern.permute.xlu0 8
      %1463 = vperm.xlu0 %1462, %v537
      %v1464 = vpop.permute.xlu0 %1463
      %1465 = vset.pattern.permute.xlu0 8
      %1466 = vperm.xlu0 %1465, %v538
      %v1467 = vpop.permute.xlu0 %1466
      %1468 = vset.pattern.permute.xlu0 8
      %1469 = vperm.xlu0 %1468, %v539
      %v1470 = vpop.permute.xlu0 %1469
      %1471 = vset.pattern.permute.xlu0 8
      %1472 = vperm.xlu0 %1471, %v540
      %v1473 = vpop.permute.xlu0 %1472
      %1474 = vset.pattern.permute.xlu0 8
      %1475 = vperm.xlu0 %1474, %v541
      %v1476 = vpop.permute.xlu0 %1475
      %1477 = vset.pattern.permute.xlu0 8
      %1478 = vperm.xlu0 %1477, %v542
      %v1479 = vpop.permute.xlu0 %1478
      %1480 = vset.pattern.permute.xlu0 8
      %1481 = vperm.xlu0 %1480, %v543
      %v1482 = vpop.permute.xlu0 %1481
      %1483 = vset.pattern.permute.xlu0 8
      %1484 = vperm.xlu0 %1483, %v544
      %v1485 = vpop.permute.xlu0 %1484
      %1486 = vset.pattern.permute.xlu0 8
      %1487 = vperm.xlu0 %1486, %v545
      %v1488 = vpop.permute.xlu0 %1487
      %1489 = vset.pattern.permute.xlu0 8
      %1490 = vperm.xlu0 %1489, %v546
      %v1491 = vpop.permute.xlu0 %1490
      %1492 = vset.pattern.permute.xlu0 8
      %1493 = vperm.xlu0 %1492, %v547
      %v1494 = vpop.permute.xlu0 %1493
      %vm1495 = vcmp.eq.s32.totalorder %v805, %v1449
      %vm1496 = vcmp.eq.s32.totalorder %v806, %v1449
      %vm1497 = vcmp.eq.s32.totalorder %v805, %v1452
      %vm1498 = vcmp.eq.s32.totalorder %v806, %v1452
      %vm1499 = vcmp.eq.s32.totalorder %v805, %v1455
      %vm1500 = vcmp.eq.s32.totalorder %v806, %v1455
      %vm1501 = vcmp.eq.s32.totalorder %v805, %v1458
      %vm1502 = vcmp.eq.s32.totalorder %v806, %v1458
      %vm1503 = vcmp.eq.s32.totalorder %v805, %v1461
      %vm1504 = vcmp.eq.s32.totalorder %v806, %v1461
      %vm1505 = vcmp.eq.s32.totalorder %v805, %v1464
      %vm1506 = vcmp.eq.s32.totalorder %v806, %v1464
      %vm1507 = vcmp.eq.s32.totalorder %v805, %v1467
      %vm1508 = vcmp.eq.s32.totalorder %v806, %v1467
      %vm1509 = vcmp.eq.s32.totalorder %v805, %v1470
      %vm1510 = vcmp.eq.s32.totalorder %v806, %v1470
      %vm1511 = vcmp.eq.s32.totalorder %v805, %v1473
      %vm1512 = vcmp.eq.s32.totalorder %v806, %v1473
      %vm1513 = vcmp.eq.s32.totalorder %v805, %v1476
      %vm1514 = vcmp.eq.s32.totalorder %v806, %v1476
      %vm1515 = vcmp.eq.s32.totalorder %v805, %v1479
      %vm1516 = vcmp.eq.s32.totalorder %v806, %v1479
      %vm1517 = vcmp.eq.s32.totalorder %v805, %v1482
      %vm1518 = vcmp.eq.s32.totalorder %v806, %v1482
      %vm1519 = vcmp.eq.s32.totalorder %v805, %v1485
      %vm1520 = vcmp.eq.s32.totalorder %v806, %v1485
      %vm1521 = vcmp.eq.s32.totalorder %v805, %v1488
      %vm1522 = vcmp.eq.s32.totalorder %v806, %v1488
      %vm1523 = vcmp.eq.s32.totalorder %v805, %v1491
      %vm1524 = vcmp.eq.s32.totalorder %v806, %v1491
      %vm1525 = vcmp.eq.s32.totalorder %v805, %v1494
      %vm1526 = vcmp.eq.s32.totalorder %v806, %v1494
      %1528 = vset.pattern.permute.xlu0 8
      %1529 = vperm.xlu0 %1528, %v788
      %v1530 = vpop.permute.xlu0 %1529
      %1533 = vset.pattern.permute.xlu0 8
      %1534 = vperm.xlu0 %1533, %v789
      %v1535 = vpop.permute.xlu0 %1534
      %1538 = vset.pattern.permute.xlu0 8
      %1539 = vperm.xlu0 %1538, %v790
      %v1540 = vpop.permute.xlu0 %1539
      %1543 = vset.pattern.permute.xlu0 8
      %1544 = vperm.xlu0 %1543, %v791
      %v1545 = vpop.permute.xlu0 %1544
      %1548 = vset.pattern.permute.xlu0 8
      %1549 = vperm.xlu0 %1548, %v792
      %v1550 = vpop.permute.xlu0 %1549
      %1553 = vset.pattern.permute.xlu0 8
      %1554 = vperm.xlu0 %1553, %v793
      %v1555 = vpop.permute.xlu0 %1554
      %1558 = vset.pattern.permute.xlu0 8
      %1559 = vperm.xlu0 %1558, %v794
      %v1560 = vpop.permute.xlu0 %1559
      %1563 = vset.pattern.permute.xlu0 8
      %1564 = vperm.xlu0 %1563, %v795
      %v1565 = vpop.permute.xlu0 %1564
      %1568 = vset.pattern.permute.xlu0 8
      %1569 = vperm.xlu0 %1568, %v796
      %v1570 = vpop.permute.xlu0 %1569
      %1573 = vset.pattern.permute.xlu0 8
      %1574 = vperm.xlu0 %1573, %v797
      %v1575 = vpop.permute.xlu0 %1574
      %1578 = vset.pattern.permute.xlu0 8
      %1579 = vperm.xlu0 %1578, %v798
      %v1580 = vpop.permute.xlu0 %1579
      %1583 = vset.pattern.permute.xlu0 8
      %1584 = vperm.xlu0 %1583, %v799
      %v1585 = vpop.permute.xlu0 %1584
      %1588 = vset.pattern.permute.xlu0 8
      %1589 = vperm.xlu0 %1588, %v800
      %v1590 = vpop.permute.xlu0 %1589
      %1593 = vset.pattern.permute.xlu0 8
      %1594 = vperm.xlu0 %1593, %v801
      %v1595 = vpop.permute.xlu0 %1594
      %1598 = vset.pattern.permute.xlu0 8
      %1599 = vperm.xlu0 %1598, %v802
      %v1600 = vpop.permute.xlu0 %1599
      %1603 = vset.pattern.permute.xlu0 8
      %1604 = vperm.xlu0 %1603, %v803
      %v1605 = vpop.permute.xlu0 %1604
      %v1607 = vsel %vm1495, %v1530, 0.0
      %v1608 = vsel %vm1496, %v1530, 0.0
      %v1609 = vsel %vm1497, %v1535, 0.0
      %v1610 = vsel %vm1498, %v1535, 0.0
      %v1611 = vsel %vm1499, %v1540, 0.0
      %v1612 = vsel %vm1500, %v1540, 0.0
      %v1613 = vsel %vm1501, %v1545, 0.0
      %v1614 = vsel %vm1502, %v1545, 0.0
      %v1615 = vsel %vm1503, %v1550, 0.0
      %v1616 = vsel %vm1504, %v1550, 0.0
      %v1617 = vsel %vm1505, %v1555, 0.0
      %v1618 = vsel %vm1506, %v1555, 0.0
      %v1619 = vsel %vm1507, %v1560, 0.0
      %v1620 = vsel %vm1508, %v1560, 0.0
      %v1621 = vsel %vm1509, %v1565, 0.0
      %v1622 = vsel %vm1510, %v1565, 0.0
      %v1623 = vsel %vm1511, %v1570, 0.0
      %v1624 = vsel %vm1512, %v1570, 0.0
      %v1625 = vsel %vm1513, %v1575, 0.0
      %v1626 = vsel %vm1514, %v1575, 0.0
      %v1627 = vsel %vm1515, %v1580, 0.0
      %v1628 = vsel %vm1516, %v1580, 0.0
      %v1629 = vsel %vm1517, %v1585, 0.0
      %v1630 = vsel %vm1518, %v1585, 0.0
      %v1631 = vsel %vm1519, %v1590, 0.0
      %v1632 = vsel %vm1520, %v1590, 0.0
      %v1633 = vsel %vm1521, %v1595, 0.0
      %v1634 = vsel %vm1522, %v1595, 0.0
      %v1635 = vsel %vm1523, %v1600, 0.0
      %v1636 = vsel %vm1524, %v1600, 0.0
      %v1637 = vsel %vm1525, %v1605, 0.0
      %v1638 = vsel %vm1526, %v1605, 0.0
      %v1639 = vadd.f32 %v1415, %v1607
      %v1640 = vadd.f32 %v1416, %v1608
      %v1641 = vadd.f32 %v1417, %v1609
      %v1642 = vadd.f32 %v1418, %v1610
      %v1643 = vadd.f32 %v1419, %v1611
      %v1644 = vadd.f32 %v1420, %v1612
      %v1645 = vadd.f32 %v1421, %v1613
      %v1646 = vadd.f32 %v1422, %v1614
      %v1647 = vadd.f32 %v1423, %v1615
      %v1648 = vadd.f32 %v1424, %v1616
      %v1649 = vadd.f32 %v1425, %v1617
      %v1650 = vadd.f32 %v1426, %v1618
      %v1651 = vadd.f32 %v1427, %v1619
      %v1652 = vadd.f32 %v1428, %v1620
      %v1653 = vadd.f32 %v1429, %v1621
      %v1654 = vadd.f32 %v1430, %v1622
      %v1655 = vadd.f32 %v1431, %v1623
      %v1656 = vadd.f32 %v1432, %v1624
      %v1657 = vadd.f32 %v1433, %v1625
      %v1658 = vadd.f32 %v1434, %v1626
      %v1659 = vadd.f32 %v1435, %v1627
      %v1660 = vadd.f32 %v1436, %v1628
      %v1661 = vadd.f32 %v1437, %v1629
      %v1662 = vadd.f32 %v1438, %v1630
      %v1663 = vadd.f32 %v1439, %v1631
      %v1664 = vadd.f32 %v1440, %v1632
      %v1665 = vadd.f32 %v1441, %v1633
      %v1666 = vadd.f32 %v1442, %v1634
      %v1667 = vadd.f32 %v1443, %v1635
      %v1668 = vadd.f32 %v1444, %v1636
      %v1669 = vadd.f32 %v1445, %v1637
      %v1670 = vadd.f32 %v1446, %v1638
      %1671 = vset.pattern.permute.xlu0 9
      %1672 = vperm.xlu0 %1671, %v436
      %v1673 = vpop.permute.xlu0 %1672
      %1674 = vset.pattern.permute.xlu0 9
      %1675 = vperm.xlu0 %1674, %v437
      %v1676 = vpop.permute.xlu0 %1675
      %1677 = vset.pattern.permute.xlu0 9
      %1678 = vperm.xlu0 %1677, %v438
      %v1679 = vpop.permute.xlu0 %1678
      %1680 = vset.pattern.permute.xlu0 9
      %1681 = vperm.xlu0 %1680, %v439
      %v1682 = vpop.permute.xlu0 %1681
      %1683 = vset.pattern.permute.xlu0 9
      %1684 = vperm.xlu0 %1683, %v440
      %v1685 = vpop.permute.xlu0 %1684
      %1686 = vset.pattern.permute.xlu0 9
      %1687 = vperm.xlu0 %1686, %v441
      %v1688 = vpop.permute.xlu0 %1687
      %1689 = vset.pattern.permute.xlu0 9
      %1690 = vperm.xlu0 %1689, %v442
      %v1691 = vpop.permute.xlu0 %1690
      %1692 = vset.pattern.permute.xlu0 9
      %1693 = vperm.xlu0 %1692, %v443
      %v1694 = vpop.permute.xlu0 %1693
      %1695 = vset.pattern.permute.xlu0 9
      %1696 = vperm.xlu0 %1695, %v444
      %v1697 = vpop.permute.xlu0 %1696
      %1698 = vset.pattern.permute.xlu0 9
      %1699 = vperm.xlu0 %1698, %v445
      %v1700 = vpop.permute.xlu0 %1699
      %1701 = vset.pattern.permute.xlu0 9
      %1702 = vperm.xlu0 %1701, %v446
      %v1703 = vpop.permute.xlu0 %1702
      %1704 = vset.pattern.permute.xlu0 9
      %1705 = vperm.xlu0 %1704, %v447
      %v1706 = vpop.permute.xlu0 %1705
      %1707 = vset.pattern.permute.xlu0 9
      %1708 = vperm.xlu0 %1707, %v448
      %v1709 = vpop.permute.xlu0 %1708
      %1710 = vset.pattern.permute.xlu0 9
      %1711 = vperm.xlu0 %1710, %v449
      %v1712 = vpop.permute.xlu0 %1711
      %1713 = vset.pattern.permute.xlu0 9
      %1714 = vperm.xlu0 %1713, %v450
      %v1715 = vpop.permute.xlu0 %1714
      %1716 = vset.pattern.permute.xlu0 9
      %1717 = vperm.xlu0 %1716, %v451
      %v1718 = vpop.permute.xlu0 %1717
      %vm1719 = vcmp.eq.s32.totalorder %v805, %v1673
      %vm1720 = vcmp.eq.s32.totalorder %v806, %v1673
      %vm1721 = vcmp.eq.s32.totalorder %v805, %v1676
      %vm1722 = vcmp.eq.s32.totalorder %v806, %v1676
      %vm1723 = vcmp.eq.s32.totalorder %v805, %v1679
      %vm1724 = vcmp.eq.s32.totalorder %v806, %v1679
      %vm1725 = vcmp.eq.s32.totalorder %v805, %v1682
      %vm1726 = vcmp.eq.s32.totalorder %v806, %v1682
      %vm1727 = vcmp.eq.s32.totalorder %v805, %v1685
      %vm1728 = vcmp.eq.s32.totalorder %v806, %v1685
      %vm1729 = vcmp.eq.s32.totalorder %v805, %v1688
      %vm1730 = vcmp.eq.s32.totalorder %v806, %v1688
      %vm1731 = vcmp.eq.s32.totalorder %v805, %v1691
      %vm1732 = vcmp.eq.s32.totalorder %v806, %v1691
      %vm1733 = vcmp.eq.s32.totalorder %v805, %v1694
      %vm1734 = vcmp.eq.s32.totalorder %v806, %v1694
      %vm1735 = vcmp.eq.s32.totalorder %v805, %v1697
      %vm1736 = vcmp.eq.s32.totalorder %v806, %v1697
      %vm1737 = vcmp.eq.s32.totalorder %v805, %v1700
      %vm1738 = vcmp.eq.s32.totalorder %v806, %v1700
      %vm1739 = vcmp.eq.s32.totalorder %v805, %v1703
      %vm1740 = vcmp.eq.s32.totalorder %v806, %v1703
      %vm1741 = vcmp.eq.s32.totalorder %v805, %v1706
      %vm1742 = vcmp.eq.s32.totalorder %v806, %v1706
      %vm1743 = vcmp.eq.s32.totalorder %v805, %v1709
      %vm1744 = vcmp.eq.s32.totalorder %v806, %v1709
      %vm1745 = vcmp.eq.s32.totalorder %v805, %v1712
      %vm1746 = vcmp.eq.s32.totalorder %v806, %v1712
      %vm1747 = vcmp.eq.s32.totalorder %v805, %v1715
      %vm1748 = vcmp.eq.s32.totalorder %v806, %v1715
      %vm1749 = vcmp.eq.s32.totalorder %v805, %v1718
      %vm1750 = vcmp.eq.s32.totalorder %v806, %v1718
      %1751 = vset.pattern.permute.xlu0 9
      %1752 = vperm.xlu0 %1751, %v628
      %v1753 = vpop.permute.xlu0 %1752
      %1755 = vset.pattern.permute.xlu0 9
      %1756 = vperm.xlu0 %1755, %v629
      %v1757 = vpop.permute.xlu0 %1756
      %1759 = vset.pattern.permute.xlu0 9
      %1760 = vperm.xlu0 %1759, %v630
      %v1761 = vpop.permute.xlu0 %1760
      %1763 = vset.pattern.permute.xlu0 9
      %1764 = vperm.xlu0 %1763, %v631
      %v1765 = vpop.permute.xlu0 %1764
      %1767 = vset.pattern.permute.xlu0 9
      %1768 = vperm.xlu0 %1767, %v632
      %v1769 = vpop.permute.xlu0 %1768
      %1771 = vset.pattern.permute.xlu0 9
      %1772 = vperm.xlu0 %1771, %v633
      %v1773 = vpop.permute.xlu0 %1772
      %1775 = vset.pattern.permute.xlu0 9
      %1776 = vperm.xlu0 %1775, %v634
      %v1777 = vpop.permute.xlu0 %1776
      %1779 = vset.pattern.permute.xlu0 9
      %1780 = vperm.xlu0 %1779, %v635
      %v1781 = vpop.permute.xlu0 %1780
      %1783 = vset.pattern.permute.xlu0 9
      %1784 = vperm.xlu0 %1783, %v636
      %v1785 = vpop.permute.xlu0 %1784
      %1787 = vset.pattern.permute.xlu0 9
      %1788 = vperm.xlu0 %1787, %v637
      %v1789 = vpop.permute.xlu0 %1788
      %1791 = vset.pattern.permute.xlu0 9
      %1792 = vperm.xlu0 %1791, %v638
      %v1793 = vpop.permute.xlu0 %1792
      %1795 = vset.pattern.permute.xlu0 9
      %1796 = vperm.xlu0 %1795, %v639
      %v1797 = vpop.permute.xlu0 %1796
      %1799 = vset.pattern.permute.xlu0 9
      %1800 = vperm.xlu0 %1799, %v640
      %v1801 = vpop.permute.xlu0 %1800
      %1803 = vset.pattern.permute.xlu0 9
      %1804 = vperm.xlu0 %1803, %v641
      %v1805 = vpop.permute.xlu0 %1804
      %1807 = vset.pattern.permute.xlu0 9
      %1808 = vperm.xlu0 %1807, %v642
      %v1809 = vpop.permute.xlu0 %1808
      %1811 = vset.pattern.permute.xlu0 9
      %1812 = vperm.xlu0 %1811, %v643
      %v1813 = vpop.permute.xlu0 %1812
      %v1815 = vsel %vm1719, %v1753, 0.0
      %v1816 = vsel %vm1720, %v1753, 0.0
      %v1817 = vsel %vm1721, %v1757, 0.0
      %v1818 = vsel %vm1722, %v1757, 0.0
      %v1819 = vsel %vm1723, %v1761, 0.0
      %v1820 = vsel %vm1724, %v1761, 0.0
      %v1821 = vsel %vm1725, %v1765, 0.0
      %v1822 = vsel %vm1726, %v1765, 0.0
      %v1823 = vsel %vm1727, %v1769, 0.0
      %v1824 = vsel %vm1728, %v1769, 0.0
      %v1825 = vsel %vm1729, %v1773, 0.0
      %v1826 = vsel %vm1730, %v1773, 0.0
      %v1827 = vsel %vm1731, %v1777, 0.0
      %v1828 = vsel %vm1732, %v1777, 0.0
      %v1829 = vsel %vm1733, %v1781, 0.0
      %v1830 = vsel %vm1734, %v1781, 0.0
      %v1831 = vsel %vm1735, %v1785, 0.0
      %v1832 = vsel %vm1736, %v1785, 0.0
      %v1833 = vsel %vm1737, %v1789, 0.0
      %v1834 = vsel %vm1738, %v1789, 0.0
      %v1835 = vsel %vm1739, %v1793, 0.0
      %v1836 = vsel %vm1740, %v1793, 0.0
      %v1837 = vsel %vm1741, %v1797, 0.0
      %v1838 = vsel %vm1742, %v1797, 0.0
      %v1839 = vsel %vm1743, %v1801, 0.0
      %v1840 = vsel %vm1744, %v1801, 0.0
      %v1841 = vsel %vm1745, %v1805, 0.0
      %v1842 = vsel %vm1746, %v1805, 0.0
      %v1843 = vsel %vm1747, %v1809, 0.0
      %v1844 = vsel %vm1748, %v1809, 0.0
      %v1845 = vsel %vm1749, %v1813, 0.0
      %v1846 = vsel %vm1750, %v1813, 0.0
      %1847 = vset.pattern.permute.xlu0 9
      %1848 = vperm.xlu0 %1847, %v484
      %v1849 = vpop.permute.xlu0 %1848
      %1850 = vset.pattern.permute.xlu0 9
      %1851 = vperm.xlu0 %1850, %v485
      %v1852 = vpop.permute.xlu0 %1851
      %1853 = vset.pattern.permute.xlu0 9
      %1854 = vperm.xlu0 %1853, %v486
      %v1855 = vpop.permute.xlu0 %1854
      %1856 = vset.pattern.permute.xlu0 9
      %1857 = vperm.xlu0 %1856, %v487
      %v1858 = vpop.permute.xlu0 %1857
      %1859 = vset.pattern.permute.xlu0 9
      %1860 = vperm.xlu0 %1859, %v488
      %v1861 = vpop.permute.xlu0 %1860
      %1862 = vset.pattern.permute.xlu0 9
      %1863 = vperm.xlu0 %1862, %v489
      %v1864 = vpop.permute.xlu0 %1863
      %1865 = vset.pattern.permute.xlu0 9
      %1866 = vperm.xlu0 %1865, %v490
      %v1867 = vpop.permute.xlu0 %1866
      %1868 = vset.pattern.permute.xlu0 9
      %1869 = vperm.xlu0 %1868, %v491
      %v1870 = vpop.permute.xlu0 %1869
      %1871 = vset.pattern.permute.xlu0 9
      %1872 = vperm.xlu0 %1871, %v492
      %v1873 = vpop.permute.xlu0 %1872
      %1874 = vset.pattern.permute.xlu0 9
      %1875 = vperm.xlu0 %1874, %v493
      %v1876 = vpop.permute.xlu0 %1875
      %1877 = vset.pattern.permute.xlu0 9
      %1878 = vperm.xlu0 %1877, %v494
      %v1879 = vpop.permute.xlu0 %1878
      %1880 = vset.pattern.permute.xlu0 9
      %1881 = vperm.xlu0 %1880, %v495
      %v1882 = vpop.permute.xlu0 %1881
      %1883 = vset.pattern.permute.xlu0 9
      %1884 = vperm.xlu0 %1883, %v496
      %v1885 = vpop.permute.xlu0 %1884
      %1886 = vset.pattern.permute.xlu0 9
      %1887 = vperm.xlu0 %1886, %v497
      %v1888 = vpop.permute.xlu0 %1887
      %1889 = vset.pattern.permute.xlu0 9
      %1890 = vperm.xlu0 %1889, %v498
      %v1891 = vpop.permute.xlu0 %1890
      %1892 = vset.pattern.permute.xlu0 9
      %1893 = vperm.xlu0 %1892, %v499
      %v1894 = vpop.permute.xlu0 %1893
      %vm1895 = vcmp.eq.s32.totalorder %v805, %v1849
      %vm1896 = vcmp.eq.s32.totalorder %v806, %v1849
      %vm1897 = vcmp.eq.s32.totalorder %v805, %v1852
      %vm1898 = vcmp.eq.s32.totalorder %v806, %v1852
      %vm1899 = vcmp.eq.s32.totalorder %v805, %v1855
      %vm1900 = vcmp.eq.s32.totalorder %v806, %v1855
      %vm1901 = vcmp.eq.s32.totalorder %v805, %v1858
      %vm1902 = vcmp.eq.s32.totalorder %v806, %v1858
      %vm1903 = vcmp.eq.s32.totalorder %v805, %v1861
      %vm1904 = vcmp.eq.s32.totalorder %v806, %v1861
      %vm1905 = vcmp.eq.s32.totalorder %v805, %v1864
      %vm1906 = vcmp.eq.s32.totalorder %v806, %v1864
      %vm1907 = vcmp.eq.s32.totalorder %v805, %v1867
      %vm1908 = vcmp.eq.s32.totalorder %v806, %v1867
      %vm1909 = vcmp.eq.s32.totalorder %v805, %v1870
      %vm1910 = vcmp.eq.s32.totalorder %v806, %v1870
      %vm1911 = vcmp.eq.s32.totalorder %v805, %v1873
      %vm1912 = vcmp.eq.s32.totalorder %v806, %v1873
      %vm1913 = vcmp.eq.s32.totalorder %v805, %v1876
      %vm1914 = vcmp.eq.s32.totalorder %v806, %v1876
      %vm1915 = vcmp.eq.s32.totalorder %v805, %v1879
      %vm1916 = vcmp.eq.s32.totalorder %v806, %v1879
      %vm1917 = vcmp.eq.s32.totalorder %v805, %v1882
      %vm1918 = vcmp.eq.s32.totalorder %v806, %v1882
      %vm1919 = vcmp.eq.s32.totalorder %v805, %v1885
      %vm1920 = vcmp.eq.s32.totalorder %v806, %v1885
      %vm1921 = vcmp.eq.s32.totalorder %v805, %v1888
      %vm1922 = vcmp.eq.s32.totalorder %v806, %v1888
      %vm1923 = vcmp.eq.s32.totalorder %v805, %v1891
      %vm1924 = vcmp.eq.s32.totalorder %v806, %v1891
      %vm1925 = vcmp.eq.s32.totalorder %v805, %v1894
      %vm1926 = vcmp.eq.s32.totalorder %v806, %v1894
      %1927 = vset.pattern.permute.xlu0 9
      %1928 = vperm.xlu0 %1927, %v724
      %v1929 = vpop.permute.xlu0 %1928
      %1931 = vset.pattern.permute.xlu0 9
      %1932 = vperm.xlu0 %1931, %v725
      %v1933 = vpop.permute.xlu0 %1932
      %1935 = vset.pattern.permute.xlu0 9
      %1936 = vperm.xlu0 %1935, %v726
      %v1937 = vpop.permute.xlu0 %1936
      %1939 = vset.pattern.permute.xlu0 9
      %1940 = vperm.xlu0 %1939, %v727
      %v1941 = vpop.permute.xlu0 %1940
      %1943 = vset.pattern.permute.xlu0 9
      %1944 = vperm.xlu0 %1943, %v728
      %v1945 = vpop.permute.xlu0 %1944
      %1947 = vset.pattern.permute.xlu0 9
      %1948 = vperm.xlu0 %1947, %v729
      %v1949 = vpop.permute.xlu0 %1948
      %1951 = vset.pattern.permute.xlu0 9
      %1952 = vperm.xlu0 %1951, %v730
      %v1953 = vpop.permute.xlu0 %1952
      %1955 = vset.pattern.permute.xlu0 9
      %1956 = vperm.xlu0 %1955, %v731
      %v1957 = vpop.permute.xlu0 %1956
      %1959 = vset.pattern.permute.xlu0 9
      %1960 = vperm.xlu0 %1959, %v732
      %v1961 = vpop.permute.xlu0 %1960
      %1963 = vset.pattern.permute.xlu0 9
      %1964 = vperm.xlu0 %1963, %v733
      %v1965 = vpop.permute.xlu0 %1964
      %1967 = vset.pattern.permute.xlu0 9
      %1968 = vperm.xlu0 %1967, %v734
      %v1969 = vpop.permute.xlu0 %1968
      %1971 = vset.pattern.permute.xlu0 9
      %1972 = vperm.xlu0 %1971, %v735
      %v1973 = vpop.permute.xlu0 %1972
      %1975 = vset.pattern.permute.xlu0 9
      %1976 = vperm.xlu0 %1975, %v736
      %v1977 = vpop.permute.xlu0 %1976
      %1979 = vset.pattern.permute.xlu0 9
      %1980 = vperm.xlu0 %1979, %v737
      %v1981 = vpop.permute.xlu0 %1980
      %1983 = vset.pattern.permute.xlu0 9
      %1984 = vperm.xlu0 %1983, %v738
      %v1985 = vpop.permute.xlu0 %1984
      %1987 = vset.pattern.permute.xlu0 9
      %1988 = vperm.xlu0 %1987, %v739
      %v1989 = vpop.permute.xlu0 %1988
      %v1991 = vsel %vm1895, %v1929, 0.0
      %v1992 = vsel %vm1896, %v1929, 0.0
      %v1993 = vsel %vm1897, %v1933, 0.0
      %v1994 = vsel %vm1898, %v1933, 0.0
      %v1995 = vsel %vm1899, %v1937, 0.0
      %v1996 = vsel %vm1900, %v1937, 0.0
      %v1997 = vsel %vm1901, %v1941, 0.0
      %v1998 = vsel %vm1902, %v1941, 0.0
      %v1999 = vsel %vm1903, %v1945, 0.0
      %v2000 = vsel %vm1904, %v1945, 0.0
      %v2001 = vsel %vm1905, %v1949, 0.0
      %v2002 = vsel %vm1906, %v1949, 0.0
      %v2003 = vsel %vm1907, %v1953, 0.0
      %v2004 = vsel %vm1908, %v1953, 0.0
      %v2005 = vsel %vm1909, %v1957, 0.0
      %v2006 = vsel %vm1910, %v1957, 0.0
      %v2007 = vsel %vm1911, %v1961, 0.0
      %v2008 = vsel %vm1912, %v1961, 0.0
      %v2009 = vsel %vm1913, %v1965, 0.0
      %v2010 = vsel %vm1914, %v1965, 0.0
      %v2011 = vsel %vm1915, %v1969, 0.0
      %v2012 = vsel %vm1916, %v1969, 0.0
      %v2013 = vsel %vm1917, %v1973, 0.0
      %v2014 = vsel %vm1918, %v1973, 0.0
      %v2015 = vsel %vm1919, %v1977, 0.0
      %v2016 = vsel %vm1920, %v1977, 0.0
      %v2017 = vsel %vm1921, %v1981, 0.0
      %v2018 = vsel %vm1922, %v1981, 0.0
      %v2019 = vsel %vm1923, %v1985, 0.0
      %v2020 = vsel %vm1924, %v1985, 0.0
      %v2021 = vsel %vm1925, %v1989, 0.0
      %v2022 = vsel %vm1926, %v1989, 0.0
      %v2023 = vadd.f32 %v1815, %v1991
      %v2024 = vadd.f32 %v1816, %v1992
      %v2025 = vadd.f32 %v1817, %v1993
      %v2026 = vadd.f32 %v1818, %v1994
      %v2027 = vadd.f32 %v1819, %v1995
      %v2028 = vadd.f32 %v1820, %v1996
      %v2029 = vadd.f32 %v1821, %v1997
      %v2030 = vadd.f32 %v1822, %v1998
      %v2031 = vadd.f32 %v1823, %v1999
      %v2032 = vadd.f32 %v1824, %v2000
      %v2033 = vadd.f32 %v1825, %v2001
      %v2034 = vadd.f32 %v1826, %v2002
      %v2035 = vadd.f32 %v1827, %v2003
      %v2036 = vadd.f32 %v1828, %v2004
      %v2037 = vadd.f32 %v1829, %v2005
      %v2038 = vadd.f32 %v1830, %v2006
      %v2039 = vadd.f32 %v1831, %v2007
      %v2040 = vadd.f32 %v1832, %v2008
      %v2041 = vadd.f32 %v1833, %v2009
      %v2042 = vadd.f32 %v1834, %v2010
      %v2043 = vadd.f32 %v1835, %v2011
      %v2044 = vadd.f32 %v1836, %v2012
      %v2045 = vadd.f32 %v1837, %v2013
      %v2046 = vadd.f32 %v1838, %v2014
      %v2047 = vadd.f32 %v1839, %v2015
      %v2048 = vadd.f32 %v1840, %v2016
      %v2049 = vadd.f32 %v1841, %v2017
      %v2050 = vadd.f32 %v1842, %v2018
      %v2051 = vadd.f32 %v1843, %v2019
      %v2052 = vadd.f32 %v1844, %v2020
      %v2053 = vadd.f32 %v1845, %v2021
      %v2054 = vadd.f32 %v1846, %v2022
      %2055 = vset.pattern.permute.xlu0 9
      %2056 = vperm.xlu0 %2055, %v516
      %v2057 = vpop.permute.xlu0 %2056
      %2058 = vset.pattern.permute.xlu0 9
      %2059 = vperm.xlu0 %2058, %v517
      %v2060 = vpop.permute.xlu0 %2059
      %2061 = vset.pattern.permute.xlu0 9
      %2062 = vperm.xlu0 %2061, %v518
      %v2063 = vpop.permute.xlu0 %2062
      %2064 = vset.pattern.permute.xlu0 9
      %2065 = vperm.xlu0 %2064, %v519
      %v2066 = vpop.permute.xlu0 %2065
      %2067 = vset.pattern.permute.xlu0 9
      %2068 = vperm.xlu0 %2067, %v520
      %v2069 = vpop.permute.xlu0 %2068
      %2070 = vset.pattern.permute.xlu0 9
      %2071 = vperm.xlu0 %2070, %v521
      %v2072 = vpop.permute.xlu0 %2071
      %2073 = vset.pattern.permute.xlu0 9
      %2074 = vperm.xlu0 %2073, %v522
      %v2075 = vpop.permute.xlu0 %2074
      %2076 = vset.pattern.permute.xlu0 9
      %2077 = vperm.xlu0 %2076, %v523
      %v2078 = vpop.permute.xlu0 %2077
      %2079 = vset.pattern.permute.xlu0 9
      %2080 = vperm.xlu0 %2079, %v524
      %v2081 = vpop.permute.xlu0 %2080
      %2082 = vset.pattern.permute.xlu0 9
      %2083 = vperm.xlu0 %2082, %v525
      %v2084 = vpop.permute.xlu0 %2083
      %2085 = vset.pattern.permute.xlu0 9
      %2086 = vperm.xlu0 %2085, %v526
      %v2087 = vpop.permute.xlu0 %2086
      %2088 = vset.pattern.permute.xlu0 9
      %2089 = vperm.xlu0 %2088, %v527
      %v2090 = vpop.permute.xlu0 %2089
      %2091 = vset.pattern.permute.xlu0 9
      %2092 = vperm.xlu0 %2091, %v528
      %v2093 = vpop.permute.xlu0 %2092
      %2094 = vset.pattern.permute.xlu0 9
      %2095 = vperm.xlu0 %2094, %v529
      %v2096 = vpop.permute.xlu0 %2095
      %2097 = vset.pattern.permute.xlu0 9
      %2098 = vperm.xlu0 %2097, %v530
      %v2099 = vpop.permute.xlu0 %2098
      %2100 = vset.pattern.permute.xlu0 9
      %2101 = vperm.xlu0 %2100, %v531
      %v2102 = vpop.permute.xlu0 %2101
      %vm2103 = vcmp.eq.s32.totalorder %v805, %v2057
      %vm2104 = vcmp.eq.s32.totalorder %v806, %v2057
      %vm2105 = vcmp.eq.s32.totalorder %v805, %v2060
      %vm2106 = vcmp.eq.s32.totalorder %v806, %v2060
      %vm2107 = vcmp.eq.s32.totalorder %v805, %v2063
      %vm2108 = vcmp.eq.s32.totalorder %v806, %v2063
      %vm2109 = vcmp.eq.s32.totalorder %v805, %v2066
      %vm2110 = vcmp.eq.s32.totalorder %v806, %v2066
      %vm2111 = vcmp.eq.s32.totalorder %v805, %v2069
      %vm2112 = vcmp.eq.s32.totalorder %v806, %v2069
      %vm2113 = vcmp.eq.s32.totalorder %v805, %v2072
      %vm2114 = vcmp.eq.s32.totalorder %v806, %v2072
      %vm2115 = vcmp.eq.s32.totalorder %v805, %v2075
      %vm2116 = vcmp.eq.s32.totalorder %v806, %v2075
      %vm2117 = vcmp.eq.s32.totalorder %v805, %v2078
      %vm2118 = vcmp.eq.s32.totalorder %v806, %v2078
      %vm2119 = vcmp.eq.s32.totalorder %v805, %v2081
      %vm2120 = vcmp.eq.s32.totalorder %v806, %v2081
      %vm2121 = vcmp.eq.s32.totalorder %v805, %v2084
      %vm2122 = vcmp.eq.s32.totalorder %v806, %v2084
      %vm2123 = vcmp.eq.s32.totalorder %v805, %v2087
      %vm2124 = vcmp.eq.s32.totalorder %v806, %v2087
      %vm2125 = vcmp.eq.s32.totalorder %v805, %v2090
      %vm2126 = vcmp.eq.s32.totalorder %v806, %v2090
      %vm2127 = vcmp.eq.s32.totalorder %v805, %v2093
      %vm2128 = vcmp.eq.s32.totalorder %v806, %v2093
      %vm2129 = vcmp.eq.s32.totalorder %v805, %v2096
      %vm2130 = vcmp.eq.s32.totalorder %v806, %v2096
      %vm2131 = vcmp.eq.s32.totalorder %v805, %v2099
      %vm2132 = vcmp.eq.s32.totalorder %v806, %v2099
      %vm2133 = vcmp.eq.s32.totalorder %v805, %v2102
      %vm2134 = vcmp.eq.s32.totalorder %v806, %v2102
      %2135 = vset.pattern.permute.xlu0 9
      %2136 = vperm.xlu0 %2135, %v756
      %v2137 = vpop.permute.xlu0 %2136
      %2139 = vset.pattern.permute.xlu0 9
      %2140 = vperm.xlu0 %2139, %v757
      %v2141 = vpop.permute.xlu0 %2140
      %2143 = vset.pattern.permute.xlu0 9
      %2144 = vperm.xlu0 %2143, %v758
      %v2145 = vpop.permute.xlu0 %2144
      %2147 = vset.pattern.permute.xlu0 9
      %2148 = vperm.xlu0 %2147, %v759
      %v2149 = vpop.permute.xlu0 %2148
      %2151 = vset.pattern.permute.xlu0 9
      %2152 = vperm.xlu0 %2151, %v760
      %v2153 = vpop.permute.xlu0 %2152
      %2155 = vset.pattern.permute.xlu0 9
      %2156 = vperm.xlu0 %2155, %v761
      %v2157 = vpop.permute.xlu0 %2156
      %2159 = vset.pattern.permute.xlu0 9
      %2160 = vperm.xlu0 %2159, %v762
      %v2161 = vpop.permute.xlu0 %2160
      %2163 = vset.pattern.permute.xlu0 9
      %2164 = vperm.xlu0 %2163, %v763
      %v2165 = vpop.permute.xlu0 %2164
      %2167 = vset.pattern.permute.xlu0 9
      %2168 = vperm.xlu0 %2167, %v764
      %v2169 = vpop.permute.xlu0 %2168
      %2171 = vset.pattern.permute.xlu0 9
      %2172 = vperm.xlu0 %2171, %v765
      %v2173 = vpop.permute.xlu0 %2172
      %2175 = vset.pattern.permute.xlu0 9
      %2176 = vperm.xlu0 %2175, %v766
      %v2177 = vpop.permute.xlu0 %2176
      %2179 = vset.pattern.permute.xlu0 9
      %2180 = vperm.xlu0 %2179, %v767
      %v2181 = vpop.permute.xlu0 %2180
      %2183 = vset.pattern.permute.xlu0 9
      %2184 = vperm.xlu0 %2183, %v768
      %v2185 = vpop.permute.xlu0 %2184
      %2187 = vset.pattern.permute.xlu0 9
      %2188 = vperm.xlu0 %2187, %v769
      %v2189 = vpop.permute.xlu0 %2188
      %2191 = vset.pattern.permute.xlu0 9
      %2192 = vperm.xlu0 %2191, %v770
      %v2193 = vpop.permute.xlu0 %2192
      %2195 = vset.pattern.permute.xlu0 9
      %2196 = vperm.xlu0 %2195, %v771
      %v2197 = vpop.permute.xlu0 %2196
      %v2199 = vsel %vm2103, %v2137, 0.0
      %v2200 = vsel %vm2104, %v2137, 0.0
      %v2201 = vsel %vm2105, %v2141, 0.0
      %v2202 = vsel %vm2106, %v2141, 0.0
      %v2203 = vsel %vm2107, %v2145, 0.0
      %v2204 = vsel %vm2108, %v2145, 0.0
      %v2205 = vsel %vm2109, %v2149, 0.0
      %v2206 = vsel %vm2110, %v2149, 0.0
      %v2207 = vsel %vm2111, %v2153, 0.0
      %v2208 = vsel %vm2112, %v2153, 0.0
      %v2209 = vsel %vm2113, %v2157, 0.0
      %v2210 = vsel %vm2114, %v2157, 0.0
      %v2211 = vsel %vm2115, %v2161, 0.0
      %v2212 = vsel %vm2116, %v2161, 0.0
      %v2213 = vsel %vm2117, %v2165, 0.0
      %v2214 = vsel %vm2118, %v2165, 0.0
      %v2215 = vsel %vm2119, %v2169, 0.0
      %v2216 = vsel %vm2120, %v2169, 0.0
      %v2217 = vsel %vm2121, %v2173, 0.0
      %v2218 = vsel %vm2122, %v2173, 0.0
      %v2219 = vsel %vm2123, %v2177, 0.0
      %v2220 = vsel %vm2124, %v2177, 0.0
      %v2221 = vsel %vm2125, %v2181, 0.0
      %v2222 = vsel %vm2126, %v2181, 0.0
      %v2223 = vsel %vm2127, %v2185, 0.0
      %v2224 = vsel %vm2128, %v2185, 0.0
      %v2225 = vsel %vm2129, %v2189, 0.0
      %v2226 = vsel %vm2130, %v2189, 0.0
      %v2227 = vsel %vm2131, %v2193, 0.0
      %v2228 = vsel %vm2132, %v2193, 0.0
      %v2229 = vsel %vm2133, %v2197, 0.0
      %v2230 = vsel %vm2134, %v2197, 0.0
      %v2231 = vadd.f32 %v2023, %v2199
      %v2232 = vadd.f32 %v2024, %v2200
      %v2233 = vadd.f32 %v2025, %v2201
      %v2234 = vadd.f32 %v2026, %v2202
      %v2235 = vadd.f32 %v2027, %v2203
      %v2236 = vadd.f32 %v2028, %v2204
      %v2237 = vadd.f32 %v2029, %v2205
      %v2238 = vadd.f32 %v2030, %v2206
      %v2239 = vadd.f32 %v2031, %v2207
      %v2240 = vadd.f32 %v2032, %v2208
      %v2241 = vadd.f32 %v2033, %v2209
      %v2242 = vadd.f32 %v2034, %v2210
      %v2243 = vadd.f32 %v2035, %v2211
      %v2244 = vadd.f32 %v2036, %v2212
      %v2245 = vadd.f32 %v2037, %v2213
      %v2246 = vadd.f32 %v2038, %v2214
      %v2247 = vadd.f32 %v2039, %v2215
      %v2248 = vadd.f32 %v2040, %v2216
      %v2249 = vadd.f32 %v2041, %v2217
      %v2250 = vadd.f32 %v2042, %v2218
      %v2251 = vadd.f32 %v2043, %v2219
      %v2252 = vadd.f32 %v2044, %v2220
      %v2253 = vadd.f32 %v2045, %v2221
      %v2254 = vadd.f32 %v2046, %v2222
      %v2255 = vadd.f32 %v2047, %v2223
      %v2256 = vadd.f32 %v2048, %v2224
      %v2257 = vadd.f32 %v2049, %v2225
      %v2258 = vadd.f32 %v2050, %v2226
      %v2259 = vadd.f32 %v2051, %v2227
      %v2260 = vadd.f32 %v2052, %v2228
      %v2261 = vadd.f32 %v2053, %v2229
      %v2262 = vadd.f32 %v2054, %v2230
      %2263 = vset.pattern.permute.xlu0 9
      %2264 = vperm.xlu0 %2263, %v532
      %v2265 = vpop.permute.xlu0 %2264
      %2266 = vset.pattern.permute.xlu0 9
      %2267 = vperm.xlu0 %2266, %v533
      %v2268 = vpop.permute.xlu0 %2267
      %2269 = vset.pattern.permute.xlu0 9
      %2270 = vperm.xlu0 %2269, %v534
      %v2271 = vpop.permute.xlu0 %2270
      %2272 = vset.pattern.permute.xlu0 9
      %2273 = vperm.xlu0 %2272, %v535
      %v2274 = vpop.permute.xlu0 %2273
      %2275 = vset.pattern.permute.xlu0 9
      %2276 = vperm.xlu0 %2275, %v536
      %v2277 = vpop.permute.xlu0 %2276
      %2278 = vset.pattern.permute.xlu0 9
      %2279 = vperm.xlu0 %2278, %v537
      %v2280 = vpop.permute.xlu0 %2279
      %2281 = vset.pattern.permute.xlu0 9
      %2282 = vperm.xlu0 %2281, %v538
      %v2283 = vpop.permute.xlu0 %2282
      %2284 = vset.pattern.permute.xlu0 9
      %2285 = vperm.xlu0 %2284, %v539
      %v2286 = vpop.permute.xlu0 %2285
      %2287 = vset.pattern.permute.xlu0 9
      %2288 = vperm.xlu0 %2287, %v540
      %v2289 = vpop.permute.xlu0 %2288
      %2290 = vset.pattern.permute.xlu0 9
      %2291 = vperm.xlu0 %2290, %v541
      %v2292 = vpop.permute.xlu0 %2291
      %2293 = vset.pattern.permute.xlu0 9
      %2294 = vperm.xlu0 %2293, %v542
      %v2295 = vpop.permute.xlu0 %2294
      %2296 = vset.pattern.permute.xlu0 9
      %2297 = vperm.xlu0 %2296, %v543
      %v2298 = vpop.permute.xlu0 %2297
      %2299 = vset.pattern.permute.xlu0 9
      %2300 = vperm.xlu0 %2299, %v544
      %v2301 = vpop.permute.xlu0 %2300
      %2302 = vset.pattern.permute.xlu0 9
      %2303 = vperm.xlu0 %2302, %v545
      %v2304 = vpop.permute.xlu0 %2303
      %2305 = vset.pattern.permute.xlu0 9
      %2306 = vperm.xlu0 %2305, %v546
      %v2307 = vpop.permute.xlu0 %2306
      %2308 = vset.pattern.permute.xlu0 9
      %2309 = vperm.xlu0 %2308, %v547
      %v2310 = vpop.permute.xlu0 %2309
      %vm2311 = vcmp.eq.s32.totalorder %v805, %v2265
      %vm2312 = vcmp.eq.s32.totalorder %v806, %v2265
      %vm2313 = vcmp.eq.s32.totalorder %v805, %v2268
      %vm2314 = vcmp.eq.s32.totalorder %v806, %v2268
      %vm2315 = vcmp.eq.s32.totalorder %v805, %v2271
      %vm2316 = vcmp.eq.s32.totalorder %v806, %v2271
      %vm2317 = vcmp.eq.s32.totalorder %v805, %v2274
      %vm2318 = vcmp.eq.s32.totalorder %v806, %v2274
      %vm2319 = vcmp.eq.s32.totalorder %v805, %v2277
      %vm2320 = vcmp.eq.s32.totalorder %v806, %v2277
      %vm2321 = vcmp.eq.s32.totalorder %v805, %v2280
      %vm2322 = vcmp.eq.s32.totalorder %v806, %v2280
      %vm2323 = vcmp.eq.s32.totalorder %v805, %v2283
      %vm2324 = vcmp.eq.s32.totalorder %v806, %v2283
      %vm2325 = vcmp.eq.s32.totalorder %v805, %v2286
      %vm2326 = vcmp.eq.s32.totalorder %v806, %v2286
      %vm2327 = vcmp.eq.s32.totalorder %v805, %v2289
      %vm2328 = vcmp.eq.s32.totalorder %v806, %v2289
      %vm2329 = vcmp.eq.s32.totalorder %v805, %v2292
      %vm2330 = vcmp.eq.s32.totalorder %v806, %v2292
      %vm2331 = vcmp.eq.s32.totalorder %v805, %v2295
      %vm2332 = vcmp.eq.s32.totalorder %v806, %v2295
      %vm2333 = vcmp.eq.s32.totalorder %v805, %v2298
      %vm2334 = vcmp.eq.s32.totalorder %v806, %v2298
      %vm2335 = vcmp.eq.s32.totalorder %v805, %v2301
      %vm2336 = vcmp.eq.s32.totalorder %v806, %v2301
      %vm2337 = vcmp.eq.s32.totalorder %v805, %v2304
      %vm2338 = vcmp.eq.s32.totalorder %v806, %v2304
      %vm2339 = vcmp.eq.s32.totalorder %v805, %v2307
      %vm2340 = vcmp.eq.s32.totalorder %v806, %v2307
      %vm2341 = vcmp.eq.s32.totalorder %v805, %v2310
      %vm2342 = vcmp.eq.s32.totalorder %v806, %v2310
      %2343 = vset.pattern.permute.xlu0 9
      %2344 = vperm.xlu0 %2343, %v788
      %v2345 = vpop.permute.xlu0 %2344
      %2347 = vset.pattern.permute.xlu0 9
      %2348 = vperm.xlu0 %2347, %v789
      %v2349 = vpop.permute.xlu0 %2348
      %2351 = vset.pattern.permute.xlu0 9
      %2352 = vperm.xlu0 %2351, %v790
      %v2353 = vpop.permute.xlu0 %2352
      %2355 = vset.pattern.permute.xlu0 9
      %2356 = vperm.xlu0 %2355, %v791
      %v2357 = vpop.permute.xlu0 %2356
      %2359 = vset.pattern.permute.xlu0 9
      %2360 = vperm.xlu0 %2359, %v792
      %v2361 = vpop.permute.xlu0 %2360
      %2363 = vset.pattern.permute.xlu0 9
      %2364 = vperm.xlu0 %2363, %v793
      %v2365 = vpop.permute.xlu0 %2364
      %2367 = vset.pattern.permute.xlu0 9
      %2368 = vperm.xlu0 %2367, %v794
      %v2369 = vpop.permute.xlu0 %2368
      %2371 = vset.pattern.permute.xlu0 9
      %2372 = vperm.xlu0 %2371, %v795
      %v2373 = vpop.permute.xlu0 %2372
      %2375 = vset.pattern.permute.xlu0 9
      %2376 = vperm.xlu0 %2375, %v796
      %v2377 = vpop.permute.xlu0 %2376
      %2379 = vset.pattern.permute.xlu0 9
      %2380 = vperm.xlu0 %2379, %v797
      %v2381 = vpop.permute.xlu0 %2380
      %2383 = vset.pattern.permute.xlu0 9
      %2384 = vperm.xlu0 %2383, %v798
      %v2385 = vpop.permute.xlu0 %2384
      %2387 = vset.pattern.permute.xlu0 9
      %2388 = vperm.xlu0 %2387, %v799
      %v2389 = vpop.permute.xlu0 %2388
      %2391 = vset.pattern.permute.xlu0 9
      %2392 = vperm.xlu0 %2391, %v800
      %v2393 = vpop.permute.xlu0 %2392
      %2395 = vset.pattern.permute.xlu0 9
      %2396 = vperm.xlu0 %2395, %v801
      %v2397 = vpop.permute.xlu0 %2396
      %2399 = vset.pattern.permute.xlu0 9
      %2400 = vperm.xlu0 %2399, %v802
      %v2401 = vpop.permute.xlu0 %2400
      %2403 = vset.pattern.permute.xlu0 9
      %2404 = vperm.xlu0 %2403, %v803
      %v2405 = vpop.permute.xlu0 %2404
      %v2407 = vsel %vm2311, %v2345, 0.0
      %v2408 = vsel %vm2312, %v2345, 0.0
      %v2409 = vsel %vm2313, %v2349, 0.0
      %v2410 = vsel %vm2314, %v2349, 0.0
      %v2411 = vsel %vm2315, %v2353, 0.0
      %v2412 = vsel %vm2316, %v2353, 0.0
      %v2413 = vsel %vm2317, %v2357, 0.0
      %v2414 = vsel %vm2318, %v2357, 0.0
      %v2415 = vsel %vm2319, %v2361, 0.0
      %v2416 = vsel %vm2320, %v2361, 0.0
      %v2417 = vsel %vm2321, %v2365, 0.0
      %v2418 = vsel %vm2322, %v2365, 0.0
      %v2419 = vsel %vm2323, %v2369, 0.0
      %v2420 = vsel %vm2324, %v2369, 0.0
      %v2421 = vsel %vm2325, %v2373, 0.0
      %v2422 = vsel %vm2326, %v2373, 0.0
      %v2423 = vsel %vm2327, %v2377, 0.0
      %v2424 = vsel %vm2328, %v2377, 0.0
      %v2425 = vsel %vm2329, %v2381, 0.0
      %v2426 = vsel %vm2330, %v2381, 0.0
      %v2427 = vsel %vm2331, %v2385, 0.0
      %v2428 = vsel %vm2332, %v2385, 0.0
      %v2429 = vsel %vm2333, %v2389, 0.0
      %v2430 = vsel %vm2334, %v2389, 0.0
      %v2431 = vsel %vm2335, %v2393, 0.0
      %v2432 = vsel %vm2336, %v2393, 0.0
      %v2433 = vsel %vm2337, %v2397, 0.0
      %v2434 = vsel %vm2338, %v2397, 0.0
      %v2435 = vsel %vm2339, %v2401, 0.0
      %v2436 = vsel %vm2340, %v2401, 0.0
      %v2437 = vsel %vm2341, %v2405, 0.0
      %v2438 = vsel %vm2342, %v2405, 0.0
      %v2439 = vadd.f32 %v2231, %v2407
      %v2440 = vadd.f32 %v2232, %v2408
      %v2441 = vadd.f32 %v2233, %v2409
      %v2442 = vadd.f32 %v2234, %v2410
      %v2443 = vadd.f32 %v2235, %v2411
      %v2444 = vadd.f32 %v2236, %v2412
      %v2445 = vadd.f32 %v2237, %v2413
      %v2446 = vadd.f32 %v2238, %v2414
      %v2447 = vadd.f32 %v2239, %v2415
      %v2448 = vadd.f32 %v2240, %v2416
      %v2449 = vadd.f32 %v2241, %v2417
      %v2450 = vadd.f32 %v2242, %v2418
      %v2451 = vadd.f32 %v2243, %v2419
      %v2452 = vadd.f32 %v2244, %v2420
      %v2453 = vadd.f32 %v2245, %v2421
      %v2454 = vadd.f32 %v2246, %v2422
      %v2455 = vadd.f32 %v2247, %v2423
      %v2456 = vadd.f32 %v2248, %v2424
      %v2457 = vadd.f32 %v2249, %v2425
      %v2458 = vadd.f32 %v2250, %v2426
      %v2459 = vadd.f32 %v2251, %v2427
      %v2460 = vadd.f32 %v2252, %v2428
      %v2461 = vadd.f32 %v2253, %v2429
      %v2462 = vadd.f32 %v2254, %v2430
      %v2463 = vadd.f32 %v2255, %v2431
      %v2464 = vadd.f32 %v2256, %v2432
      %v2465 = vadd.f32 %v2257, %v2433
      %v2466 = vadd.f32 %v2258, %v2434
      %v2467 = vadd.f32 %v2259, %v2435
      %v2468 = vadd.f32 %v2260, %v2436
      %v2469 = vadd.f32 %v2261, %v2437
      %v2470 = vadd.f32 %v2262, %v2438
      %v2471 = vadd.f32 %v1639, %v2439
      %v2472 = vadd.f32 %v1640, %v2440
      %v2473 = vadd.f32 %v1641, %v2441
      %v2474 = vadd.f32 %v1642, %v2442
      %v2475 = vadd.f32 %v1643, %v2443
      %v2476 = vadd.f32 %v1644, %v2444
      %v2477 = vadd.f32 %v1645, %v2445
      %v2478 = vadd.f32 %v1646, %v2446
      %v2479 = vadd.f32 %v1647, %v2447
      %v2480 = vadd.f32 %v1648, %v2448
      %v2481 = vadd.f32 %v1649, %v2449
      %v2482 = vadd.f32 %v1650, %v2450
      %v2483 = vadd.f32 %v1651, %v2451
      %v2484 = vadd.f32 %v1652, %v2452
      %v2485 = vadd.f32 %v1653, %v2453
      %v2486 = vadd.f32 %v1654, %v2454
      %v2487 = vadd.f32 %v1655, %v2455
      %v2488 = vadd.f32 %v1656, %v2456
      %v2489 = vadd.f32 %v1657, %v2457
      %v2490 = vadd.f32 %v1658, %v2458
      %v2491 = vadd.f32 %v1659, %v2459
      %v2492 = vadd.f32 %v1660, %v2460
      %v2493 = vadd.f32 %v1661, %v2461
      %v2494 = vadd.f32 %v1662, %v2462
      %v2495 = vadd.f32 %v1663, %v2463
      %v2496 = vadd.f32 %v1664, %v2464
      %v2497 = vadd.f32 %v1665, %v2465
      %v2498 = vadd.f32 %v1666, %v2466
      %v2499 = vadd.f32 %v1667, %v2467
      %v2500 = vadd.f32 %v1668, %v2468
      %v2501 = vadd.f32 %v1669, %v2469
      %v2502 = vadd.f32 %v1670, %v2470
      %2503 = vset.pattern.permute.xlu0 10
      %2504 = vperm.xlu0 %2503, %v436
      %v2505 = vpop.permute.xlu0 %2504
      %2506 = vset.pattern.permute.xlu0 10
      %2507 = vperm.xlu0 %2506, %v437
      %v2508 = vpop.permute.xlu0 %2507
      %2509 = vset.pattern.permute.xlu0 10
      %2510 = vperm.xlu0 %2509, %v438
      %v2511 = vpop.permute.xlu0 %2510
      %2512 = vset.pattern.permute.xlu0 10
      %2513 = vperm.xlu0 %2512, %v439
      %v2514 = vpop.permute.xlu0 %2513
      %2515 = vset.pattern.permute.xlu0 10
      %2516 = vperm.xlu0 %2515, %v440
      %v2517 = vpop.permute.xlu0 %2516
      %2518 = vset.pattern.permute.xlu0 10
      %2519 = vperm.xlu0 %2518, %v441
      %v2520 = vpop.permute.xlu0 %2519
      %2521 = vset.pattern.permute.xlu0 10
      %2522 = vperm.xlu0 %2521, %v442
      %v2523 = vpop.permute.xlu0 %2522
      %2524 = vset.pattern.permute.xlu0 10
      %2525 = vperm.xlu0 %2524, %v443
      %v2526 = vpop.permute.xlu0 %2525
      %2527 = vset.pattern.permute.xlu0 10
      %2528 = vperm.xlu0 %2527, %v444
      %v2529 = vpop.permute.xlu0 %2528
      %2530 = vset.pattern.permute.xlu0 10
      %2531 = vperm.xlu0 %2530, %v445
      %v2532 = vpop.permute.xlu0 %2531
      %2533 = vset.pattern.permute.xlu0 10
      %2534 = vperm.xlu0 %2533, %v446
      %v2535 = vpop.permute.xlu0 %2534
      %2536 = vset.pattern.permute.xlu0 10
      %2537 = vperm.xlu0 %2536, %v447
      %v2538 = vpop.permute.xlu0 %2537
      %2539 = vset.pattern.permute.xlu0 10
      %2540 = vperm.xlu0 %2539, %v448
      %v2541 = vpop.permute.xlu0 %2540
      %2542 = vset.pattern.permute.xlu0 10
      %2543 = vperm.xlu0 %2542, %v449
      %v2544 = vpop.permute.xlu0 %2543
      %2545 = vset.pattern.permute.xlu0 10
      %2546 = vperm.xlu0 %2545, %v450
      %v2547 = vpop.permute.xlu0 %2546
      %2548 = vset.pattern.permute.xlu0 10
      %2549 = vperm.xlu0 %2548, %v451
      %v2550 = vpop.permute.xlu0 %2549
      %vm2551 = vcmp.eq.s32.totalorder %v805, %v2505
      %vm2552 = vcmp.eq.s32.totalorder %v806, %v2505
      %vm2553 = vcmp.eq.s32.totalorder %v805, %v2508
      %vm2554 = vcmp.eq.s32.totalorder %v806, %v2508
      %vm2555 = vcmp.eq.s32.totalorder %v805, %v2511
      %vm2556 = vcmp.eq.s32.totalorder %v806, %v2511
      %vm2557 = vcmp.eq.s32.totalorder %v805, %v2514
      %vm2558 = vcmp.eq.s32.totalorder %v806, %v2514
      %vm2559 = vcmp.eq.s32.totalorder %v805, %v2517
      %vm2560 = vcmp.eq.s32.totalorder %v806, %v2517
      %vm2561 = vcmp.eq.s32.totalorder %v805, %v2520
      %vm2562 = vcmp.eq.s32.totalorder %v806, %v2520
      %vm2563 = vcmp.eq.s32.totalorder %v805, %v2523
      %vm2564 = vcmp.eq.s32.totalorder %v806, %v2523
      %vm2565 = vcmp.eq.s32.totalorder %v805, %v2526
      %vm2566 = vcmp.eq.s32.totalorder %v806, %v2526
      %vm2567 = vcmp.eq.s32.totalorder %v805, %v2529
      %vm2568 = vcmp.eq.s32.totalorder %v806, %v2529
      %vm2569 = vcmp.eq.s32.totalorder %v805, %v2532
      %vm2570 = vcmp.eq.s32.totalorder %v806, %v2532
      %vm2571 = vcmp.eq.s32.totalorder %v805, %v2535
      %vm2572 = vcmp.eq.s32.totalorder %v806, %v2535
      %vm2573 = vcmp.eq.s32.totalorder %v805, %v2538
      %vm2574 = vcmp.eq.s32.totalorder %v806, %v2538
      %vm2575 = vcmp.eq.s32.totalorder %v805, %v2541
      %vm2576 = vcmp.eq.s32.totalorder %v806, %v2541
      %vm2577 = vcmp.eq.s32.totalorder %v805, %v2544
      %vm2578 = vcmp.eq.s32.totalorder %v806, %v2544
      %vm2579 = vcmp.eq.s32.totalorder %v805, %v2547
      %vm2580 = vcmp.eq.s32.totalorder %v806, %v2547
      %vm2581 = vcmp.eq.s32.totalorder %v805, %v2550
      %vm2582 = vcmp.eq.s32.totalorder %v806, %v2550
      %2583 = vset.pattern.permute.xlu0 10
      %2584 = vperm.xlu0 %2583, %v628
      %v2585 = vpop.permute.xlu0 %2584
      %2587 = vset.pattern.permute.xlu0 10
      %2588 = vperm.xlu0 %2587, %v629
      %v2589 = vpop.permute.xlu0 %2588
      %2591 = vset.pattern.permute.xlu0 10
      %2592 = vperm.xlu0 %2591, %v630
      %v2593 = vpop.permute.xlu0 %2592
      %2595 = vset.pattern.permute.xlu0 10
      %2596 = vperm.xlu0 %2595, %v631
      %v2597 = vpop.permute.xlu0 %2596
      %2599 = vset.pattern.permute.xlu0 10
      %2600 = vperm.xlu0 %2599, %v632
      %v2601 = vpop.permute.xlu0 %2600
      %2603 = vset.pattern.permute.xlu0 10
      %2604 = vperm.xlu0 %2603, %v633
      %v2605 = vpop.permute.xlu0 %2604
      %2607 = vset.pattern.permute.xlu0 10
      %2608 = vperm.xlu0 %2607, %v634
      %v2609 = vpop.permute.xlu0 %2608
      %2611 = vset.pattern.permute.xlu0 10
      %2612 = vperm.xlu0 %2611, %v635
      %v2613 = vpop.permute.xlu0 %2612
      %2615 = vset.pattern.permute.xlu0 10
      %2616 = vperm.xlu0 %2615, %v636
      %v2617 = vpop.permute.xlu0 %2616
      %2619 = vset.pattern.permute.xlu0 10
      %2620 = vperm.xlu0 %2619, %v637
      %v2621 = vpop.permute.xlu0 %2620
      %2623 = vset.pattern.permute.xlu0 10
      %2624 = vperm.xlu0 %2623, %v638
      %v2625 = vpop.permute.xlu0 %2624
      %2627 = vset.pattern.permute.xlu0 10
      %2628 = vperm.xlu0 %2627, %v639
      %v2629 = vpop.permute.xlu0 %2628
      %2631 = vset.pattern.permute.xlu0 10
      %2632 = vperm.xlu0 %2631, %v640
      %v2633 = vpop.permute.xlu0 %2632
      %2635 = vset.pattern.permute.xlu0 10
      %2636 = vperm.xlu0 %2635, %v641
      %v2637 = vpop.permute.xlu0 %2636
      %2639 = vset.pattern.permute.xlu0 10
      %2640 = vperm.xlu0 %2639, %v642
      %v2641 = vpop.permute.xlu0 %2640
      %2643 = vset.pattern.permute.xlu0 10
      %2644 = vperm.xlu0 %2643, %v643
      %v2645 = vpop.permute.xlu0 %2644
      %v2647 = vsel %vm2551, %v2585, 0.0
      %v2648 = vsel %vm2552, %v2585, 0.0
      %v2649 = vsel %vm2553, %v2589, 0.0
      %v2650 = vsel %vm2554, %v2589, 0.0
      %v2651 = vsel %vm2555, %v2593, 0.0
      %v2652 = vsel %vm2556, %v2593, 0.0
      %v2653 = vsel %vm2557, %v2597, 0.0
      %v2654 = vsel %vm2558, %v2597, 0.0
      %v2655 = vsel %vm2559, %v2601, 0.0
      %v2656 = vsel %vm2560, %v2601, 0.0
      %v2657 = vsel %vm2561, %v2605, 0.0
      %v2658 = vsel %vm2562, %v2605, 0.0
      %v2659 = vsel %vm2563, %v2609, 0.0
      %v2660 = vsel %vm2564, %v2609, 0.0
      %v2661 = vsel %vm2565, %v2613, 0.0
      %v2662 = vsel %vm2566, %v2613, 0.0
      %v2663 = vsel %vm2567, %v2617, 0.0
      %v2664 = vsel %vm2568, %v2617, 0.0
      %v2665 = vsel %vm2569, %v2621, 0.0
      %v2666 = vsel %vm2570, %v2621, 0.0
      %v2667 = vsel %vm2571, %v2625, 0.0
      %v2668 = vsel %vm2572, %v2625, 0.0
      %v2669 = vsel %vm2573, %v2629, 0.0
      %v2670 = vsel %vm2574, %v2629, 0.0
      %v2671 = vsel %vm2575, %v2633, 0.0
      %v2672 = vsel %vm2576, %v2633, 0.0
      %v2673 = vsel %vm2577, %v2637, 0.0
      %v2674 = vsel %vm2578, %v2637, 0.0
      %v2675 = vsel %vm2579, %v2641, 0.0
      %v2676 = vsel %vm2580, %v2641, 0.0
      %v2677 = vsel %vm2581, %v2645, 0.0
      %v2678 = vsel %vm2582, %v2645, 0.0
      %2679 = vset.pattern.permute.xlu0 10
      %2680 = vperm.xlu0 %2679, %v484
      %v2681 = vpop.permute.xlu0 %2680
      %2682 = vset.pattern.permute.xlu0 10
      %2683 = vperm.xlu0 %2682, %v485
      %v2684 = vpop.permute.xlu0 %2683
      %2685 = vset.pattern.permute.xlu0 10
      %2686 = vperm.xlu0 %2685, %v486
      %v2687 = vpop.permute.xlu0 %2686
      %2688 = vset.pattern.permute.xlu0 10
      %2689 = vperm.xlu0 %2688, %v487
      %v2690 = vpop.permute.xlu0 %2689
      %2691 = vset.pattern.permute.xlu0 10
      %2692 = vperm.xlu0 %2691, %v488
      %v2693 = vpop.permute.xlu0 %2692
      %2694 = vset.pattern.permute.xlu0 10
      %2695 = vperm.xlu0 %2694, %v489
      %v2696 = vpop.permute.xlu0 %2695
      %2697 = vset.pattern.permute.xlu0 10
      %2698 = vperm.xlu0 %2697, %v490
      %v2699 = vpop.permute.xlu0 %2698
      %2700 = vset.pattern.permute.xlu0 10
      %2701 = vperm.xlu0 %2700, %v491
      %v2702 = vpop.permute.xlu0 %2701
      %2703 = vset.pattern.permute.xlu0 10
      %2704 = vperm.xlu0 %2703, %v492
      %v2705 = vpop.permute.xlu0 %2704
      %2706 = vset.pattern.permute.xlu0 10
      %2707 = vperm.xlu0 %2706, %v493
      %v2708 = vpop.permute.xlu0 %2707
      %2709 = vset.pattern.permute.xlu0 10
      %2710 = vperm.xlu0 %2709, %v494
      %v2711 = vpop.permute.xlu0 %2710
      %2712 = vset.pattern.permute.xlu0 10
      %2713 = vperm.xlu0 %2712, %v495
      %v2714 = vpop.permute.xlu0 %2713
      %2715 = vset.pattern.permute.xlu0 10
      %2716 = vperm.xlu0 %2715, %v496
      %v2717 = vpop.permute.xlu0 %2716
      %2718 = vset.pattern.permute.xlu0 10
      %2719 = vperm.xlu0 %2718, %v497
      %v2720 = vpop.permute.xlu0 %2719
      %2721 = vset.pattern.permute.xlu0 10
      %2722 = vperm.xlu0 %2721, %v498
      %v2723 = vpop.permute.xlu0 %2722
      %2724 = vset.pattern.permute.xlu0 10
      %2725 = vperm.xlu0 %2724, %v499
      %v2726 = vpop.permute.xlu0 %2725
      %vm2727 = vcmp.eq.s32.totalorder %v805, %v2681
      %vm2728 = vcmp.eq.s32.totalorder %v806, %v2681
      %vm2729 = vcmp.eq.s32.totalorder %v805, %v2684
      %vm2730 = vcmp.eq.s32.totalorder %v806, %v2684
      %vm2731 = vcmp.eq.s32.totalorder %v805, %v2687
      %vm2732 = vcmp.eq.s32.totalorder %v806, %v2687
      %vm2733 = vcmp.eq.s32.totalorder %v805, %v2690
      %vm2734 = vcmp.eq.s32.totalorder %v806, %v2690
      %vm2735 = vcmp.eq.s32.totalorder %v805, %v2693
      %vm2736 = vcmp.eq.s32.totalorder %v806, %v2693
      %vm2737 = vcmp.eq.s32.totalorder %v805, %v2696
      %vm2738 = vcmp.eq.s32.totalorder %v806, %v2696
      %vm2739 = vcmp.eq.s32.totalorder %v805, %v2699
      %vm2740 = vcmp.eq.s32.totalorder %v806, %v2699
      %vm2741 = vcmp.eq.s32.totalorder %v805, %v2702
      %vm2742 = vcmp.eq.s32.totalorder %v806, %v2702
      %vm2743 = vcmp.eq.s32.totalorder %v805, %v2705
      %vm2744 = vcmp.eq.s32.totalorder %v806, %v2705
      %vm2745 = vcmp.eq.s32.totalorder %v805, %v2708
      %vm2746 = vcmp.eq.s32.totalorder %v806, %v2708
      %vm2747 = vcmp.eq.s32.totalorder %v805, %v2711
      %vm2748 = vcmp.eq.s32.totalorder %v806, %v2711
      %vm2749 = vcmp.eq.s32.totalorder %v805, %v2714
      %vm2750 = vcmp.eq.s32.totalorder %v806, %v2714
      %vm2751 = vcmp.eq.s32.totalorder %v805, %v2717
      %vm2752 = vcmp.eq.s32.totalorder %v806, %v2717
      %vm2753 = vcmp.eq.s32.totalorder %v805, %v2720
      %vm2754 = vcmp.eq.s32.totalorder %v806, %v2720
      %vm2755 = vcmp.eq.s32.totalorder %v805, %v2723
      %vm2756 = vcmp.eq.s32.totalorder %v806, %v2723
      %vm2757 = vcmp.eq.s32.totalorder %v805, %v2726
      %vm2758 = vcmp.eq.s32.totalorder %v806, %v2726
      %2759 = vset.pattern.permute.xlu0 10
      %2760 = vperm.xlu0 %2759, %v724
      %v2761 = vpop.permute.xlu0 %2760
      %2763 = vset.pattern.permute.xlu0 10
      %2764 = vperm.xlu0 %2763, %v725
      %v2765 = vpop.permute.xlu0 %2764
      %2767 = vset.pattern.permute.xlu0 10
      %2768 = vperm.xlu0 %2767, %v726
      %v2769 = vpop.permute.xlu0 %2768
      %2771 = vset.pattern.permute.xlu0 10
      %2772 = vperm.xlu0 %2771, %v727
      %v2773 = vpop.permute.xlu0 %2772
      %2775 = vset.pattern.permute.xlu0 10
      %2776 = vperm.xlu0 %2775, %v728
      %v2777 = vpop.permute.xlu0 %2776
      %2779 = vset.pattern.permute.xlu0 10
      %2780 = vperm.xlu0 %2779, %v729
      %v2781 = vpop.permute.xlu0 %2780
      %2783 = vset.pattern.permute.xlu0 10
      %2784 = vperm.xlu0 %2783, %v730
      %v2785 = vpop.permute.xlu0 %2784
      %2787 = vset.pattern.permute.xlu0 10
      %2788 = vperm.xlu0 %2787, %v731
      %v2789 = vpop.permute.xlu0 %2788
      %2791 = vset.pattern.permute.xlu0 10
      %2792 = vperm.xlu0 %2791, %v732
      %v2793 = vpop.permute.xlu0 %2792
      %2795 = vset.pattern.permute.xlu0 10
      %2796 = vperm.xlu0 %2795, %v733
      %v2797 = vpop.permute.xlu0 %2796
      %2799 = vset.pattern.permute.xlu0 10
      %2800 = vperm.xlu0 %2799, %v734
      %v2801 = vpop.permute.xlu0 %2800
      %2803 = vset.pattern.permute.xlu0 10
      %2804 = vperm.xlu0 %2803, %v735
      %v2805 = vpop.permute.xlu0 %2804
      %2807 = vset.pattern.permute.xlu0 10
      %2808 = vperm.xlu0 %2807, %v736
      %v2809 = vpop.permute.xlu0 %2808
      %2811 = vset.pattern.permute.xlu0 10
      %2812 = vperm.xlu0 %2811, %v737
      %v2813 = vpop.permute.xlu0 %2812
      %2815 = vset.pattern.permute.xlu0 10
      %2816 = vperm.xlu0 %2815, %v738
      %v2817 = vpop.permute.xlu0 %2816
      %2819 = vset.pattern.permute.xlu0 10
      %2820 = vperm.xlu0 %2819, %v739
      %v2821 = vpop.permute.xlu0 %2820
      %v2823 = vsel %vm2727, %v2761, 0.0
      %v2824 = vsel %vm2728, %v2761, 0.0
      %v2825 = vsel %vm2729, %v2765, 0.0
      %v2826 = vsel %vm2730, %v2765, 0.0
      %v2827 = vsel %vm2731, %v2769, 0.0
      %v2828 = vsel %vm2732, %v2769, 0.0
      %v2829 = vsel %vm2733, %v2773, 0.0
      %v2830 = vsel %vm2734, %v2773, 0.0
      %v2831 = vsel %vm2735, %v2777, 0.0
      %v2832 = vsel %vm2736, %v2777, 0.0
      %v2833 = vsel %vm2737, %v2781, 0.0
      %v2834 = vsel %vm2738, %v2781, 0.0
      %v2835 = vsel %vm2739, %v2785, 0.0
      %v2836 = vsel %vm2740, %v2785, 0.0
      %v2837 = vsel %vm2741, %v2789, 0.0
      %v2838 = vsel %vm2742, %v2789, 0.0
      %v2839 = vsel %vm2743, %v2793, 0.0
      %v2840 = vsel %vm2744, %v2793, 0.0
      %v2841 = vsel %vm2745, %v2797, 0.0
      %v2842 = vsel %vm2746, %v2797, 0.0
      %v2843 = vsel %vm2747, %v2801, 0.0
      %v2844 = vsel %vm2748, %v2801, 0.0
      %v2845 = vsel %vm2749, %v2805, 0.0
      %v2846 = vsel %vm2750, %v2805, 0.0
      %v2847 = vsel %vm2751, %v2809, 0.0
      %v2848 = vsel %vm2752, %v2809, 0.0
      %v2849 = vsel %vm2753, %v2813, 0.0
      %v2850 = vsel %vm2754, %v2813, 0.0
      %v2851 = vsel %vm2755, %v2817, 0.0
      %v2852 = vsel %vm2756, %v2817, 0.0
      %v2853 = vsel %vm2757, %v2821, 0.0
      %v2854 = vsel %vm2758, %v2821, 0.0
      %v2855 = vadd.f32 %v2647, %v2823
      %v2856 = vadd.f32 %v2648, %v2824
      %v2857 = vadd.f32 %v2649, %v2825
      %v2858 = vadd.f32 %v2650, %v2826
      %v2859 = vadd.f32 %v2651, %v2827
      %v2860 = vadd.f32 %v2652, %v2828
      %v2861 = vadd.f32 %v2653, %v2829
      %v2862 = vadd.f32 %v2654, %v2830
      %v2863 = vadd.f32 %v2655, %v2831
      %v2864 = vadd.f32 %v2656, %v2832
      %v2865 = vadd.f32 %v2657, %v2833
      %v2866 = vadd.f32 %v2658, %v2834
      %v2867 = vadd.f32 %v2659, %v2835
      %v2868 = vadd.f32 %v2660, %v2836
      %v2869 = vadd.f32 %v2661, %v2837
      %v2870 = vadd.f32 %v2662, %v2838
      %v2871 = vadd.f32 %v2663, %v2839
      %v2872 = vadd.f32 %v2664, %v2840
      %v2873 = vadd.f32 %v2665, %v2841
      %v2874 = vadd.f32 %v2666, %v2842
      %v2875 = vadd.f32 %v2667, %v2843
      %v2876 = vadd.f32 %v2668, %v2844
      %v2877 = vadd.f32 %v2669, %v2845
      %v2878 = vadd.f32 %v2670, %v2846
      %v2879 = vadd.f32 %v2671, %v2847
      %v2880 = vadd.f32 %v2672, %v2848
      %v2881 = vadd.f32 %v2673, %v2849
      %v2882 = vadd.f32 %v2674, %v2850
      %v2883 = vadd.f32 %v2675, %v2851
      %v2884 = vadd.f32 %v2676, %v2852
      %v2885 = vadd.f32 %v2677, %v2853
      %v2886 = vadd.f32 %v2678, %v2854
      %2887 = vset.pattern.permute.xlu0 10
      %2888 = vperm.xlu0 %2887, %v516
      %v2889 = vpop.permute.xlu0 %2888
      %2890 = vset.pattern.permute.xlu0 10
      %2891 = vperm.xlu0 %2890, %v517
      %v2892 = vpop.permute.xlu0 %2891
      %2893 = vset.pattern.permute.xlu0 10
      %2894 = vperm.xlu0 %2893, %v518
      %v2895 = vpop.permute.xlu0 %2894
      %2896 = vset.pattern.permute.xlu0 10
      %2897 = vperm.xlu0 %2896, %v519
      %v2898 = vpop.permute.xlu0 %2897
      %2899 = vset.pattern.permute.xlu0 10
      %2900 = vperm.xlu0 %2899, %v520
      %v2901 = vpop.permute.xlu0 %2900
      %2902 = vset.pattern.permute.xlu0 10
      %2903 = vperm.xlu0 %2902, %v521
      %v2904 = vpop.permute.xlu0 %2903
      %2905 = vset.pattern.permute.xlu0 10
      %2906 = vperm.xlu0 %2905, %v522
      %v2907 = vpop.permute.xlu0 %2906
      %2908 = vset.pattern.permute.xlu0 10
      %2909 = vperm.xlu0 %2908, %v523
      %v2910 = vpop.permute.xlu0 %2909
      %2911 = vset.pattern.permute.xlu0 10
      %2912 = vperm.xlu0 %2911, %v524
      %v2913 = vpop.permute.xlu0 %2912
      %2914 = vset.pattern.permute.xlu0 10
      %2915 = vperm.xlu0 %2914, %v525
      %v2916 = vpop.permute.xlu0 %2915
      %2917 = vset.pattern.permute.xlu0 10
      %2918 = vperm.xlu0 %2917, %v526
      %v2919 = vpop.permute.xlu0 %2918
      %2920 = vset.pattern.permute.xlu0 10
      %2921 = vperm.xlu0 %2920, %v527
      %v2922 = vpop.permute.xlu0 %2921
      %2923 = vset.pattern.permute.xlu0 10
      %2924 = vperm.xlu0 %2923, %v528
      %v2925 = vpop.permute.xlu0 %2924
      %2926 = vset.pattern.permute.xlu0 10
      %2927 = vperm.xlu0 %2926, %v529
      %v2928 = vpop.permute.xlu0 %2927
      %2929 = vset.pattern.permute.xlu0 10
      %2930 = vperm.xlu0 %2929, %v530
      %v2931 = vpop.permute.xlu0 %2930
      %2932 = vset.pattern.permute.xlu0 10
      %2933 = vperm.xlu0 %2932, %v531
      %v2934 = vpop.permute.xlu0 %2933
      %vm2935 = vcmp.eq.s32.totalorder %v805, %v2889
      %vm2936 = vcmp.eq.s32.totalorder %v806, %v2889
      %vm2937 = vcmp.eq.s32.totalorder %v805, %v2892
      %vm2938 = vcmp.eq.s32.totalorder %v806, %v2892
      %vm2939 = vcmp.eq.s32.totalorder %v805, %v2895
      %vm2940 = vcmp.eq.s32.totalorder %v806, %v2895
      %vm2941 = vcmp.eq.s32.totalorder %v805, %v2898
      %vm2942 = vcmp.eq.s32.totalorder %v806, %v2898
      %vm2943 = vcmp.eq.s32.totalorder %v805, %v2901
      %vm2944 = vcmp.eq.s32.totalorder %v806, %v2901
      %vm2945 = vcmp.eq.s32.totalorder %v805, %v2904
      %vm2946 = vcmp.eq.s32.totalorder %v806, %v2904
      %vm2947 = vcmp.eq.s32.totalorder %v805, %v2907
      %vm2948 = vcmp.eq.s32.totalorder %v806, %v2907
      %vm2949 = vcmp.eq.s32.totalorder %v805, %v2910
      %vm2950 = vcmp.eq.s32.totalorder %v806, %v2910
      %vm2951 = vcmp.eq.s32.totalorder %v805, %v2913
      %vm2952 = vcmp.eq.s32.totalorder %v806, %v2913
      %vm2953 = vcmp.eq.s32.totalorder %v805, %v2916
      %vm2954 = vcmp.eq.s32.totalorder %v806, %v2916
      %vm2955 = vcmp.eq.s32.totalorder %v805, %v2919
      %vm2956 = vcmp.eq.s32.totalorder %v806, %v2919
      %vm2957 = vcmp.eq.s32.totalorder %v805, %v2922
      %vm2958 = vcmp.eq.s32.totalorder %v806, %v2922
      %vm2959 = vcmp.eq.s32.totalorder %v805, %v2925
      %vm2960 = vcmp.eq.s32.totalorder %v806, %v2925
      %vm2961 = vcmp.eq.s32.totalorder %v805, %v2928
      %vm2962 = vcmp.eq.s32.totalorder %v806, %v2928
      %vm2963 = vcmp.eq.s32.totalorder %v805, %v2931
      %vm2964 = vcmp.eq.s32.totalorder %v806, %v2931
      %vm2965 = vcmp.eq.s32.totalorder %v805, %v2934
      %vm2966 = vcmp.eq.s32.totalorder %v806, %v2934
      %2967 = vset.pattern.permute.xlu0 10
      %2968 = vperm.xlu0 %2967, %v756
      %v2969 = vpop.permute.xlu0 %2968
      %2971 = vset.pattern.permute.xlu0 10
      %2972 = vperm.xlu0 %2971, %v757
      %v2973 = vpop.permute.xlu0 %2972
      %2975 = vset.pattern.permute.xlu0 10
      %2976 = vperm.xlu0 %2975, %v758
      %v2977 = vpop.permute.xlu0 %2976
      %2979 = vset.pattern.permute.xlu0 10
      %2980 = vperm.xlu0 %2979, %v759
      %v2981 = vpop.permute.xlu0 %2980
      %2983 = vset.pattern.permute.xlu0 10
      %2984 = vperm.xlu0 %2983, %v760
      %v2985 = vpop.permute.xlu0 %2984
      %2987 = vset.pattern.permute.xlu0 10
      %2988 = vperm.xlu0 %2987, %v761
      %v2989 = vpop.permute.xlu0 %2988
      %2991 = vset.pattern.permute.xlu0 10
      %2992 = vperm.xlu0 %2991, %v762
      %v2993 = vpop.permute.xlu0 %2992
      %2995 = vset.pattern.permute.xlu0 10
      %2996 = vperm.xlu0 %2995, %v763
      %v2997 = vpop.permute.xlu0 %2996
      %2999 = vset.pattern.permute.xlu0 10
      %3000 = vperm.xlu0 %2999, %v764
      %v3001 = vpop.permute.xlu0 %3000
      %3003 = vset.pattern.permute.xlu0 10
      %3004 = vperm.xlu0 %3003, %v765
      %v3005 = vpop.permute.xlu0 %3004
      %3007 = vset.pattern.permute.xlu0 10
      %3008 = vperm.xlu0 %3007, %v766
      %v3009 = vpop.permute.xlu0 %3008
      %3011 = vset.pattern.permute.xlu0 10
      %3012 = vperm.xlu0 %3011, %v767
      %v3013 = vpop.permute.xlu0 %3012
      %3015 = vset.pattern.permute.xlu0 10
      %3016 = vperm.xlu0 %3015, %v768
      %v3017 = vpop.permute.xlu0 %3016
      %3019 = vset.pattern.permute.xlu0 10
      %3020 = vperm.xlu0 %3019, %v769
      %v3021 = vpop.permute.xlu0 %3020
      %3023 = vset.pattern.permute.xlu0 10
      %3024 = vperm.xlu0 %3023, %v770
      %v3025 = vpop.permute.xlu0 %3024
      %3027 = vset.pattern.permute.xlu0 10
      %3028 = vperm.xlu0 %3027, %v771
      %v3029 = vpop.permute.xlu0 %3028
      %v3031 = vsel %vm2935, %v2969, 0.0
      %v3032 = vsel %vm2936, %v2969, 0.0
      %v3033 = vsel %vm2937, %v2973, 0.0
      %v3034 = vsel %vm2938, %v2973, 0.0
      %v3035 = vsel %vm2939, %v2977, 0.0
      %v3036 = vsel %vm2940, %v2977, 0.0
      %v3037 = vsel %vm2941, %v2981, 0.0
      %v3038 = vsel %vm2942, %v2981, 0.0
      %v3039 = vsel %vm2943, %v2985, 0.0
      %v3040 = vsel %vm2944, %v2985, 0.0
      %v3041 = vsel %vm2945, %v2989, 0.0
      %v3042 = vsel %vm2946, %v2989, 0.0
      %v3043 = vsel %vm2947, %v2993, 0.0
      %v3044 = vsel %vm2948, %v2993, 0.0
      %v3045 = vsel %vm2949, %v2997, 0.0
      %v3046 = vsel %vm2950, %v2997, 0.0
      %v3047 = vsel %vm2951, %v3001, 0.0
      %v3048 = vsel %vm2952, %v3001, 0.0
      %v3049 = vsel %vm2953, %v3005, 0.0
      %v3050 = vsel %vm2954, %v3005, 0.0
      %v3051 = vsel %vm2955, %v3009, 0.0
      %v3052 = vsel %vm2956, %v3009, 0.0
      %v3053 = vsel %vm2957, %v3013, 0.0
      %v3054 = vsel %vm2958, %v3013, 0.0
      %v3055 = vsel %vm2959, %v3017, 0.0
      %v3056 = vsel %vm2960, %v3017, 0.0
      %v3057 = vsel %vm2961, %v3021, 0.0
      %v3058 = vsel %vm2962, %v3021, 0.0
      %v3059 = vsel %vm2963, %v3025, 0.0
      %v3060 = vsel %vm2964, %v3025, 0.0
      %v3061 = vsel %vm2965, %v3029, 0.0
      %v3062 = vsel %vm2966, %v3029, 0.0
      %v3063 = vadd.f32 %v2855, %v3031
      %v3064 = vadd.f32 %v2856, %v3032
      %v3065 = vadd.f32 %v2857, %v3033
      %v3066 = vadd.f32 %v2858, %v3034
      %v3067 = vadd.f32 %v2859, %v3035
      %v3068 = vadd.f32 %v2860, %v3036
      %v3069 = vadd.f32 %v2861, %v3037
      %v3070 = vadd.f32 %v2862, %v3038
      %v3071 = vadd.f32 %v2863, %v3039
      %v3072 = vadd.f32 %v2864, %v3040
      %v3073 = vadd.f32 %v2865, %v3041
      %v3074 = vadd.f32 %v2866, %v3042
      %v3075 = vadd.f32 %v2867, %v3043
      %v3076 = vadd.f32 %v2868, %v3044
      %v3077 = vadd.f32 %v2869, %v3045
      %v3078 = vadd.f32 %v2870, %v3046
      %v3079 = vadd.f32 %v2871, %v3047
      %v3080 = vadd.f32 %v2872, %v3048
      %v3081 = vadd.f32 %v2873, %v3049
      %v3082 = vadd.f32 %v2874, %v3050
      %v3083 = vadd.f32 %v2875, %v3051
      %v3084 = vadd.f32 %v2876, %v3052
      %v3085 = vadd.f32 %v2877, %v3053
      %v3086 = vadd.f32 %v2878, %v3054
      %v3087 = vadd.f32 %v2879, %v3055
      %v3088 = vadd.f32 %v2880, %v3056
      %v3089 = vadd.f32 %v2881, %v3057
      %v3090 = vadd.f32 %v2882, %v3058
      %v3091 = vadd.f32 %v2883, %v3059
      %v3092 = vadd.f32 %v2884, %v3060
      %v3093 = vadd.f32 %v2885, %v3061
      %v3094 = vadd.f32 %v2886, %v3062
      %3095 = vset.pattern.permute.xlu0 10
      %3096 = vperm.xlu0 %3095, %v532
      %v3097 = vpop.permute.xlu0 %3096
      %3098 = vset.pattern.permute.xlu0 10
      %3099 = vperm.xlu0 %3098, %v533
      %v3100 = vpop.permute.xlu0 %3099
      %3101 = vset.pattern.permute.xlu0 10
      %3102 = vperm.xlu0 %3101, %v534
      %v3103 = vpop.permute.xlu0 %3102
      %3104 = vset.pattern.permute.xlu0 10
      %3105 = vperm.xlu0 %3104, %v535
      %v3106 = vpop.permute.xlu0 %3105
      %3107 = vset.pattern.permute.xlu0 10
      %3108 = vperm.xlu0 %3107, %v536
      %v3109 = vpop.permute.xlu0 %3108
      %3110 = vset.pattern.permute.xlu0 10
      %3111 = vperm.xlu0 %3110, %v537
      %v3112 = vpop.permute.xlu0 %3111
      %3113 = vset.pattern.permute.xlu0 10
      %3114 = vperm.xlu0 %3113, %v538
      %v3115 = vpop.permute.xlu0 %3114
      %3116 = vset.pattern.permute.xlu0 10
      %3117 = vperm.xlu0 %3116, %v539
      %v3118 = vpop.permute.xlu0 %3117
      %3119 = vset.pattern.permute.xlu0 10
      %3120 = vperm.xlu0 %3119, %v540
      %v3121 = vpop.permute.xlu0 %3120
      %3122 = vset.pattern.permute.xlu0 10
      %3123 = vperm.xlu0 %3122, %v541
      %v3124 = vpop.permute.xlu0 %3123
      %3125 = vset.pattern.permute.xlu0 10
      %3126 = vperm.xlu0 %3125, %v542
      %v3127 = vpop.permute.xlu0 %3126
      %3128 = vset.pattern.permute.xlu0 10
      %3129 = vperm.xlu0 %3128, %v543
      %v3130 = vpop.permute.xlu0 %3129
      %3131 = vset.pattern.permute.xlu0 10
      %3132 = vperm.xlu0 %3131, %v544
      %v3133 = vpop.permute.xlu0 %3132
      %3134 = vset.pattern.permute.xlu0 10
      %3135 = vperm.xlu0 %3134, %v545
      %v3136 = vpop.permute.xlu0 %3135
      %3137 = vset.pattern.permute.xlu0 10
      %3138 = vperm.xlu0 %3137, %v546
      %v3139 = vpop.permute.xlu0 %3138
      %3140 = vset.pattern.permute.xlu0 10
      %3141 = vperm.xlu0 %3140, %v547
      %v3142 = vpop.permute.xlu0 %3141
      %vm3143 = vcmp.eq.s32.totalorder %v805, %v3097
      %vm3144 = vcmp.eq.s32.totalorder %v806, %v3097
      %vm3145 = vcmp.eq.s32.totalorder %v805, %v3100
      %vm3146 = vcmp.eq.s32.totalorder %v806, %v3100
      %vm3147 = vcmp.eq.s32.totalorder %v805, %v3103
      %vm3148 = vcmp.eq.s32.totalorder %v806, %v3103
      %vm3149 = vcmp.eq.s32.totalorder %v805, %v3106
      %vm3150 = vcmp.eq.s32.totalorder %v806, %v3106
      %vm3151 = vcmp.eq.s32.totalorder %v805, %v3109
      %vm3152 = vcmp.eq.s32.totalorder %v806, %v3109
      %vm3153 = vcmp.eq.s32.totalorder %v805, %v3112
      %vm3154 = vcmp.eq.s32.totalorder %v806, %v3112
      %vm3155 = vcmp.eq.s32.totalorder %v805, %v3115
      %vm3156 = vcmp.eq.s32.totalorder %v806, %v3115
      %vm3157 = vcmp.eq.s32.totalorder %v805, %v3118
      %vm3158 = vcmp.eq.s32.totalorder %v806, %v3118
      %vm3159 = vcmp.eq.s32.totalorder %v805, %v3121
      %vm3160 = vcmp.eq.s32.totalorder %v806, %v3121
      %vm3161 = vcmp.eq.s32.totalorder %v805, %v3124
      %vm3162 = vcmp.eq.s32.totalorder %v806, %v3124
      %vm3163 = vcmp.eq.s32.totalorder %v805, %v3127
      %vm3164 = vcmp.eq.s32.totalorder %v806, %v3127
      %vm3165 = vcmp.eq.s32.totalorder %v805, %v3130
      %vm3166 = vcmp.eq.s32.totalorder %v806, %v3130
      %vm3167 = vcmp.eq.s32.totalorder %v805, %v3133
      %vm3168 = vcmp.eq.s32.totalorder %v806, %v3133
      %vm3169 = vcmp.eq.s32.totalorder %v805, %v3136
      %vm3170 = vcmp.eq.s32.totalorder %v806, %v3136
      %vm3171 = vcmp.eq.s32.totalorder %v805, %v3139
      %vm3172 = vcmp.eq.s32.totalorder %v806, %v3139
      %vm3173 = vcmp.eq.s32.totalorder %v805, %v3142
      %vm3174 = vcmp.eq.s32.totalorder %v806, %v3142
      %3175 = vset.pattern.permute.xlu0 10
      %3176 = vperm.xlu0 %3175, %v788
      %v3177 = vpop.permute.xlu0 %3176
      %3179 = vset.pattern.permute.xlu0 10
      %3180 = vperm.xlu0 %3179, %v789
      %v3181 = vpop.permute.xlu0 %3180
      %3183 = vset.pattern.permute.xlu0 10
      %3184 = vperm.xlu0 %3183, %v790
      %v3185 = vpop.permute.xlu0 %3184
      %3187 = vset.pattern.permute.xlu0 10
      %3188 = vperm.xlu0 %3187, %v791
      %v3189 = vpop.permute.xlu0 %3188
      %3191 = vset.pattern.permute.xlu0 10
      %3192 = vperm.xlu0 %3191, %v792
      %v3193 = vpop.permute.xlu0 %3192
      %3195 = vset.pattern.permute.xlu0 10
      %3196 = vperm.xlu0 %3195, %v793
      %v3197 = vpop.permute.xlu0 %3196
      %3199 = vset.pattern.permute.xlu0 10
      %3200 = vperm.xlu0 %3199, %v794
      %v3201 = vpop.permute.xlu0 %3200
      %3203 = vset.pattern.permute.xlu0 10
      %3204 = vperm.xlu0 %3203, %v795
      %v3205 = vpop.permute.xlu0 %3204
      %3207 = vset.pattern.permute.xlu0 10
      %3208 = vperm.xlu0 %3207, %v796
      %v3209 = vpop.permute.xlu0 %3208
      %3211 = vset.pattern.permute.xlu0 10
      %3212 = vperm.xlu0 %3211, %v797
      %v3213 = vpop.permute.xlu0 %3212
      %3215 = vset.pattern.permute.xlu0 10
      %3216 = vperm.xlu0 %3215, %v798
      %v3217 = vpop.permute.xlu0 %3216
      %3219 = vset.pattern.permute.xlu0 10
      %3220 = vperm.xlu0 %3219, %v799
      %v3221 = vpop.permute.xlu0 %3220
      %3223 = vset.pattern.permute.xlu0 10
      %3224 = vperm.xlu0 %3223, %v800
      %v3225 = vpop.permute.xlu0 %3224
      %3227 = vset.pattern.permute.xlu0 10
      %3228 = vperm.xlu0 %3227, %v801
      %v3229 = vpop.permute.xlu0 %3228
      %3231 = vset.pattern.permute.xlu0 10
      %3232 = vperm.xlu0 %3231, %v802
      %v3233 = vpop.permute.xlu0 %3232
      %3235 = vset.pattern.permute.xlu0 10
      %3236 = vperm.xlu0 %3235, %v803
      %v3237 = vpop.permute.xlu0 %3236
      %v3239 = vsel %vm3143, %v3177, 0.0
      %v3240 = vsel %vm3144, %v3177, 0.0
      %v3241 = vsel %vm3145, %v3181, 0.0
      %v3242 = vsel %vm3146, %v3181, 0.0
      %v3243 = vsel %vm3147, %v3185, 0.0
      %v3244 = vsel %vm3148, %v3185, 0.0
      %v3245 = vsel %vm3149, %v3189, 0.0
      %v3246 = vsel %vm3150, %v3189, 0.0
      %v3247 = vsel %vm3151, %v3193, 0.0
      %v3248 = vsel %vm3152, %v3193, 0.0
      %v3249 = vsel %vm3153, %v3197, 0.0
      %v3250 = vsel %vm3154, %v3197, 0.0
      %v3251 = vsel %vm3155, %v3201, 0.0
      %v3252 = vsel %vm3156, %v3201, 0.0
      %v3253 = vsel %vm3157, %v3205, 0.0
      %v3254 = vsel %vm3158, %v3205, 0.0
      %v3255 = vsel %vm3159, %v3209, 0.0
      %v3256 = vsel %vm3160, %v3209, 0.0
      %v3257 = vsel %vm3161, %v3213, 0.0
      %v3258 = vsel %vm3162, %v3213, 0.0
      %v3259 = vsel %vm3163, %v3217, 0.0
      %v3260 = vsel %vm3164, %v3217, 0.0
      %v3261 = vsel %vm3165, %v3221, 0.0
      %v3262 = vsel %vm3166, %v3221, 0.0
      %v3263 = vsel %vm3167, %v3225, 0.0
      %v3264 = vsel %vm3168, %v3225, 0.0
      %v3265 = vsel %vm3169, %v3229, 0.0
      %v3266 = vsel %vm3170, %v3229, 0.0
      %v3267 = vsel %vm3171, %v3233, 0.0
      %v3268 = vsel %vm3172, %v3233, 0.0
      %v3269 = vsel %vm3173, %v3237, 0.0
      %v3270 = vsel %vm3174, %v3237, 0.0
      %v3271 = vadd.f32 %v3063, %v3239
      %v3272 = vadd.f32 %v3064, %v3240
      %v3273 = vadd.f32 %v3065, %v3241
      %v3274 = vadd.f32 %v3066, %v3242
      %v3275 = vadd.f32 %v3067, %v3243
      %v3276 = vadd.f32 %v3068, %v3244
      %v3277 = vadd.f32 %v3069, %v3245
      %v3278 = vadd.f32 %v3070, %v3246
      %v3279 = vadd.f32 %v3071, %v3247
      %v3280 = vadd.f32 %v3072, %v3248
      %v3281 = vadd.f32 %v3073, %v3249
      %v3282 = vadd.f32 %v3074, %v3250
      %v3283 = vadd.f32 %v3075, %v3251
      %v3284 = vadd.f32 %v3076, %v3252
      %v3285 = vadd.f32 %v3077, %v3253
      %v3286 = vadd.f32 %v3078, %v3254
      %v3287 = vadd.f32 %v3079, %v3255
      %v3288 = vadd.f32 %v3080, %v3256
      %v3289 = vadd.f32 %v3081, %v3257
      %v3290 = vadd.f32 %v3082, %v3258
      %v3291 = vadd.f32 %v3083, %v3259
      %v3292 = vadd.f32 %v3084, %v3260
      %v3293 = vadd.f32 %v3085, %v3261
      %v3294 = vadd.f32 %v3086, %v3262
      %v3295 = vadd.f32 %v3087, %v3263
      %v3296 = vadd.f32 %v3088, %v3264
      %v3297 = vadd.f32 %v3089, %v3265
      %v3298 = vadd.f32 %v3090, %v3266
      %v3299 = vadd.f32 %v3091, %v3267
      %v3300 = vadd.f32 %v3092, %v3268
      %v3301 = vadd.f32 %v3093, %v3269
      %v3302 = vadd.f32 %v3094, %v3270
      %v3303 = vadd.f32 %v2471, %v3271
      %v3304 = vadd.f32 %v2472, %v3272
      %v3305 = vadd.f32 %v2473, %v3273
      %v3306 = vadd.f32 %v2474, %v3274
      %v3307 = vadd.f32 %v2475, %v3275
      %v3308 = vadd.f32 %v2476, %v3276
      %v3309 = vadd.f32 %v2477, %v3277
      %v3310 = vadd.f32 %v2478, %v3278
      %v3311 = vadd.f32 %v2479, %v3279
      %v3312 = vadd.f32 %v2480, %v3280
      %v3313 = vadd.f32 %v2481, %v3281
      %v3314 = vadd.f32 %v2482, %v3282
      %v3315 = vadd.f32 %v2483, %v3283
      %v3316 = vadd.f32 %v2484, %v3284
      %v3317 = vadd.f32 %v2485, %v3285
      %v3318 = vadd.f32 %v2486, %v3286
      %v3319 = vadd.f32 %v2487, %v3287
      %v3320 = vadd.f32 %v2488, %v3288
      %v3321 = vadd.f32 %v2489, %v3289
      %v3322 = vadd.f32 %v2490, %v3290
      %v3323 = vadd.f32 %v2491, %v3291
      %v3324 = vadd.f32 %v2492, %v3292
      %v3325 = vadd.f32 %v2493, %v3293
      %v3326 = vadd.f32 %v2494, %v3294
      %v3327 = vadd.f32 %v2495, %v3295
      %v3328 = vadd.f32 %v2496, %v3296
      %v3329 = vadd.f32 %v2497, %v3297
      %v3330 = vadd.f32 %v2498, %v3298
      %v3331 = vadd.f32 %v2499, %v3299
      %v3332 = vadd.f32 %v2500, %v3300
      %v3333 = vadd.f32 %v2501, %v3301
      %v3334 = vadd.f32 %v2502, %v3302
      %3335 = vset.pattern.permute.xlu0 11
      %3336 = vperm.xlu0 %3335, %v436
      %v3337 = vpop.permute.xlu0 %3336
      %3338 = vset.pattern.permute.xlu0 11
      %3339 = vperm.xlu0 %3338, %v437
      %v3340 = vpop.permute.xlu0 %3339
      %3341 = vset.pattern.permute.xlu0 11
      %3342 = vperm.xlu0 %3341, %v438
      %v3343 = vpop.permute.xlu0 %3342
      %3344 = vset.pattern.permute.xlu0 11
      %3345 = vperm.xlu0 %3344, %v439
      %v3346 = vpop.permute.xlu0 %3345
      %3347 = vset.pattern.permute.xlu0 11
      %3348 = vperm.xlu0 %3347, %v440
      %v3349 = vpop.permute.xlu0 %3348
      %3350 = vset.pattern.permute.xlu0 11
      %3351 = vperm.xlu0 %3350, %v441
      %v3352 = vpop.permute.xlu0 %3351
      %3353 = vset.pattern.permute.xlu0 11
      %3354 = vperm.xlu0 %3353, %v442
      %v3355 = vpop.permute.xlu0 %3354
      %3356 = vset.pattern.permute.xlu0 11
      %3357 = vperm.xlu0 %3356, %v443
      %v3358 = vpop.permute.xlu0 %3357
      %3359 = vset.pattern.permute.xlu0 11
      %3360 = vperm.xlu0 %3359, %v444
      %v3361 = vpop.permute.xlu0 %3360
      %3362 = vset.pattern.permute.xlu0 11
      %3363 = vperm.xlu0 %3362, %v445
      %v3364 = vpop.permute.xlu0 %3363
      %3365 = vset.pattern.permute.xlu0 11
      %3366 = vperm.xlu0 %3365, %v446
      %v3367 = vpop.permute.xlu0 %3366
      %3368 = vset.pattern.permute.xlu0 11
      %3369 = vperm.xlu0 %3368, %v447
      %v3370 = vpop.permute.xlu0 %3369
      %3371 = vset.pattern.permute.xlu0 11
      %3372 = vperm.xlu0 %3371, %v448
      %v3373 = vpop.permute.xlu0 %3372
      %3374 = vset.pattern.permute.xlu0 11
      %3375 = vperm.xlu0 %3374, %v449
      %v3376 = vpop.permute.xlu0 %3375
      %3377 = vset.pattern.permute.xlu0 11
      %3378 = vperm.xlu0 %3377, %v450
      %v3379 = vpop.permute.xlu0 %3378
      %3380 = vset.pattern.permute.xlu0 11
      %3381 = vperm.xlu0 %3380, %v451
      %v3382 = vpop.permute.xlu0 %3381
      %vm3383 = vcmp.eq.s32.totalorder %v805, %v3337
      %vm3384 = vcmp.eq.s32.totalorder %v806, %v3337
      %vm3385 = vcmp.eq.s32.totalorder %v805, %v3340
      %vm3386 = vcmp.eq.s32.totalorder %v806, %v3340
      %vm3387 = vcmp.eq.s32.totalorder %v805, %v3343
      %vm3388 = vcmp.eq.s32.totalorder %v806, %v3343
      %vm3389 = vcmp.eq.s32.totalorder %v805, %v3346
      %vm3390 = vcmp.eq.s32.totalorder %v806, %v3346
      %vm3391 = vcmp.eq.s32.totalorder %v805, %v3349
      %vm3392 = vcmp.eq.s32.totalorder %v806, %v3349
      %vm3393 = vcmp.eq.s32.totalorder %v805, %v3352
      %vm3394 = vcmp.eq.s32.totalorder %v806, %v3352
      %vm3395 = vcmp.eq.s32.totalorder %v805, %v3355
      %vm3396 = vcmp.eq.s32.totalorder %v806, %v3355
      %vm3397 = vcmp.eq.s32.totalorder %v805, %v3358
      %vm3398 = vcmp.eq.s32.totalorder %v806, %v3358
      %vm3399 = vcmp.eq.s32.totalorder %v805, %v3361
      %vm3400 = vcmp.eq.s32.totalorder %v806, %v3361
      %vm3401 = vcmp.eq.s32.totalorder %v805, %v3364
      %vm3402 = vcmp.eq.s32.totalorder %v806, %v3364
      %vm3403 = vcmp.eq.s32.totalorder %v805, %v3367
      %vm3404 = vcmp.eq.s32.totalorder %v806, %v3367
      %vm3405 = vcmp.eq.s32.totalorder %v805, %v3370
      %vm3406 = vcmp.eq.s32.totalorder %v806, %v3370
      %vm3407 = vcmp.eq.s32.totalorder %v805, %v3373
      %vm3408 = vcmp.eq.s32.totalorder %v806, %v3373
      %vm3409 = vcmp.eq.s32.totalorder %v805, %v3376
      %vm3410 = vcmp.eq.s32.totalorder %v806, %v3376
      %vm3411 = vcmp.eq.s32.totalorder %v805, %v3379
      %vm3412 = vcmp.eq.s32.totalorder %v806, %v3379
      %vm3413 = vcmp.eq.s32.totalorder %v805, %v3382
      %vm3414 = vcmp.eq.s32.totalorder %v806, %v3382
      %3415 = vset.pattern.permute.xlu0 11
      %3416 = vperm.xlu0 %3415, %v628
      %v3417 = vpop.permute.xlu0 %3416
      %3419 = vset.pattern.permute.xlu0 11
      %3420 = vperm.xlu0 %3419, %v629
      %v3421 = vpop.permute.xlu0 %3420
      %3423 = vset.pattern.permute.xlu0 11
      %3424 = vperm.xlu0 %3423, %v630
      %v3425 = vpop.permute.xlu0 %3424
      %3427 = vset.pattern.permute.xlu0 11
      %3428 = vperm.xlu0 %3427, %v631
      %v3429 = vpop.permute.xlu0 %3428
      %3431 = vset.pattern.permute.xlu0 11
      %3432 = vperm.xlu0 %3431, %v632
      %v3433 = vpop.permute.xlu0 %3432
      %3435 = vset.pattern.permute.xlu0 11
      %3436 = vperm.xlu0 %3435, %v633
      %v3437 = vpop.permute.xlu0 %3436
      %3439 = vset.pattern.permute.xlu0 11
      %3440 = vperm.xlu0 %3439, %v634
      %v3441 = vpop.permute.xlu0 %3440
      %3443 = vset.pattern.permute.xlu0 11
      %3444 = vperm.xlu0 %3443, %v635
      %v3445 = vpop.permute.xlu0 %3444
      %3447 = vset.pattern.permute.xlu0 11
      %3448 = vperm.xlu0 %3447, %v636
      %v3449 = vpop.permute.xlu0 %3448
      %3451 = vset.pattern.permute.xlu0 11
      %3452 = vperm.xlu0 %3451, %v637
      %v3453 = vpop.permute.xlu0 %3452
      %3455 = vset.pattern.permute.xlu0 11
      %3456 = vperm.xlu0 %3455, %v638
      %v3457 = vpop.permute.xlu0 %3456
      %3459 = vset.pattern.permute.xlu0 11
      %3460 = vperm.xlu0 %3459, %v639
      %v3461 = vpop.permute.xlu0 %3460
      %3463 = vset.pattern.permute.xlu0 11
      %3464 = vperm.xlu0 %3463, %v640
      %v3465 = vpop.permute.xlu0 %3464
      %3467 = vset.pattern.permute.xlu0 11
      %3468 = vperm.xlu0 %3467, %v641
      %v3469 = vpop.permute.xlu0 %3468
      %3471 = vset.pattern.permute.xlu0 11
      %3472 = vperm.xlu0 %3471, %v642
      %v3473 = vpop.permute.xlu0 %3472
      %3475 = vset.pattern.permute.xlu0 11
      %3476 = vperm.xlu0 %3475, %v643
      %v3477 = vpop.permute.xlu0 %3476
      %v3479 = vsel %vm3383, %v3417, 0.0
      %v3480 = vsel %vm3384, %v3417, 0.0
      %v3481 = vsel %vm3385, %v3421, 0.0
      %v3482 = vsel %vm3386, %v3421, 0.0
      %v3483 = vsel %vm3387, %v3425, 0.0
      %v3484 = vsel %vm3388, %v3425, 0.0
      %v3485 = vsel %vm3389, %v3429, 0.0
      %v3486 = vsel %vm3390, %v3429, 0.0
      %v3487 = vsel %vm3391, %v3433, 0.0
      %v3488 = vsel %vm3392, %v3433, 0.0
      %v3489 = vsel %vm3393, %v3437, 0.0
      %v3490 = vsel %vm3394, %v3437, 0.0
      %v3491 = vsel %vm3395, %v3441, 0.0
      %v3492 = vsel %vm3396, %v3441, 0.0
      %v3493 = vsel %vm3397, %v3445, 0.0
      %v3494 = vsel %vm3398, %v3445, 0.0
      %v3495 = vsel %vm3399, %v3449, 0.0
      %v3496 = vsel %vm3400, %v3449, 0.0
      %v3497 = vsel %vm3401, %v3453, 0.0
      %v3498 = vsel %vm3402, %v3453, 0.0
      %v3499 = vsel %vm3403, %v3457, 0.0
      %v3500 = vsel %vm3404, %v3457, 0.0
      %v3501 = vsel %vm3405, %v3461, 0.0
      %v3502 = vsel %vm3406, %v3461, 0.0
      %v3503 = vsel %vm3407, %v3465, 0.0
      %v3504 = vsel %vm3408, %v3465, 0.0
      %v3505 = vsel %vm3409, %v3469, 0.0
      %v3506 = vsel %vm3410, %v3469, 0.0
      %v3507 = vsel %vm3411, %v3473, 0.0
      %v3508 = vsel %vm3412, %v3473, 0.0
      %v3509 = vsel %vm3413, %v3477, 0.0
      %v3510 = vsel %vm3414, %v3477, 0.0
      %3511 = vset.pattern.permute.xlu0 11
      %3512 = vperm.xlu0 %3511, %v484
      %v3513 = vpop.permute.xlu0 %3512
      %3514 = vset.pattern.permute.xlu0 11
      %3515 = vperm.xlu0 %3514, %v485
      %v3516 = vpop.permute.xlu0 %3515
      %3517 = vset.pattern.permute.xlu0 11
      %3518 = vperm.xlu0 %3517, %v486
      %v3519 = vpop.permute.xlu0 %3518
      %3520 = vset.pattern.permute.xlu0 11
      %3521 = vperm.xlu0 %3520, %v487
      %v3522 = vpop.permute.xlu0 %3521
      %3523 = vset.pattern.permute.xlu0 11
      %3524 = vperm.xlu0 %3523, %v488
      %v3525 = vpop.permute.xlu0 %3524
      %3526 = vset.pattern.permute.xlu0 11
      %3527 = vperm.xlu0 %3526, %v489
      %v3528 = vpop.permute.xlu0 %3527
      %3529 = vset.pattern.permute.xlu0 11
      %3530 = vperm.xlu0 %3529, %v490
      %v3531 = vpop.permute.xlu0 %3530
      %3532 = vset.pattern.permute.xlu0 11
      %3533 = vperm.xlu0 %3532, %v491
      %v3534 = vpop.permute.xlu0 %3533
      %3535 = vset.pattern.permute.xlu0 11
      %3536 = vperm.xlu0 %3535, %v492
      %v3537 = vpop.permute.xlu0 %3536
      %3538 = vset.pattern.permute.xlu0 11
      %3539 = vperm.xlu0 %3538, %v493
      %v3540 = vpop.permute.xlu0 %3539
      %3541 = vset.pattern.permute.xlu0 11
      %3542 = vperm.xlu0 %3541, %v494
      %v3543 = vpop.permute.xlu0 %3542
      %3544 = vset.pattern.permute.xlu0 11
      %3545 = vperm.xlu0 %3544, %v495
      %v3546 = vpop.permute.xlu0 %3545
      %3547 = vset.pattern.permute.xlu0 11
      %3548 = vperm.xlu0 %3547, %v496
      %v3549 = vpop.permute.xlu0 %3548
      %3550 = vset.pattern.permute.xlu0 11
      %3551 = vperm.xlu0 %3550, %v497
      %v3552 = vpop.permute.xlu0 %3551
      %3553 = vset.pattern.permute.xlu0 11
      %3554 = vperm.xlu0 %3553, %v498
      %v3555 = vpop.permute.xlu0 %3554
      %3556 = vset.pattern.permute.xlu0 11
      %3557 = vperm.xlu0 %3556, %v499
      %v3558 = vpop.permute.xlu0 %3557
      %vm3559 = vcmp.eq.s32.totalorder %v805, %v3513
      %vm3560 = vcmp.eq.s32.totalorder %v806, %v3513
      %vm3561 = vcmp.eq.s32.totalorder %v805, %v3516
      %vm3562 = vcmp.eq.s32.totalorder %v806, %v3516
      %vm3563 = vcmp.eq.s32.totalorder %v805, %v3519
      %vm3564 = vcmp.eq.s32.totalorder %v806, %v3519
      %vm3565 = vcmp.eq.s32.totalorder %v805, %v3522
      %vm3566 = vcmp.eq.s32.totalorder %v806, %v3522
      %vm3567 = vcmp.eq.s32.totalorder %v805, %v3525
      %vm3568 = vcmp.eq.s32.totalorder %v806, %v3525
      %vm3569 = vcmp.eq.s32.totalorder %v805, %v3528
      %vm3570 = vcmp.eq.s32.totalorder %v806, %v3528
      %vm3571 = vcmp.eq.s32.totalorder %v805, %v3531
      %vm3572 = vcmp.eq.s32.totalorder %v806, %v3531
      %vm3573 = vcmp.eq.s32.totalorder %v805, %v3534
      %vm3574 = vcmp.eq.s32.totalorder %v806, %v3534
      %vm3575 = vcmp.eq.s32.totalorder %v805, %v3537
      %vm3576 = vcmp.eq.s32.totalorder %v806, %v3537
      %vm3577 = vcmp.eq.s32.totalorder %v805, %v3540
      %vm3578 = vcmp.eq.s32.totalorder %v806, %v3540
      %vm3579 = vcmp.eq.s32.totalorder %v805, %v3543
      %vm3580 = vcmp.eq.s32.totalorder %v806, %v3543
      %vm3581 = vcmp.eq.s32.totalorder %v805, %v3546
      %vm3582 = vcmp.eq.s32.totalorder %v806, %v3546
      %vm3583 = vcmp.eq.s32.totalorder %v805, %v3549
      %vm3584 = vcmp.eq.s32.totalorder %v806, %v3549
      %vm3585 = vcmp.eq.s32.totalorder %v805, %v3552
      %vm3586 = vcmp.eq.s32.totalorder %v806, %v3552
      %vm3587 = vcmp.eq.s32.totalorder %v805, %v3555
      %vm3588 = vcmp.eq.s32.totalorder %v806, %v3555
      %vm3589 = vcmp.eq.s32.totalorder %v805, %v3558
      %vm3590 = vcmp.eq.s32.totalorder %v806, %v3558
      %3591 = vset.pattern.permute.xlu0 11
      %3592 = vperm.xlu0 %3591, %v724
      %v3593 = vpop.permute.xlu0 %3592
      %3595 = vset.pattern.permute.xlu0 11
      %3596 = vperm.xlu0 %3595, %v725
      %v3597 = vpop.permute.xlu0 %3596
      %3599 = vset.pattern.permute.xlu0 11
      %3600 = vperm.xlu0 %3599, %v726
      %v3601 = vpop.permute.xlu0 %3600
      %3603 = vset.pattern.permute.xlu0 11
      %3604 = vperm.xlu0 %3603, %v727
      %v3605 = vpop.permute.xlu0 %3604
      %3607 = vset.pattern.permute.xlu0 11
      %3608 = vperm.xlu0 %3607, %v728
      %v3609 = vpop.permute.xlu0 %3608
      %3611 = vset.pattern.permute.xlu0 11
      %3612 = vperm.xlu0 %3611, %v729
      %v3613 = vpop.permute.xlu0 %3612
      %3615 = vset.pattern.permute.xlu0 11
      %3616 = vperm.xlu0 %3615, %v730
      %v3617 = vpop.permute.xlu0 %3616
      %3619 = vset.pattern.permute.xlu0 11
      %3620 = vperm.xlu0 %3619, %v731
      %v3621 = vpop.permute.xlu0 %3620
      %3623 = vset.pattern.permute.xlu0 11
      %3624 = vperm.xlu0 %3623, %v732
      %v3625 = vpop.permute.xlu0 %3624
      %3627 = vset.pattern.permute.xlu0 11
      %3628 = vperm.xlu0 %3627, %v733
      %v3629 = vpop.permute.xlu0 %3628
      %3631 = vset.pattern.permute.xlu0 11
      %3632 = vperm.xlu0 %3631, %v734
      %v3633 = vpop.permute.xlu0 %3632
      %3635 = vset.pattern.permute.xlu0 11
      %3636 = vperm.xlu0 %3635, %v735
      %v3637 = vpop.permute.xlu0 %3636
      %3639 = vset.pattern.permute.xlu0 11
      %3640 = vperm.xlu0 %3639, %v736
      %v3641 = vpop.permute.xlu0 %3640
      %3643 = vset.pattern.permute.xlu0 11
      %3644 = vperm.xlu0 %3643, %v737
      %v3645 = vpop.permute.xlu0 %3644
      %3647 = vset.pattern.permute.xlu0 11
      %3648 = vperm.xlu0 %3647, %v738
      %v3649 = vpop.permute.xlu0 %3648
      %3651 = vset.pattern.permute.xlu0 11
      %3652 = vperm.xlu0 %3651, %v739
      %v3653 = vpop.permute.xlu0 %3652
      %v3655 = vsel %vm3559, %v3593, 0.0
      %v3656 = vsel %vm3560, %v3593, 0.0
      %v3657 = vsel %vm3561, %v3597, 0.0
      %v3658 = vsel %vm3562, %v3597, 0.0
      %v3659 = vsel %vm3563, %v3601, 0.0
      %v3660 = vsel %vm3564, %v3601, 0.0
      %v3661 = vsel %vm3565, %v3605, 0.0
      %v3662 = vsel %vm3566, %v3605, 0.0
      %v3663 = vsel %vm3567, %v3609, 0.0
      %v3664 = vsel %vm3568, %v3609, 0.0
      %v3665 = vsel %vm3569, %v3613, 0.0
      %v3666 = vsel %vm3570, %v3613, 0.0
      %v3667 = vsel %vm3571, %v3617, 0.0
      %v3668 = vsel %vm3572, %v3617, 0.0
      %v3669 = vsel %vm3573, %v3621, 0.0
      %v3670 = vsel %vm3574, %v3621, 0.0
      %v3671 = vsel %vm3575, %v3625, 0.0
      %v3672 = vsel %vm3576, %v3625, 0.0
      %v3673 = vsel %vm3577, %v3629, 0.0
      %v3674 = vsel %vm3578, %v3629, 0.0
      %v3675 = vsel %vm3579, %v3633, 0.0
      %v3676 = vsel %vm3580, %v3633, 0.0
      %v3677 = vsel %vm3581, %v3637, 0.0
      %v3678 = vsel %vm3582, %v3637, 0.0
      %v3679 = vsel %vm3583, %v3641, 0.0
      %v3680 = vsel %vm3584, %v3641, 0.0
      %v3681 = vsel %vm3585, %v3645, 0.0
      %v3682 = vsel %vm3586, %v3645, 0.0
      %v3683 = vsel %vm3587, %v3649, 0.0
      %v3684 = vsel %vm3588, %v3649, 0.0
      %v3685 = vsel %vm3589, %v3653, 0.0
      %v3686 = vsel %vm3590, %v3653, 0.0
      %v3687 = vadd.f32 %v3479, %v3655
      %v3688 = vadd.f32 %v3480, %v3656
      %v3689 = vadd.f32 %v3481, %v3657
      %v3690 = vadd.f32 %v3482, %v3658
      %v3691 = vadd.f32 %v3483, %v3659
      %v3692 = vadd.f32 %v3484, %v3660
      %v3693 = vadd.f32 %v3485, %v3661
      %v3694 = vadd.f32 %v3486, %v3662
      %v3695 = vadd.f32 %v3487, %v3663
      %v3696 = vadd.f32 %v3488, %v3664
      %v3697 = vadd.f32 %v3489, %v3665
      %v3698 = vadd.f32 %v3490, %v3666
      %v3699 = vadd.f32 %v3491, %v3667
      %v3700 = vadd.f32 %v3492, %v3668
      %v3701 = vadd.f32 %v3493, %v3669
      %v3702 = vadd.f32 %v3494, %v3670
      %v3703 = vadd.f32 %v3495, %v3671
      %v3704 = vadd.f32 %v3496, %v3672
      %v3705 = vadd.f32 %v3497, %v3673
      %v3706 = vadd.f32 %v3498, %v3674
      %v3707 = vadd.f32 %v3499, %v3675
      %v3708 = vadd.f32 %v3500, %v3676
      %v3709 = vadd.f32 %v3501, %v3677
      %v3710 = vadd.f32 %v3502, %v3678
      %v3711 = vadd.f32 %v3503, %v3679
      %v3712 = vadd.f32 %v3504, %v3680
      %v3713 = vadd.f32 %v3505, %v3681
      %v3714 = vadd.f32 %v3506, %v3682
      %v3715 = vadd.f32 %v3507, %v3683
      %v3716 = vadd.f32 %v3508, %v3684
      %v3717 = vadd.f32 %v3509, %v3685
      %v3718 = vadd.f32 %v3510, %v3686
      %3719 = vset.pattern.permute.xlu0 11
      %3720 = vperm.xlu0 %3719, %v516
      %v3721 = vpop.permute.xlu0 %3720
      %3722 = vset.pattern.permute.xlu0 11
      %3723 = vperm.xlu0 %3722, %v517
      %v3724 = vpop.permute.xlu0 %3723
      %3725 = vset.pattern.permute.xlu0 11
      %3726 = vperm.xlu0 %3725, %v518
      %v3727 = vpop.permute.xlu0 %3726
      %3728 = vset.pattern.permute.xlu0 11
      %3729 = vperm.xlu0 %3728, %v519
      %v3730 = vpop.permute.xlu0 %3729
      %3731 = vset.pattern.permute.xlu0 11
      %3732 = vperm.xlu0 %3731, %v520
      %v3733 = vpop.permute.xlu0 %3732
      %3734 = vset.pattern.permute.xlu0 11
      %3735 = vperm.xlu0 %3734, %v521
      %v3736 = vpop.permute.xlu0 %3735
      %3737 = vset.pattern.permute.xlu0 11
      %3738 = vperm.xlu0 %3737, %v522
      %v3739 = vpop.permute.xlu0 %3738
      %3740 = vset.pattern.permute.xlu0 11
      %3741 = vperm.xlu0 %3740, %v523
      %v3742 = vpop.permute.xlu0 %3741
      %3743 = vset.pattern.permute.xlu0 11
      %3744 = vperm.xlu0 %3743, %v524
      %v3745 = vpop.permute.xlu0 %3744
      %3746 = vset.pattern.permute.xlu0 11
      %3747 = vperm.xlu0 %3746, %v525
      %v3748 = vpop.permute.xlu0 %3747
      %3749 = vset.pattern.permute.xlu0 11
      %3750 = vperm.xlu0 %3749, %v526
      %v3751 = vpop.permute.xlu0 %3750
      %3752 = vset.pattern.permute.xlu0 11
      %3753 = vperm.xlu0 %3752, %v527
      %v3754 = vpop.permute.xlu0 %3753
      %3755 = vset.pattern.permute.xlu0 11
      %3756 = vperm.xlu0 %3755, %v528
      %v3757 = vpop.permute.xlu0 %3756
      %3758 = vset.pattern.permute.xlu0 11
      %3759 = vperm.xlu0 %3758, %v529
      %v3760 = vpop.permute.xlu0 %3759
      %3761 = vset.pattern.permute.xlu0 11
      %3762 = vperm.xlu0 %3761, %v530
      %v3763 = vpop.permute.xlu0 %3762
      %3764 = vset.pattern.permute.xlu0 11
      %3765 = vperm.xlu0 %3764, %v531
      %v3766 = vpop.permute.xlu0 %3765
      %vm3767 = vcmp.eq.s32.totalorder %v805, %v3721
      %vm3768 = vcmp.eq.s32.totalorder %v806, %v3721
      %vm3769 = vcmp.eq.s32.totalorder %v805, %v3724
      %vm3770 = vcmp.eq.s32.totalorder %v806, %v3724
      %vm3771 = vcmp.eq.s32.totalorder %v805, %v3727
      %vm3772 = vcmp.eq.s32.totalorder %v806, %v3727
      %vm3773 = vcmp.eq.s32.totalorder %v805, %v3730
      %vm3774 = vcmp.eq.s32.totalorder %v806, %v3730
      %vm3775 = vcmp.eq.s32.totalorder %v805, %v3733
      %vm3776 = vcmp.eq.s32.totalorder %v806, %v3733
      %vm3777 = vcmp.eq.s32.totalorder %v805, %v3736
      %vm3778 = vcmp.eq.s32.totalorder %v806, %v3736
      %vm3779 = vcmp.eq.s32.totalorder %v805, %v3739
      %vm3780 = vcmp.eq.s32.totalorder %v806, %v3739
      %vm3781 = vcmp.eq.s32.totalorder %v805, %v3742
      %vm3782 = vcmp.eq.s32.totalorder %v806, %v3742
      %vm3783 = vcmp.eq.s32.totalorder %v805, %v3745
      %vm3784 = vcmp.eq.s32.totalorder %v806, %v3745
      %vm3785 = vcmp.eq.s32.totalorder %v805, %v3748
      %vm3786 = vcmp.eq.s32.totalorder %v806, %v3748
      %vm3787 = vcmp.eq.s32.totalorder %v805, %v3751
      %vm3788 = vcmp.eq.s32.totalorder %v806, %v3751
      %vm3789 = vcmp.eq.s32.totalorder %v805, %v3754
      %vm3790 = vcmp.eq.s32.totalorder %v806, %v3754
      %vm3791 = vcmp.eq.s32.totalorder %v805, %v3757
      %vm3792 = vcmp.eq.s32.totalorder %v806, %v3757
      %vm3793 = vcmp.eq.s32.totalorder %v805, %v3760
      %vm3794 = vcmp.eq.s32.totalorder %v806, %v3760
      %vm3795 = vcmp.eq.s32.totalorder %v805, %v3763
      %vm3796 = vcmp.eq.s32.totalorder %v806, %v3763
      %vm3797 = vcmp.eq.s32.totalorder %v805, %v3766
      %vm3798 = vcmp.eq.s32.totalorder %v806, %v3766
      %3799 = vset.pattern.permute.xlu0 11
      %3800 = vperm.xlu0 %3799, %v756
      %v3801 = vpop.permute.xlu0 %3800
      %3803 = vset.pattern.permute.xlu0 11
      %3804 = vperm.xlu0 %3803, %v757
      %v3805 = vpop.permute.xlu0 %3804
      %3807 = vset.pattern.permute.xlu0 11
      %3808 = vperm.xlu0 %3807, %v758
      %v3809 = vpop.permute.xlu0 %3808
      %3811 = vset.pattern.permute.xlu0 11
      %3812 = vperm.xlu0 %3811, %v759
      %v3813 = vpop.permute.xlu0 %3812
      %3815 = vset.pattern.permute.xlu0 11
      %3816 = vperm.xlu0 %3815, %v760
      %v3817 = vpop.permute.xlu0 %3816
      %3819 = vset.pattern.permute.xlu0 11
      %3820 = vperm.xlu0 %3819, %v761
      %v3821 = vpop.permute.xlu0 %3820
      %3823 = vset.pattern.permute.xlu0 11
      %3824 = vperm.xlu0 %3823, %v762
      %v3825 = vpop.permute.xlu0 %3824
      %3827 = vset.pattern.permute.xlu0 11
      %3828 = vperm.xlu0 %3827, %v763
      %v3829 = vpop.permute.xlu0 %3828
      %3831 = vset.pattern.permute.xlu0 11
      %3832 = vperm.xlu0 %3831, %v764
      %v3833 = vpop.permute.xlu0 %3832
      %3835 = vset.pattern.permute.xlu0 11
      %3836 = vperm.xlu0 %3835, %v765
      %v3837 = vpop.permute.xlu0 %3836
      %3839 = vset.pattern.permute.xlu0 11
      %3840 = vperm.xlu0 %3839, %v766
      %v3841 = vpop.permute.xlu0 %3840
      %3843 = vset.pattern.permute.xlu0 11
      %3844 = vperm.xlu0 %3843, %v767
      %v3845 = vpop.permute.xlu0 %3844
      %3847 = vset.pattern.permute.xlu0 11
      %3848 = vperm.xlu0 %3847, %v768
      %v3849 = vpop.permute.xlu0 %3848
      %3851 = vset.pattern.permute.xlu0 11
      %3852 = vperm.xlu0 %3851, %v769
      %v3853 = vpop.permute.xlu0 %3852
      %3855 = vset.pattern.permute.xlu0 11
      %3856 = vperm.xlu0 %3855, %v770
      %v3857 = vpop.permute.xlu0 %3856
      %3859 = vset.pattern.permute.xlu0 11
      %3860 = vperm.xlu0 %3859, %v771
      %v3861 = vpop.permute.xlu0 %3860
      %v3863 = vsel %vm3767, %v3801, 0.0
      %v3864 = vsel %vm3768, %v3801, 0.0
      %v3865 = vsel %vm3769, %v3805, 0.0
      %v3866 = vsel %vm3770, %v3805, 0.0
      %v3867 = vsel %vm3771, %v3809, 0.0
      %v3868 = vsel %vm3772, %v3809, 0.0
      %v3869 = vsel %vm3773, %v3813, 0.0
      %v3870 = vsel %vm3774, %v3813, 0.0
      %v3871 = vsel %vm3775, %v3817, 0.0
      %v3872 = vsel %vm3776, %v3817, 0.0
      %v3873 = vsel %vm3777, %v3821, 0.0
      %v3874 = vsel %vm3778, %v3821, 0.0
      %v3875 = vsel %vm3779, %v3825, 0.0
      %v3876 = vsel %vm3780, %v3825, 0.0
      %v3877 = vsel %vm3781, %v3829, 0.0
      %v3878 = vsel %vm3782, %v3829, 0.0
      %v3879 = vsel %vm3783, %v3833, 0.0
      %v3880 = vsel %vm3784, %v3833, 0.0
      %v3881 = vsel %vm3785, %v3837, 0.0
      %v3882 = vsel %vm3786, %v3837, 0.0
      %v3883 = vsel %vm3787, %v3841, 0.0
      %v3884 = vsel %vm3788, %v3841, 0.0
      %v3885 = vsel %vm3789, %v3845, 0.0
      %v3886 = vsel %vm3790, %v3845, 0.0
      %v3887 = vsel %vm3791, %v3849, 0.0
      %v3888 = vsel %vm3792, %v3849, 0.0
      %v3889 = vsel %vm3793, %v3853, 0.0
      %v3890 = vsel %vm3794, %v3853, 0.0
      %v3891 = vsel %vm3795, %v3857, 0.0
      %v3892 = vsel %vm3796, %v3857, 0.0
      %v3893 = vsel %vm3797, %v3861, 0.0
      %v3894 = vsel %vm3798, %v3861, 0.0
      %v3895 = vadd.f32 %v3687, %v3863
      %v3896 = vadd.f32 %v3688, %v3864
      %v3897 = vadd.f32 %v3689, %v3865
      %v3898 = vadd.f32 %v3690, %v3866
      %v3899 = vadd.f32 %v3691, %v3867
      %v3900 = vadd.f32 %v3692, %v3868
      %v3901 = vadd.f32 %v3693, %v3869
      %v3902 = vadd.f32 %v3694, %v3870
      %v3903 = vadd.f32 %v3695, %v3871
      %v3904 = vadd.f32 %v3696, %v3872
      %v3905 = vadd.f32 %v3697, %v3873
      %v3906 = vadd.f32 %v3698, %v3874
      %v3907 = vadd.f32 %v3699, %v3875
      %v3908 = vadd.f32 %v3700, %v3876
      %v3909 = vadd.f32 %v3701, %v3877
      %v3910 = vadd.f32 %v3702, %v3878
      %v3911 = vadd.f32 %v3703, %v3879
      %v3912 = vadd.f32 %v3704, %v3880
      %v3913 = vadd.f32 %v3705, %v3881
      %v3914 = vadd.f32 %v3706, %v3882
      %v3915 = vadd.f32 %v3707, %v3883
      %v3916 = vadd.f32 %v3708, %v3884
      %v3917 = vadd.f32 %v3709, %v3885
      %v3918 = vadd.f32 %v3710, %v3886
      %v3919 = vadd.f32 %v3711, %v3887
      %v3920 = vadd.f32 %v3712, %v3888
      %v3921 = vadd.f32 %v3713, %v3889
      %v3922 = vadd.f32 %v3714, %v3890
      %v3923 = vadd.f32 %v3715, %v3891
      %v3924 = vadd.f32 %v3716, %v3892
      %v3925 = vadd.f32 %v3717, %v3893
      %v3926 = vadd.f32 %v3718, %v3894
      %3927 = vset.pattern.permute.xlu0 11
      %3928 = vperm.xlu0 %3927, %v532
      %v3929 = vpop.permute.xlu0 %3928
      %3930 = vset.pattern.permute.xlu0 11
      %3931 = vperm.xlu0 %3930, %v533
      %v3932 = vpop.permute.xlu0 %3931
      %3933 = vset.pattern.permute.xlu0 11
      %3934 = vperm.xlu0 %3933, %v534
      %v3935 = vpop.permute.xlu0 %3934
      %3936 = vset.pattern.permute.xlu0 11
      %3937 = vperm.xlu0 %3936, %v535
      %v3938 = vpop.permute.xlu0 %3937
      %3939 = vset.pattern.permute.xlu0 11
      %3940 = vperm.xlu0 %3939, %v536
      %v3941 = vpop.permute.xlu0 %3940
      %3942 = vset.pattern.permute.xlu0 11
      %3943 = vperm.xlu0 %3942, %v537
      %v3944 = vpop.permute.xlu0 %3943
      %3945 = vset.pattern.permute.xlu0 11
      %3946 = vperm.xlu0 %3945, %v538
      %v3947 = vpop.permute.xlu0 %3946
      %3948 = vset.pattern.permute.xlu0 11
      %3949 = vperm.xlu0 %3948, %v539
      %v3950 = vpop.permute.xlu0 %3949
      %3951 = vset.pattern.permute.xlu0 11
      %3952 = vperm.xlu0 %3951, %v540
      %v3953 = vpop.permute.xlu0 %3952
      %3954 = vset.pattern.permute.xlu0 11
      %3955 = vperm.xlu0 %3954, %v541
      %v3956 = vpop.permute.xlu0 %3955
      %3957 = vset.pattern.permute.xlu0 11
      %3958 = vperm.xlu0 %3957, %v542
      %v3959 = vpop.permute.xlu0 %3958
      %3960 = vset.pattern.permute.xlu0 11
      %3961 = vperm.xlu0 %3960, %v543
      %v3962 = vpop.permute.xlu0 %3961
      %3963 = vset.pattern.permute.xlu0 11
      %3964 = vperm.xlu0 %3963, %v544
      %v3965 = vpop.permute.xlu0 %3964
      %3966 = vset.pattern.permute.xlu0 11
      %3967 = vperm.xlu0 %3966, %v545
      %v3968 = vpop.permute.xlu0 %3967
      %3969 = vset.pattern.permute.xlu0 11
      %3970 = vperm.xlu0 %3969, %v546
      %v3971 = vpop.permute.xlu0 %3970
      %3972 = vset.pattern.permute.xlu0 11
      %3973 = vperm.xlu0 %3972, %v547
      %v3974 = vpop.permute.xlu0 %3973
      %vm3975 = vcmp.eq.s32.totalorder %v805, %v3929
      %vm3976 = vcmp.eq.s32.totalorder %v806, %v3929
      %vm3977 = vcmp.eq.s32.totalorder %v805, %v3932
      %vm3978 = vcmp.eq.s32.totalorder %v806, %v3932
      %vm3979 = vcmp.eq.s32.totalorder %v805, %v3935
      %vm3980 = vcmp.eq.s32.totalorder %v806, %v3935
      %vm3981 = vcmp.eq.s32.totalorder %v805, %v3938
      %vm3982 = vcmp.eq.s32.totalorder %v806, %v3938
      %vm3983 = vcmp.eq.s32.totalorder %v805, %v3941
      %vm3984 = vcmp.eq.s32.totalorder %v806, %v3941
      %vm3985 = vcmp.eq.s32.totalorder %v805, %v3944
      %vm3986 = vcmp.eq.s32.totalorder %v806, %v3944
      %vm3987 = vcmp.eq.s32.totalorder %v805, %v3947
      %vm3988 = vcmp.eq.s32.totalorder %v806, %v3947
      %vm3989 = vcmp.eq.s32.totalorder %v805, %v3950
      %vm3990 = vcmp.eq.s32.totalorder %v806, %v3950
      %vm3991 = vcmp.eq.s32.totalorder %v805, %v3953
      %vm3992 = vcmp.eq.s32.totalorder %v806, %v3953
      %vm3993 = vcmp.eq.s32.totalorder %v805, %v3956
      %vm3994 = vcmp.eq.s32.totalorder %v806, %v3956
      %vm3995 = vcmp.eq.s32.totalorder %v805, %v3959
      %vm3996 = vcmp.eq.s32.totalorder %v806, %v3959
      %vm3997 = vcmp.eq.s32.totalorder %v805, %v3962
      %vm3998 = vcmp.eq.s32.totalorder %v806, %v3962
      %vm3999 = vcmp.eq.s32.totalorder %v805, %v3965
      %vm4000 = vcmp.eq.s32.totalorder %v806, %v3965
      %vm4001 = vcmp.eq.s32.totalorder %v805, %v3968
      %vm4002 = vcmp.eq.s32.totalorder %v806, %v3968
      %vm4003 = vcmp.eq.s32.totalorder %v805, %v3971
      %vm4004 = vcmp.eq.s32.totalorder %v806, %v3971
      %vm4005 = vcmp.eq.s32.totalorder %v805, %v3974
      %vm4006 = vcmp.eq.s32.totalorder %v806, %v3974
      %4007 = vset.pattern.permute.xlu0 11
      %4008 = vperm.xlu0 %4007, %v788
      %v4009 = vpop.permute.xlu0 %4008
      %4011 = vset.pattern.permute.xlu0 11
      %4012 = vperm.xlu0 %4011, %v789
      %v4013 = vpop.permute.xlu0 %4012
      %4015 = vset.pattern.permute.xlu0 11
      %4016 = vperm.xlu0 %4015, %v790
      %v4017 = vpop.permute.xlu0 %4016
      %4019 = vset.pattern.permute.xlu0 11
      %4020 = vperm.xlu0 %4019, %v791
      %v4021 = vpop.permute.xlu0 %4020
      %4023 = vset.pattern.permute.xlu0 11
      %4024 = vperm.xlu0 %4023, %v792
      %v4025 = vpop.permute.xlu0 %4024
      %4027 = vset.pattern.permute.xlu0 11
      %4028 = vperm.xlu0 %4027, %v793
      %v4029 = vpop.permute.xlu0 %4028
      %4031 = vset.pattern.permute.xlu0 11
      %4032 = vperm.xlu0 %4031, %v794
      %v4033 = vpop.permute.xlu0 %4032
      %4035 = vset.pattern.permute.xlu0 11
      %4036 = vperm.xlu0 %4035, %v795
      %v4037 = vpop.permute.xlu0 %4036
      %4039 = vset.pattern.permute.xlu0 11
      %4040 = vperm.xlu0 %4039, %v796
      %v4041 = vpop.permute.xlu0 %4040
      %4043 = vset.pattern.permute.xlu0 11
      %4044 = vperm.xlu0 %4043, %v797
      %v4045 = vpop.permute.xlu0 %4044
      %4047 = vset.pattern.permute.xlu0 11
      %4048 = vperm.xlu0 %4047, %v798
      %v4049 = vpop.permute.xlu0 %4048
      %4051 = vset.pattern.permute.xlu0 11
      %4052 = vperm.xlu0 %4051, %v799
      %v4053 = vpop.permute.xlu0 %4052
      %4055 = vset.pattern.permute.xlu0 11
      %4056 = vperm.xlu0 %4055, %v800
      %v4057 = vpop.permute.xlu0 %4056
      %4059 = vset.pattern.permute.xlu0 11
      %4060 = vperm.xlu0 %4059, %v801
      %v4061 = vpop.permute.xlu0 %4060
      %4063 = vset.pattern.permute.xlu0 11
      %4064 = vperm.xlu0 %4063, %v802
      %v4065 = vpop.permute.xlu0 %4064
      %4067 = vset.pattern.permute.xlu0 11
      %4068 = vperm.xlu0 %4067, %v803
      %v4069 = vpop.permute.xlu0 %4068
      %v4071 = vsel %vm3975, %v4009, 0.0
      %v4072 = vsel %vm3976, %v4009, 0.0
      %v4073 = vsel %vm3977, %v4013, 0.0
      %v4074 = vsel %vm3978, %v4013, 0.0
      %v4075 = vsel %vm3979, %v4017, 0.0
      %v4076 = vsel %vm3980, %v4017, 0.0
      %v4077 = vsel %vm3981, %v4021, 0.0
      %v4078 = vsel %vm3982, %v4021, 0.0
      %v4079 = vsel %vm3983, %v4025, 0.0
      %v4080 = vsel %vm3984, %v4025, 0.0
      %v4081 = vsel %vm3985, %v4029, 0.0
      %v4082 = vsel %vm3986, %v4029, 0.0
      %v4083 = vsel %vm3987, %v4033, 0.0
      %v4084 = vsel %vm3988, %v4033, 0.0
      %v4085 = vsel %vm3989, %v4037, 0.0
      %v4086 = vsel %vm3990, %v4037, 0.0
      %v4087 = vsel %vm3991, %v4041, 0.0
      %v4088 = vsel %vm3992, %v4041, 0.0
      %v4089 = vsel %vm3993, %v4045, 0.0
      %v4090 = vsel %vm3994, %v4045, 0.0
      %v4091 = vsel %vm3995, %v4049, 0.0
      %v4092 = vsel %vm3996, %v4049, 0.0
      %v4093 = vsel %vm3997, %v4053, 0.0
      %v4094 = vsel %vm3998, %v4053, 0.0
      %v4095 = vsel %vm3999, %v4057, 0.0
      %v4096 = vsel %vm4000, %v4057, 0.0
      %v4097 = vsel %vm4001, %v4061, 0.0
      %v4098 = vsel %vm4002, %v4061, 0.0
      %v4099 = vsel %vm4003, %v4065, 0.0
      %v4100 = vsel %vm4004, %v4065, 0.0
      %v4101 = vsel %vm4005, %v4069, 0.0
      %v4102 = vsel %vm4006, %v4069, 0.0
      %v4103 = vadd.f32 %v3895, %v4071
      %v4104 = vadd.f32 %v3896, %v4072
      %v4105 = vadd.f32 %v3897, %v4073
      %v4106 = vadd.f32 %v3898, %v4074
      %v4107 = vadd.f32 %v3899, %v4075
      %v4108 = vadd.f32 %v3900, %v4076
      %v4109 = vadd.f32 %v3901, %v4077
      %v4110 = vadd.f32 %v3902, %v4078
      %v4111 = vadd.f32 %v3903, %v4079
      %v4112 = vadd.f32 %v3904, %v4080
      %v4113 = vadd.f32 %v3905, %v4081
      %v4114 = vadd.f32 %v3906, %v4082
      %v4115 = vadd.f32 %v3907, %v4083
      %v4116 = vadd.f32 %v3908, %v4084
      %v4117 = vadd.f32 %v3909, %v4085
      %v4118 = vadd.f32 %v3910, %v4086
      %v4119 = vadd.f32 %v3911, %v4087
      %v4120 = vadd.f32 %v3912, %v4088
      %v4121 = vadd.f32 %v3913, %v4089
      %v4122 = vadd.f32 %v3914, %v4090
      %v4123 = vadd.f32 %v3915, %v4091
      %v4124 = vadd.f32 %v3916, %v4092
      %v4125 = vadd.f32 %v3917, %v4093
      %v4126 = vadd.f32 %v3918, %v4094
      %v4127 = vadd.f32 %v3919, %v4095
      %v4128 = vadd.f32 %v3920, %v4096
      %v4129 = vadd.f32 %v3921, %v4097
      %v4130 = vadd.f32 %v3922, %v4098
      %v4131 = vadd.f32 %v3923, %v4099
      %v4132 = vadd.f32 %v3924, %v4100
      %v4133 = vadd.f32 %v3925, %v4101
      %v4134 = vadd.f32 %v3926, %v4102
      %v4135 = vadd.f32 %v3303, %v4103
      %v4136 = vadd.f32 %v3304, %v4104
      %v4137 = vadd.f32 %v3305, %v4105
      %v4138 = vadd.f32 %v3306, %v4106
      %v4139 = vadd.f32 %v3307, %v4107
      %v4140 = vadd.f32 %v3308, %v4108
      %v4141 = vadd.f32 %v3309, %v4109
      %v4142 = vadd.f32 %v3310, %v4110
      %v4143 = vadd.f32 %v3311, %v4111
      %v4144 = vadd.f32 %v3312, %v4112
      %v4145 = vadd.f32 %v3313, %v4113
      %v4146 = vadd.f32 %v3314, %v4114
      %v4147 = vadd.f32 %v3315, %v4115
      %v4148 = vadd.f32 %v3316, %v4116
      %v4149 = vadd.f32 %v3317, %v4117
      %v4150 = vadd.f32 %v3318, %v4118
      %v4151 = vadd.f32 %v3319, %v4119
      %v4152 = vadd.f32 %v3320, %v4120
      %v4153 = vadd.f32 %v3321, %v4121
      %v4154 = vadd.f32 %v3322, %v4122
      %v4155 = vadd.f32 %v3323, %v4123
      %v4156 = vadd.f32 %v3324, %v4124
      %v4157 = vadd.f32 %v3325, %v4125
      %v4158 = vadd.f32 %v3326, %v4126
      %v4159 = vadd.f32 %v3327, %v4127
      %v4160 = vadd.f32 %v3328, %v4128
      %v4161 = vadd.f32 %v3329, %v4129
      %v4162 = vadd.f32 %v3330, %v4130
      %v4163 = vadd.f32 %v3331, %v4131
      %v4164 = vadd.f32 %v3332, %v4132
      %v4165 = vadd.f32 %v3333, %v4133
      %v4166 = vadd.f32 %v3334, %v4134
      %4167 = vset.pattern.permute.xlu0 12
      %4168 = vperm.xlu0 %4167, %v436
      %v4169 = vpop.permute.xlu0 %4168
      %4170 = vset.pattern.permute.xlu0 12
      %4171 = vperm.xlu0 %4170, %v437
      %v4172 = vpop.permute.xlu0 %4171
      %4173 = vset.pattern.permute.xlu0 12
      %4174 = vperm.xlu0 %4173, %v438
      %v4175 = vpop.permute.xlu0 %4174
      %4176 = vset.pattern.permute.xlu0 12
      %4177 = vperm.xlu0 %4176, %v439
      %v4178 = vpop.permute.xlu0 %4177
      %4179 = vset.pattern.permute.xlu0 12
      %4180 = vperm.xlu0 %4179, %v440
      %v4181 = vpop.permute.xlu0 %4180
      %4182 = vset.pattern.permute.xlu0 12
      %4183 = vperm.xlu0 %4182, %v441
      %v4184 = vpop.permute.xlu0 %4183
      %4185 = vset.pattern.permute.xlu0 12
      %4186 = vperm.xlu0 %4185, %v442
      %v4187 = vpop.permute.xlu0 %4186
      %4188 = vset.pattern.permute.xlu0 12
      %4189 = vperm.xlu0 %4188, %v443
      %v4190 = vpop.permute.xlu0 %4189
      %4191 = vset.pattern.permute.xlu0 12
      %4192 = vperm.xlu0 %4191, %v444
      %v4193 = vpop.permute.xlu0 %4192
      %4194 = vset.pattern.permute.xlu0 12
      %4195 = vperm.xlu0 %4194, %v445
      %v4196 = vpop.permute.xlu0 %4195
      %4197 = vset.pattern.permute.xlu0 12
      %4198 = vperm.xlu0 %4197, %v446
      %v4199 = vpop.permute.xlu0 %4198
      %4200 = vset.pattern.permute.xlu0 12
      %4201 = vperm.xlu0 %4200, %v447
      %v4202 = vpop.permute.xlu0 %4201
      %4203 = vset.pattern.permute.xlu0 12
      %4204 = vperm.xlu0 %4203, %v448
      %v4205 = vpop.permute.xlu0 %4204
      %4206 = vset.pattern.permute.xlu0 12
      %4207 = vperm.xlu0 %4206, %v449
      %v4208 = vpop.permute.xlu0 %4207
      %4209 = vset.pattern.permute.xlu0 12
      %4210 = vperm.xlu0 %4209, %v450
      %v4211 = vpop.permute.xlu0 %4210
      %4212 = vset.pattern.permute.xlu0 12
      %4213 = vperm.xlu0 %4212, %v451
      %v4214 = vpop.permute.xlu0 %4213
      %vm4215 = vcmp.eq.s32.totalorder %v805, %v4169
      %vm4216 = vcmp.eq.s32.totalorder %v806, %v4169
      %vm4217 = vcmp.eq.s32.totalorder %v805, %v4172
      %vm4218 = vcmp.eq.s32.totalorder %v806, %v4172
      %vm4219 = vcmp.eq.s32.totalorder %v805, %v4175
      %vm4220 = vcmp.eq.s32.totalorder %v806, %v4175
      %vm4221 = vcmp.eq.s32.totalorder %v805, %v4178
      %vm4222 = vcmp.eq.s32.totalorder %v806, %v4178
      %vm4223 = vcmp.eq.s32.totalorder %v805, %v4181
      %vm4224 = vcmp.eq.s32.totalorder %v806, %v4181
      %vm4225 = vcmp.eq.s32.totalorder %v805, %v4184
      %vm4226 = vcmp.eq.s32.totalorder %v806, %v4184
      %vm4227 = vcmp.eq.s32.totalorder %v805, %v4187
      %vm4228 = vcmp.eq.s32.totalorder %v806, %v4187
      %vm4229 = vcmp.eq.s32.totalorder %v805, %v4190
      %vm4230 = vcmp.eq.s32.totalorder %v806, %v4190
      %vm4231 = vcmp.eq.s32.totalorder %v805, %v4193
      %vm4232 = vcmp.eq.s32.totalorder %v806, %v4193
      %vm4233 = vcmp.eq.s32.totalorder %v805, %v4196
      %vm4234 = vcmp.eq.s32.totalorder %v806, %v4196
      %vm4235 = vcmp.eq.s32.totalorder %v805, %v4199
      %vm4236 = vcmp.eq.s32.totalorder %v806, %v4199
      %vm4237 = vcmp.eq.s32.totalorder %v805, %v4202
      %vm4238 = vcmp.eq.s32.totalorder %v806, %v4202
      %vm4239 = vcmp.eq.s32.totalorder %v805, %v4205
      %vm4240 = vcmp.eq.s32.totalorder %v806, %v4205
      %vm4241 = vcmp.eq.s32.totalorder %v805, %v4208
      %vm4242 = vcmp.eq.s32.totalorder %v806, %v4208
      %vm4243 = vcmp.eq.s32.totalorder %v805, %v4211
      %vm4244 = vcmp.eq.s32.totalorder %v806, %v4211
      %vm4245 = vcmp.eq.s32.totalorder %v805, %v4214
      %vm4246 = vcmp.eq.s32.totalorder %v806, %v4214
      %4247 = vset.pattern.permute.xlu0 12
      %4248 = vperm.xlu0 %4247, %v628
      %v4249 = vpop.permute.xlu0 %4248
      %4251 = vset.pattern.permute.xlu0 12
      %4252 = vperm.xlu0 %4251, %v629
      %v4253 = vpop.permute.xlu0 %4252
      %4255 = vset.pattern.permute.xlu0 12
      %4256 = vperm.xlu0 %4255, %v630
      %v4257 = vpop.permute.xlu0 %4256
      %4259 = vset.pattern.permute.xlu0 12
      %4260 = vperm.xlu0 %4259, %v631
      %v4261 = vpop.permute.xlu0 %4260
      %4263 = vset.pattern.permute.xlu0 12
      %4264 = vperm.xlu0 %4263, %v632
      %v4265 = vpop.permute.xlu0 %4264
      %4267 = vset.pattern.permute.xlu0 12
      %4268 = vperm.xlu0 %4267, %v633
      %v4269 = vpop.permute.xlu0 %4268
      %4271 = vset.pattern.permute.xlu0 12
      %4272 = vperm.xlu0 %4271, %v634
      %v4273 = vpop.permute.xlu0 %4272
      %4275 = vset.pattern.permute.xlu0 12
      %4276 = vperm.xlu0 %4275, %v635
      %v4277 = vpop.permute.xlu0 %4276
      %4279 = vset.pattern.permute.xlu0 12
      %4280 = vperm.xlu0 %4279, %v636
      %v4281 = vpop.permute.xlu0 %4280
      %4283 = vset.pattern.permute.xlu0 12
      %4284 = vperm.xlu0 %4283, %v637
      %v4285 = vpop.permute.xlu0 %4284
      %4287 = vset.pattern.permute.xlu0 12
      %4288 = vperm.xlu0 %4287, %v638
      %v4289 = vpop.permute.xlu0 %4288
      %4291 = vset.pattern.permute.xlu0 12
      %4292 = vperm.xlu0 %4291, %v639
      %v4293 = vpop.permute.xlu0 %4292
      %4295 = vset.pattern.permute.xlu0 12
      %4296 = vperm.xlu0 %4295, %v640
      %v4297 = vpop.permute.xlu0 %4296
      %4299 = vset.pattern.permute.xlu0 12
      %4300 = vperm.xlu0 %4299, %v641
      %v4301 = vpop.permute.xlu0 %4300
      %4303 = vset.pattern.permute.xlu0 12
      %4304 = vperm.xlu0 %4303, %v642
      %v4305 = vpop.permute.xlu0 %4304
      %4307 = vset.pattern.permute.xlu0 12
      %4308 = vperm.xlu0 %4307, %v643
      %v4309 = vpop.permute.xlu0 %4308
      %v4311 = vsel %vm4215, %v4249, 0.0
      %v4312 = vsel %vm4216, %v4249, 0.0
      %v4313 = vsel %vm4217, %v4253, 0.0
      %v4314 = vsel %vm4218, %v4253, 0.0
      %v4315 = vsel %vm4219, %v4257, 0.0
      %v4316 = vsel %vm4220, %v4257, 0.0
      %v4317 = vsel %vm4221, %v4261, 0.0
      %v4318 = vsel %vm4222, %v4261, 0.0
      %v4319 = vsel %vm4223, %v4265, 0.0
      %v4320 = vsel %vm4224, %v4265, 0.0
      %v4321 = vsel %vm4225, %v4269, 0.0
      %v4322 = vsel %vm4226, %v4269, 0.0
      %v4323 = vsel %vm4227, %v4273, 0.0
      %v4324 = vsel %vm4228, %v4273, 0.0
      %v4325 = vsel %vm4229, %v4277, 0.0
      %v4326 = vsel %vm4230, %v4277, 0.0
      %v4327 = vsel %vm4231, %v4281, 0.0
      %v4328 = vsel %vm4232, %v4281, 0.0
      %v4329 = vsel %vm4233, %v4285, 0.0
      %v4330 = vsel %vm4234, %v4285, 0.0
      %v4331 = vsel %vm4235, %v4289, 0.0
      %v4332 = vsel %vm4236, %v4289, 0.0
      %v4333 = vsel %vm4237, %v4293, 0.0
      %v4334 = vsel %vm4238, %v4293, 0.0
      %v4335 = vsel %vm4239, %v4297, 0.0
      %v4336 = vsel %vm4240, %v4297, 0.0
      %v4337 = vsel %vm4241, %v4301, 0.0
      %v4338 = vsel %vm4242, %v4301, 0.0
      %v4339 = vsel %vm4243, %v4305, 0.0
      %v4340 = vsel %vm4244, %v4305, 0.0
      %v4341 = vsel %vm4245, %v4309, 0.0
      %v4342 = vsel %vm4246, %v4309, 0.0
      %4343 = vset.pattern.permute.xlu0 12
      %4344 = vperm.xlu0 %4343, %v484
      %v4345 = vpop.permute.xlu0 %4344
      %4346 = vset.pattern.permute.xlu0 12
      %4347 = vperm.xlu0 %4346, %v485
      %v4348 = vpop.permute.xlu0 %4347
      %4349 = vset.pattern.permute.xlu0 12
      %4350 = vperm.xlu0 %4349, %v486
      %v4351 = vpop.permute.xlu0 %4350
      %4352 = vset.pattern.permute.xlu0 12
      %4353 = vperm.xlu0 %4352, %v487
      %v4354 = vpop.permute.xlu0 %4353
      %4355 = vset.pattern.permute.xlu0 12
      %4356 = vperm.xlu0 %4355, %v488
      %v4357 = vpop.permute.xlu0 %4356
      %4358 = vset.pattern.permute.xlu0 12
      %4359 = vperm.xlu0 %4358, %v489
      %v4360 = vpop.permute.xlu0 %4359
      %4361 = vset.pattern.permute.xlu0 12
      %4362 = vperm.xlu0 %4361, %v490
      %v4363 = vpop.permute.xlu0 %4362
      %4364 = vset.pattern.permute.xlu0 12
      %4365 = vperm.xlu0 %4364, %v491
      %v4366 = vpop.permute.xlu0 %4365
      %4367 = vset.pattern.permute.xlu0 12
      %4368 = vperm.xlu0 %4367, %v492
      %v4369 = vpop.permute.xlu0 %4368
      %4370 = vset.pattern.permute.xlu0 12
      %4371 = vperm.xlu0 %4370, %v493
      %v4372 = vpop.permute.xlu0 %4371
      %4373 = vset.pattern.permute.xlu0 12
      %4374 = vperm.xlu0 %4373, %v494
      %v4375 = vpop.permute.xlu0 %4374
      %4376 = vset.pattern.permute.xlu0 12
      %4377 = vperm.xlu0 %4376, %v495
      %v4378 = vpop.permute.xlu0 %4377
      %4379 = vset.pattern.permute.xlu0 12
      %4380 = vperm.xlu0 %4379, %v496
      %v4381 = vpop.permute.xlu0 %4380
      %4382 = vset.pattern.permute.xlu0 12
      %4383 = vperm.xlu0 %4382, %v497
      %v4384 = vpop.permute.xlu0 %4383
      %4385 = vset.pattern.permute.xlu0 12
      %4386 = vperm.xlu0 %4385, %v498
      %v4387 = vpop.permute.xlu0 %4386
      %4388 = vset.pattern.permute.xlu0 12
      %4389 = vperm.xlu0 %4388, %v499
      %v4390 = vpop.permute.xlu0 %4389
      %vm4391 = vcmp.eq.s32.totalorder %v805, %v4345
      %vm4392 = vcmp.eq.s32.totalorder %v806, %v4345
      %vm4393 = vcmp.eq.s32.totalorder %v805, %v4348
      %vm4394 = vcmp.eq.s32.totalorder %v806, %v4348
      %vm4395 = vcmp.eq.s32.totalorder %v805, %v4351
      %vm4396 = vcmp.eq.s32.totalorder %v806, %v4351
      %vm4397 = vcmp.eq.s32.totalorder %v805, %v4354
      %vm4398 = vcmp.eq.s32.totalorder %v806, %v4354
      %vm4399 = vcmp.eq.s32.totalorder %v805, %v4357
      %vm4400 = vcmp.eq.s32.totalorder %v806, %v4357
      %vm4401 = vcmp.eq.s32.totalorder %v805, %v4360
      %vm4402 = vcmp.eq.s32.totalorder %v806, %v4360
      %vm4403 = vcmp.eq.s32.totalorder %v805, %v4363
      %vm4404 = vcmp.eq.s32.totalorder %v806, %v4363
      %vm4405 = vcmp.eq.s32.totalorder %v805, %v4366
      %vm4406 = vcmp.eq.s32.totalorder %v806, %v4366
      %vm4407 = vcmp.eq.s32.totalorder %v805, %v4369
      %vm4408 = vcmp.eq.s32.totalorder %v806, %v4369
      %vm4409 = vcmp.eq.s32.totalorder %v805, %v4372
      %vm4410 = vcmp.eq.s32.totalorder %v806, %v4372
      %vm4411 = vcmp.eq.s32.totalorder %v805, %v4375
      %vm4412 = vcmp.eq.s32.totalorder %v806, %v4375
      %vm4413 = vcmp.eq.s32.totalorder %v805, %v4378
      %vm4414 = vcmp.eq.s32.totalorder %v806, %v4378
      %vm4415 = vcmp.eq.s32.totalorder %v805, %v4381
      %vm4416 = vcmp.eq.s32.totalorder %v806, %v4381
      %vm4417 = vcmp.eq.s32.totalorder %v805, %v4384
      %vm4418 = vcmp.eq.s32.totalorder %v806, %v4384
      %vm4419 = vcmp.eq.s32.totalorder %v805, %v4387
      %vm4420 = vcmp.eq.s32.totalorder %v806, %v4387
      %vm4421 = vcmp.eq.s32.totalorder %v805, %v4390
      %vm4422 = vcmp.eq.s32.totalorder %v806, %v4390
      %4423 = vset.pattern.permute.xlu0 12
      %4424 = vperm.xlu0 %4423, %v724
      %v4425 = vpop.permute.xlu0 %4424
      %4427 = vset.pattern.permute.xlu0 12
      %4428 = vperm.xlu0 %4427, %v725
      %v4429 = vpop.permute.xlu0 %4428
      %4431 = vset.pattern.permute.xlu0 12
      %4432 = vperm.xlu0 %4431, %v726
      %v4433 = vpop.permute.xlu0 %4432
      %4435 = vset.pattern.permute.xlu0 12
      %4436 = vperm.xlu0 %4435, %v727
      %v4437 = vpop.permute.xlu0 %4436
      %4439 = vset.pattern.permute.xlu0 12
      %4440 = vperm.xlu0 %4439, %v728
      %v4441 = vpop.permute.xlu0 %4440
      %4443 = vset.pattern.permute.xlu0 12
      %4444 = vperm.xlu0 %4443, %v729
      %v4445 = vpop.permute.xlu0 %4444
      %4447 = vset.pattern.permute.xlu0 12
      %4448 = vperm.xlu0 %4447, %v730
      %v4449 = vpop.permute.xlu0 %4448
      %4451 = vset.pattern.permute.xlu0 12
      %4452 = vperm.xlu0 %4451, %v731
      %v4453 = vpop.permute.xlu0 %4452
      %4455 = vset.pattern.permute.xlu0 12
      %4456 = vperm.xlu0 %4455, %v732
      %v4457 = vpop.permute.xlu0 %4456
      %4459 = vset.pattern.permute.xlu0 12
      %4460 = vperm.xlu0 %4459, %v733
      %v4461 = vpop.permute.xlu0 %4460
      %4463 = vset.pattern.permute.xlu0 12
      %4464 = vperm.xlu0 %4463, %v734
      %v4465 = vpop.permute.xlu0 %4464
      %4467 = vset.pattern.permute.xlu0 12
      %4468 = vperm.xlu0 %4467, %v735
      %v4469 = vpop.permute.xlu0 %4468
      %4471 = vset.pattern.permute.xlu0 12
      %4472 = vperm.xlu0 %4471, %v736
      %v4473 = vpop.permute.xlu0 %4472
      %4475 = vset.pattern.permute.xlu0 12
      %4476 = vperm.xlu0 %4475, %v737
      %v4477 = vpop.permute.xlu0 %4476
      %4479 = vset.pattern.permute.xlu0 12
      %4480 = vperm.xlu0 %4479, %v738
      %v4481 = vpop.permute.xlu0 %4480
      %4483 = vset.pattern.permute.xlu0 12
      %4484 = vperm.xlu0 %4483, %v739
      %v4485 = vpop.permute.xlu0 %4484
      %v4487 = vsel %vm4391, %v4425, 0.0
      %v4488 = vsel %vm4392, %v4425, 0.0
      %v4489 = vsel %vm4393, %v4429, 0.0
      %v4490 = vsel %vm4394, %v4429, 0.0
      %v4491 = vsel %vm4395, %v4433, 0.0
      %v4492 = vsel %vm4396, %v4433, 0.0
      %v4493 = vsel %vm4397, %v4437, 0.0
      %v4494 = vsel %vm4398, %v4437, 0.0
      %v4495 = vsel %vm4399, %v4441, 0.0
      %v4496 = vsel %vm4400, %v4441, 0.0
      %v4497 = vsel %vm4401, %v4445, 0.0
      %v4498 = vsel %vm4402, %v4445, 0.0
      %v4499 = vsel %vm4403, %v4449, 0.0
      %v4500 = vsel %vm4404, %v4449, 0.0
      %v4501 = vsel %vm4405, %v4453, 0.0
      %v4502 = vsel %vm4406, %v4453, 0.0
      %v4503 = vsel %vm4407, %v4457, 0.0
      %v4504 = vsel %vm4408, %v4457, 0.0
      %v4505 = vsel %vm4409, %v4461, 0.0
      %v4506 = vsel %vm4410, %v4461, 0.0
      %v4507 = vsel %vm4411, %v4465, 0.0
      %v4508 = vsel %vm4412, %v4465, 0.0
      %v4509 = vsel %vm4413, %v4469, 0.0
      %v4510 = vsel %vm4414, %v4469, 0.0
      %v4511 = vsel %vm4415, %v4473, 0.0
      %v4512 = vsel %vm4416, %v4473, 0.0
      %v4513 = vsel %vm4417, %v4477, 0.0
      %v4514 = vsel %vm4418, %v4477, 0.0
      %v4515 = vsel %vm4419, %v4481, 0.0
      %v4516 = vsel %vm4420, %v4481, 0.0
      %v4517 = vsel %vm4421, %v4485, 0.0
      %v4518 = vsel %vm4422, %v4485, 0.0
      %v4519 = vadd.f32 %v4311, %v4487
      %v4520 = vadd.f32 %v4312, %v4488
      %v4521 = vadd.f32 %v4313, %v4489
      %v4522 = vadd.f32 %v4314, %v4490
      %v4523 = vadd.f32 %v4315, %v4491
      %v4524 = vadd.f32 %v4316, %v4492
      %v4525 = vadd.f32 %v4317, %v4493
      %v4526 = vadd.f32 %v4318, %v4494
      %v4527 = vadd.f32 %v4319, %v4495
      %v4528 = vadd.f32 %v4320, %v4496
      %v4529 = vadd.f32 %v4321, %v4497
      %v4530 = vadd.f32 %v4322, %v4498
      %v4531 = vadd.f32 %v4323, %v4499
      %v4532 = vadd.f32 %v4324, %v4500
      %v4533 = vadd.f32 %v4325, %v4501
      %v4534 = vadd.f32 %v4326, %v4502
      %v4535 = vadd.f32 %v4327, %v4503
      %v4536 = vadd.f32 %v4328, %v4504
      %v4537 = vadd.f32 %v4329, %v4505
      %v4538 = vadd.f32 %v4330, %v4506
      %v4539 = vadd.f32 %v4331, %v4507
      %v4540 = vadd.f32 %v4332, %v4508
      %v4541 = vadd.f32 %v4333, %v4509
      %v4542 = vadd.f32 %v4334, %v4510
      %v4543 = vadd.f32 %v4335, %v4511
      %v4544 = vadd.f32 %v4336, %v4512
      %v4545 = vadd.f32 %v4337, %v4513
      %v4546 = vadd.f32 %v4338, %v4514
      %v4547 = vadd.f32 %v4339, %v4515
      %v4548 = vadd.f32 %v4340, %v4516
      %v4549 = vadd.f32 %v4341, %v4517
      %v4550 = vadd.f32 %v4342, %v4518
      %4551 = vset.pattern.permute.xlu0 12
      %4552 = vperm.xlu0 %4551, %v516
      %v4553 = vpop.permute.xlu0 %4552
      %4554 = vset.pattern.permute.xlu0 12
      %4555 = vperm.xlu0 %4554, %v517
      %v4556 = vpop.permute.xlu0 %4555
      %4557 = vset.pattern.permute.xlu0 12
      %4558 = vperm.xlu0 %4557, %v518
      %v4559 = vpop.permute.xlu0 %4558
      %4560 = vset.pattern.permute.xlu0 12
      %4561 = vperm.xlu0 %4560, %v519
      %v4562 = vpop.permute.xlu0 %4561
      %4563 = vset.pattern.permute.xlu0 12
      %4564 = vperm.xlu0 %4563, %v520
      %v4565 = vpop.permute.xlu0 %4564
      %4566 = vset.pattern.permute.xlu0 12
      %4567 = vperm.xlu0 %4566, %v521
      %v4568 = vpop.permute.xlu0 %4567
      %4569 = vset.pattern.permute.xlu0 12
      %4570 = vperm.xlu0 %4569, %v522
      %v4571 = vpop.permute.xlu0 %4570
      %4572 = vset.pattern.permute.xlu0 12
      %4573 = vperm.xlu0 %4572, %v523
      %v4574 = vpop.permute.xlu0 %4573
      %4575 = vset.pattern.permute.xlu0 12
      %4576 = vperm.xlu0 %4575, %v524
      %v4577 = vpop.permute.xlu0 %4576
      %4578 = vset.pattern.permute.xlu0 12
      %4579 = vperm.xlu0 %4578, %v525
      %v4580 = vpop.permute.xlu0 %4579
      %4581 = vset.pattern.permute.xlu0 12
      %4582 = vperm.xlu0 %4581, %v526
      %v4583 = vpop.permute.xlu0 %4582
      %4584 = vset.pattern.permute.xlu0 12
      %4585 = vperm.xlu0 %4584, %v527
      %v4586 = vpop.permute.xlu0 %4585
      %4587 = vset.pattern.permute.xlu0 12
      %4588 = vperm.xlu0 %4587, %v528
      %v4589 = vpop.permute.xlu0 %4588
      %4590 = vset.pattern.permute.xlu0 12
      %4591 = vperm.xlu0 %4590, %v529
      %v4592 = vpop.permute.xlu0 %4591
      %4593 = vset.pattern.permute.xlu0 12
      %4594 = vperm.xlu0 %4593, %v530
      %v4595 = vpop.permute.xlu0 %4594
      %4596 = vset.pattern.permute.xlu0 12
      %4597 = vperm.xlu0 %4596, %v531
      %v4598 = vpop.permute.xlu0 %4597
      %vm4599 = vcmp.eq.s32.totalorder %v805, %v4553
      %vm4600 = vcmp.eq.s32.totalorder %v806, %v4553
      %vm4601 = vcmp.eq.s32.totalorder %v805, %v4556
      %vm4602 = vcmp.eq.s32.totalorder %v806, %v4556
      %vm4603 = vcmp.eq.s32.totalorder %v805, %v4559
      %vm4604 = vcmp.eq.s32.totalorder %v806, %v4559
      %vm4605 = vcmp.eq.s32.totalorder %v805, %v4562
      %vm4606 = vcmp.eq.s32.totalorder %v806, %v4562
      %vm4607 = vcmp.eq.s32.totalorder %v805, %v4565
      %vm4608 = vcmp.eq.s32.totalorder %v806, %v4565
      %vm4609 = vcmp.eq.s32.totalorder %v805, %v4568
      %vm4610 = vcmp.eq.s32.totalorder %v806, %v4568
      %vm4611 = vcmp.eq.s32.totalorder %v805, %v4571
      %vm4612 = vcmp.eq.s32.totalorder %v806, %v4571
      %vm4613 = vcmp.eq.s32.totalorder %v805, %v4574
      %vm4614 = vcmp.eq.s32.totalorder %v806, %v4574
      %vm4615 = vcmp.eq.s32.totalorder %v805, %v4577
      %vm4616 = vcmp.eq.s32.totalorder %v806, %v4577
      %vm4617 = vcmp.eq.s32.totalorder %v805, %v4580
      %vm4618 = vcmp.eq.s32.totalorder %v806, %v4580
      %vm4619 = vcmp.eq.s32.totalorder %v805, %v4583
      %vm4620 = vcmp.eq.s32.totalorder %v806, %v4583
      %vm4621 = vcmp.eq.s32.totalorder %v805, %v4586
      %vm4622 = vcmp.eq.s32.totalorder %v806, %v4586
      %vm4623 = vcmp.eq.s32.totalorder %v805, %v4589
      %vm4624 = vcmp.eq.s32.totalorder %v806, %v4589
      %vm4625 = vcmp.eq.s32.totalorder %v805, %v4592
      %vm4626 = vcmp.eq.s32.totalorder %v806, %v4592
      %vm4627 = vcmp.eq.s32.totalorder %v805, %v4595
      %vm4628 = vcmp.eq.s32.totalorder %v806, %v4595
      %vm4629 = vcmp.eq.s32.totalorder %v805, %v4598
      %vm4630 = vcmp.eq.s32.totalorder %v806, %v4598
      %4631 = vset.pattern.permute.xlu0 12
      %4632 = vperm.xlu0 %4631, %v756
      %v4633 = vpop.permute.xlu0 %4632
      %4635 = vset.pattern.permute.xlu0 12
      %4636 = vperm.xlu0 %4635, %v757
      %v4637 = vpop.permute.xlu0 %4636
      %4639 = vset.pattern.permute.xlu0 12
      %4640 = vperm.xlu0 %4639, %v758
      %v4641 = vpop.permute.xlu0 %4640
      %4643 = vset.pattern.permute.xlu0 12
      %4644 = vperm.xlu0 %4643, %v759
      %v4645 = vpop.permute.xlu0 %4644
      %4647 = vset.pattern.permute.xlu0 12
      %4648 = vperm.xlu0 %4647, %v760
      %v4649 = vpop.permute.xlu0 %4648
      %4651 = vset.pattern.permute.xlu0 12
      %4652 = vperm.xlu0 %4651, %v761
      %v4653 = vpop.permute.xlu0 %4652
      %4655 = vset.pattern.permute.xlu0 12
      %4656 = vperm.xlu0 %4655, %v762
      %v4657 = vpop.permute.xlu0 %4656
      %4659 = vset.pattern.permute.xlu0 12
      %4660 = vperm.xlu0 %4659, %v763
      %v4661 = vpop.permute.xlu0 %4660
      %4663 = vset.pattern.permute.xlu0 12
      %4664 = vperm.xlu0 %4663, %v764
      %v4665 = vpop.permute.xlu0 %4664
      %4667 = vset.pattern.permute.xlu0 12
      %4668 = vperm.xlu0 %4667, %v765
      %v4669 = vpop.permute.xlu0 %4668
      %4671 = vset.pattern.permute.xlu0 12
      %4672 = vperm.xlu0 %4671, %v766
      %v4673 = vpop.permute.xlu0 %4672
      %4675 = vset.pattern.permute.xlu0 12
      %4676 = vperm.xlu0 %4675, %v767
      %v4677 = vpop.permute.xlu0 %4676
      %4679 = vset.pattern.permute.xlu0 12
      %4680 = vperm.xlu0 %4679, %v768
      %v4681 = vpop.permute.xlu0 %4680
      %4683 = vset.pattern.permute.xlu0 12
      %4684 = vperm.xlu0 %4683, %v769
      %v4685 = vpop.permute.xlu0 %4684
      %4687 = vset.pattern.permute.xlu0 12
      %4688 = vperm.xlu0 %4687, %v770
      %v4689 = vpop.permute.xlu0 %4688
      %4691 = vset.pattern.permute.xlu0 12
      %4692 = vperm.xlu0 %4691, %v771
      %v4693 = vpop.permute.xlu0 %4692
      %v4695 = vsel %vm4599, %v4633, 0.0
      %v4696 = vsel %vm4600, %v4633, 0.0
      %v4697 = vsel %vm4601, %v4637, 0.0
      %v4698 = vsel %vm4602, %v4637, 0.0
      %v4699 = vsel %vm4603, %v4641, 0.0
      %v4700 = vsel %vm4604, %v4641, 0.0
      %v4701 = vsel %vm4605, %v4645, 0.0
      %v4702 = vsel %vm4606, %v4645, 0.0
      %v4703 = vsel %vm4607, %v4649, 0.0
      %v4704 = vsel %vm4608, %v4649, 0.0
      %v4705 = vsel %vm4609, %v4653, 0.0
      %v4706 = vsel %vm4610, %v4653, 0.0
      %v4707 = vsel %vm4611, %v4657, 0.0
      %v4708 = vsel %vm4612, %v4657, 0.0
      %v4709 = vsel %vm4613, %v4661, 0.0
      %v4710 = vsel %vm4614, %v4661, 0.0
      %v4711 = vsel %vm4615, %v4665, 0.0
      %v4712 = vsel %vm4616, %v4665, 0.0
      %v4713 = vsel %vm4617, %v4669, 0.0
      %v4714 = vsel %vm4618, %v4669, 0.0
      %v4715 = vsel %vm4619, %v4673, 0.0
      %v4716 = vsel %vm4620, %v4673, 0.0
      %v4717 = vsel %vm4621, %v4677, 0.0
      %v4718 = vsel %vm4622, %v4677, 0.0
      %v4719 = vsel %vm4623, %v4681, 0.0
      %v4720 = vsel %vm4624, %v4681, 0.0
      %v4721 = vsel %vm4625, %v4685, 0.0
      %v4722 = vsel %vm4626, %v4685, 0.0
      %v4723 = vsel %vm4627, %v4689, 0.0
      %v4724 = vsel %vm4628, %v4689, 0.0
      %v4725 = vsel %vm4629, %v4693, 0.0
      %v4726 = vsel %vm4630, %v4693, 0.0
      %v4727 = vadd.f32 %v4519, %v4695
      %v4728 = vadd.f32 %v4520, %v4696
      %v4729 = vadd.f32 %v4521, %v4697
      %v4730 = vadd.f32 %v4522, %v4698
      %v4731 = vadd.f32 %v4523, %v4699
      %v4732 = vadd.f32 %v4524, %v4700
      %v4733 = vadd.f32 %v4525, %v4701
      %v4734 = vadd.f32 %v4526, %v4702
      %v4735 = vadd.f32 %v4527, %v4703
      %v4736 = vadd.f32 %v4528, %v4704
      %v4737 = vadd.f32 %v4529, %v4705
      %v4738 = vadd.f32 %v4530, %v4706
      %v4739 = vadd.f32 %v4531, %v4707
      %v4740 = vadd.f32 %v4532, %v4708
      %v4741 = vadd.f32 %v4533, %v4709
      %v4742 = vadd.f32 %v4534, %v4710
      %v4743 = vadd.f32 %v4535, %v4711
      %v4744 = vadd.f32 %v4536, %v4712
      %v4745 = vadd.f32 %v4537, %v4713
      %v4746 = vadd.f32 %v4538, %v4714
      %v4747 = vadd.f32 %v4539, %v4715
      %v4748 = vadd.f32 %v4540, %v4716
      %v4749 = vadd.f32 %v4541, %v4717
      %v4750 = vadd.f32 %v4542, %v4718
      %v4751 = vadd.f32 %v4543, %v4719
      %v4752 = vadd.f32 %v4544, %v4720
      %v4753 = vadd.f32 %v4545, %v4721
      %v4754 = vadd.f32 %v4546, %v4722
      %v4755 = vadd.f32 %v4547, %v4723
      %v4756 = vadd.f32 %v4548, %v4724
      %v4757 = vadd.f32 %v4549, %v4725
      %v4758 = vadd.f32 %v4550, %v4726
      %4759 = vset.pattern.permute.xlu0 12
      %4760 = vperm.xlu0 %4759, %v532
      %v4761 = vpop.permute.xlu0 %4760
      %4762 = vset.pattern.permute.xlu0 12
      %4763 = vperm.xlu0 %4762, %v533
      %v4764 = vpop.permute.xlu0 %4763
      %4765 = vset.pattern.permute.xlu0 12
      %4766 = vperm.xlu0 %4765, %v534
      %v4767 = vpop.permute.xlu0 %4766
      %4768 = vset.pattern.permute.xlu0 12
      %4769 = vperm.xlu0 %4768, %v535
      %v4770 = vpop.permute.xlu0 %4769
      %4771 = vset.pattern.permute.xlu0 12
      %4772 = vperm.xlu0 %4771, %v536
      %v4773 = vpop.permute.xlu0 %4772
      %4774 = vset.pattern.permute.xlu0 12
      %4775 = vperm.xlu0 %4774, %v537
      %v4776 = vpop.permute.xlu0 %4775
      %4777 = vset.pattern.permute.xlu0 12
      %4778 = vperm.xlu0 %4777, %v538
      %v4779 = vpop.permute.xlu0 %4778
      %4780 = vset.pattern.permute.xlu0 12
      %4781 = vperm.xlu0 %4780, %v539
      %v4782 = vpop.permute.xlu0 %4781
      %4783 = vset.pattern.permute.xlu0 12
      %4784 = vperm.xlu0 %4783, %v540
      %v4785 = vpop.permute.xlu0 %4784
      %4786 = vset.pattern.permute.xlu0 12
      %4787 = vperm.xlu0 %4786, %v541
      %v4788 = vpop.permute.xlu0 %4787
      %4789 = vset.pattern.permute.xlu0 12
      %4790 = vperm.xlu0 %4789, %v542
      %v4791 = vpop.permute.xlu0 %4790
      %4792 = vset.pattern.permute.xlu0 12
      %4793 = vperm.xlu0 %4792, %v543
      %v4794 = vpop.permute.xlu0 %4793
      %4795 = vset.pattern.permute.xlu0 12
      %4796 = vperm.xlu0 %4795, %v544
      %v4797 = vpop.permute.xlu0 %4796
      %4798 = vset.pattern.permute.xlu0 12
      %4799 = vperm.xlu0 %4798, %v545
      %v4800 = vpop.permute.xlu0 %4799
      %4801 = vset.pattern.permute.xlu0 12
      %4802 = vperm.xlu0 %4801, %v546
      %v4803 = vpop.permute.xlu0 %4802
      %4804 = vset.pattern.permute.xlu0 12
      %4805 = vperm.xlu0 %4804, %v547
      %v4806 = vpop.permute.xlu0 %4805
      %vm4807 = vcmp.eq.s32.totalorder %v805, %v4761
      %vm4808 = vcmp.eq.s32.totalorder %v806, %v4761
      %vm4809 = vcmp.eq.s32.totalorder %v805, %v4764
      %vm4810 = vcmp.eq.s32.totalorder %v806, %v4764
      %vm4811 = vcmp.eq.s32.totalorder %v805, %v4767
      %vm4812 = vcmp.eq.s32.totalorder %v806, %v4767
      %vm4813 = vcmp.eq.s32.totalorder %v805, %v4770
      %vm4814 = vcmp.eq.s32.totalorder %v806, %v4770
      %vm4815 = vcmp.eq.s32.totalorder %v805, %v4773
      %vm4816 = vcmp.eq.s32.totalorder %v806, %v4773
      %vm4817 = vcmp.eq.s32.totalorder %v805, %v4776
      %vm4818 = vcmp.eq.s32.totalorder %v806, %v4776
      %vm4819 = vcmp.eq.s32.totalorder %v805, %v4779
      %vm4820 = vcmp.eq.s32.totalorder %v806, %v4779
      %vm4821 = vcmp.eq.s32.totalorder %v805, %v4782
      %vm4822 = vcmp.eq.s32.totalorder %v806, %v4782
      %vm4823 = vcmp.eq.s32.totalorder %v805, %v4785
      %vm4824 = vcmp.eq.s32.totalorder %v806, %v4785
      %vm4825 = vcmp.eq.s32.totalorder %v805, %v4788
      %vm4826 = vcmp.eq.s32.totalorder %v806, %v4788
      %vm4827 = vcmp.eq.s32.totalorder %v805, %v4791
      %vm4828 = vcmp.eq.s32.totalorder %v806, %v4791
      %vm4829 = vcmp.eq.s32.totalorder %v805, %v4794
      %vm4830 = vcmp.eq.s32.totalorder %v806, %v4794
      %vm4831 = vcmp.eq.s32.totalorder %v805, %v4797
      %vm4832 = vcmp.eq.s32.totalorder %v806, %v4797
      %vm4833 = vcmp.eq.s32.totalorder %v805, %v4800
      %vm4834 = vcmp.eq.s32.totalorder %v806, %v4800
      %vm4835 = vcmp.eq.s32.totalorder %v805, %v4803
      %vm4836 = vcmp.eq.s32.totalorder %v806, %v4803
      %vm4837 = vcmp.eq.s32.totalorder %v805, %v4806
      %vm4838 = vcmp.eq.s32.totalorder %v806, %v4806
      %4839 = vset.pattern.permute.xlu0 12
      %4840 = vperm.xlu0 %4839, %v788
      %v4841 = vpop.permute.xlu0 %4840
      %4843 = vset.pattern.permute.xlu0 12
      %4844 = vperm.xlu0 %4843, %v789
      %v4845 = vpop.permute.xlu0 %4844
      %4847 = vset.pattern.permute.xlu0 12
      %4848 = vperm.xlu0 %4847, %v790
      %v4849 = vpop.permute.xlu0 %4848
      %4851 = vset.pattern.permute.xlu0 12
      %4852 = vperm.xlu0 %4851, %v791
      %v4853 = vpop.permute.xlu0 %4852
      %4855 = vset.pattern.permute.xlu0 12
      %4856 = vperm.xlu0 %4855, %v792
      %v4857 = vpop.permute.xlu0 %4856
      %4859 = vset.pattern.permute.xlu0 12
      %4860 = vperm.xlu0 %4859, %v793
      %v4861 = vpop.permute.xlu0 %4860
      %4863 = vset.pattern.permute.xlu0 12
      %4864 = vperm.xlu0 %4863, %v794
      %v4865 = vpop.permute.xlu0 %4864
      %4867 = vset.pattern.permute.xlu0 12
      %4868 = vperm.xlu0 %4867, %v795
      %v4869 = vpop.permute.xlu0 %4868
      %4871 = vset.pattern.permute.xlu0 12
      %4872 = vperm.xlu0 %4871, %v796
      %v4873 = vpop.permute.xlu0 %4872
      %4875 = vset.pattern.permute.xlu0 12
      %4876 = vperm.xlu0 %4875, %v797
      %v4877 = vpop.permute.xlu0 %4876
      %4879 = vset.pattern.permute.xlu0 12
      %4880 = vperm.xlu0 %4879, %v798
      %v4881 = vpop.permute.xlu0 %4880
      %4883 = vset.pattern.permute.xlu0 12
      %4884 = vperm.xlu0 %4883, %v799
      %v4885 = vpop.permute.xlu0 %4884
      %4887 = vset.pattern.permute.xlu0 12
      %4888 = vperm.xlu0 %4887, %v800
      %v4889 = vpop.permute.xlu0 %4888
      %4891 = vset.pattern.permute.xlu0 12
      %4892 = vperm.xlu0 %4891, %v801
      %v4893 = vpop.permute.xlu0 %4892
      %4895 = vset.pattern.permute.xlu0 12
      %4896 = vperm.xlu0 %4895, %v802
      %v4897 = vpop.permute.xlu0 %4896
      %4899 = vset.pattern.permute.xlu0 12
      %4900 = vperm.xlu0 %4899, %v803
      %v4901 = vpop.permute.xlu0 %4900
      %v4903 = vsel %vm4807, %v4841, 0.0
      %v4904 = vsel %vm4808, %v4841, 0.0
      %v4905 = vsel %vm4809, %v4845, 0.0
      %v4906 = vsel %vm4810, %v4845, 0.0
      %v4907 = vsel %vm4811, %v4849, 0.0
      %v4908 = vsel %vm4812, %v4849, 0.0
      %v4909 = vsel %vm4813, %v4853, 0.0
      %v4910 = vsel %vm4814, %v4853, 0.0
      %v4911 = vsel %vm4815, %v4857, 0.0
      %v4912 = vsel %vm4816, %v4857, 0.0
      %v4913 = vsel %vm4817, %v4861, 0.0
      %v4914 = vsel %vm4818, %v4861, 0.0
      %v4915 = vsel %vm4819, %v4865, 0.0
      %v4916 = vsel %vm4820, %v4865, 0.0
      %v4917 = vsel %vm4821, %v4869, 0.0
      %v4918 = vsel %vm4822, %v4869, 0.0
      %v4919 = vsel %vm4823, %v4873, 0.0
      %v4920 = vsel %vm4824, %v4873, 0.0
      %v4921 = vsel %vm4825, %v4877, 0.0
      %v4922 = vsel %vm4826, %v4877, 0.0
      %v4923 = vsel %vm4827, %v4881, 0.0
      %v4924 = vsel %vm4828, %v4881, 0.0
      %v4925 = vsel %vm4829, %v4885, 0.0
      %v4926 = vsel %vm4830, %v4885, 0.0
      %v4927 = vsel %vm4831, %v4889, 0.0
      %v4928 = vsel %vm4832, %v4889, 0.0
      %v4929 = vsel %vm4833, %v4893, 0.0
      %v4930 = vsel %vm4834, %v4893, 0.0
      %v4931 = vsel %vm4835, %v4897, 0.0
      %v4932 = vsel %vm4836, %v4897, 0.0
      %v4933 = vsel %vm4837, %v4901, 0.0
      %v4934 = vsel %vm4838, %v4901, 0.0
      %v4935 = vadd.f32 %v4727, %v4903
      %v4936 = vadd.f32 %v4728, %v4904
      %v4937 = vadd.f32 %v4729, %v4905
      %v4938 = vadd.f32 %v4730, %v4906
      %v4939 = vadd.f32 %v4731, %v4907
      %v4940 = vadd.f32 %v4732, %v4908
      %v4941 = vadd.f32 %v4733, %v4909
      %v4942 = vadd.f32 %v4734, %v4910
      %v4943 = vadd.f32 %v4735, %v4911
      %v4944 = vadd.f32 %v4736, %v4912
      %v4945 = vadd.f32 %v4737, %v4913
      %v4946 = vadd.f32 %v4738, %v4914
      %v4947 = vadd.f32 %v4739, %v4915
      %v4948 = vadd.f32 %v4740, %v4916
      %v4949 = vadd.f32 %v4741, %v4917
      %v4950 = vadd.f32 %v4742, %v4918
      %v4951 = vadd.f32 %v4743, %v4919
      %v4952 = vadd.f32 %v4744, %v4920
      %v4953 = vadd.f32 %v4745, %v4921
      %v4954 = vadd.f32 %v4746, %v4922
      %v4955 = vadd.f32 %v4747, %v4923
      %v4956 = vadd.f32 %v4748, %v4924
      %v4957 = vadd.f32 %v4749, %v4925
      %v4958 = vadd.f32 %v4750, %v4926
      %v4959 = vadd.f32 %v4751, %v4927
      %v4960 = vadd.f32 %v4752, %v4928
      %v4961 = vadd.f32 %v4753, %v4929
      %v4962 = vadd.f32 %v4754, %v4930
      %v4963 = vadd.f32 %v4755, %v4931
      %v4964 = vadd.f32 %v4756, %v4932
      %v4965 = vadd.f32 %v4757, %v4933
      %v4966 = vadd.f32 %v4758, %v4934
      %v4967 = vadd.f32 %v4135, %v4935
      %v4968 = vadd.f32 %v4136, %v4936
      %v4969 = vadd.f32 %v4137, %v4937
      %v4970 = vadd.f32 %v4138, %v4938
      %v4971 = vadd.f32 %v4139, %v4939
      %v4972 = vadd.f32 %v4140, %v4940
      %v4973 = vadd.f32 %v4141, %v4941
      %v4974 = vadd.f32 %v4142, %v4942
      %v4975 = vadd.f32 %v4143, %v4943
      %v4976 = vadd.f32 %v4144, %v4944
      %v4977 = vadd.f32 %v4145, %v4945
      %v4978 = vadd.f32 %v4146, %v4946
      %v4979 = vadd.f32 %v4147, %v4947
      %v4980 = vadd.f32 %v4148, %v4948
      %v4981 = vadd.f32 %v4149, %v4949
      %v4982 = vadd.f32 %v4150, %v4950
      %v4983 = vadd.f32 %v4151, %v4951
      %v4984 = vadd.f32 %v4152, %v4952
      %v4985 = vadd.f32 %v4153, %v4953
      %v4986 = vadd.f32 %v4154, %v4954
      %v4987 = vadd.f32 %v4155, %v4955
      %v4988 = vadd.f32 %v4156, %v4956
      %v4989 = vadd.f32 %v4157, %v4957
      %v4990 = vadd.f32 %v4158, %v4958
      %v4991 = vadd.f32 %v4159, %v4959
      %v4992 = vadd.f32 %v4160, %v4960
      %v4993 = vadd.f32 %v4161, %v4961
      %v4994 = vadd.f32 %v4162, %v4962
      %v4995 = vadd.f32 %v4163, %v4963
      %v4996 = vadd.f32 %v4164, %v4964
      %v4997 = vadd.f32 %v4165, %v4965
      %v4998 = vadd.f32 %v4166, %v4966
      %4999 = vset.pattern.permute.xlu0 13
      %5000 = vperm.xlu0 %4999, %v436
      %v5001 = vpop.permute.xlu0 %5000
      %5002 = vset.pattern.permute.xlu0 13
      %5003 = vperm.xlu0 %5002, %v437
      %v5004 = vpop.permute.xlu0 %5003
      %5005 = vset.pattern.permute.xlu0 13
      %5006 = vperm.xlu0 %5005, %v438
      %v5007 = vpop.permute.xlu0 %5006
      %5008 = vset.pattern.permute.xlu0 13
      %5009 = vperm.xlu0 %5008, %v439
      %v5010 = vpop.permute.xlu0 %5009
      %5011 = vset.pattern.permute.xlu0 13
      %5012 = vperm.xlu0 %5011, %v440
      %v5013 = vpop.permute.xlu0 %5012
      %5014 = vset.pattern.permute.xlu0 13
      %5015 = vperm.xlu0 %5014, %v441
      %v5016 = vpop.permute.xlu0 %5015
      %5017 = vset.pattern.permute.xlu0 13
      %5018 = vperm.xlu0 %5017, %v442
      %v5019 = vpop.permute.xlu0 %5018
      %5020 = vset.pattern.permute.xlu0 13
      %5021 = vperm.xlu0 %5020, %v443
      %v5022 = vpop.permute.xlu0 %5021
      %5023 = vset.pattern.permute.xlu0 13
      %5024 = vperm.xlu0 %5023, %v444
      %v5025 = vpop.permute.xlu0 %5024
      %5026 = vset.pattern.permute.xlu0 13
      %5027 = vperm.xlu0 %5026, %v445
      %v5028 = vpop.permute.xlu0 %5027
      %5029 = vset.pattern.permute.xlu0 13
      %5030 = vperm.xlu0 %5029, %v446
      %v5031 = vpop.permute.xlu0 %5030
      %5032 = vset.pattern.permute.xlu0 13
      %5033 = vperm.xlu0 %5032, %v447
      %v5034 = vpop.permute.xlu0 %5033
      %5035 = vset.pattern.permute.xlu0 13
      %5036 = vperm.xlu0 %5035, %v448
      %v5037 = vpop.permute.xlu0 %5036
      %5038 = vset.pattern.permute.xlu0 13
      %5039 = vperm.xlu0 %5038, %v449
      %v5040 = vpop.permute.xlu0 %5039
      %5041 = vset.pattern.permute.xlu0 13
      %5042 = vperm.xlu0 %5041, %v450
      %v5043 = vpop.permute.xlu0 %5042
      %5044 = vset.pattern.permute.xlu0 13
      %5045 = vperm.xlu0 %5044, %v451
      %v5046 = vpop.permute.xlu0 %5045
      %vm5047 = vcmp.eq.s32.totalorder %v805, %v5001
      %vm5048 = vcmp.eq.s32.totalorder %v806, %v5001
      %vm5049 = vcmp.eq.s32.totalorder %v805, %v5004
      %vm5050 = vcmp.eq.s32.totalorder %v806, %v5004
      %vm5051 = vcmp.eq.s32.totalorder %v805, %v5007
      %vm5052 = vcmp.eq.s32.totalorder %v806, %v5007
      %vm5053 = vcmp.eq.s32.totalorder %v805, %v5010
      %vm5054 = vcmp.eq.s32.totalorder %v806, %v5010
      %vm5055 = vcmp.eq.s32.totalorder %v805, %v5013
      %vm5056 = vcmp.eq.s32.totalorder %v806, %v5013
      %vm5057 = vcmp.eq.s32.totalorder %v805, %v5016
      %vm5058 = vcmp.eq.s32.totalorder %v806, %v5016
      %vm5059 = vcmp.eq.s32.totalorder %v805, %v5019
      %vm5060 = vcmp.eq.s32.totalorder %v806, %v5019
      %vm5061 = vcmp.eq.s32.totalorder %v805, %v5022
      %vm5062 = vcmp.eq.s32.totalorder %v806, %v5022
      %vm5063 = vcmp.eq.s32.totalorder %v805, %v5025
      %vm5064 = vcmp.eq.s32.totalorder %v806, %v5025
      %vm5065 = vcmp.eq.s32.totalorder %v805, %v5028
      %vm5066 = vcmp.eq.s32.totalorder %v806, %v5028
      %vm5067 = vcmp.eq.s32.totalorder %v805, %v5031
      %vm5068 = vcmp.eq.s32.totalorder %v806, %v5031
      %vm5069 = vcmp.eq.s32.totalorder %v805, %v5034
      %vm5070 = vcmp.eq.s32.totalorder %v806, %v5034
      %vm5071 = vcmp.eq.s32.totalorder %v805, %v5037
      %vm5072 = vcmp.eq.s32.totalorder %v806, %v5037
      %vm5073 = vcmp.eq.s32.totalorder %v805, %v5040
      %vm5074 = vcmp.eq.s32.totalorder %v806, %v5040
      %vm5075 = vcmp.eq.s32.totalorder %v805, %v5043
      %vm5076 = vcmp.eq.s32.totalorder %v806, %v5043
      %vm5077 = vcmp.eq.s32.totalorder %v805, %v5046
      %vm5078 = vcmp.eq.s32.totalorder %v806, %v5046
      %5079 = vset.pattern.permute.xlu0 13
      %5080 = vperm.xlu0 %5079, %v628
      %v5081 = vpop.permute.xlu0 %5080
      %5083 = vset.pattern.permute.xlu0 13
      %5084 = vperm.xlu0 %5083, %v629
      %v5085 = vpop.permute.xlu0 %5084
      %5087 = vset.pattern.permute.xlu0 13
      %5088 = vperm.xlu0 %5087, %v630
      %v5089 = vpop.permute.xlu0 %5088
      %5091 = vset.pattern.permute.xlu0 13
      %5092 = vperm.xlu0 %5091, %v631
      %v5093 = vpop.permute.xlu0 %5092
      %5095 = vset.pattern.permute.xlu0 13
      %5096 = vperm.xlu0 %5095, %v632
      %v5097 = vpop.permute.xlu0 %5096
      %5099 = vset.pattern.permute.xlu0 13
      %5100 = vperm.xlu0 %5099, %v633
      %v5101 = vpop.permute.xlu0 %5100
      %5103 = vset.pattern.permute.xlu0 13
      %5104 = vperm.xlu0 %5103, %v634
      %v5105 = vpop.permute.xlu0 %5104
      %5107 = vset.pattern.permute.xlu0 13
      %5108 = vperm.xlu0 %5107, %v635
      %v5109 = vpop.permute.xlu0 %5108
      %5111 = vset.pattern.permute.xlu0 13
      %5112 = vperm.xlu0 %5111, %v636
      %v5113 = vpop.permute.xlu0 %5112
      %5115 = vset.pattern.permute.xlu0 13
      %5116 = vperm.xlu0 %5115, %v637
      %v5117 = vpop.permute.xlu0 %5116
      %5119 = vset.pattern.permute.xlu0 13
      %5120 = vperm.xlu0 %5119, %v638
      %v5121 = vpop.permute.xlu0 %5120
      %5123 = vset.pattern.permute.xlu0 13
      %5124 = vperm.xlu0 %5123, %v639
      %v5125 = vpop.permute.xlu0 %5124
      %5127 = vset.pattern.permute.xlu0 13
      %5128 = vperm.xlu0 %5127, %v640
      %v5129 = vpop.permute.xlu0 %5128
      %5131 = vset.pattern.permute.xlu0 13
      %5132 = vperm.xlu0 %5131, %v641
      %v5133 = vpop.permute.xlu0 %5132
      %5135 = vset.pattern.permute.xlu0 13
      %5136 = vperm.xlu0 %5135, %v642
      %v5137 = vpop.permute.xlu0 %5136
      %5139 = vset.pattern.permute.xlu0 13
      %5140 = vperm.xlu0 %5139, %v643
      %v5141 = vpop.permute.xlu0 %5140
      %v5143 = vsel %vm5047, %v5081, 0.0
      %v5144 = vsel %vm5048, %v5081, 0.0
      %v5145 = vsel %vm5049, %v5085, 0.0
      %v5146 = vsel %vm5050, %v5085, 0.0
      %v5147 = vsel %vm5051, %v5089, 0.0
      %v5148 = vsel %vm5052, %v5089, 0.0
      %v5149 = vsel %vm5053, %v5093, 0.0
      %v5150 = vsel %vm5054, %v5093, 0.0
      %v5151 = vsel %vm5055, %v5097, 0.0
      %v5152 = vsel %vm5056, %v5097, 0.0
      %v5153 = vsel %vm5057, %v5101, 0.0
      %v5154 = vsel %vm5058, %v5101, 0.0
      %v5155 = vsel %vm5059, %v5105, 0.0
      %v5156 = vsel %vm5060, %v5105, 0.0
      %v5157 = vsel %vm5061, %v5109, 0.0
      %v5158 = vsel %vm5062, %v5109, 0.0
      %v5159 = vsel %vm5063, %v5113, 0.0
      %v5160 = vsel %vm5064, %v5113, 0.0
      %v5161 = vsel %vm5065, %v5117, 0.0
      %v5162 = vsel %vm5066, %v5117, 0.0
      %v5163 = vsel %vm5067, %v5121, 0.0
      %v5164 = vsel %vm5068, %v5121, 0.0
      %v5165 = vsel %vm5069, %v5125, 0.0
      %v5166 = vsel %vm5070, %v5125, 0.0
      %v5167 = vsel %vm5071, %v5129, 0.0
      %v5168 = vsel %vm5072, %v5129, 0.0
      %v5169 = vsel %vm5073, %v5133, 0.0
      %v5170 = vsel %vm5074, %v5133, 0.0
      %v5171 = vsel %vm5075, %v5137, 0.0
      %v5172 = vsel %vm5076, %v5137, 0.0
      %v5173 = vsel %vm5077, %v5141, 0.0
      %v5174 = vsel %vm5078, %v5141, 0.0
      %5175 = vset.pattern.permute.xlu0 13
      %5176 = vperm.xlu0 %5175, %v484
      %v5177 = vpop.permute.xlu0 %5176
      %5178 = vset.pattern.permute.xlu0 13
      %5179 = vperm.xlu0 %5178, %v485
      %v5180 = vpop.permute.xlu0 %5179
      %5181 = vset.pattern.permute.xlu0 13
      %5182 = vperm.xlu0 %5181, %v486
      %v5183 = vpop.permute.xlu0 %5182
      %5184 = vset.pattern.permute.xlu0 13
      %5185 = vperm.xlu0 %5184, %v487
      %v5186 = vpop.permute.xlu0 %5185
      %5187 = vset.pattern.permute.xlu0 13
      %5188 = vperm.xlu0 %5187, %v488
      %v5189 = vpop.permute.xlu0 %5188
      %5190 = vset.pattern.permute.xlu0 13
      %5191 = vperm.xlu0 %5190, %v489
      %v5192 = vpop.permute.xlu0 %5191
      %5193 = vset.pattern.permute.xlu0 13
      %5194 = vperm.xlu0 %5193, %v490
      %v5195 = vpop.permute.xlu0 %5194
      %5196 = vset.pattern.permute.xlu0 13
      %5197 = vperm.xlu0 %5196, %v491
      %v5198 = vpop.permute.xlu0 %5197
      %5199 = vset.pattern.permute.xlu0 13
      %5200 = vperm.xlu0 %5199, %v492
      %v5201 = vpop.permute.xlu0 %5200
      %5202 = vset.pattern.permute.xlu0 13
      %5203 = vperm.xlu0 %5202, %v493
      %v5204 = vpop.permute.xlu0 %5203
      %5205 = vset.pattern.permute.xlu0 13
      %5206 = vperm.xlu0 %5205, %v494
      %v5207 = vpop.permute.xlu0 %5206
      %5208 = vset.pattern.permute.xlu0 13
      %5209 = vperm.xlu0 %5208, %v495
      %v5210 = vpop.permute.xlu0 %5209
      %5211 = vset.pattern.permute.xlu0 13
      %5212 = vperm.xlu0 %5211, %v496
      %v5213 = vpop.permute.xlu0 %5212
      %5214 = vset.pattern.permute.xlu0 13
      %5215 = vperm.xlu0 %5214, %v497
      %v5216 = vpop.permute.xlu0 %5215
      %5217 = vset.pattern.permute.xlu0 13
      %5218 = vperm.xlu0 %5217, %v498
      %v5219 = vpop.permute.xlu0 %5218
      %5220 = vset.pattern.permute.xlu0 13
      %5221 = vperm.xlu0 %5220, %v499
      %v5222 = vpop.permute.xlu0 %5221
      %vm5223 = vcmp.eq.s32.totalorder %v805, %v5177
      %vm5224 = vcmp.eq.s32.totalorder %v806, %v5177
      %vm5225 = vcmp.eq.s32.totalorder %v805, %v5180
      %vm5226 = vcmp.eq.s32.totalorder %v806, %v5180
      %vm5227 = vcmp.eq.s32.totalorder %v805, %v5183
      %vm5228 = vcmp.eq.s32.totalorder %v806, %v5183
      %vm5229 = vcmp.eq.s32.totalorder %v805, %v5186
      %vm5230 = vcmp.eq.s32.totalorder %v806, %v5186
      %vm5231 = vcmp.eq.s32.totalorder %v805, %v5189
      %vm5232 = vcmp.eq.s32.totalorder %v806, %v5189
      %vm5233 = vcmp.eq.s32.totalorder %v805, %v5192
      %vm5234 = vcmp.eq.s32.totalorder %v806, %v5192
      %vm5235 = vcmp.eq.s32.totalorder %v805, %v5195
      %vm5236 = vcmp.eq.s32.totalorder %v806, %v5195
      %vm5237 = vcmp.eq.s32.totalorder %v805, %v5198
      %vm5238 = vcmp.eq.s32.totalorder %v806, %v5198
      %vm5239 = vcmp.eq.s32.totalorder %v805, %v5201
      %vm5240 = vcmp.eq.s32.totalorder %v806, %v5201
      %vm5241 = vcmp.eq.s32.totalorder %v805, %v5204
      %vm5242 = vcmp.eq.s32.totalorder %v806, %v5204
      %vm5243 = vcmp.eq.s32.totalorder %v805, %v5207
      %vm5244 = vcmp.eq.s32.totalorder %v806, %v5207
      %vm5245 = vcmp.eq.s32.totalorder %v805, %v5210
      %vm5246 = vcmp.eq.s32.totalorder %v806, %v5210
      %vm5247 = vcmp.eq.s32.totalorder %v805, %v5213
      %vm5248 = vcmp.eq.s32.totalorder %v806, %v5213
      %vm5249 = vcmp.eq.s32.totalorder %v805, %v5216
      %vm5250 = vcmp.eq.s32.totalorder %v806, %v5216
      %vm5251 = vcmp.eq.s32.totalorder %v805, %v5219
      %vm5252 = vcmp.eq.s32.totalorder %v806, %v5219
      %vm5253 = vcmp.eq.s32.totalorder %v805, %v5222
      %vm5254 = vcmp.eq.s32.totalorder %v806, %v5222
      %5255 = vset.pattern.permute.xlu0 13
      %5256 = vperm.xlu0 %5255, %v724
      %v5257 = vpop.permute.xlu0 %5256
      %5259 = vset.pattern.permute.xlu0 13
      %5260 = vperm.xlu0 %5259, %v725
      %v5261 = vpop.permute.xlu0 %5260
      %5263 = vset.pattern.permute.xlu0 13
      %5264 = vperm.xlu0 %5263, %v726
      %v5265 = vpop.permute.xlu0 %5264
      %5267 = vset.pattern.permute.xlu0 13
      %5268 = vperm.xlu0 %5267, %v727
      %v5269 = vpop.permute.xlu0 %5268
      %5271 = vset.pattern.permute.xlu0 13
      %5272 = vperm.xlu0 %5271, %v728
      %v5273 = vpop.permute.xlu0 %5272
      %5275 = vset.pattern.permute.xlu0 13
      %5276 = vperm.xlu0 %5275, %v729
      %v5277 = vpop.permute.xlu0 %5276
      %5279 = vset.pattern.permute.xlu0 13
      %5280 = vperm.xlu0 %5279, %v730
      %v5281 = vpop.permute.xlu0 %5280
      %5283 = vset.pattern.permute.xlu0 13
      %5284 = vperm.xlu0 %5283, %v731
      %v5285 = vpop.permute.xlu0 %5284
      %5287 = vset.pattern.permute.xlu0 13
      %5288 = vperm.xlu0 %5287, %v732
      %v5289 = vpop.permute.xlu0 %5288
      %5291 = vset.pattern.permute.xlu0 13
      %5292 = vperm.xlu0 %5291, %v733
      %v5293 = vpop.permute.xlu0 %5292
      %5295 = vset.pattern.permute.xlu0 13
      %5296 = vperm.xlu0 %5295, %v734
      %v5297 = vpop.permute.xlu0 %5296
      %5299 = vset.pattern.permute.xlu0 13
      %5300 = vperm.xlu0 %5299, %v735
      %v5301 = vpop.permute.xlu0 %5300
      %5303 = vset.pattern.permute.xlu0 13
      %5304 = vperm.xlu0 %5303, %v736
      %v5305 = vpop.permute.xlu0 %5304
      %5307 = vset.pattern.permute.xlu0 13
      %5308 = vperm.xlu0 %5307, %v737
      %v5309 = vpop.permute.xlu0 %5308
      %5311 = vset.pattern.permute.xlu0 13
      %5312 = vperm.xlu0 %5311, %v738
      %v5313 = vpop.permute.xlu0 %5312
      %5315 = vset.pattern.permute.xlu0 13
      %5316 = vperm.xlu0 %5315, %v739
      %v5317 = vpop.permute.xlu0 %5316
      %v5319 = vsel %vm5223, %v5257, 0.0
      %v5320 = vsel %vm5224, %v5257, 0.0
      %v5321 = vsel %vm5225, %v5261, 0.0
      %v5322 = vsel %vm5226, %v5261, 0.0
      %v5323 = vsel %vm5227, %v5265, 0.0
      %v5324 = vsel %vm5228, %v5265, 0.0
      %v5325 = vsel %vm5229, %v5269, 0.0
      %v5326 = vsel %vm5230, %v5269, 0.0
      %v5327 = vsel %vm5231, %v5273, 0.0
      %v5328 = vsel %vm5232, %v5273, 0.0
      %v5329 = vsel %vm5233, %v5277, 0.0
      %v5330 = vsel %vm5234, %v5277, 0.0
      %v5331 = vsel %vm5235, %v5281, 0.0
      %v5332 = vsel %vm5236, %v5281, 0.0
      %v5333 = vsel %vm5237, %v5285, 0.0
      %v5334 = vsel %vm5238, %v5285, 0.0
      %v5335 = vsel %vm5239, %v5289, 0.0
      %v5336 = vsel %vm5240, %v5289, 0.0
      %v5337 = vsel %vm5241, %v5293, 0.0
      %v5338 = vsel %vm5242, %v5293, 0.0
      %v5339 = vsel %vm5243, %v5297, 0.0
      %v5340 = vsel %vm5244, %v5297, 0.0
      %v5341 = vsel %vm5245, %v5301, 0.0
      %v5342 = vsel %vm5246, %v5301, 0.0
      %v5343 = vsel %vm5247, %v5305, 0.0
      %v5344 = vsel %vm5248, %v5305, 0.0
      %v5345 = vsel %vm5249, %v5309, 0.0
      %v5346 = vsel %vm5250, %v5309, 0.0
      %v5347 = vsel %vm5251, %v5313, 0.0
      %v5348 = vsel %vm5252, %v5313, 0.0
      %v5349 = vsel %vm5253, %v5317, 0.0
      %v5350 = vsel %vm5254, %v5317, 0.0
      %v5351 = vadd.f32 %v5143, %v5319
      %v5352 = vadd.f32 %v5144, %v5320
      %v5353 = vadd.f32 %v5145, %v5321
      %v5354 = vadd.f32 %v5146, %v5322
      %v5355 = vadd.f32 %v5147, %v5323
      %v5356 = vadd.f32 %v5148, %v5324
      %v5357 = vadd.f32 %v5149, %v5325
      %v5358 = vadd.f32 %v5150, %v5326
      %v5359 = vadd.f32 %v5151, %v5327
      %v5360 = vadd.f32 %v5152, %v5328
      %v5361 = vadd.f32 %v5153, %v5329
      %v5362 = vadd.f32 %v5154, %v5330
      %v5363 = vadd.f32 %v5155, %v5331
      %v5364 = vadd.f32 %v5156, %v5332
      %v5365 = vadd.f32 %v5157, %v5333
      %v5366 = vadd.f32 %v5158, %v5334
      %v5367 = vadd.f32 %v5159, %v5335
      %v5368 = vadd.f32 %v5160, %v5336
      %v5369 = vadd.f32 %v5161, %v5337
      %v5370 = vadd.f32 %v5162, %v5338
      %v5371 = vadd.f32 %v5163, %v5339
      %v5372 = vadd.f32 %v5164, %v5340
      %v5373 = vadd.f32 %v5165, %v5341
      %v5374 = vadd.f32 %v5166, %v5342
      %v5375 = vadd.f32 %v5167, %v5343
      %v5376 = vadd.f32 %v5168, %v5344
      %v5377 = vadd.f32 %v5169, %v5345
      %v5378 = vadd.f32 %v5170, %v5346
      %v5379 = vadd.f32 %v5171, %v5347
      %v5380 = vadd.f32 %v5172, %v5348
      %v5381 = vadd.f32 %v5173, %v5349
      %v5382 = vadd.f32 %v5174, %v5350
      %5383 = vset.pattern.permute.xlu0 13
      %5384 = vperm.xlu0 %5383, %v516
      %v5385 = vpop.permute.xlu0 %5384
      %5386 = vset.pattern.permute.xlu0 13
      %5387 = vperm.xlu0 %5386, %v517
      %v5388 = vpop.permute.xlu0 %5387
      %5389 = vset.pattern.permute.xlu0 13
      %5390 = vperm.xlu0 %5389, %v518
      %v5391 = vpop.permute.xlu0 %5390
      %5392 = vset.pattern.permute.xlu0 13
      %5393 = vperm.xlu0 %5392, %v519
      %v5394 = vpop.permute.xlu0 %5393
      %5395 = vset.pattern.permute.xlu0 13
      %5396 = vperm.xlu0 %5395, %v520
      %v5397 = vpop.permute.xlu0 %5396
      %5398 = vset.pattern.permute.xlu0 13
      %5399 = vperm.xlu0 %5398, %v521
      %v5400 = vpop.permute.xlu0 %5399
      %5401 = vset.pattern.permute.xlu0 13
      %5402 = vperm.xlu0 %5401, %v522
      %v5403 = vpop.permute.xlu0 %5402
      %5404 = vset.pattern.permute.xlu0 13
      %5405 = vperm.xlu0 %5404, %v523
      %v5406 = vpop.permute.xlu0 %5405
      %5407 = vset.pattern.permute.xlu0 13
      %5408 = vperm.xlu0 %5407, %v524
      %v5409 = vpop.permute.xlu0 %5408
      %5410 = vset.pattern.permute.xlu0 13
      %5411 = vperm.xlu0 %5410, %v525
      %v5412 = vpop.permute.xlu0 %5411
      %5413 = vset.pattern.permute.xlu0 13
      %5414 = vperm.xlu0 %5413, %v526
      %v5415 = vpop.permute.xlu0 %5414
      %5416 = vset.pattern.permute.xlu0 13
      %5417 = vperm.xlu0 %5416, %v527
      %v5418 = vpop.permute.xlu0 %5417
      %5419 = vset.pattern.permute.xlu0 13
      %5420 = vperm.xlu0 %5419, %v528
      %v5421 = vpop.permute.xlu0 %5420
      %5422 = vset.pattern.permute.xlu0 13
      %5423 = vperm.xlu0 %5422, %v529
      %v5424 = vpop.permute.xlu0 %5423
      %5425 = vset.pattern.permute.xlu0 13
      %5426 = vperm.xlu0 %5425, %v530
      %v5427 = vpop.permute.xlu0 %5426
      %5428 = vset.pattern.permute.xlu0 13
      %5429 = vperm.xlu0 %5428, %v531
      %v5430 = vpop.permute.xlu0 %5429
      %vm5431 = vcmp.eq.s32.totalorder %v805, %v5385
      %vm5432 = vcmp.eq.s32.totalorder %v806, %v5385
      %vm5433 = vcmp.eq.s32.totalorder %v805, %v5388
      %vm5434 = vcmp.eq.s32.totalorder %v806, %v5388
      %vm5435 = vcmp.eq.s32.totalorder %v805, %v5391
      %vm5436 = vcmp.eq.s32.totalorder %v806, %v5391
      %vm5437 = vcmp.eq.s32.totalorder %v805, %v5394
      %vm5438 = vcmp.eq.s32.totalorder %v806, %v5394
      %vm5439 = vcmp.eq.s32.totalorder %v805, %v5397
      %vm5440 = vcmp.eq.s32.totalorder %v806, %v5397
      %vm5441 = vcmp.eq.s32.totalorder %v805, %v5400
      %vm5442 = vcmp.eq.s32.totalorder %v806, %v5400
      %vm5443 = vcmp.eq.s32.totalorder %v805, %v5403
      %vm5444 = vcmp.eq.s32.totalorder %v806, %v5403
      %vm5445 = vcmp.eq.s32.totalorder %v805, %v5406
      %vm5446 = vcmp.eq.s32.totalorder %v806, %v5406
      %vm5447 = vcmp.eq.s32.totalorder %v805, %v5409
      %vm5448 = vcmp.eq.s32.totalorder %v806, %v5409
      %vm5449 = vcmp.eq.s32.totalorder %v805, %v5412
      %vm5450 = vcmp.eq.s32.totalorder %v806, %v5412
      %vm5451 = vcmp.eq.s32.totalorder %v805, %v5415
      %vm5452 = vcmp.eq.s32.totalorder %v806, %v5415
      %vm5453 = vcmp.eq.s32.totalorder %v805, %v5418
      %vm5454 = vcmp.eq.s32.totalorder %v806, %v5418
      %vm5455 = vcmp.eq.s32.totalorder %v805, %v5421
      %vm5456 = vcmp.eq.s32.totalorder %v806, %v5421
      %vm5457 = vcmp.eq.s32.totalorder %v805, %v5424
      %vm5458 = vcmp.eq.s32.totalorder %v806, %v5424
      %vm5459 = vcmp.eq.s32.totalorder %v805, %v5427
      %vm5460 = vcmp.eq.s32.totalorder %v806, %v5427
      %vm5461 = vcmp.eq.s32.totalorder %v805, %v5430
      %vm5462 = vcmp.eq.s32.totalorder %v806, %v5430
      %5463 = vset.pattern.permute.xlu0 13
      %5464 = vperm.xlu0 %5463, %v756
      %v5465 = vpop.permute.xlu0 %5464
      %5467 = vset.pattern.permute.xlu0 13
      %5468 = vperm.xlu0 %5467, %v757
      %v5469 = vpop.permute.xlu0 %5468
      %5471 = vset.pattern.permute.xlu0 13
      %5472 = vperm.xlu0 %5471, %v758
      %v5473 = vpop.permute.xlu0 %5472
      %5475 = vset.pattern.permute.xlu0 13
      %5476 = vperm.xlu0 %5475, %v759
      %v5477 = vpop.permute.xlu0 %5476
      %5479 = vset.pattern.permute.xlu0 13
      %5480 = vperm.xlu0 %5479, %v760
      %v5481 = vpop.permute.xlu0 %5480
      %5483 = vset.pattern.permute.xlu0 13
      %5484 = vperm.xlu0 %5483, %v761
      %v5485 = vpop.permute.xlu0 %5484
      %5487 = vset.pattern.permute.xlu0 13
      %5488 = vperm.xlu0 %5487, %v762
      %v5489 = vpop.permute.xlu0 %5488
      %5491 = vset.pattern.permute.xlu0 13
      %5492 = vperm.xlu0 %5491, %v763
      %v5493 = vpop.permute.xlu0 %5492
      %5495 = vset.pattern.permute.xlu0 13
      %5496 = vperm.xlu0 %5495, %v764
      %v5497 = vpop.permute.xlu0 %5496
      %5499 = vset.pattern.permute.xlu0 13
      %5500 = vperm.xlu0 %5499, %v765
      %v5501 = vpop.permute.xlu0 %5500
      %5503 = vset.pattern.permute.xlu0 13
      %5504 = vperm.xlu0 %5503, %v766
      %v5505 = vpop.permute.xlu0 %5504
      %5507 = vset.pattern.permute.xlu0 13
      %5508 = vperm.xlu0 %5507, %v767
      %v5509 = vpop.permute.xlu0 %5508
      %5511 = vset.pattern.permute.xlu0 13
      %5512 = vperm.xlu0 %5511, %v768
      %v5513 = vpop.permute.xlu0 %5512
      %5515 = vset.pattern.permute.xlu0 13
      %5516 = vperm.xlu0 %5515, %v769
      %v5517 = vpop.permute.xlu0 %5516
      %5519 = vset.pattern.permute.xlu0 13
      %5520 = vperm.xlu0 %5519, %v770
      %v5521 = vpop.permute.xlu0 %5520
      %5523 = vset.pattern.permute.xlu0 13
      %5524 = vperm.xlu0 %5523, %v771
      %v5525 = vpop.permute.xlu0 %5524
      %v5527 = vsel %vm5431, %v5465, 0.0
      %v5528 = vsel %vm5432, %v5465, 0.0
      %v5529 = vsel %vm5433, %v5469, 0.0
      %v5530 = vsel %vm5434, %v5469, 0.0
      %v5531 = vsel %vm5435, %v5473, 0.0
      %v5532 = vsel %vm5436, %v5473, 0.0
      %v5533 = vsel %vm5437, %v5477, 0.0
      %v5534 = vsel %vm5438, %v5477, 0.0
      %v5535 = vsel %vm5439, %v5481, 0.0
      %v5536 = vsel %vm5440, %v5481, 0.0
      %v5537 = vsel %vm5441, %v5485, 0.0
      %v5538 = vsel %vm5442, %v5485, 0.0
      %v5539 = vsel %vm5443, %v5489, 0.0
      %v5540 = vsel %vm5444, %v5489, 0.0
      %v5541 = vsel %vm5445, %v5493, 0.0
      %v5542 = vsel %vm5446, %v5493, 0.0
      %v5543 = vsel %vm5447, %v5497, 0.0
      %v5544 = vsel %vm5448, %v5497, 0.0
      %v5545 = vsel %vm5449, %v5501, 0.0
      %v5546 = vsel %vm5450, %v5501, 0.0
      %v5547 = vsel %vm5451, %v5505, 0.0
      %v5548 = vsel %vm5452, %v5505, 0.0
      %v5549 = vsel %vm5453, %v5509, 0.0
      %v5550 = vsel %vm5454, %v5509, 0.0
      %v5551 = vsel %vm5455, %v5513, 0.0
      %v5552 = vsel %vm5456, %v5513, 0.0
      %v5553 = vsel %vm5457, %v5517, 0.0
      %v5554 = vsel %vm5458, %v5517, 0.0
      %v5555 = vsel %vm5459, %v5521, 0.0
      %v5556 = vsel %vm5460, %v5521, 0.0
      %v5557 = vsel %vm5461, %v5525, 0.0
      %v5558 = vsel %vm5462, %v5525, 0.0
      %v5559 = vadd.f32 %v5351, %v5527
      %v5560 = vadd.f32 %v5352, %v5528
      %v5561 = vadd.f32 %v5353, %v5529
      %v5562 = vadd.f32 %v5354, %v5530
      %v5563 = vadd.f32 %v5355, %v5531
      %v5564 = vadd.f32 %v5356, %v5532
      %v5565 = vadd.f32 %v5357, %v5533
      %v5566 = vadd.f32 %v5358, %v5534
      %v5567 = vadd.f32 %v5359, %v5535
      %v5568 = vadd.f32 %v5360, %v5536
      %v5569 = vadd.f32 %v5361, %v5537
      %v5570 = vadd.f32 %v5362, %v5538
      %v5571 = vadd.f32 %v5363, %v5539
      %v5572 = vadd.f32 %v5364, %v5540
      %v5573 = vadd.f32 %v5365, %v5541
      %v5574 = vadd.f32 %v5366, %v5542
      %v5575 = vadd.f32 %v5367, %v5543
      %v5576 = vadd.f32 %v5368, %v5544
      %v5577 = vadd.f32 %v5369, %v5545
      %v5578 = vadd.f32 %v5370, %v5546
      %v5579 = vadd.f32 %v5371, %v5547
      %v5580 = vadd.f32 %v5372, %v5548
      %v5581 = vadd.f32 %v5373, %v5549
      %v5582 = vadd.f32 %v5374, %v5550
      %v5583 = vadd.f32 %v5375, %v5551
      %v5584 = vadd.f32 %v5376, %v5552
      %v5585 = vadd.f32 %v5377, %v5553
      %v5586 = vadd.f32 %v5378, %v5554
      %v5587 = vadd.f32 %v5379, %v5555
      %v5588 = vadd.f32 %v5380, %v5556
      %v5589 = vadd.f32 %v5381, %v5557
      %v5590 = vadd.f32 %v5382, %v5558
      %5591 = vset.pattern.permute.xlu0 13
      %5592 = vperm.xlu0 %5591, %v532
      %v5593 = vpop.permute.xlu0 %5592
      %5594 = vset.pattern.permute.xlu0 13
      %5595 = vperm.xlu0 %5594, %v533
      %v5596 = vpop.permute.xlu0 %5595
      %5597 = vset.pattern.permute.xlu0 13
      %5598 = vperm.xlu0 %5597, %v534
      %v5599 = vpop.permute.xlu0 %5598
      %5600 = vset.pattern.permute.xlu0 13
      %5601 = vperm.xlu0 %5600, %v535
      %v5602 = vpop.permute.xlu0 %5601
      %5603 = vset.pattern.permute.xlu0 13
      %5604 = vperm.xlu0 %5603, %v536
      %v5605 = vpop.permute.xlu0 %5604
      %5606 = vset.pattern.permute.xlu0 13
      %5607 = vperm.xlu0 %5606, %v537
      %v5608 = vpop.permute.xlu0 %5607
      %5609 = vset.pattern.permute.xlu0 13
      %5610 = vperm.xlu0 %5609, %v538
      %v5611 = vpop.permute.xlu0 %5610
      %5612 = vset.pattern.permute.xlu0 13
      %5613 = vperm.xlu0 %5612, %v539
      %v5614 = vpop.permute.xlu0 %5613
      %5615 = vset.pattern.permute.xlu0 13
      %5616 = vperm.xlu0 %5615, %v540
      %v5617 = vpop.permute.xlu0 %5616
      %5618 = vset.pattern.permute.xlu0 13
      %5619 = vperm.xlu0 %5618, %v541
      %v5620 = vpop.permute.xlu0 %5619
      %5621 = vset.pattern.permute.xlu0 13
      %5622 = vperm.xlu0 %5621, %v542
      %v5623 = vpop.permute.xlu0 %5622
      %5624 = vset.pattern.permute.xlu0 13
      %5625 = vperm.xlu0 %5624, %v543
      %v5626 = vpop.permute.xlu0 %5625
      %5627 = vset.pattern.permute.xlu0 13
      %5628 = vperm.xlu0 %5627, %v544
      %v5629 = vpop.permute.xlu0 %5628
      %5630 = vset.pattern.permute.xlu0 13
      %5631 = vperm.xlu0 %5630, %v545
      %v5632 = vpop.permute.xlu0 %5631
      %5633 = vset.pattern.permute.xlu0 13
      %5634 = vperm.xlu0 %5633, %v546
      %v5635 = vpop.permute.xlu0 %5634
      %5636 = vset.pattern.permute.xlu0 13
      %5637 = vperm.xlu0 %5636, %v547
      %v5638 = vpop.permute.xlu0 %5637
      %vm5639 = vcmp.eq.s32.totalorder %v805, %v5593
      %vm5640 = vcmp.eq.s32.totalorder %v806, %v5593
      %vm5641 = vcmp.eq.s32.totalorder %v805, %v5596
      %vm5642 = vcmp.eq.s32.totalorder %v806, %v5596
      %vm5643 = vcmp.eq.s32.totalorder %v805, %v5599
      %vm5644 = vcmp.eq.s32.totalorder %v806, %v5599
      %vm5645 = vcmp.eq.s32.totalorder %v805, %v5602
      %vm5646 = vcmp.eq.s32.totalorder %v806, %v5602
      %vm5647 = vcmp.eq.s32.totalorder %v805, %v5605
      %vm5648 = vcmp.eq.s32.totalorder %v806, %v5605
      %vm5649 = vcmp.eq.s32.totalorder %v805, %v5608
      %vm5650 = vcmp.eq.s32.totalorder %v806, %v5608
      %vm5651 = vcmp.eq.s32.totalorder %v805, %v5611
      %vm5652 = vcmp.eq.s32.totalorder %v806, %v5611
      %vm5653 = vcmp.eq.s32.totalorder %v805, %v5614
      %vm5654 = vcmp.eq.s32.totalorder %v806, %v5614
      %vm5655 = vcmp.eq.s32.totalorder %v805, %v5617
      %vm5656 = vcmp.eq.s32.totalorder %v806, %v5617
      %vm5657 = vcmp.eq.s32.totalorder %v805, %v5620
      %vm5658 = vcmp.eq.s32.totalorder %v806, %v5620
      %vm5659 = vcmp.eq.s32.totalorder %v805, %v5623
      %vm5660 = vcmp.eq.s32.totalorder %v806, %v5623
      %vm5661 = vcmp.eq.s32.totalorder %v805, %v5626
      %vm5662 = vcmp.eq.s32.totalorder %v806, %v5626
      %vm5663 = vcmp.eq.s32.totalorder %v805, %v5629
      %vm5664 = vcmp.eq.s32.totalorder %v806, %v5629
      %vm5665 = vcmp.eq.s32.totalorder %v805, %v5632
      %vm5666 = vcmp.eq.s32.totalorder %v806, %v5632
      %vm5667 = vcmp.eq.s32.totalorder %v805, %v5635
      %vm5668 = vcmp.eq.s32.totalorder %v806, %v5635
      %vm5669 = vcmp.eq.s32.totalorder %v805, %v5638
      %vm5670 = vcmp.eq.s32.totalorder %v806, %v5638
      %5671 = vset.pattern.permute.xlu0 13
      %5672 = vperm.xlu0 %5671, %v788
      %v5673 = vpop.permute.xlu0 %5672
      %5675 = vset.pattern.permute.xlu0 13
      %5676 = vperm.xlu0 %5675, %v789
      %v5677 = vpop.permute.xlu0 %5676
      %5679 = vset.pattern.permute.xlu0 13
      %5680 = vperm.xlu0 %5679, %v790
      %v5681 = vpop.permute.xlu0 %5680
      %5683 = vset.pattern.permute.xlu0 13
      %5684 = vperm.xlu0 %5683, %v791
      %v5685 = vpop.permute.xlu0 %5684
      %5687 = vset.pattern.permute.xlu0 13
      %5688 = vperm.xlu0 %5687, %v792
      %v5689 = vpop.permute.xlu0 %5688
      %5691 = vset.pattern.permute.xlu0 13
      %5692 = vperm.xlu0 %5691, %v793
      %v5693 = vpop.permute.xlu0 %5692
      %5695 = vset.pattern.permute.xlu0 13
      %5696 = vperm.xlu0 %5695, %v794
      %v5697 = vpop.permute.xlu0 %5696
      %5699 = vset.pattern.permute.xlu0 13
      %5700 = vperm.xlu0 %5699, %v795
      %v5701 = vpop.permute.xlu0 %5700
      %5703 = vset.pattern.permute.xlu0 13
      %5704 = vperm.xlu0 %5703, %v796
      %v5705 = vpop.permute.xlu0 %5704
      %5707 = vset.pattern.permute.xlu0 13
      %5708 = vperm.xlu0 %5707, %v797
      %v5709 = vpop.permute.xlu0 %5708
      %5711 = vset.pattern.permute.xlu0 13
      %5712 = vperm.xlu0 %5711, %v798
      %v5713 = vpop.permute.xlu0 %5712
      %5715 = vset.pattern.permute.xlu0 13
      %5716 = vperm.xlu0 %5715, %v799
      %v5717 = vpop.permute.xlu0 %5716
      %5719 = vset.pattern.permute.xlu0 13
      %5720 = vperm.xlu0 %5719, %v800
      %v5721 = vpop.permute.xlu0 %5720
      %5723 = vset.pattern.permute.xlu0 13
      %5724 = vperm.xlu0 %5723, %v801
      %v5725 = vpop.permute.xlu0 %5724
      %5727 = vset.pattern.permute.xlu0 13
      %5728 = vperm.xlu0 %5727, %v802
      %v5729 = vpop.permute.xlu0 %5728
      %5731 = vset.pattern.permute.xlu0 13
      %5732 = vperm.xlu0 %5731, %v803
      %v5733 = vpop.permute.xlu0 %5732
      %v5735 = vsel %vm5639, %v5673, 0.0
      %v5736 = vsel %vm5640, %v5673, 0.0
      %v5737 = vsel %vm5641, %v5677, 0.0
      %v5738 = vsel %vm5642, %v5677, 0.0
      %v5739 = vsel %vm5643, %v5681, 0.0
      %v5740 = vsel %vm5644, %v5681, 0.0
      %v5741 = vsel %vm5645, %v5685, 0.0
      %v5742 = vsel %vm5646, %v5685, 0.0
      %v5743 = vsel %vm5647, %v5689, 0.0
      %v5744 = vsel %vm5648, %v5689, 0.0
      %v5745 = vsel %vm5649, %v5693, 0.0
      %v5746 = vsel %vm5650, %v5693, 0.0
      %v5747 = vsel %vm5651, %v5697, 0.0
      %v5748 = vsel %vm5652, %v5697, 0.0
      %v5749 = vsel %vm5653, %v5701, 0.0
      %v5750 = vsel %vm5654, %v5701, 0.0
      %v5751 = vsel %vm5655, %v5705, 0.0
      %v5752 = vsel %vm5656, %v5705, 0.0
      %v5753 = vsel %vm5657, %v5709, 0.0
      %v5754 = vsel %vm5658, %v5709, 0.0
      %v5755 = vsel %vm5659, %v5713, 0.0
      %v5756 = vsel %vm5660, %v5713, 0.0
      %v5757 = vsel %vm5661, %v5717, 0.0
      %v5758 = vsel %vm5662, %v5717, 0.0
      %v5759 = vsel %vm5663, %v5721, 0.0
      %v5760 = vsel %vm5664, %v5721, 0.0
      %v5761 = vsel %vm5665, %v5725, 0.0
      %v5762 = vsel %vm5666, %v5725, 0.0
      %v5763 = vsel %vm5667, %v5729, 0.0
      %v5764 = vsel %vm5668, %v5729, 0.0
      %v5765 = vsel %vm5669, %v5733, 0.0
      %v5766 = vsel %vm5670, %v5733, 0.0
      %v5767 = vadd.f32 %v5559, %v5735
      %v5768 = vadd.f32 %v5560, %v5736
      %v5769 = vadd.f32 %v5561, %v5737
      %v5770 = vadd.f32 %v5562, %v5738
      %v5771 = vadd.f32 %v5563, %v5739
      %v5772 = vadd.f32 %v5564, %v5740
      %v5773 = vadd.f32 %v5565, %v5741
      %v5774 = vadd.f32 %v5566, %v5742
      %v5775 = vadd.f32 %v5567, %v5743
      %v5776 = vadd.f32 %v5568, %v5744
      %v5777 = vadd.f32 %v5569, %v5745
      %v5778 = vadd.f32 %v5570, %v5746
      %v5779 = vadd.f32 %v5571, %v5747
      %v5780 = vadd.f32 %v5572, %v5748
      %v5781 = vadd.f32 %v5573, %v5749
      %v5782 = vadd.f32 %v5574, %v5750
      %v5783 = vadd.f32 %v5575, %v5751
      %v5784 = vadd.f32 %v5576, %v5752
      %v5785 = vadd.f32 %v5577, %v5753
      %v5786 = vadd.f32 %v5578, %v5754
      %v5787 = vadd.f32 %v5579, %v5755
      %v5788 = vadd.f32 %v5580, %v5756
      %v5789 = vadd.f32 %v5581, %v5757
      %v5790 = vadd.f32 %v5582, %v5758
      %v5791 = vadd.f32 %v5583, %v5759
      %v5792 = vadd.f32 %v5584, %v5760
      %v5793 = vadd.f32 %v5585, %v5761
      %v5794 = vadd.f32 %v5586, %v5762
      %v5795 = vadd.f32 %v5587, %v5763
      %v5796 = vadd.f32 %v5588, %v5764
      %v5797 = vadd.f32 %v5589, %v5765
      %v5798 = vadd.f32 %v5590, %v5766
      %v5799 = vadd.f32 %v4967, %v5767
      %v5800 = vadd.f32 %v4968, %v5768
      %v5801 = vadd.f32 %v4969, %v5769
      %v5802 = vadd.f32 %v4970, %v5770
      %v5803 = vadd.f32 %v4971, %v5771
      %v5804 = vadd.f32 %v4972, %v5772
      %v5805 = vadd.f32 %v4973, %v5773
      %v5806 = vadd.f32 %v4974, %v5774
      %v5807 = vadd.f32 %v4975, %v5775
      %v5808 = vadd.f32 %v4976, %v5776
      %v5809 = vadd.f32 %v4977, %v5777
      %v5810 = vadd.f32 %v4978, %v5778
      %v5811 = vadd.f32 %v4979, %v5779
      %v5812 = vadd.f32 %v4980, %v5780
      %v5813 = vadd.f32 %v4981, %v5781
      %v5814 = vadd.f32 %v4982, %v5782
      %v5815 = vadd.f32 %v4983, %v5783
      %v5816 = vadd.f32 %v4984, %v5784
      %v5817 = vadd.f32 %v4985, %v5785
      %v5818 = vadd.f32 %v4986, %v5786
      %v5819 = vadd.f32 %v4987, %v5787
      %v5820 = vadd.f32 %v4988, %v5788
      %v5821 = vadd.f32 %v4989, %v5789
      %v5822 = vadd.f32 %v4990, %v5790
      %v5823 = vadd.f32 %v4991, %v5791
      %v5824 = vadd.f32 %v4992, %v5792
      %v5825 = vadd.f32 %v4993, %v5793
      %v5826 = vadd.f32 %v4994, %v5794
      %v5827 = vadd.f32 %v4995, %v5795
      %v5828 = vadd.f32 %v4996, %v5796
      %v5829 = vadd.f32 %v4997, %v5797
      %v5830 = vadd.f32 %v4998, %v5798
      %5831 = vset.pattern.permute.xlu0 14
      %5832 = vperm.xlu0 %5831, %v436
      %v5833 = vpop.permute.xlu0 %5832
      %5834 = vset.pattern.permute.xlu0 14
      %5835 = vperm.xlu0 %5834, %v437
      %v5836 = vpop.permute.xlu0 %5835
      %5837 = vset.pattern.permute.xlu0 14
      %5838 = vperm.xlu0 %5837, %v438
      %v5839 = vpop.permute.xlu0 %5838
      %5840 = vset.pattern.permute.xlu0 14
      %5841 = vperm.xlu0 %5840, %v439
      %v5842 = vpop.permute.xlu0 %5841
      %5843 = vset.pattern.permute.xlu0 14
      %5844 = vperm.xlu0 %5843, %v440
      %v5845 = vpop.permute.xlu0 %5844
      %5846 = vset.pattern.permute.xlu0 14
      %5847 = vperm.xlu0 %5846, %v441
      %v5848 = vpop.permute.xlu0 %5847
      %5849 = vset.pattern.permute.xlu0 14
      %5850 = vperm.xlu0 %5849, %v442
      %v5851 = vpop.permute.xlu0 %5850
      %5852 = vset.pattern.permute.xlu0 14
      %5853 = vperm.xlu0 %5852, %v443
      %v5854 = vpop.permute.xlu0 %5853
      %5855 = vset.pattern.permute.xlu0 14
      %5856 = vperm.xlu0 %5855, %v444
      %v5857 = vpop.permute.xlu0 %5856
      %5858 = vset.pattern.permute.xlu0 14
      %5859 = vperm.xlu0 %5858, %v445
      %v5860 = vpop.permute.xlu0 %5859
      %5861 = vset.pattern.permute.xlu0 14
      %5862 = vperm.xlu0 %5861, %v446
      %v5863 = vpop.permute.xlu0 %5862
      %5864 = vset.pattern.permute.xlu0 14
      %5865 = vperm.xlu0 %5864, %v447
      %v5866 = vpop.permute.xlu0 %5865
      %5867 = vset.pattern.permute.xlu0 14
      %5868 = vperm.xlu0 %5867, %v448
      %v5869 = vpop.permute.xlu0 %5868
      %5870 = vset.pattern.permute.xlu0 14
      %5871 = vperm.xlu0 %5870, %v449
      %v5872 = vpop.permute.xlu0 %5871
      %5873 = vset.pattern.permute.xlu0 14
      %5874 = vperm.xlu0 %5873, %v450
      %v5875 = vpop.permute.xlu0 %5874
      %5876 = vset.pattern.permute.xlu0 14
      %5877 = vperm.xlu0 %5876, %v451
      %v5878 = vpop.permute.xlu0 %5877
      %vm5879 = vcmp.eq.s32.totalorder %v805, %v5833
      %vm5880 = vcmp.eq.s32.totalorder %v806, %v5833
      %vm5881 = vcmp.eq.s32.totalorder %v805, %v5836
      %vm5882 = vcmp.eq.s32.totalorder %v806, %v5836
      %vm5883 = vcmp.eq.s32.totalorder %v805, %v5839
      %vm5884 = vcmp.eq.s32.totalorder %v806, %v5839
      %vm5885 = vcmp.eq.s32.totalorder %v805, %v5842
      %vm5886 = vcmp.eq.s32.totalorder %v806, %v5842
      %vm5887 = vcmp.eq.s32.totalorder %v805, %v5845
      %vm5888 = vcmp.eq.s32.totalorder %v806, %v5845
      %vm5889 = vcmp.eq.s32.totalorder %v805, %v5848
      %vm5890 = vcmp.eq.s32.totalorder %v806, %v5848
      %vm5891 = vcmp.eq.s32.totalorder %v805, %v5851
      %vm5892 = vcmp.eq.s32.totalorder %v806, %v5851
      %vm5893 = vcmp.eq.s32.totalorder %v805, %v5854
      %vm5894 = vcmp.eq.s32.totalorder %v806, %v5854
      %vm5895 = vcmp.eq.s32.totalorder %v805, %v5857
      %vm5896 = vcmp.eq.s32.totalorder %v806, %v5857
      %vm5897 = vcmp.eq.s32.totalorder %v805, %v5860
      %vm5898 = vcmp.eq.s32.totalorder %v806, %v5860
      %vm5899 = vcmp.eq.s32.totalorder %v805, %v5863
      %vm5900 = vcmp.eq.s32.totalorder %v806, %v5863
      %vm5901 = vcmp.eq.s32.totalorder %v805, %v5866
      %vm5902 = vcmp.eq.s32.totalorder %v806, %v5866
      %vm5903 = vcmp.eq.s32.totalorder %v805, %v5869
      %vm5904 = vcmp.eq.s32.totalorder %v806, %v5869
      %vm5905 = vcmp.eq.s32.totalorder %v805, %v5872
      %vm5906 = vcmp.eq.s32.totalorder %v806, %v5872
      %vm5907 = vcmp.eq.s32.totalorder %v805, %v5875
      %vm5908 = vcmp.eq.s32.totalorder %v806, %v5875
      %vm5909 = vcmp.eq.s32.totalorder %v805, %v5878
      %vm5910 = vcmp.eq.s32.totalorder %v806, %v5878
      %5911 = vset.pattern.permute.xlu0 14
      %5912 = vperm.xlu0 %5911, %v628
      %v5913 = vpop.permute.xlu0 %5912
      %5915 = vset.pattern.permute.xlu0 14
      %5916 = vperm.xlu0 %5915, %v629
      %v5917 = vpop.permute.xlu0 %5916
      %5919 = vset.pattern.permute.xlu0 14
      %5920 = vperm.xlu0 %5919, %v630
      %v5921 = vpop.permute.xlu0 %5920
      %5923 = vset.pattern.permute.xlu0 14
      %5924 = vperm.xlu0 %5923, %v631
      %v5925 = vpop.permute.xlu0 %5924
      %5927 = vset.pattern.permute.xlu0 14
      %5928 = vperm.xlu0 %5927, %v632
      %v5929 = vpop.permute.xlu0 %5928
      %5931 = vset.pattern.permute.xlu0 14
      %5932 = vperm.xlu0 %5931, %v633
      %v5933 = vpop.permute.xlu0 %5932
      %5935 = vset.pattern.permute.xlu0 14
      %5936 = vperm.xlu0 %5935, %v634
      %v5937 = vpop.permute.xlu0 %5936
      %5939 = vset.pattern.permute.xlu0 14
      %5940 = vperm.xlu0 %5939, %v635
      %v5941 = vpop.permute.xlu0 %5940
      %5943 = vset.pattern.permute.xlu0 14
      %5944 = vperm.xlu0 %5943, %v636
      %v5945 = vpop.permute.xlu0 %5944
      %5947 = vset.pattern.permute.xlu0 14
      %5948 = vperm.xlu0 %5947, %v637
      %v5949 = vpop.permute.xlu0 %5948
      %5951 = vset.pattern.permute.xlu0 14
      %5952 = vperm.xlu0 %5951, %v638
      %v5953 = vpop.permute.xlu0 %5952
      %5955 = vset.pattern.permute.xlu0 14
      %5956 = vperm.xlu0 %5955, %v639
      %v5957 = vpop.permute.xlu0 %5956
      %5959 = vset.pattern.permute.xlu0 14
      %5960 = vperm.xlu0 %5959, %v640
      %v5961 = vpop.permute.xlu0 %5960
      %5963 = vset.pattern.permute.xlu0 14
      %5964 = vperm.xlu0 %5963, %v641
      %v5965 = vpop.permute.xlu0 %5964
      %5967 = vset.pattern.permute.xlu0 14
      %5968 = vperm.xlu0 %5967, %v642
      %v5969 = vpop.permute.xlu0 %5968
      %5971 = vset.pattern.permute.xlu0 14
      %5972 = vperm.xlu0 %5971, %v643
      %v5973 = vpop.permute.xlu0 %5972
      %v5975 = vsel %vm5879, %v5913, 0.0
      %v5976 = vsel %vm5880, %v5913, 0.0
      %v5977 = vsel %vm5881, %v5917, 0.0
      %v5978 = vsel %vm5882, %v5917, 0.0
      %v5979 = vsel %vm5883, %v5921, 0.0
      %v5980 = vsel %vm5884, %v5921, 0.0
      %v5981 = vsel %vm5885, %v5925, 0.0
      %v5982 = vsel %vm5886, %v5925, 0.0
      %v5983 = vsel %vm5887, %v5929, 0.0
      %v5984 = vsel %vm5888, %v5929, 0.0
      %v5985 = vsel %vm5889, %v5933, 0.0
      %v5986 = vsel %vm5890, %v5933, 0.0
      %v5987 = vsel %vm5891, %v5937, 0.0
      %v5988 = vsel %vm5892, %v5937, 0.0
      %v5989 = vsel %vm5893, %v5941, 0.0
      %v5990 = vsel %vm5894, %v5941, 0.0
      %v5991 = vsel %vm5895, %v5945, 0.0
      %v5992 = vsel %vm5896, %v5945, 0.0
      %v5993 = vsel %vm5897, %v5949, 0.0
      %v5994 = vsel %vm5898, %v5949, 0.0
      %v5995 = vsel %vm5899, %v5953, 0.0
      %v5996 = vsel %vm5900, %v5953, 0.0
      %v5997 = vsel %vm5901, %v5957, 0.0
      %v5998 = vsel %vm5902, %v5957, 0.0
      %v5999 = vsel %vm5903, %v5961, 0.0
      %v6000 = vsel %vm5904, %v5961, 0.0
      %v6001 = vsel %vm5905, %v5965, 0.0
      %v6002 = vsel %vm5906, %v5965, 0.0
      %v6003 = vsel %vm5907, %v5969, 0.0
      %v6004 = vsel %vm5908, %v5969, 0.0
      %v6005 = vsel %vm5909, %v5973, 0.0
      %v6006 = vsel %vm5910, %v5973, 0.0
      %6007 = vset.pattern.permute.xlu0 14
      %6008 = vperm.xlu0 %6007, %v484
      %v6009 = vpop.permute.xlu0 %6008
      %6010 = vset.pattern.permute.xlu0 14
      %6011 = vperm.xlu0 %6010, %v485
      %v6012 = vpop.permute.xlu0 %6011
      %6013 = vset.pattern.permute.xlu0 14
      %6014 = vperm.xlu0 %6013, %v486
      %v6015 = vpop.permute.xlu0 %6014
      %6016 = vset.pattern.permute.xlu0 14
      %6017 = vperm.xlu0 %6016, %v487
      %v6018 = vpop.permute.xlu0 %6017
      %6019 = vset.pattern.permute.xlu0 14
      %6020 = vperm.xlu0 %6019, %v488
      %v6021 = vpop.permute.xlu0 %6020
      %6022 = vset.pattern.permute.xlu0 14
      %6023 = vperm.xlu0 %6022, %v489
      %v6024 = vpop.permute.xlu0 %6023
      %6025 = vset.pattern.permute.xlu0 14
      %6026 = vperm.xlu0 %6025, %v490
      %v6027 = vpop.permute.xlu0 %6026
      %6028 = vset.pattern.permute.xlu0 14
      %6029 = vperm.xlu0 %6028, %v491
      %v6030 = vpop.permute.xlu0 %6029
      %6031 = vset.pattern.permute.xlu0 14
      %6032 = vperm.xlu0 %6031, %v492
      %v6033 = vpop.permute.xlu0 %6032
      %6034 = vset.pattern.permute.xlu0 14
      %6035 = vperm.xlu0 %6034, %v493
      %v6036 = vpop.permute.xlu0 %6035
      %6037 = vset.pattern.permute.xlu0 14
      %6038 = vperm.xlu0 %6037, %v494
      %v6039 = vpop.permute.xlu0 %6038
      %6040 = vset.pattern.permute.xlu0 14
      %6041 = vperm.xlu0 %6040, %v495
      %v6042 = vpop.permute.xlu0 %6041
      %6043 = vset.pattern.permute.xlu0 14
      %6044 = vperm.xlu0 %6043, %v496
      %v6045 = vpop.permute.xlu0 %6044
      %6046 = vset.pattern.permute.xlu0 14
      %6047 = vperm.xlu0 %6046, %v497
      %v6048 = vpop.permute.xlu0 %6047
      %6049 = vset.pattern.permute.xlu0 14
      %6050 = vperm.xlu0 %6049, %v498
      %v6051 = vpop.permute.xlu0 %6050
      %6052 = vset.pattern.permute.xlu0 14
      %6053 = vperm.xlu0 %6052, %v499
      %v6054 = vpop.permute.xlu0 %6053
      %vm6055 = vcmp.eq.s32.totalorder %v805, %v6009
      %vm6056 = vcmp.eq.s32.totalorder %v806, %v6009
      %vm6057 = vcmp.eq.s32.totalorder %v805, %v6012
      %vm6058 = vcmp.eq.s32.totalorder %v806, %v6012
      %vm6059 = vcmp.eq.s32.totalorder %v805, %v6015
      %vm6060 = vcmp.eq.s32.totalorder %v806, %v6015
      %vm6061 = vcmp.eq.s32.totalorder %v805, %v6018
      %vm6062 = vcmp.eq.s32.totalorder %v806, %v6018
      %vm6063 = vcmp.eq.s32.totalorder %v805, %v6021
      %vm6064 = vcmp.eq.s32.totalorder %v806, %v6021
      %vm6065 = vcmp.eq.s32.totalorder %v805, %v6024
      %vm6066 = vcmp.eq.s32.totalorder %v806, %v6024
      %vm6067 = vcmp.eq.s32.totalorder %v805, %v6027
      %vm6068 = vcmp.eq.s32.totalorder %v806, %v6027
      %vm6069 = vcmp.eq.s32.totalorder %v805, %v6030
      %vm6070 = vcmp.eq.s32.totalorder %v806, %v6030
      %vm6071 = vcmp.eq.s32.totalorder %v805, %v6033
      %vm6072 = vcmp.eq.s32.totalorder %v806, %v6033
      %vm6073 = vcmp.eq.s32.totalorder %v805, %v6036
      %vm6074 = vcmp.eq.s32.totalorder %v806, %v6036
      %vm6075 = vcmp.eq.s32.totalorder %v805, %v6039
      %vm6076 = vcmp.eq.s32.totalorder %v806, %v6039
      %vm6077 = vcmp.eq.s32.totalorder %v805, %v6042
      %vm6078 = vcmp.eq.s32.totalorder %v806, %v6042
      %vm6079 = vcmp.eq.s32.totalorder %v805, %v6045
      %vm6080 = vcmp.eq.s32.totalorder %v806, %v6045
      %vm6081 = vcmp.eq.s32.totalorder %v805, %v6048
      %vm6082 = vcmp.eq.s32.totalorder %v806, %v6048
      %vm6083 = vcmp.eq.s32.totalorder %v805, %v6051
      %vm6084 = vcmp.eq.s32.totalorder %v806, %v6051
      %vm6085 = vcmp.eq.s32.totalorder %v805, %v6054
      %vm6086 = vcmp.eq.s32.totalorder %v806, %v6054
      %6087 = vset.pattern.permute.xlu0 14
      %6088 = vperm.xlu0 %6087, %v724
      %v6089 = vpop.permute.xlu0 %6088
      %6091 = vset.pattern.permute.xlu0 14
      %6092 = vperm.xlu0 %6091, %v725
      %v6093 = vpop.permute.xlu0 %6092
      %6095 = vset.pattern.permute.xlu0 14
      %6096 = vperm.xlu0 %6095, %v726
      %v6097 = vpop.permute.xlu0 %6096
      %6099 = vset.pattern.permute.xlu0 14
      %6100 = vperm.xlu0 %6099, %v727
      %v6101 = vpop.permute.xlu0 %6100
      %6103 = vset.pattern.permute.xlu0 14
      %6104 = vperm.xlu0 %6103, %v728
      %v6105 = vpop.permute.xlu0 %6104
      %6107 = vset.pattern.permute.xlu0 14
      %6108 = vperm.xlu0 %6107, %v729
      %v6109 = vpop.permute.xlu0 %6108
      %6111 = vset.pattern.permute.xlu0 14
      %6112 = vperm.xlu0 %6111, %v730
      %v6113 = vpop.permute.xlu0 %6112
      %6115 = vset.pattern.permute.xlu0 14
      %6116 = vperm.xlu0 %6115, %v731
      %v6117 = vpop.permute.xlu0 %6116
      %6119 = vset.pattern.permute.xlu0 14
      %6120 = vperm.xlu0 %6119, %v732
      %v6121 = vpop.permute.xlu0 %6120
      %6123 = vset.pattern.permute.xlu0 14
      %6124 = vperm.xlu0 %6123, %v733
      %v6125 = vpop.permute.xlu0 %6124
      %6127 = vset.pattern.permute.xlu0 14
      %6128 = vperm.xlu0 %6127, %v734
      %v6129 = vpop.permute.xlu0 %6128
      %6131 = vset.pattern.permute.xlu0 14
      %6132 = vperm.xlu0 %6131, %v735
      %v6133 = vpop.permute.xlu0 %6132
      %6135 = vset.pattern.permute.xlu0 14
      %6136 = vperm.xlu0 %6135, %v736
      %v6137 = vpop.permute.xlu0 %6136
      %6139 = vset.pattern.permute.xlu0 14
      %6140 = vperm.xlu0 %6139, %v737
      %v6141 = vpop.permute.xlu0 %6140
      %6143 = vset.pattern.permute.xlu0 14
      %6144 = vperm.xlu0 %6143, %v738
      %v6145 = vpop.permute.xlu0 %6144
      %6147 = vset.pattern.permute.xlu0 14
      %6148 = vperm.xlu0 %6147, %v739
      %v6149 = vpop.permute.xlu0 %6148
      %v6151 = vsel %vm6055, %v6089, 0.0
      %v6152 = vsel %vm6056, %v6089, 0.0
      %v6153 = vsel %vm6057, %v6093, 0.0
      %v6154 = vsel %vm6058, %v6093, 0.0
      %v6155 = vsel %vm6059, %v6097, 0.0
      %v6156 = vsel %vm6060, %v6097, 0.0
      %v6157 = vsel %vm6061, %v6101, 0.0
      %v6158 = vsel %vm6062, %v6101, 0.0
      %v6159 = vsel %vm6063, %v6105, 0.0
      %v6160 = vsel %vm6064, %v6105, 0.0
      %v6161 = vsel %vm6065, %v6109, 0.0
      %v6162 = vsel %vm6066, %v6109, 0.0
      %v6163 = vsel %vm6067, %v6113, 0.0
      %v6164 = vsel %vm6068, %v6113, 0.0
      %v6165 = vsel %vm6069, %v6117, 0.0
      %v6166 = vsel %vm6070, %v6117, 0.0
      %v6167 = vsel %vm6071, %v6121, 0.0
      %v6168 = vsel %vm6072, %v6121, 0.0
      %v6169 = vsel %vm6073, %v6125, 0.0
      %v6170 = vsel %vm6074, %v6125, 0.0
      %v6171 = vsel %vm6075, %v6129, 0.0
      %v6172 = vsel %vm6076, %v6129, 0.0
      %v6173 = vsel %vm6077, %v6133, 0.0
      %v6174 = vsel %vm6078, %v6133, 0.0
      %v6175 = vsel %vm6079, %v6137, 0.0
      %v6176 = vsel %vm6080, %v6137, 0.0
      %v6177 = vsel %vm6081, %v6141, 0.0
      %v6178 = vsel %vm6082, %v6141, 0.0
      %v6179 = vsel %vm6083, %v6145, 0.0
      %v6180 = vsel %vm6084, %v6145, 0.0
      %v6181 = vsel %vm6085, %v6149, 0.0
      %v6182 = vsel %vm6086, %v6149, 0.0
      %v6183 = vadd.f32 %v5975, %v6151
      %v6184 = vadd.f32 %v5976, %v6152
      %v6185 = vadd.f32 %v5977, %v6153
      %v6186 = vadd.f32 %v5978, %v6154
      %v6187 = vadd.f32 %v5979, %v6155
      %v6188 = vadd.f32 %v5980, %v6156
      %v6189 = vadd.f32 %v5981, %v6157
      %v6190 = vadd.f32 %v5982, %v6158
      %v6191 = vadd.f32 %v5983, %v6159
      %v6192 = vadd.f32 %v5984, %v6160
      %v6193 = vadd.f32 %v5985, %v6161
      %v6194 = vadd.f32 %v5986, %v6162
      %v6195 = vadd.f32 %v5987, %v6163
      %v6196 = vadd.f32 %v5988, %v6164
      %v6197 = vadd.f32 %v5989, %v6165
      %v6198 = vadd.f32 %v5990, %v6166
      %v6199 = vadd.f32 %v5991, %v6167
      %v6200 = vadd.f32 %v5992, %v6168
      %v6201 = vadd.f32 %v5993, %v6169
      %v6202 = vadd.f32 %v5994, %v6170
      %v6203 = vadd.f32 %v5995, %v6171
      %v6204 = vadd.f32 %v5996, %v6172
      %v6205 = vadd.f32 %v5997, %v6173
      %v6206 = vadd.f32 %v5998, %v6174
      %v6207 = vadd.f32 %v5999, %v6175
      %v6208 = vadd.f32 %v6000, %v6176
      %v6209 = vadd.f32 %v6001, %v6177
      %v6210 = vadd.f32 %v6002, %v6178
      %v6211 = vadd.f32 %v6003, %v6179
      %v6212 = vadd.f32 %v6004, %v6180
      %v6213 = vadd.f32 %v6005, %v6181
      %v6214 = vadd.f32 %v6006, %v6182
      %6215 = vset.pattern.permute.xlu0 14
      %6216 = vperm.xlu0 %6215, %v516
      %v6217 = vpop.permute.xlu0 %6216
      %6218 = vset.pattern.permute.xlu0 14
      %6219 = vperm.xlu0 %6218, %v517
      %v6220 = vpop.permute.xlu0 %6219
      %6221 = vset.pattern.permute.xlu0 14
      %6222 = vperm.xlu0 %6221, %v518
      %v6223 = vpop.permute.xlu0 %6222
      %6224 = vset.pattern.permute.xlu0 14
      %6225 = vperm.xlu0 %6224, %v519
      %v6226 = vpop.permute.xlu0 %6225
      %6227 = vset.pattern.permute.xlu0 14
      %6228 = vperm.xlu0 %6227, %v520
      %v6229 = vpop.permute.xlu0 %6228
      %6230 = vset.pattern.permute.xlu0 14
      %6231 = vperm.xlu0 %6230, %v521
      %v6232 = vpop.permute.xlu0 %6231
      %6233 = vset.pattern.permute.xlu0 14
      %6234 = vperm.xlu0 %6233, %v522
      %v6235 = vpop.permute.xlu0 %6234
      %6236 = vset.pattern.permute.xlu0 14
      %6237 = vperm.xlu0 %6236, %v523
      %v6238 = vpop.permute.xlu0 %6237
      %6239 = vset.pattern.permute.xlu0 14
      %6240 = vperm.xlu0 %6239, %v524
      %v6241 = vpop.permute.xlu0 %6240
      %6242 = vset.pattern.permute.xlu0 14
      %6243 = vperm.xlu0 %6242, %v525
      %v6244 = vpop.permute.xlu0 %6243
      %6245 = vset.pattern.permute.xlu0 14
      %6246 = vperm.xlu0 %6245, %v526
      %v6247 = vpop.permute.xlu0 %6246
      %6248 = vset.pattern.permute.xlu0 14
      %6249 = vperm.xlu0 %6248, %v527
      %v6250 = vpop.permute.xlu0 %6249
      %6251 = vset.pattern.permute.xlu0 14
      %6252 = vperm.xlu0 %6251, %v528
      %v6253 = vpop.permute.xlu0 %6252
      %6254 = vset.pattern.permute.xlu0 14
      %6255 = vperm.xlu0 %6254, %v529
      %v6256 = vpop.permute.xlu0 %6255
      %6257 = vset.pattern.permute.xlu0 14
      %6258 = vperm.xlu0 %6257, %v530
      %v6259 = vpop.permute.xlu0 %6258
      %6260 = vset.pattern.permute.xlu0 14
      %6261 = vperm.xlu0 %6260, %v531
      %v6262 = vpop.permute.xlu0 %6261
      %vm6263 = vcmp.eq.s32.totalorder %v805, %v6217
      %vm6264 = vcmp.eq.s32.totalorder %v806, %v6217
      %vm6265 = vcmp.eq.s32.totalorder %v805, %v6220
      %vm6266 = vcmp.eq.s32.totalorder %v806, %v6220
      %vm6267 = vcmp.eq.s32.totalorder %v805, %v6223
      %vm6268 = vcmp.eq.s32.totalorder %v806, %v6223
      %vm6269 = vcmp.eq.s32.totalorder %v805, %v6226
      %vm6270 = vcmp.eq.s32.totalorder %v806, %v6226
      %vm6271 = vcmp.eq.s32.totalorder %v805, %v6229
      %vm6272 = vcmp.eq.s32.totalorder %v806, %v6229
      %vm6273 = vcmp.eq.s32.totalorder %v805, %v6232
      %vm6274 = vcmp.eq.s32.totalorder %v806, %v6232
      %vm6275 = vcmp.eq.s32.totalorder %v805, %v6235
      %vm6276 = vcmp.eq.s32.totalorder %v806, %v6235
      %vm6277 = vcmp.eq.s32.totalorder %v805, %v6238
      %vm6278 = vcmp.eq.s32.totalorder %v806, %v6238
      %vm6279 = vcmp.eq.s32.totalorder %v805, %v6241
      %vm6280 = vcmp.eq.s32.totalorder %v806, %v6241
      %vm6281 = vcmp.eq.s32.totalorder %v805, %v6244
      %vm6282 = vcmp.eq.s32.totalorder %v806, %v6244
      %vm6283 = vcmp.eq.s32.totalorder %v805, %v6247
      %vm6284 = vcmp.eq.s32.totalorder %v806, %v6247
      %vm6285 = vcmp.eq.s32.totalorder %v805, %v6250
      %vm6286 = vcmp.eq.s32.totalorder %v806, %v6250
      %vm6287 = vcmp.eq.s32.totalorder %v805, %v6253
      %vm6288 = vcmp.eq.s32.totalorder %v806, %v6253
      %vm6289 = vcmp.eq.s32.totalorder %v805, %v6256
      %vm6290 = vcmp.eq.s32.totalorder %v806, %v6256
      %vm6291 = vcmp.eq.s32.totalorder %v805, %v6259
      %vm6292 = vcmp.eq.s32.totalorder %v806, %v6259
      %vm6293 = vcmp.eq.s32.totalorder %v805, %v6262
      %vm6294 = vcmp.eq.s32.totalorder %v806, %v6262
      %6295 = vset.pattern.permute.xlu0 14
      %6296 = vperm.xlu0 %6295, %v756
      %v6297 = vpop.permute.xlu0 %6296
      %6299 = vset.pattern.permute.xlu0 14
      %6300 = vperm.xlu0 %6299, %v757
      %v6301 = vpop.permute.xlu0 %6300
      %6303 = vset.pattern.permute.xlu0 14
      %6304 = vperm.xlu0 %6303, %v758
      %v6305 = vpop.permute.xlu0 %6304
      %6307 = vset.pattern.permute.xlu0 14
      %6308 = vperm.xlu0 %6307, %v759
      %v6309 = vpop.permute.xlu0 %6308
      %6311 = vset.pattern.permute.xlu0 14
      %6312 = vperm.xlu0 %6311, %v760
      %v6313 = vpop.permute.xlu0 %6312
      %6315 = vset.pattern.permute.xlu0 14
      %6316 = vperm.xlu0 %6315, %v761
      %v6317 = vpop.permute.xlu0 %6316
      %6319 = vset.pattern.permute.xlu0 14
      %6320 = vperm.xlu0 %6319, %v762
      %v6321 = vpop.permute.xlu0 %6320
      %6323 = vset.pattern.permute.xlu0 14
      %6324 = vperm.xlu0 %6323, %v763
      %v6325 = vpop.permute.xlu0 %6324
      %6327 = vset.pattern.permute.xlu0 14
      %6328 = vperm.xlu0 %6327, %v764
      %v6329 = vpop.permute.xlu0 %6328
      %6331 = vset.pattern.permute.xlu0 14
      %6332 = vperm.xlu0 %6331, %v765
      %v6333 = vpop.permute.xlu0 %6332
      %6335 = vset.pattern.permute.xlu0 14
      %6336 = vperm.xlu0 %6335, %v766
      %v6337 = vpop.permute.xlu0 %6336
      %6339 = vset.pattern.permute.xlu0 14
      %6340 = vperm.xlu0 %6339, %v767
      %v6341 = vpop.permute.xlu0 %6340
      %6343 = vset.pattern.permute.xlu0 14
      %6344 = vperm.xlu0 %6343, %v768
      %v6345 = vpop.permute.xlu0 %6344
      %6347 = vset.pattern.permute.xlu0 14
      %6348 = vperm.xlu0 %6347, %v769
      %v6349 = vpop.permute.xlu0 %6348
      %6351 = vset.pattern.permute.xlu0 14
      %6352 = vperm.xlu0 %6351, %v770
      %v6353 = vpop.permute.xlu0 %6352
      %6355 = vset.pattern.permute.xlu0 14
      %6356 = vperm.xlu0 %6355, %v771
      %v6357 = vpop.permute.xlu0 %6356
      %v6359 = vsel %vm6263, %v6297, 0.0
      %v6360 = vsel %vm6264, %v6297, 0.0
      %v6361 = vsel %vm6265, %v6301, 0.0
      %v6362 = vsel %vm6266, %v6301, 0.0
      %v6363 = vsel %vm6267, %v6305, 0.0
      %v6364 = vsel %vm6268, %v6305, 0.0
      %v6365 = vsel %vm6269, %v6309, 0.0
      %v6366 = vsel %vm6270, %v6309, 0.0
      %v6367 = vsel %vm6271, %v6313, 0.0
      %v6368 = vsel %vm6272, %v6313, 0.0
      %v6369 = vsel %vm6273, %v6317, 0.0
      %v6370 = vsel %vm6274, %v6317, 0.0
      %v6371 = vsel %vm6275, %v6321, 0.0
      %v6372 = vsel %vm6276, %v6321, 0.0
      %v6373 = vsel %vm6277, %v6325, 0.0
      %v6374 = vsel %vm6278, %v6325, 0.0
      %v6375 = vsel %vm6279, %v6329, 0.0
      %v6376 = vsel %vm6280, %v6329, 0.0
      %v6377 = vsel %vm6281, %v6333, 0.0
      %v6378 = vsel %vm6282, %v6333, 0.0
      %v6379 = vsel %vm6283, %v6337, 0.0
      %v6380 = vsel %vm6284, %v6337, 0.0
      %v6381 = vsel %vm6285, %v6341, 0.0
      %v6382 = vsel %vm6286, %v6341, 0.0
      %v6383 = vsel %vm6287, %v6345, 0.0
      %v6384 = vsel %vm6288, %v6345, 0.0
      %v6385 = vsel %vm6289, %v6349, 0.0
      %v6386 = vsel %vm6290, %v6349, 0.0
      %v6387 = vsel %vm6291, %v6353, 0.0
      %v6388 = vsel %vm6292, %v6353, 0.0
      %v6389 = vsel %vm6293, %v6357, 0.0
      %v6390 = vsel %vm6294, %v6357, 0.0
      %v6391 = vadd.f32 %v6183, %v6359
      %v6392 = vadd.f32 %v6184, %v6360
      %v6393 = vadd.f32 %v6185, %v6361
      %v6394 = vadd.f32 %v6186, %v6362
      %v6395 = vadd.f32 %v6187, %v6363
      %v6396 = vadd.f32 %v6188, %v6364
      %v6397 = vadd.f32 %v6189, %v6365
      %v6398 = vadd.f32 %v6190, %v6366
      %v6399 = vadd.f32 %v6191, %v6367
      %v6400 = vadd.f32 %v6192, %v6368
      %v6401 = vadd.f32 %v6193, %v6369
      %v6402 = vadd.f32 %v6194, %v6370
      %v6403 = vadd.f32 %v6195, %v6371
      %v6404 = vadd.f32 %v6196, %v6372
      %v6405 = vadd.f32 %v6197, %v6373
      %v6406 = vadd.f32 %v6198, %v6374
      %v6407 = vadd.f32 %v6199, %v6375
      %v6408 = vadd.f32 %v6200, %v6376
      %v6409 = vadd.f32 %v6201, %v6377
      %v6410 = vadd.f32 %v6202, %v6378
      %v6411 = vadd.f32 %v6203, %v6379
      %v6412 = vadd.f32 %v6204, %v6380
      %v6413 = vadd.f32 %v6205, %v6381
      %v6414 = vadd.f32 %v6206, %v6382
      %v6415 = vadd.f32 %v6207, %v6383
      %v6416 = vadd.f32 %v6208, %v6384
      %v6417 = vadd.f32 %v6209, %v6385
      %v6418 = vadd.f32 %v6210, %v6386
      %v6419 = vadd.f32 %v6211, %v6387
      %v6420 = vadd.f32 %v6212, %v6388
      %v6421 = vadd.f32 %v6213, %v6389
      %v6422 = vadd.f32 %v6214, %v6390
      %6423 = vset.pattern.permute.xlu0 14
      %6424 = vperm.xlu0 %6423, %v532
      %v6425 = vpop.permute.xlu0 %6424
      %6426 = vset.pattern.permute.xlu0 14
      %6427 = vperm.xlu0 %6426, %v533
      %v6428 = vpop.permute.xlu0 %6427
      %6429 = vset.pattern.permute.xlu0 14
      %6430 = vperm.xlu0 %6429, %v534
      %v6431 = vpop.permute.xlu0 %6430
      %6432 = vset.pattern.permute.xlu0 14
      %6433 = vperm.xlu0 %6432, %v535
      %v6434 = vpop.permute.xlu0 %6433
      %6435 = vset.pattern.permute.xlu0 14
      %6436 = vperm.xlu0 %6435, %v536
      %v6437 = vpop.permute.xlu0 %6436
      %6438 = vset.pattern.permute.xlu0 14
      %6439 = vperm.xlu0 %6438, %v537
      %v6440 = vpop.permute.xlu0 %6439
      %6441 = vset.pattern.permute.xlu0 14
      %6442 = vperm.xlu0 %6441, %v538
      %v6443 = vpop.permute.xlu0 %6442
      %6444 = vset.pattern.permute.xlu0 14
      %6445 = vperm.xlu0 %6444, %v539
      %v6446 = vpop.permute.xlu0 %6445
      %6447 = vset.pattern.permute.xlu0 14
      %6448 = vperm.xlu0 %6447, %v540
      %v6449 = vpop.permute.xlu0 %6448
      %6450 = vset.pattern.permute.xlu0 14
      %6451 = vperm.xlu0 %6450, %v541
      %v6452 = vpop.permute.xlu0 %6451
      %6453 = vset.pattern.permute.xlu0 14
      %6454 = vperm.xlu0 %6453, %v542
      %v6455 = vpop.permute.xlu0 %6454
      %6456 = vset.pattern.permute.xlu0 14
      %6457 = vperm.xlu0 %6456, %v543
      %v6458 = vpop.permute.xlu0 %6457
      %6459 = vset.pattern.permute.xlu0 14
      %6460 = vperm.xlu0 %6459, %v544
      %v6461 = vpop.permute.xlu0 %6460
      %6462 = vset.pattern.permute.xlu0 14
      %6463 = vperm.xlu0 %6462, %v545
      %v6464 = vpop.permute.xlu0 %6463
      %6465 = vset.pattern.permute.xlu0 14
      %6466 = vperm.xlu0 %6465, %v546
      %v6467 = vpop.permute.xlu0 %6466
      %6468 = vset.pattern.permute.xlu0 14
      %6469 = vperm.xlu0 %6468, %v547
      %v6470 = vpop.permute.xlu0 %6469
      %vm6471 = vcmp.eq.s32.totalorder %v805, %v6425
      %vm6472 = vcmp.eq.s32.totalorder %v806, %v6425
      %vm6473 = vcmp.eq.s32.totalorder %v805, %v6428
      %vm6474 = vcmp.eq.s32.totalorder %v806, %v6428
      %vm6475 = vcmp.eq.s32.totalorder %v805, %v6431
      %vm6476 = vcmp.eq.s32.totalorder %v806, %v6431
      %vm6477 = vcmp.eq.s32.totalorder %v805, %v6434
      %vm6478 = vcmp.eq.s32.totalorder %v806, %v6434
      %vm6479 = vcmp.eq.s32.totalorder %v805, %v6437
      %vm6480 = vcmp.eq.s32.totalorder %v806, %v6437
      %vm6481 = vcmp.eq.s32.totalorder %v805, %v6440
      %vm6482 = vcmp.eq.s32.totalorder %v806, %v6440
      %vm6483 = vcmp.eq.s32.totalorder %v805, %v6443
      %vm6484 = vcmp.eq.s32.totalorder %v806, %v6443
      %vm6485 = vcmp.eq.s32.totalorder %v805, %v6446
      %vm6486 = vcmp.eq.s32.totalorder %v806, %v6446
      %vm6487 = vcmp.eq.s32.totalorder %v805, %v6449
      %vm6488 = vcmp.eq.s32.totalorder %v806, %v6449
      %vm6489 = vcmp.eq.s32.totalorder %v805, %v6452
      %vm6490 = vcmp.eq.s32.totalorder %v806, %v6452
      %vm6491 = vcmp.eq.s32.totalorder %v805, %v6455
      %vm6492 = vcmp.eq.s32.totalorder %v806, %v6455
      %vm6493 = vcmp.eq.s32.totalorder %v805, %v6458
      %vm6494 = vcmp.eq.s32.totalorder %v806, %v6458
      %vm6495 = vcmp.eq.s32.totalorder %v805, %v6461
      %vm6496 = vcmp.eq.s32.totalorder %v806, %v6461
      %vm6497 = vcmp.eq.s32.totalorder %v805, %v6464
      %vm6498 = vcmp.eq.s32.totalorder %v806, %v6464
      %vm6499 = vcmp.eq.s32.totalorder %v805, %v6467
      %vm6500 = vcmp.eq.s32.totalorder %v806, %v6467
      %vm6501 = vcmp.eq.s32.totalorder %v805, %v6470
      %vm6502 = vcmp.eq.s32.totalorder %v806, %v6470
      %6503 = vset.pattern.permute.xlu0 14
      %6504 = vperm.xlu0 %6503, %v788
      %v6505 = vpop.permute.xlu0 %6504
      %6507 = vset.pattern.permute.xlu0 14
      %6508 = vperm.xlu0 %6507, %v789
      %v6509 = vpop.permute.xlu0 %6508
      %6511 = vset.pattern.permute.xlu0 14
      %6512 = vperm.xlu0 %6511, %v790
      %v6513 = vpop.permute.xlu0 %6512
      %6515 = vset.pattern.permute.xlu0 14
      %6516 = vperm.xlu0 %6515, %v791
      %v6517 = vpop.permute.xlu0 %6516
      %6519 = vset.pattern.permute.xlu0 14
      %6520 = vperm.xlu0 %6519, %v792
      %v6521 = vpop.permute.xlu0 %6520
      %6523 = vset.pattern.permute.xlu0 14
      %6524 = vperm.xlu0 %6523, %v793
      %v6525 = vpop.permute.xlu0 %6524
      %6527 = vset.pattern.permute.xlu0 14
      %6528 = vperm.xlu0 %6527, %v794
      %v6529 = vpop.permute.xlu0 %6528
      %6531 = vset.pattern.permute.xlu0 14
      %6532 = vperm.xlu0 %6531, %v795
      %v6533 = vpop.permute.xlu0 %6532
      %6535 = vset.pattern.permute.xlu0 14
      %6536 = vperm.xlu0 %6535, %v796
      %v6537 = vpop.permute.xlu0 %6536
      %6539 = vset.pattern.permute.xlu0 14
      %6540 = vperm.xlu0 %6539, %v797
      %v6541 = vpop.permute.xlu0 %6540
      %6543 = vset.pattern.permute.xlu0 14
      %6544 = vperm.xlu0 %6543, %v798
      %v6545 = vpop.permute.xlu0 %6544
      %6547 = vset.pattern.permute.xlu0 14
      %6548 = vperm.xlu0 %6547, %v799
      %v6549 = vpop.permute.xlu0 %6548
      %6551 = vset.pattern.permute.xlu0 14
      %6552 = vperm.xlu0 %6551, %v800
      %v6553 = vpop.permute.xlu0 %6552
      %6555 = vset.pattern.permute.xlu0 14
      %6556 = vperm.xlu0 %6555, %v801
      %v6557 = vpop.permute.xlu0 %6556
      %6559 = vset.pattern.permute.xlu0 14
      %6560 = vperm.xlu0 %6559, %v802
      %v6561 = vpop.permute.xlu0 %6560
      %6563 = vset.pattern.permute.xlu0 14
      %6564 = vperm.xlu0 %6563, %v803
      %v6565 = vpop.permute.xlu0 %6564
      %v6567 = vsel %vm6471, %v6505, 0.0
      %v6568 = vsel %vm6472, %v6505, 0.0
      %v6569 = vsel %vm6473, %v6509, 0.0
      %v6570 = vsel %vm6474, %v6509, 0.0
      %v6571 = vsel %vm6475, %v6513, 0.0
      %v6572 = vsel %vm6476, %v6513, 0.0
      %v6573 = vsel %vm6477, %v6517, 0.0
      %v6574 = vsel %vm6478, %v6517, 0.0
      %v6575 = vsel %vm6479, %v6521, 0.0
      %v6576 = vsel %vm6480, %v6521, 0.0
      %v6577 = vsel %vm6481, %v6525, 0.0
      %v6578 = vsel %vm6482, %v6525, 0.0
      %v6579 = vsel %vm6483, %v6529, 0.0
      %v6580 = vsel %vm6484, %v6529, 0.0
      %v6581 = vsel %vm6485, %v6533, 0.0
      %v6582 = vsel %vm6486, %v6533, 0.0
      %v6583 = vsel %vm6487, %v6537, 0.0
      %v6584 = vsel %vm6488, %v6537, 0.0
      %v6585 = vsel %vm6489, %v6541, 0.0
      %v6586 = vsel %vm6490, %v6541, 0.0
      %v6587 = vsel %vm6491, %v6545, 0.0
      %v6588 = vsel %vm6492, %v6545, 0.0
      %v6589 = vsel %vm6493, %v6549, 0.0
      %v6590 = vsel %vm6494, %v6549, 0.0
      %v6591 = vsel %vm6495, %v6553, 0.0
      %v6592 = vsel %vm6496, %v6553, 0.0
      %v6593 = vsel %vm6497, %v6557, 0.0
      %v6594 = vsel %vm6498, %v6557, 0.0
      %v6595 = vsel %vm6499, %v6561, 0.0
      %v6596 = vsel %vm6500, %v6561, 0.0
      %v6597 = vsel %vm6501, %v6565, 0.0
      %v6598 = vsel %vm6502, %v6565, 0.0
      %v6599 = vadd.f32 %v6391, %v6567
      %v6600 = vadd.f32 %v6392, %v6568
      %v6601 = vadd.f32 %v6393, %v6569
      %v6602 = vadd.f32 %v6394, %v6570
      %v6603 = vadd.f32 %v6395, %v6571
      %v6604 = vadd.f32 %v6396, %v6572
      %v6605 = vadd.f32 %v6397, %v6573
      %v6606 = vadd.f32 %v6398, %v6574
      %v6607 = vadd.f32 %v6399, %v6575
      %v6608 = vadd.f32 %v6400, %v6576
      %v6609 = vadd.f32 %v6401, %v6577
      %v6610 = vadd.f32 %v6402, %v6578
      %v6611 = vadd.f32 %v6403, %v6579
      %v6612 = vadd.f32 %v6404, %v6580
      %v6613 = vadd.f32 %v6405, %v6581
      %v6614 = vadd.f32 %v6406, %v6582
      %v6615 = vadd.f32 %v6407, %v6583
      %v6616 = vadd.f32 %v6408, %v6584
      %v6617 = vadd.f32 %v6409, %v6585
      %v6618 = vadd.f32 %v6410, %v6586
      %v6619 = vadd.f32 %v6411, %v6587
      %v6620 = vadd.f32 %v6412, %v6588
      %v6621 = vadd.f32 %v6413, %v6589
      %v6622 = vadd.f32 %v6414, %v6590
      %v6623 = vadd.f32 %v6415, %v6591
      %v6624 = vadd.f32 %v6416, %v6592
      %v6625 = vadd.f32 %v6417, %v6593
      %v6626 = vadd.f32 %v6418, %v6594
      %v6627 = vadd.f32 %v6419, %v6595
      %v6628 = vadd.f32 %v6420, %v6596
      %v6629 = vadd.f32 %v6421, %v6597
      %v6630 = vadd.f32 %v6422, %v6598
      %v6631 = vadd.f32 %v5799, %v6599
      %v6632 = vadd.f32 %v5800, %v6600
      %v6633 = vadd.f32 %v5801, %v6601
      %v6634 = vadd.f32 %v5802, %v6602
      %v6635 = vadd.f32 %v5803, %v6603
      %v6636 = vadd.f32 %v5804, %v6604
      %v6637 = vadd.f32 %v5805, %v6605
      %v6638 = vadd.f32 %v5806, %v6606
      %v6639 = vadd.f32 %v5807, %v6607
      %v6640 = vadd.f32 %v5808, %v6608
      %v6641 = vadd.f32 %v5809, %v6609
      %v6642 = vadd.f32 %v5810, %v6610
      %v6643 = vadd.f32 %v5811, %v6611
      %v6644 = vadd.f32 %v5812, %v6612
      %v6645 = vadd.f32 %v5813, %v6613
      %v6646 = vadd.f32 %v5814, %v6614
      %v6647 = vadd.f32 %v5815, %v6615
      %v6648 = vadd.f32 %v5816, %v6616
      %v6649 = vadd.f32 %v5817, %v6617
      %v6650 = vadd.f32 %v5818, %v6618
      %v6651 = vadd.f32 %v5819, %v6619
      %v6652 = vadd.f32 %v5820, %v6620
      %v6653 = vadd.f32 %v5821, %v6621
      %v6654 = vadd.f32 %v5822, %v6622
      %v6655 = vadd.f32 %v5823, %v6623
      %v6656 = vadd.f32 %v5824, %v6624
      %v6657 = vadd.f32 %v5825, %v6625
      %v6658 = vadd.f32 %v5826, %v6626
      %v6659 = vadd.f32 %v5827, %v6627
      %v6660 = vadd.f32 %v5828, %v6628
      %v6661 = vadd.f32 %v5829, %v6629
      %v6662 = vadd.f32 %v5830, %v6630
      %6663 = vset.pattern.permute.xlu0 15
      %6664 = vperm.xlu0 %6663, %v436
      %v6665 = vpop.permute.xlu0 %6664
      %6666 = vset.pattern.permute.xlu0 15
      %6667 = vperm.xlu0 %6666, %v437
      %v6668 = vpop.permute.xlu0 %6667
      %6669 = vset.pattern.permute.xlu0 15
      %6670 = vperm.xlu0 %6669, %v438
      %v6671 = vpop.permute.xlu0 %6670
      %6672 = vset.pattern.permute.xlu0 15
      %6673 = vperm.xlu0 %6672, %v439
      %v6674 = vpop.permute.xlu0 %6673
      %6675 = vset.pattern.permute.xlu0 15
      %6676 = vperm.xlu0 %6675, %v440
      %v6677 = vpop.permute.xlu0 %6676
      %6678 = vset.pattern.permute.xlu0 15
      %6679 = vperm.xlu0 %6678, %v441
      %v6680 = vpop.permute.xlu0 %6679
      %6681 = vset.pattern.permute.xlu0 15
      %6682 = vperm.xlu0 %6681, %v442
      %v6683 = vpop.permute.xlu0 %6682
      %6684 = vset.pattern.permute.xlu0 15
      %6685 = vperm.xlu0 %6684, %v443
      %v6686 = vpop.permute.xlu0 %6685
      %6687 = vset.pattern.permute.xlu0 15
      %6688 = vperm.xlu0 %6687, %v444
      %v6689 = vpop.permute.xlu0 %6688
      %6690 = vset.pattern.permute.xlu0 15
      %6691 = vperm.xlu0 %6690, %v445
      %v6692 = vpop.permute.xlu0 %6691
      %6693 = vset.pattern.permute.xlu0 15
      %6694 = vperm.xlu0 %6693, %v446
      %v6695 = vpop.permute.xlu0 %6694
      %6696 = vset.pattern.permute.xlu0 15
      %6697 = vperm.xlu0 %6696, %v447
      %v6698 = vpop.permute.xlu0 %6697
      %6699 = vset.pattern.permute.xlu0 15
      %6700 = vperm.xlu0 %6699, %v448
      %v6701 = vpop.permute.xlu0 %6700
      %6702 = vset.pattern.permute.xlu0 15
      %6703 = vperm.xlu0 %6702, %v449
      %v6704 = vpop.permute.xlu0 %6703
      %6705 = vset.pattern.permute.xlu0 15
      %6706 = vperm.xlu0 %6705, %v450
      %v6707 = vpop.permute.xlu0 %6706
      %6708 = vset.pattern.permute.xlu0 15
      %6709 = vperm.xlu0 %6708, %v451
      %v6710 = vpop.permute.xlu0 %6709
      %vm6711 = vcmp.eq.s32.totalorder %v805, %v6665
      %vm6712 = vcmp.eq.s32.totalorder %v806, %v6665
      %vm6713 = vcmp.eq.s32.totalorder %v805, %v6668
      %vm6714 = vcmp.eq.s32.totalorder %v806, %v6668
      %vm6715 = vcmp.eq.s32.totalorder %v805, %v6671
      %vm6716 = vcmp.eq.s32.totalorder %v806, %v6671
      %vm6717 = vcmp.eq.s32.totalorder %v805, %v6674
      %vm6718 = vcmp.eq.s32.totalorder %v806, %v6674
      %vm6719 = vcmp.eq.s32.totalorder %v805, %v6677
      %vm6720 = vcmp.eq.s32.totalorder %v806, %v6677
      %vm6721 = vcmp.eq.s32.totalorder %v805, %v6680
      %vm6722 = vcmp.eq.s32.totalorder %v806, %v6680
      %vm6723 = vcmp.eq.s32.totalorder %v805, %v6683
      %vm6724 = vcmp.eq.s32.totalorder %v806, %v6683
      %vm6725 = vcmp.eq.s32.totalorder %v805, %v6686
      %vm6726 = vcmp.eq.s32.totalorder %v806, %v6686
      %vm6727 = vcmp.eq.s32.totalorder %v805, %v6689
      %vm6728 = vcmp.eq.s32.totalorder %v806, %v6689
      %vm6729 = vcmp.eq.s32.totalorder %v805, %v6692
      %vm6730 = vcmp.eq.s32.totalorder %v806, %v6692
      %vm6731 = vcmp.eq.s32.totalorder %v805, %v6695
      %vm6732 = vcmp.eq.s32.totalorder %v806, %v6695
      %vm6733 = vcmp.eq.s32.totalorder %v805, %v6698
      %vm6734 = vcmp.eq.s32.totalorder %v806, %v6698
      %vm6735 = vcmp.eq.s32.totalorder %v805, %v6701
      %vm6736 = vcmp.eq.s32.totalorder %v806, %v6701
      %vm6737 = vcmp.eq.s32.totalorder %v805, %v6704
      %vm6738 = vcmp.eq.s32.totalorder %v806, %v6704
      %vm6739 = vcmp.eq.s32.totalorder %v805, %v6707
      %vm6740 = vcmp.eq.s32.totalorder %v806, %v6707
      %vm6741 = vcmp.eq.s32.totalorder %v805, %v6710
      %vm6742 = vcmp.eq.s32.totalorder %v806, %v6710
      %6743 = vset.pattern.permute.xlu0 15
      %6744 = vperm.xlu0 %6743, %v628
      %v6745 = vpop.permute.xlu0 %6744
      %6747 = vset.pattern.permute.xlu0 15
      %6748 = vperm.xlu0 %6747, %v629
      %v6749 = vpop.permute.xlu0 %6748
      %6751 = vset.pattern.permute.xlu0 15
      %6752 = vperm.xlu0 %6751, %v630
      %v6753 = vpop.permute.xlu0 %6752
      %6755 = vset.pattern.permute.xlu0 15
      %6756 = vperm.xlu0 %6755, %v631
      %v6757 = vpop.permute.xlu0 %6756
      %6759 = vset.pattern.permute.xlu0 15
      %6760 = vperm.xlu0 %6759, %v632
      %v6761 = vpop.permute.xlu0 %6760
      %6763 = vset.pattern.permute.xlu0 15
      %6764 = vperm.xlu0 %6763, %v633
      %v6765 = vpop.permute.xlu0 %6764
      %6767 = vset.pattern.permute.xlu0 15
      %6768 = vperm.xlu0 %6767, %v634
      %v6769 = vpop.permute.xlu0 %6768
      %6771 = vset.pattern.permute.xlu0 15
      %6772 = vperm.xlu0 %6771, %v635
      %v6773 = vpop.permute.xlu0 %6772
      %6775 = vset.pattern.permute.xlu0 15
      %6776 = vperm.xlu0 %6775, %v636
      %v6777 = vpop.permute.xlu0 %6776
      %6779 = vset.pattern.permute.xlu0 15
      %6780 = vperm.xlu0 %6779, %v637
      %v6781 = vpop.permute.xlu0 %6780
      %6783 = vset.pattern.permute.xlu0 15
      %6784 = vperm.xlu0 %6783, %v638
      %v6785 = vpop.permute.xlu0 %6784
      %6787 = vset.pattern.permute.xlu0 15
      %6788 = vperm.xlu0 %6787, %v639
      %v6789 = vpop.permute.xlu0 %6788
      %6791 = vset.pattern.permute.xlu0 15
      %6792 = vperm.xlu0 %6791, %v640
      %v6793 = vpop.permute.xlu0 %6792
      %6795 = vset.pattern.permute.xlu0 15
      %6796 = vperm.xlu0 %6795, %v641
      %v6797 = vpop.permute.xlu0 %6796
      %6799 = vset.pattern.permute.xlu0 15
      %6800 = vperm.xlu0 %6799, %v642
      %v6801 = vpop.permute.xlu0 %6800
      %6803 = vset.pattern.permute.xlu0 15
      %6804 = vperm.xlu0 %6803, %v643
      %v6805 = vpop.permute.xlu0 %6804
      %v6807 = vsel %vm6711, %v6745, 0.0
      %v6808 = vsel %vm6712, %v6745, 0.0
      %v6809 = vsel %vm6713, %v6749, 0.0
      %v6810 = vsel %vm6714, %v6749, 0.0
      %v6811 = vsel %vm6715, %v6753, 0.0
      %v6812 = vsel %vm6716, %v6753, 0.0
      %v6813 = vsel %vm6717, %v6757, 0.0
      %v6814 = vsel %vm6718, %v6757, 0.0
      %v6815 = vsel %vm6719, %v6761, 0.0
      %v6816 = vsel %vm6720, %v6761, 0.0
      %v6817 = vsel %vm6721, %v6765, 0.0
      %v6818 = vsel %vm6722, %v6765, 0.0
      %v6819 = vsel %vm6723, %v6769, 0.0
      %v6820 = vsel %vm6724, %v6769, 0.0
      %v6821 = vsel %vm6725, %v6773, 0.0
      %v6822 = vsel %vm6726, %v6773, 0.0
      %v6823 = vsel %vm6727, %v6777, 0.0
      %v6824 = vsel %vm6728, %v6777, 0.0
      %v6825 = vsel %vm6729, %v6781, 0.0
      %v6826 = vsel %vm6730, %v6781, 0.0
      %v6827 = vsel %vm6731, %v6785, 0.0
      %v6828 = vsel %vm6732, %v6785, 0.0
      %v6829 = vsel %vm6733, %v6789, 0.0
      %v6830 = vsel %vm6734, %v6789, 0.0
      %v6831 = vsel %vm6735, %v6793, 0.0
      %v6832 = vsel %vm6736, %v6793, 0.0
      %v6833 = vsel %vm6737, %v6797, 0.0
      %v6834 = vsel %vm6738, %v6797, 0.0
      %v6835 = vsel %vm6739, %v6801, 0.0
      %v6836 = vsel %vm6740, %v6801, 0.0
      %v6837 = vsel %vm6741, %v6805, 0.0
      %v6838 = vsel %vm6742, %v6805, 0.0
      %6839 = vset.pattern.permute.xlu0 15
      %6840 = vperm.xlu0 %6839, %v484
      %v6841 = vpop.permute.xlu0 %6840
      %6842 = vset.pattern.permute.xlu0 15
      %6843 = vperm.xlu0 %6842, %v485
      %v6844 = vpop.permute.xlu0 %6843
      %6845 = vset.pattern.permute.xlu0 15
      %6846 = vperm.xlu0 %6845, %v486
      %v6847 = vpop.permute.xlu0 %6846
      %6848 = vset.pattern.permute.xlu0 15
      %6849 = vperm.xlu0 %6848, %v487
      %v6850 = vpop.permute.xlu0 %6849
      %6851 = vset.pattern.permute.xlu0 15
      %6852 = vperm.xlu0 %6851, %v488
      %v6853 = vpop.permute.xlu0 %6852
      %6854 = vset.pattern.permute.xlu0 15
      %6855 = vperm.xlu0 %6854, %v489
      %v6856 = vpop.permute.xlu0 %6855
      %6857 = vset.pattern.permute.xlu0 15
      %6858 = vperm.xlu0 %6857, %v490
      %v6859 = vpop.permute.xlu0 %6858
      %6860 = vset.pattern.permute.xlu0 15
      %6861 = vperm.xlu0 %6860, %v491
      %v6862 = vpop.permute.xlu0 %6861
      %6863 = vset.pattern.permute.xlu0 15
      %6864 = vperm.xlu0 %6863, %v492
      %v6865 = vpop.permute.xlu0 %6864
      %6866 = vset.pattern.permute.xlu0 15
      %6867 = vperm.xlu0 %6866, %v493
      %v6868 = vpop.permute.xlu0 %6867
      %6869 = vset.pattern.permute.xlu0 15
      %6870 = vperm.xlu0 %6869, %v494
      %v6871 = vpop.permute.xlu0 %6870
      %6872 = vset.pattern.permute.xlu0 15
      %6873 = vperm.xlu0 %6872, %v495
      %v6874 = vpop.permute.xlu0 %6873
      %6875 = vset.pattern.permute.xlu0 15
      %6876 = vperm.xlu0 %6875, %v496
      %v6877 = vpop.permute.xlu0 %6876
      %6878 = vset.pattern.permute.xlu0 15
      %6879 = vperm.xlu0 %6878, %v497
      %v6880 = vpop.permute.xlu0 %6879
      %6881 = vset.pattern.permute.xlu0 15
      %6882 = vperm.xlu0 %6881, %v498
      %v6883 = vpop.permute.xlu0 %6882
      %6884 = vset.pattern.permute.xlu0 15
      %6885 = vperm.xlu0 %6884, %v499
      %v6886 = vpop.permute.xlu0 %6885
      %vm6887 = vcmp.eq.s32.totalorder %v805, %v6841
      %vm6888 = vcmp.eq.s32.totalorder %v806, %v6841
      %vm6889 = vcmp.eq.s32.totalorder %v805, %v6844
      %vm6890 = vcmp.eq.s32.totalorder %v806, %v6844
      %vm6891 = vcmp.eq.s32.totalorder %v805, %v6847
      %vm6892 = vcmp.eq.s32.totalorder %v806, %v6847
      %vm6893 = vcmp.eq.s32.totalorder %v805, %v6850
      %vm6894 = vcmp.eq.s32.totalorder %v806, %v6850
      %vm6895 = vcmp.eq.s32.totalorder %v805, %v6853
      %vm6896 = vcmp.eq.s32.totalorder %v806, %v6853
      %vm6897 = vcmp.eq.s32.totalorder %v805, %v6856
      %vm6898 = vcmp.eq.s32.totalorder %v806, %v6856
      %vm6899 = vcmp.eq.s32.totalorder %v805, %v6859
      %vm6900 = vcmp.eq.s32.totalorder %v806, %v6859
      %vm6901 = vcmp.eq.s32.totalorder %v805, %v6862
      %vm6902 = vcmp.eq.s32.totalorder %v806, %v6862
      %vm6903 = vcmp.eq.s32.totalorder %v805, %v6865
      %vm6904 = vcmp.eq.s32.totalorder %v806, %v6865
      %vm6905 = vcmp.eq.s32.totalorder %v805, %v6868
      %vm6906 = vcmp.eq.s32.totalorder %v806, %v6868
      %vm6907 = vcmp.eq.s32.totalorder %v805, %v6871
      %vm6908 = vcmp.eq.s32.totalorder %v806, %v6871
      %vm6909 = vcmp.eq.s32.totalorder %v805, %v6874
      %vm6910 = vcmp.eq.s32.totalorder %v806, %v6874
      %vm6911 = vcmp.eq.s32.totalorder %v805, %v6877
      %vm6912 = vcmp.eq.s32.totalorder %v806, %v6877
      %vm6913 = vcmp.eq.s32.totalorder %v805, %v6880
      %vm6914 = vcmp.eq.s32.totalorder %v806, %v6880
      %vm6915 = vcmp.eq.s32.totalorder %v805, %v6883
      %vm6916 = vcmp.eq.s32.totalorder %v806, %v6883
      %vm6917 = vcmp.eq.s32.totalorder %v805, %v6886
      %vm6918 = vcmp.eq.s32.totalorder %v806, %v6886
      %6919 = vset.pattern.permute.xlu0 15
      %6920 = vperm.xlu0 %6919, %v724
      %v6921 = vpop.permute.xlu0 %6920
      %6923 = vset.pattern.permute.xlu0 15
      %6924 = vperm.xlu0 %6923, %v725
      %v6925 = vpop.permute.xlu0 %6924
      %6927 = vset.pattern.permute.xlu0 15
      %6928 = vperm.xlu0 %6927, %v726
      %v6929 = vpop.permute.xlu0 %6928
      %6931 = vset.pattern.permute.xlu0 15
      %6932 = vperm.xlu0 %6931, %v727
      %v6933 = vpop.permute.xlu0 %6932
      %6935 = vset.pattern.permute.xlu0 15
      %6936 = vperm.xlu0 %6935, %v728
      %v6937 = vpop.permute.xlu0 %6936
      %6939 = vset.pattern.permute.xlu0 15
      %6940 = vperm.xlu0 %6939, %v729
      %v6941 = vpop.permute.xlu0 %6940
      %6943 = vset.pattern.permute.xlu0 15
      %6944 = vperm.xlu0 %6943, %v730
      %v6945 = vpop.permute.xlu0 %6944
      %6947 = vset.pattern.permute.xlu0 15
      %6948 = vperm.xlu0 %6947, %v731
      %v6949 = vpop.permute.xlu0 %6948
      %6951 = vset.pattern.permute.xlu0 15
      %6952 = vperm.xlu0 %6951, %v732
      %v6953 = vpop.permute.xlu0 %6952
      %6955 = vset.pattern.permute.xlu0 15
      %6956 = vperm.xlu0 %6955, %v733
      %v6957 = vpop.permute.xlu0 %6956
      %6959 = vset.pattern.permute.xlu0 15
      %6960 = vperm.xlu0 %6959, %v734
      %v6961 = vpop.permute.xlu0 %6960
      %6963 = vset.pattern.permute.xlu0 15
      %6964 = vperm.xlu0 %6963, %v735
      %v6965 = vpop.permute.xlu0 %6964
      %6967 = vset.pattern.permute.xlu0 15
      %6968 = vperm.xlu0 %6967, %v736
      %v6969 = vpop.permute.xlu0 %6968
      %6971 = vset.pattern.permute.xlu0 15
      %6972 = vperm.xlu0 %6971, %v737
      %v6973 = vpop.permute.xlu0 %6972
      %6975 = vset.pattern.permute.xlu0 15
      %6976 = vperm.xlu0 %6975, %v738
      %v6977 = vpop.permute.xlu0 %6976
      %6979 = vset.pattern.permute.xlu0 15
      %6980 = vperm.xlu0 %6979, %v739
      %v6981 = vpop.permute.xlu0 %6980
      %v6983 = vsel %vm6887, %v6921, 0.0
      %v6984 = vsel %vm6888, %v6921, 0.0
      %v6985 = vsel %vm6889, %v6925, 0.0
      %v6986 = vsel %vm6890, %v6925, 0.0
      %v6987 = vsel %vm6891, %v6929, 0.0
      %v6988 = vsel %vm6892, %v6929, 0.0
      %v6989 = vsel %vm6893, %v6933, 0.0
      %v6990 = vsel %vm6894, %v6933, 0.0
      %v6991 = vsel %vm6895, %v6937, 0.0
      %v6992 = vsel %vm6896, %v6937, 0.0
      %v6993 = vsel %vm6897, %v6941, 0.0
      %v6994 = vsel %vm6898, %v6941, 0.0
      %v6995 = vsel %vm6899, %v6945, 0.0
      %v6996 = vsel %vm6900, %v6945, 0.0
      %v6997 = vsel %vm6901, %v6949, 0.0
      %v6998 = vsel %vm6902, %v6949, 0.0
      %v6999 = vsel %vm6903, %v6953, 0.0
      %v7000 = vsel %vm6904, %v6953, 0.0
      %v7001 = vsel %vm6905, %v6957, 0.0
      %v7002 = vsel %vm6906, %v6957, 0.0
      %v7003 = vsel %vm6907, %v6961, 0.0
      %v7004 = vsel %vm6908, %v6961, 0.0
      %v7005 = vsel %vm6909, %v6965, 0.0
      %v7006 = vsel %vm6910, %v6965, 0.0
      %v7007 = vsel %vm6911, %v6969, 0.0
      %v7008 = vsel %vm6912, %v6969, 0.0
      %v7009 = vsel %vm6913, %v6973, 0.0
      %v7010 = vsel %vm6914, %v6973, 0.0
      %v7011 = vsel %vm6915, %v6977, 0.0
      %v7012 = vsel %vm6916, %v6977, 0.0
      %v7013 = vsel %vm6917, %v6981, 0.0
      %v7014 = vsel %vm6918, %v6981, 0.0
      %v7015 = vadd.f32 %v6807, %v6983
      %v7016 = vadd.f32 %v6808, %v6984
      %v7017 = vadd.f32 %v6809, %v6985
      %v7018 = vadd.f32 %v6810, %v6986
      %v7019 = vadd.f32 %v6811, %v6987
      %v7020 = vadd.f32 %v6812, %v6988
      %v7021 = vadd.f32 %v6813, %v6989
      %v7022 = vadd.f32 %v6814, %v6990
      %v7023 = vadd.f32 %v6815, %v6991
      %v7024 = vadd.f32 %v6816, %v6992
      %v7025 = vadd.f32 %v6817, %v6993
      %v7026 = vadd.f32 %v6818, %v6994
      %v7027 = vadd.f32 %v6819, %v6995
      %v7028 = vadd.f32 %v6820, %v6996
      %v7029 = vadd.f32 %v6821, %v6997
      %v7030 = vadd.f32 %v6822, %v6998
      %v7031 = vadd.f32 %v6823, %v6999
      %v7032 = vadd.f32 %v6824, %v7000
      %v7033 = vadd.f32 %v6825, %v7001
      %v7034 = vadd.f32 %v6826, %v7002
      %v7035 = vadd.f32 %v6827, %v7003
      %v7036 = vadd.f32 %v6828, %v7004
      %v7037 = vadd.f32 %v6829, %v7005
      %v7038 = vadd.f32 %v6830, %v7006
      %v7039 = vadd.f32 %v6831, %v7007
      %v7040 = vadd.f32 %v6832, %v7008
      %v7041 = vadd.f32 %v6833, %v7009
      %v7042 = vadd.f32 %v6834, %v7010
      %v7043 = vadd.f32 %v6835, %v7011
      %v7044 = vadd.f32 %v6836, %v7012
      %v7045 = vadd.f32 %v6837, %v7013
      %v7046 = vadd.f32 %v6838, %v7014
      %7047 = vset.pattern.permute.xlu0 15
      %7048 = vperm.xlu0 %7047, %v516
      %v7049 = vpop.permute.xlu0 %7048
      %7050 = vset.pattern.permute.xlu0 15
      %7051 = vperm.xlu0 %7050, %v517
      %v7052 = vpop.permute.xlu0 %7051
      %7053 = vset.pattern.permute.xlu0 15
      %7054 = vperm.xlu0 %7053, %v518
      %v7055 = vpop.permute.xlu0 %7054
      %7056 = vset.pattern.permute.xlu0 15
      %7057 = vperm.xlu0 %7056, %v519
      %v7058 = vpop.permute.xlu0 %7057
      %7059 = vset.pattern.permute.xlu0 15
      %7060 = vperm.xlu0 %7059, %v520
      %v7061 = vpop.permute.xlu0 %7060
      %7062 = vset.pattern.permute.xlu0 15
      %7063 = vperm.xlu0 %7062, %v521
      %v7064 = vpop.permute.xlu0 %7063
      %7065 = vset.pattern.permute.xlu0 15
      %7066 = vperm.xlu0 %7065, %v522
      %v7067 = vpop.permute.xlu0 %7066
      %7068 = vset.pattern.permute.xlu0 15
      %7069 = vperm.xlu0 %7068, %v523
      %v7070 = vpop.permute.xlu0 %7069
      %7071 = vset.pattern.permute.xlu0 15
      %7072 = vperm.xlu0 %7071, %v524
      %v7073 = vpop.permute.xlu0 %7072
      %7074 = vset.pattern.permute.xlu0 15
      %7075 = vperm.xlu0 %7074, %v525
      %v7076 = vpop.permute.xlu0 %7075
      %7077 = vset.pattern.permute.xlu0 15
      %7078 = vperm.xlu0 %7077, %v526
      %v7079 = vpop.permute.xlu0 %7078
      %7080 = vset.pattern.permute.xlu0 15
      %7081 = vperm.xlu0 %7080, %v527
      %v7082 = vpop.permute.xlu0 %7081
      %7083 = vset.pattern.permute.xlu0 15
      %7084 = vperm.xlu0 %7083, %v528
      %v7085 = vpop.permute.xlu0 %7084
      %7086 = vset.pattern.permute.xlu0 15
      %7087 = vperm.xlu0 %7086, %v529
      %v7088 = vpop.permute.xlu0 %7087
      %7089 = vset.pattern.permute.xlu0 15
      %7090 = vperm.xlu0 %7089, %v530
      %v7091 = vpop.permute.xlu0 %7090
      %7092 = vset.pattern.permute.xlu0 15
      %7093 = vperm.xlu0 %7092, %v531
      %v7094 = vpop.permute.xlu0 %7093
      %vm7095 = vcmp.eq.s32.totalorder %v805, %v7049
      %vm7096 = vcmp.eq.s32.totalorder %v806, %v7049
      %vm7097 = vcmp.eq.s32.totalorder %v805, %v7052
      %vm7098 = vcmp.eq.s32.totalorder %v806, %v7052
      %vm7099 = vcmp.eq.s32.totalorder %v805, %v7055
      %vm7100 = vcmp.eq.s32.totalorder %v806, %v7055
      %vm7101 = vcmp.eq.s32.totalorder %v805, %v7058
      %vm7102 = vcmp.eq.s32.totalorder %v806, %v7058
      %vm7103 = vcmp.eq.s32.totalorder %v805, %v7061
      %vm7104 = vcmp.eq.s32.totalorder %v806, %v7061
      %vm7105 = vcmp.eq.s32.totalorder %v805, %v7064
      %vm7106 = vcmp.eq.s32.totalorder %v806, %v7064
      %vm7107 = vcmp.eq.s32.totalorder %v805, %v7067
      %vm7108 = vcmp.eq.s32.totalorder %v806, %v7067
      %vm7109 = vcmp.eq.s32.totalorder %v805, %v7070
      %vm7110 = vcmp.eq.s32.totalorder %v806, %v7070
      %vm7111 = vcmp.eq.s32.totalorder %v805, %v7073
      %vm7112 = vcmp.eq.s32.totalorder %v806, %v7073
      %vm7113 = vcmp.eq.s32.totalorder %v805, %v7076
      %vm7114 = vcmp.eq.s32.totalorder %v806, %v7076
      %vm7115 = vcmp.eq.s32.totalorder %v805, %v7079
      %vm7116 = vcmp.eq.s32.totalorder %v806, %v7079
      %vm7117 = vcmp.eq.s32.totalorder %v805, %v7082
      %vm7118 = vcmp.eq.s32.totalorder %v806, %v7082
      %vm7119 = vcmp.eq.s32.totalorder %v805, %v7085
      %vm7120 = vcmp.eq.s32.totalorder %v806, %v7085
      %vm7121 = vcmp.eq.s32.totalorder %v805, %v7088
      %vm7122 = vcmp.eq.s32.totalorder %v806, %v7088
      %vm7123 = vcmp.eq.s32.totalorder %v805, %v7091
      %vm7124 = vcmp.eq.s32.totalorder %v806, %v7091
      %vm7125 = vcmp.eq.s32.totalorder %v805, %v7094
      %vm7126 = vcmp.eq.s32.totalorder %v806, %v7094
      %7127 = vset.pattern.permute.xlu0 15
      %7128 = vperm.xlu0 %7127, %v756
      %v7129 = vpop.permute.xlu0 %7128
      %7131 = vset.pattern.permute.xlu0 15
      %7132 = vperm.xlu0 %7131, %v757
      %v7133 = vpop.permute.xlu0 %7132
      %7135 = vset.pattern.permute.xlu0 15
      %7136 = vperm.xlu0 %7135, %v758
      %v7137 = vpop.permute.xlu0 %7136
      %7139 = vset.pattern.permute.xlu0 15
      %7140 = vperm.xlu0 %7139, %v759
      %v7141 = vpop.permute.xlu0 %7140
      %7143 = vset.pattern.permute.xlu0 15
      %7144 = vperm.xlu0 %7143, %v760
      %v7145 = vpop.permute.xlu0 %7144
      %7147 = vset.pattern.permute.xlu0 15
      %7148 = vperm.xlu0 %7147, %v761
      %v7149 = vpop.permute.xlu0 %7148
      %7151 = vset.pattern.permute.xlu0 15
      %7152 = vperm.xlu0 %7151, %v762
      %v7153 = vpop.permute.xlu0 %7152
      %7155 = vset.pattern.permute.xlu0 15
      %7156 = vperm.xlu0 %7155, %v763
      %v7157 = vpop.permute.xlu0 %7156
      %7159 = vset.pattern.permute.xlu0 15
      %7160 = vperm.xlu0 %7159, %v764
      %v7161 = vpop.permute.xlu0 %7160
      %7163 = vset.pattern.permute.xlu0 15
      %7164 = vperm.xlu0 %7163, %v765
      %v7165 = vpop.permute.xlu0 %7164
      %7167 = vset.pattern.permute.xlu0 15
      %7168 = vperm.xlu0 %7167, %v766
      %v7169 = vpop.permute.xlu0 %7168
      %7171 = vset.pattern.permute.xlu0 15
      %7172 = vperm.xlu0 %7171, %v767
      %v7173 = vpop.permute.xlu0 %7172
      %7175 = vset.pattern.permute.xlu0 15
      %7176 = vperm.xlu0 %7175, %v768
      %v7177 = vpop.permute.xlu0 %7176
      %7179 = vset.pattern.permute.xlu0 15
      %7180 = vperm.xlu0 %7179, %v769
      %v7181 = vpop.permute.xlu0 %7180
      %7183 = vset.pattern.permute.xlu0 15
      %7184 = vperm.xlu0 %7183, %v770
      %v7185 = vpop.permute.xlu0 %7184
      %7187 = vset.pattern.permute.xlu0 15
      %7188 = vperm.xlu0 %7187, %v771
      %v7189 = vpop.permute.xlu0 %7188
      %v7191 = vsel %vm7095, %v7129, 0.0
      %v7192 = vsel %vm7096, %v7129, 0.0
      %v7193 = vsel %vm7097, %v7133, 0.0
      %v7194 = vsel %vm7098, %v7133, 0.0
      %v7195 = vsel %vm7099, %v7137, 0.0
      %v7196 = vsel %vm7100, %v7137, 0.0
      %v7197 = vsel %vm7101, %v7141, 0.0
      %v7198 = vsel %vm7102, %v7141, 0.0
      %v7199 = vsel %vm7103, %v7145, 0.0
      %v7200 = vsel %vm7104, %v7145, 0.0
      %v7201 = vsel %vm7105, %v7149, 0.0
      %v7202 = vsel %vm7106, %v7149, 0.0
      %v7203 = vsel %vm7107, %v7153, 0.0
      %v7204 = vsel %vm7108, %v7153, 0.0
      %v7205 = vsel %vm7109, %v7157, 0.0
      %v7206 = vsel %vm7110, %v7157, 0.0
      %v7207 = vsel %vm7111, %v7161, 0.0
      %v7208 = vsel %vm7112, %v7161, 0.0
      %v7209 = vsel %vm7113, %v7165, 0.0
      %v7210 = vsel %vm7114, %v7165, 0.0
      %v7211 = vsel %vm7115, %v7169, 0.0
      %v7212 = vsel %vm7116, %v7169, 0.0
      %v7213 = vsel %vm7117, %v7173, 0.0
      %v7214 = vsel %vm7118, %v7173, 0.0
      %v7215 = vsel %vm7119, %v7177, 0.0
      %v7216 = vsel %vm7120, %v7177, 0.0
      %v7217 = vsel %vm7121, %v7181, 0.0
      %v7218 = vsel %vm7122, %v7181, 0.0
      %v7219 = vsel %vm7123, %v7185, 0.0
      %v7220 = vsel %vm7124, %v7185, 0.0
      %v7221 = vsel %vm7125, %v7189, 0.0
      %v7222 = vsel %vm7126, %v7189, 0.0
      %v7223 = vadd.f32 %v7015, %v7191
      %v7224 = vadd.f32 %v7016, %v7192
      %v7225 = vadd.f32 %v7017, %v7193
      %v7226 = vadd.f32 %v7018, %v7194
      %v7227 = vadd.f32 %v7019, %v7195
      %v7228 = vadd.f32 %v7020, %v7196
      %v7229 = vadd.f32 %v7021, %v7197
      %v7230 = vadd.f32 %v7022, %v7198
      %v7231 = vadd.f32 %v7023, %v7199
      %v7232 = vadd.f32 %v7024, %v7200
      %v7233 = vadd.f32 %v7025, %v7201
      %v7234 = vadd.f32 %v7026, %v7202
      %v7235 = vadd.f32 %v7027, %v7203
      %v7236 = vadd.f32 %v7028, %v7204
      %v7237 = vadd.f32 %v7029, %v7205
      %v7238 = vadd.f32 %v7030, %v7206
      %v7239 = vadd.f32 %v7031, %v7207
      %v7240 = vadd.f32 %v7032, %v7208
      %v7241 = vadd.f32 %v7033, %v7209
      %v7242 = vadd.f32 %v7034, %v7210
      %v7243 = vadd.f32 %v7035, %v7211
      %v7244 = vadd.f32 %v7036, %v7212
      %v7245 = vadd.f32 %v7037, %v7213
      %v7246 = vadd.f32 %v7038, %v7214
      %v7247 = vadd.f32 %v7039, %v7215
      %v7248 = vadd.f32 %v7040, %v7216
      %v7249 = vadd.f32 %v7041, %v7217
      %v7250 = vadd.f32 %v7042, %v7218
      %v7251 = vadd.f32 %v7043, %v7219
      %v7252 = vadd.f32 %v7044, %v7220
      %v7253 = vadd.f32 %v7045, %v7221
      %v7254 = vadd.f32 %v7046, %v7222
      %7255 = vset.pattern.permute.xlu0 15
      %7256 = vperm.xlu0 %7255, %v532
      %v7257 = vpop.permute.xlu0 %7256
      %7258 = vset.pattern.permute.xlu0 15
      %7259 = vperm.xlu0 %7258, %v533
      %v7260 = vpop.permute.xlu0 %7259
      %7261 = vset.pattern.permute.xlu0 15
      %7262 = vperm.xlu0 %7261, %v534
      %v7263 = vpop.permute.xlu0 %7262
      %7264 = vset.pattern.permute.xlu0 15
      %7265 = vperm.xlu0 %7264, %v535
      %v7266 = vpop.permute.xlu0 %7265
      %7267 = vset.pattern.permute.xlu0 15
      %7268 = vperm.xlu0 %7267, %v536
      %v7269 = vpop.permute.xlu0 %7268
      %7270 = vset.pattern.permute.xlu0 15
      %7271 = vperm.xlu0 %7270, %v537
      %v7272 = vpop.permute.xlu0 %7271
      %7273 = vset.pattern.permute.xlu0 15
      %7274 = vperm.xlu0 %7273, %v538
      %v7275 = vpop.permute.xlu0 %7274
      %7276 = vset.pattern.permute.xlu0 15
      %7277 = vperm.xlu0 %7276, %v539
      %v7278 = vpop.permute.xlu0 %7277
      %7279 = vset.pattern.permute.xlu0 15
      %7280 = vperm.xlu0 %7279, %v540
      %v7281 = vpop.permute.xlu0 %7280
      %7282 = vset.pattern.permute.xlu0 15
      %7283 = vperm.xlu0 %7282, %v541
      %v7284 = vpop.permute.xlu0 %7283
      %7285 = vset.pattern.permute.xlu0 15
      %7286 = vperm.xlu0 %7285, %v542
      %v7287 = vpop.permute.xlu0 %7286
      %7288 = vset.pattern.permute.xlu0 15
      %7289 = vperm.xlu0 %7288, %v543
      %v7290 = vpop.permute.xlu0 %7289
      %7291 = vset.pattern.permute.xlu0 15
      %7292 = vperm.xlu0 %7291, %v544
      %v7293 = vpop.permute.xlu0 %7292
      %7294 = vset.pattern.permute.xlu0 15
      %7295 = vperm.xlu0 %7294, %v545
      %v7296 = vpop.permute.xlu0 %7295
      %7297 = vset.pattern.permute.xlu0 15
      %7298 = vperm.xlu0 %7297, %v546
      %v7299 = vpop.permute.xlu0 %7298
      %7300 = vset.pattern.permute.xlu0 15
      %7301 = vperm.xlu0 %7300, %v547
      %v7302 = vpop.permute.xlu0 %7301
      %vm7303 = vcmp.eq.s32.totalorder %v805, %v7257
      %vm7304 = vcmp.eq.s32.totalorder %v806, %v7257
      %vm7305 = vcmp.eq.s32.totalorder %v805, %v7260
      %vm7306 = vcmp.eq.s32.totalorder %v806, %v7260
      %vm7307 = vcmp.eq.s32.totalorder %v805, %v7263
      %vm7308 = vcmp.eq.s32.totalorder %v806, %v7263
      %vm7309 = vcmp.eq.s32.totalorder %v805, %v7266
      %vm7310 = vcmp.eq.s32.totalorder %v806, %v7266
      %vm7311 = vcmp.eq.s32.totalorder %v805, %v7269
      %vm7312 = vcmp.eq.s32.totalorder %v806, %v7269
      %vm7313 = vcmp.eq.s32.totalorder %v805, %v7272
      %vm7314 = vcmp.eq.s32.totalorder %v806, %v7272
      %vm7315 = vcmp.eq.s32.totalorder %v805, %v7275
      %vm7316 = vcmp.eq.s32.totalorder %v806, %v7275
      %vm7317 = vcmp.eq.s32.totalorder %v805, %v7278
      %vm7318 = vcmp.eq.s32.totalorder %v806, %v7278
      %vm7319 = vcmp.eq.s32.totalorder %v805, %v7281
      %vm7320 = vcmp.eq.s32.totalorder %v806, %v7281
      %vm7321 = vcmp.eq.s32.totalorder %v805, %v7284
      %vm7322 = vcmp.eq.s32.totalorder %v806, %v7284
      %vm7323 = vcmp.eq.s32.totalorder %v805, %v7287
      %vm7324 = vcmp.eq.s32.totalorder %v806, %v7287
      %vm7325 = vcmp.eq.s32.totalorder %v805, %v7290
      %vm7326 = vcmp.eq.s32.totalorder %v806, %v7290
      %vm7327 = vcmp.eq.s32.totalorder %v805, %v7293
      %vm7328 = vcmp.eq.s32.totalorder %v806, %v7293
      %vm7329 = vcmp.eq.s32.totalorder %v805, %v7296
      %vm7330 = vcmp.eq.s32.totalorder %v806, %v7296
      %vm7331 = vcmp.eq.s32.totalorder %v805, %v7299
      %vm7332 = vcmp.eq.s32.totalorder %v806, %v7299
      %vm7333 = vcmp.eq.s32.totalorder %v805, %v7302
      %vm7334 = vcmp.eq.s32.totalorder %v806, %v7302
      %7335 = vset.pattern.permute.xlu0 15
      %7336 = vperm.xlu0 %7335, %v788
      %v7337 = vpop.permute.xlu0 %7336
      %7339 = vset.pattern.permute.xlu0 15
      %7340 = vperm.xlu0 %7339, %v789
      %v7341 = vpop.permute.xlu0 %7340
      %7343 = vset.pattern.permute.xlu0 15
      %7344 = vperm.xlu0 %7343, %v790
      %v7345 = vpop.permute.xlu0 %7344
      %7347 = vset.pattern.permute.xlu0 15
      %7348 = vperm.xlu0 %7347, %v791
      %v7349 = vpop.permute.xlu0 %7348
      %7351 = vset.pattern.permute.xlu0 15
      %7352 = vperm.xlu0 %7351, %v792
      %v7353 = vpop.permute.xlu0 %7352
      %7355 = vset.pattern.permute.xlu0 15
      %7356 = vperm.xlu0 %7355, %v793
      %v7357 = vpop.permute.xlu0 %7356
      %7359 = vset.pattern.permute.xlu0 15
      %7360 = vperm.xlu0 %7359, %v794
      %v7361 = vpop.permute.xlu0 %7360
      %7363 = vset.pattern.permute.xlu0 15
      %7364 = vperm.xlu0 %7363, %v795
      %v7365 = vpop.permute.xlu0 %7364
      %7367 = vset.pattern.permute.xlu0 15
      %7368 = vperm.xlu0 %7367, %v796
      %v7369 = vpop.permute.xlu0 %7368
      %7371 = vset.pattern.permute.xlu0 15
      %7372 = vperm.xlu0 %7371, %v797
      %v7373 = vpop.permute.xlu0 %7372
      %7375 = vset.pattern.permute.xlu0 15
      %7376 = vperm.xlu0 %7375, %v798
      %v7377 = vpop.permute.xlu0 %7376
      %7379 = vset.pattern.permute.xlu0 15
      %7380 = vperm.xlu0 %7379, %v799
      %v7381 = vpop.permute.xlu0 %7380
      %7383 = vset.pattern.permute.xlu0 15
      %7384 = vperm.xlu0 %7383, %v800
      %v7385 = vpop.permute.xlu0 %7384
      %7387 = vset.pattern.permute.xlu0 15
      %7388 = vperm.xlu0 %7387, %v801
      %v7389 = vpop.permute.xlu0 %7388
      %7391 = vset.pattern.permute.xlu0 15
      %7392 = vperm.xlu0 %7391, %v802
      %v7393 = vpop.permute.xlu0 %7392
      %7395 = vset.pattern.permute.xlu0 15
      %7396 = vperm.xlu0 %7395, %v803
      %v7397 = vpop.permute.xlu0 %7396
      %v7399 = vsel %vm7303, %v7337, 0.0
      %v7400 = vsel %vm7304, %v7337, 0.0
      %v7401 = vsel %vm7305, %v7341, 0.0
      %v7402 = vsel %vm7306, %v7341, 0.0
      %v7403 = vsel %vm7307, %v7345, 0.0
      %v7404 = vsel %vm7308, %v7345, 0.0
      %v7405 = vsel %vm7309, %v7349, 0.0
      %v7406 = vsel %vm7310, %v7349, 0.0
      %v7407 = vsel %vm7311, %v7353, 0.0
      %v7408 = vsel %vm7312, %v7353, 0.0
      %v7409 = vsel %vm7313, %v7357, 0.0
      %v7410 = vsel %vm7314, %v7357, 0.0
      %v7411 = vsel %vm7315, %v7361, 0.0
      %v7412 = vsel %vm7316, %v7361, 0.0
      %v7413 = vsel %vm7317, %v7365, 0.0
      %v7414 = vsel %vm7318, %v7365, 0.0
      %v7415 = vsel %vm7319, %v7369, 0.0
      %v7416 = vsel %vm7320, %v7369, 0.0
      %v7417 = vsel %vm7321, %v7373, 0.0
      %v7418 = vsel %vm7322, %v7373, 0.0
      %v7419 = vsel %vm7323, %v7377, 0.0
      %v7420 = vsel %vm7324, %v7377, 0.0
      %v7421 = vsel %vm7325, %v7381, 0.0
      %v7422 = vsel %vm7326, %v7381, 0.0
      %v7423 = vsel %vm7327, %v7385, 0.0
      %v7424 = vsel %vm7328, %v7385, 0.0
      %v7425 = vsel %vm7329, %v7389, 0.0
      %v7426 = vsel %vm7330, %v7389, 0.0
      %v7427 = vsel %vm7331, %v7393, 0.0
      %v7428 = vsel %vm7332, %v7393, 0.0
      %v7429 = vsel %vm7333, %v7397, 0.0
      %v7430 = vsel %vm7334, %v7397, 0.0
      %v7431 = vadd.f32 %v7223, %v7399
      %v7432 = vadd.f32 %v7224, %v7400
      %v7433 = vadd.f32 %v7225, %v7401
      %v7434 = vadd.f32 %v7226, %v7402
      %v7435 = vadd.f32 %v7227, %v7403
      %v7436 = vadd.f32 %v7228, %v7404
      %v7437 = vadd.f32 %v7229, %v7405
      %v7438 = vadd.f32 %v7230, %v7406
      %v7439 = vadd.f32 %v7231, %v7407
      %v7440 = vadd.f32 %v7232, %v7408
      %v7441 = vadd.f32 %v7233, %v7409
      %v7442 = vadd.f32 %v7234, %v7410
      %v7443 = vadd.f32 %v7235, %v7411
      %v7444 = vadd.f32 %v7236, %v7412
      %v7445 = vadd.f32 %v7237, %v7413
      %v7446 = vadd.f32 %v7238, %v7414
      %v7447 = vadd.f32 %v7239, %v7415
      %v7448 = vadd.f32 %v7240, %v7416
      %v7449 = vadd.f32 %v7241, %v7417
      %v7450 = vadd.f32 %v7242, %v7418
      %v7451 = vadd.f32 %v7243, %v7419
      %v7452 = vadd.f32 %v7244, %v7420
      %v7453 = vadd.f32 %v7245, %v7421
      %v7454 = vadd.f32 %v7246, %v7422
      %v7455 = vadd.f32 %v7247, %v7423
      %v7456 = vadd.f32 %v7248, %v7424
      %v7457 = vadd.f32 %v7249, %v7425
      %v7458 = vadd.f32 %v7250, %v7426
      %v7459 = vadd.f32 %v7251, %v7427
      %v7460 = vadd.f32 %v7252, %v7428
      %v7461 = vadd.f32 %v7253, %v7429
      %v7462 = vadd.f32 %v7254, %v7430
      %v7463 = vadd.f32 %v6631, %v7431
      %v7464 = vadd.f32 %v6632, %v7432
      %v7465 = vadd.f32 %v6633, %v7433
      %v7466 = vadd.f32 %v6634, %v7434
      %v7467 = vadd.f32 %v6635, %v7435
      %v7468 = vadd.f32 %v6636, %v7436
      %v7469 = vadd.f32 %v6637, %v7437
      %v7470 = vadd.f32 %v6638, %v7438
      %v7471 = vadd.f32 %v6639, %v7439
      %v7472 = vadd.f32 %v6640, %v7440
      %v7473 = vadd.f32 %v6641, %v7441
      %v7474 = vadd.f32 %v6642, %v7442
      %v7475 = vadd.f32 %v6643, %v7443
      %v7476 = vadd.f32 %v6644, %v7444
      %v7477 = vadd.f32 %v6645, %v7445
      %v7478 = vadd.f32 %v6646, %v7446
      %v7479 = vadd.f32 %v6647, %v7447
      %v7480 = vadd.f32 %v6648, %v7448
      %v7481 = vadd.f32 %v6649, %v7449
      %v7482 = vadd.f32 %v6650, %v7450
      %v7483 = vadd.f32 %v6651, %v7451
      %v7484 = vadd.f32 %v6652, %v7452
      %v7485 = vadd.f32 %v6653, %v7453
      %v7486 = vadd.f32 %v6654, %v7454
      %v7487 = vadd.f32 %v6655, %v7455
      %v7488 = vadd.f32 %v6656, %v7456
      %v7489 = vadd.f32 %v6657, %v7457
      %v7490 = vadd.f32 %v6658, %v7458
      %v7491 = vadd.f32 %v6659, %v7459
      %v7492 = vadd.f32 %v6660, %v7460
      %v7493 = vadd.f32 %v6661, %v7461
      %v7494 = vadd.f32 %v6662, %v7462
      %v7495 = vld [vmem:[%s201] sm:$0xff]
      %v7496 = vld [vmem:[%s201 + $0x8] sm:$0xff]
      %v7497 = vld [vmem:[%s201 + $0x10] sm:$0xff]
      %v7498 = vld [vmem:[%s201 + $0x18] sm:$0xff]
      %v7499 = vld [vmem:[%s201 + $0x20] sm:$0xff]
      %v7500 = vld [vmem:[%s201 + $0x28] sm:$0xff]
      %v7501 = vld [vmem:[%s201 + $0x30] sm:$0xff]
      %v7502 = vld [vmem:[%s201 + $0x38] sm:$0xff]
      %v7503 = vld [vmem:[%s201 + $0x40] sm:$0xff]
      %v7504 = vld [vmem:[%s201 + $0x48] sm:$0xff]
      %v7505 = vld [vmem:[%s201 + $0x50] sm:$0xff]
      %v7506 = vld [vmem:[%s201 + $0x58] sm:$0xff]
      %v7507 = vld [vmem:[%s201 + $0x60] sm:$0xff]
      %v7508 = vld [vmem:[%s201 + $0x68] sm:$0xff]
      %v7509 = vld [vmem:[%s201 + $0x70] sm:$0xff]
      %v7510 = vld [vmem:[%s201 + $0x78] sm:$0xff]
      %v7511 = vld [vmem:[%s201 + $0x80] sm:$0xff]
      %v7512 = vld [vmem:[%s201 + $0x88] sm:$0xff]
      %v7513 = vld [vmem:[%s201 + $0x90] sm:$0xff]
      %v7514 = vld [vmem:[%s201 + $0x98] sm:$0xff]
      %v7515 = vld [vmem:[%s201 + $0xa0] sm:$0xff]
      %v7516 = vld [vmem:[%s201 + $0xa8] sm:$0xff]
      %v7517 = vld [vmem:[%s201 + $0xb0] sm:$0xff]
      %v7518 = vld [vmem:[%s201 + $0xb8] sm:$0xff]
      %v7519 = vld [vmem:[%s201 + $0xc0] sm:$0xff]
      %v7520 = vld [vmem:[%s201 + $0xc8] sm:$0xff]
      %v7521 = vld [vmem:[%s201 + $0xd0] sm:$0xff]
      %v7522 = vld [vmem:[%s201 + $0xd8] sm:$0xff]
      %v7523 = vld [vmem:[%s201 + $0xe0] sm:$0xff]
      %v7524 = vld [vmem:[%s201 + $0xe8] sm:$0xff]
      %v7525 = vld [vmem:[%s201 + $0xf0] sm:$0xff]
      %v7526 = vld [vmem:[%s201 + $0xf8] sm:$0xff]
      %7527 = vmatprep.subr.mxu0 0.0
      %7528 = vmatpush1.msra.mxu0 %v7495
      %7529 = vmatprep.subr.mxu0 0.0
      %7530 = vmatpush1.msra.mxu0 %v7496
      %7531 = vmatprep.subr.mxu0 0.0
      %7532 = vmatpush1.msra.mxu0 %v7497
      %7533 = vmatprep.subr.mxu0 0.0
      %7534 = vmatpush1.msra.mxu0 %v7498
      %7535 = vmatprep.subr.mxu0 0.0
      %7536 = vmatpush1.msra.mxu0 %v7499
      %7537 = vmatprep.subr.mxu0 0.0
      %7538 = vmatpush1.msra.mxu0 %v7500
      %7539 = vmatprep.subr.mxu0 0.0
      %7540 = vmatpush1.msra.mxu0 %v7501
      %7541 = vmatprep.subr.mxu0 0.0
      %7542 = vmatpush1.msra.mxu0 %v7502
      %7543 = vmatprep.subr.mxu0 0.0
      %7544 = vmatpush1.msra.mxu0 %v7503
      %7545 = vmatprep.subr.mxu0 0.0
      %7546 = vmatpush1.msra.mxu0 %v7504
      %7547 = vmatprep.subr.mxu0 0.0
      %7548 = vmatpush1.msra.mxu0 %v7505
      %7549 = vmatprep.subr.mxu0 0.0
      %7550 = vmatpush1.msra.mxu0 %v7506
      %7551 = vmatprep.subr.mxu0 0.0
      %7552 = vmatpush1.msra.mxu0 %v7507
      %7553 = vmatprep.subr.mxu0 0.0
      %7554 = vmatpush1.msra.mxu0 %v7508
      %7555 = vmatprep.subr.mxu0 0.0
      %7556 = vmatpush1.msra.mxu0 %v7509
      %7557 = vmatprep.subr.mxu0 0.0
      %7558 = vmatpush1.msra.mxu0 %v7510
      %7559 = vmatprep.subr.mxu0 0.0
      %7560 = vmatpush1.msra.mxu0 %v7511
      %7561 = vmatprep.subr.mxu0 0.0
      %7562 = vmatpush1.msra.mxu0 %v7512
      %7563 = vmatprep.subr.mxu0 0.0
      %7564 = vmatpush1.msra.mxu0 %v7513
      %7565 = vmatprep.subr.mxu0 0.0
      %7566 = vmatpush1.msra.mxu0 %v7514
      %7567 = vmatprep.subr.mxu0 0.0
      %7568 = vmatpush1.msra.mxu0 %v7515
      %7569 = vmatprep.subr.mxu0 0.0
      %7570 = vmatpush1.msra.mxu0 %v7516
      %7571 = vmatprep.subr.mxu0 0.0
      %7572 = vmatpush1.msra.mxu0 %v7517
      %7573 = vmatprep.subr.mxu0 0.0
      %7574 = vmatpush1.msra.mxu0 %v7518
      %7575 = vmatprep.subr.mxu0 0.0
      %7576 = vmatpush1.msra.mxu0 %v7519
      %7577 = vmatprep.subr.mxu0 0.0
      %7578 = vmatpush1.msra.mxu0 %v7520
      %7579 = vmatprep.subr.mxu0 0.0
      %7580 = vmatpush1.msra.mxu0 %v7521
      %7581 = vmatprep.subr.mxu0 0.0
      %7582 = vmatpush1.msra.mxu0 %v7522
      %7583 = vmatprep.subr.mxu0 0.0
      %7584 = vmatpush1.msra.mxu0 %v7523
      %7585 = vmatprep.subr.mxu0 0.0
      %7586 = vmatpush1.msra.mxu0 %v7524
      %7587 = vmatprep.subr.mxu0 0.0
      %7588 = vmatpush1.msra.mxu0 %v7525
      %7589 = vmatprep.subr.mxu0 0.0
      %7590 = vmatpush1.msra.mxu0 %v7526
      %7591 = vmatprep.mubr.f32.mxu0 %v7464
      %7592 = vmatmul.mubr.f32.gmra.mrb[0].mxu0 %v7463
      %v7593 = vpop.f32.mrb[0].mxu0
      %v7594 = vadd.f32 0.0, %v7593
      %v7595 = vpop.f32.mrb[0].mxu0
      %7596 = vmatprep.mubr.f32.mxu0 %v7466
      %7597 = vmatmul.mubr.f32.gmra.mrb[0].mxu0 %v7465
      %v7598 = vpop.f32.mrb[0].mxu0
      %v7599 = vadd.f32 0.0, %v7598
      %v7600 = vpop.f32.mrb[0].mxu0
      %7601 = vmatprep.mubr.f32.mxu0 %v7468
      %7602 = vmatmul.mubr.f32.gmra.mrb[0].mxu0 %v7467
      %v7603 = vpop.f32.mrb[0].mxu0
      %v7604 = vadd.f32 0.0, %v7603
      %v7605 = vpop.f32.mrb[0].mxu0
      %7606 = vmatprep.mubr.f32.mxu0 %v7470
      %7607 = vmatmul.mubr.f32.gmra.mrb[0].mxu0 %v7469
      %v7608 = vpop.f32.mrb[0].mxu0
      %v7609 = vadd.f32 0.0, %v7608
      %v7610 = vpop.f32.mrb[0].mxu0
      %7611 = vmatprep.mubr.f32.mxu0 %v7472
      %7612 = vmatmul.mubr.f32.gmra.mrb[0].mxu0 %v7471
      %v7613 = vpop.f32.mrb[0].mxu0
      %v7614 = vadd.f32 0.0, %v7613
      %v7615 = vpop.f32.mrb[0].mxu0
      %7616 = vmatprep.mubr.f32.mxu0 %v7474
      %7617 = vmatmul.mubr.f32.gmra.mrb[0].mxu0 %v7473
      %v7618 = vpop.f32.mrb[0].mxu0
      %v7619 = vadd.f32 0.0, %v7618
      %v7620 = vpop.f32.mrb[0].mxu0
      %7621 = vmatprep.mubr.f32.mxu0 %v7476
      %7622 = vmatmul.mubr.f32.gmra.mrb[0].mxu0 %v7475
      %v7623 = vpop.f32.mrb[0].mxu0
      %v7624 = vadd.f32 0.0, %v7623
      %v7625 = vpop.f32.mrb[0].mxu0
      %7626 = vmatprep.mubr.f32.mxu0 %v7478
      %7627 = vmatmul.mubr.f32.gmra.mrb[0].mxu0 %v7477
      %v7628 = vpop.f32.mrb[0].mxu0
      %v7629 = vadd.f32 0.0, %v7628
      %v7630 = vpop.f32.mrb[0].mxu0
      %7631 = vmatprep.mubr.f32.mxu0 %v7480
      %7632 = vmatmul.mubr.f32.gmra.mrb[0].mxu0 %v7479
      %v7633 = vpop.f32.mrb[0].mxu0
      %v7634 = vadd.f32 0.0, %v7633
      %v7635 = vpop.f32.mrb[0].mxu0
      %7636 = vmatprep.mubr.f32.mxu0 %v7482
      %7637 = vmatmul.mubr.f32.gmra.mrb[0].mxu0 %v7481
      %v7638 = vpop.f32.mrb[0].mxu0
      %v7639 = vadd.f32 0.0, %v7638
      %v7640 = vpop.f32.mrb[0].mxu0
      %7641 = vmatprep.mubr.f32.mxu0 %v7484
      %7642 = vmatmul.mubr.f32.gmra.mrb[0].mxu0 %v7483
      %v7643 = vpop.f32.mrb[0].mxu0
      %v7644 = vadd.f32 0.0, %v7643
      %v7645 = vpop.f32.mrb[0].mxu0
      %7646 = vmatprep.mubr.f32.mxu0 %v7486
      %7647 = vmatmul.mubr.f32.gmra.mrb[0].mxu0 %v7485
      %v7648 = vpop.f32.mrb[0].mxu0
      %v7649 = vadd.f32 0.0, %v7648
      %v7650 = vpop.f32.mrb[0].mxu0
      %7651 = vmatprep.mubr.f32.mxu0 %v7488
      %7652 = vmatmul.mubr.f32.gmra.mrb[0].mxu0 %v7487
      %v7653 = vpop.f32.mrb[0].mxu0
      %v7654 = vadd.f32 0.0, %v7653
      %v7655 = vpop.f32.mrb[0].mxu0
      %7656 = vmatprep.mubr.f32.mxu0 %v7490
      %7657 = vmatmul.mubr.f32.gmra.mrb[0].mxu0 %v7489
      %v7658 = vpop.f32.mrb[0].mxu0
      %v7659 = vadd.f32 0.0, %v7658
      %v7660 = vpop.f32.mrb[0].mxu0
      %7661 = vmatprep.mubr.f32.mxu0 %v7492
      %7662 = vmatmul.mubr.f32.gmra.mrb[0].mxu0 %v7491
      %v7663 = vpop.f32.mrb[0].mxu0
      %v7664 = vadd.f32 0.0, %v7663
      %v7665 = vpop.f32.mrb[0].mxu0
      %7666 = vmatprep.mubr.f32.mxu0 %v7494
      %7667 = vmatmul.mubr.f32.gmra.mrb[0].mxu0 %v7493
      %v7668 = vpop.f32.mrb[0].mxu0
      %v7669 = vadd.f32 0.0, %v7668
      %v7670 = vpop.f32.mrb[0].mxu0
      %7671 = vdwg.mxu0
      %vm7672 = vcmask 261120
      %7673 = vst.msk [vmem:[%s210] sm:$0xff] %vm7672, %v7594
      %7674 = vst.msk [vmem:[%s210 + $0x8] sm:$0xff] %vm7672, %v7599
      %7675 = vst.msk [vmem:[%s210 + $0x10] sm:$0xff] %vm7672, %v7604
      %7676 = vst.msk [vmem:[%s210 + $0x18] sm:$0xff] %vm7672, %v7609
      %7677 = vst.msk [vmem:[%s210 + $0x20] sm:$0xff] %vm7672, %v7614
      %7678 = vst.msk [vmem:[%s210 + $0x28] sm:$0xff] %vm7672, %v7619
      %7679 = vst.msk [vmem:[%s210 + $0x30] sm:$0xff] %vm7672, %v7624
      %7680 = vst.msk [vmem:[%s210 + $0x38] sm:$0xff] %vm7672, %v7629
      %7681 = vst.msk [vmem:[%s210 + $0x40] sm:$0xff] %vm7672, %v7634
      %7682 = vst.msk [vmem:[%s210 + $0x48] sm:$0xff] %vm7672, %v7639
      %7683 = vst.msk [vmem:[%s210 + $0x50] sm:$0xff] %vm7672, %v7644
      %7684 = vst.msk [vmem:[%s210 + $0x58] sm:$0xff] %vm7672, %v7649
      %7685 = vst.msk [vmem:[%s210 + $0x60] sm:$0xff] %vm7672, %v7654
      %7686 = vst.msk [vmem:[%s210 + $0x68] sm:$0xff] %vm7672, %v7659
      %7687 = vst.msk [vmem:[%s210 + $0x70] sm:$0xff] %vm7672, %v7664
      %7688 = vst.msk [vmem:[%s210 + $0x78] sm:$0xff] %vm7672, %v7669
      %s7689 = smul.u32 16, %s25
      %p7690 = scmp.lt.s32.totalorder %s7689, 31
      %s7691 = scalar_select %p7690, %s7689, 31
      %p7692 = scmp.lt.s32.totalorder %s24, 0
      %s7693 = scalar_select %p7692, %s24, 0
      %s7694 = sadd.s32 %s7693, %s7691
      %s7695 = smul.addr %s7694, 8
      %s7696 = scalar_lea.vmem %s3, %s7695
      // Predicated region
      $region29: #{tpu_custom_call.1} parent=27 // pred_check
        %p7697 = pneg %p108
      $region30: #{tpu_custom_call.1} parent=27 // pred_check_branch
        %7699 = sbr.rel (%p7697) target = $region32
      $region31: #{tpu_custom_call.1} parent=27 // pred_region
        %s7700 = smul.u32 16, %s25
      $region32: #{tpu_custom_call.1} parent=27 // pred_fallthru
        _
    $region28: #{tpu_custom_call.1} parent=5 // pred_fallthru
      _
    %p7701 = scmp.le.s32.totalorder 2, %s15
    // Predicated region
    $region33: #{tpu_custom_call.1} parent=5 // pred_check
      %p7702 = pneg %p7701
    $region34: #{tpu_custom_call.1} parent=5 // pred_check_branch
      %7704 = sbr.rel (%p7702) target = $region36
    $region35: #{tpu_custom_call.1} parent=5 // pred_region
      %s7705 = ssub.s32 %s15, 2
      // Predicated region
      $region37: #{tpu_custom_call.1} parent=35 // pred_check
        %p7706 = pneg %p114
      $region38: #{tpu_custom_call.1} parent=35 // pred_check_branch
        %7708 = sbr.rel (%p7706) target = $region40
      $region39: #{tpu_custom_call.1} parent=35 // pred_region
        %s7709 = smul.u32 16, %s27
        %p7710 = scmp.lt.s32.totalorder %s7709, 31
        %s7711 = scalar_select %p7710, %s7709, 31
        %p7712 = scmp.lt.s32.totalorder %s26, 0
        %s7713 = scalar_select %p7712, %s26, 0
        %s7714 = sadd.s32 %s7713, %s7711
        %s7715 = smul.addr %s7714, 8
        %s7716 = scalar_lea.vmem %s3, %s7715
      $region40: #{tpu_custom_call.1} parent=35 // pred_fallthru
        _
    $region36: #{tpu_custom_call.1} parent=5 // pred_fallthru
      _
  $region6: #{tpu_custom_call.1} parent=0 // loop_footer
    %s19 = sadd.s32 1, %s15
  $region7: #{tpu_custom_call.1} parent=0 // loop_footer_branch
    %14 = sbr.rel target = $region3
  $region8: #{tpu_custom_call.1} parent=0 // loop_exit
    _

</llo_original>
